<compile_context>
chip_gen: v7x
topology: tpu7x:2x2x1
jax: 0.10.0
libtpu: 0.0.40
codegen_flags: <defaults>
</compile_context>

<pallas_src>
import functools
import math

import numpy as np
import jax
import jax.numpy as jnp
from jax.experimental import pallas as pl
from jax.experimental.pallas import tpu as pltpu

BN_EPS = 1e-5


# ----------------------------------------------------------------------------
# Fused matmul + shift (+ residual) (+ ReLU) Pallas kernel — the conv hot path.
# Single full-K block per grid point: one MXU dot, f32 epilogue, no scratch.
# ----------------------------------------------------------------------------
def _conv_mm_kernel(*refs, apply_relu, has_residual):
    if has_residual:
        x_ref, w_ref, shift_ref, res_ref, o_ref = refs
    else:
        x_ref, w_ref, shift_ref, o_ref = refs
        res_ref = None

    acc = jnp.dot(x_ref[...], w_ref[...], preferred_element_type=jnp.float32)
    y = acc + shift_ref[...]
    if res_ref is not None:
        y = y + res_ref[...]
    if apply_relu:
        y = jnp.maximum(y, 0.0)
    o_ref[...] = y.astype(o_ref.dtype)


def _pick_tm(M):
    """Largest M tile <= 256 that divides M (keeps >=2 parallel blocks when M>=512)."""
    if M <= 256:
        return M
    for tm in (256, 128, 64, 32, 16, 8):
        if M % tm == 0:
            return tm
    return M  # fallback: single full-M block (block == full dim is always legal)


def fused_matmul(x, w, shift, *, apply_relu, residual=None):
    """out = maybe_relu(x @ w + shift [+ residual]); shift broadcasts over rows.

    x: (M, K) — cast to bf16 for the MXU; w: (K, N) bf16 (BN scale pre-folded);
    shift: (N,) f32; residual: optional (M, N) f32. Output f32 (M, N).
    """
    M, K = x.shape
    _, N = w.shape
    tm = _pick_tm(M)
    grid = (M // tm,)

    x_bf = x.astype(jnp.bfloat16)
    w_bf = w.astype(jnp.bfloat16)
    shift2 = shift.reshape(1, N).astype(jnp.float32)

    in_specs = [
        pl.BlockSpec((tm, K), lambda i: (i, 0)),   # patches tile (full K)
        pl.BlockSpec((K, N), lambda i: (0, 0)),    # full weight (grid-invariant)
        pl.BlockSpec((1, N), lambda i: (0, 0)),    # per-channel shift
    ]
    args = [x_bf, w_bf, shift2]
    if residual is not None:
        in_specs.append(pl.BlockSpec((tm, N), lambda i: (i, 0)))
        args.append(residual.astype(jnp.float32))

    kernel = functools.partial(_conv_mm_kernel, apply_relu=apply_relu,
                               has_residual=residual is not None)

    out = pl.pallas_call(
        kernel,
        out_shape=jax.ShapeDtypeStruct((M, N), jnp.float32),
        grid_spec=pltpu.PrefetchScalarGridSpec(
            num_scalar_prefetch=0,
            grid=grid,
            in_specs=in_specs,
            out_specs=pl.BlockSpec((tm, N), lambda i: (i, 0)),
        ),
        compiler_params=pltpu.CompilerParams(
            dimension_semantics=("parallel",)),
    )(*args)
    return out


# ----------------------------------------------------------------------------
# im2col variants (plain JAX gathers — patches ordering: tap-major, channel-minor)
# ----------------------------------------------------------------------------
def _im2col(x, kh, kw, stride, pad):
    n, h, w, c = x.shape
    oh = (h + 2 * pad - kh) // stride + 1
    ow = (w + 2 * pad - kw) // stride + 1
    xp = jnp.pad(x, ((0, 0), (pad, pad), (pad, pad), (0, 0)))
    cols = []
    for i in range(kh):
        for j in range(kw):
            cols.append(xp[:, i:i + stride * oh:stride, j:j + stride * ow:stride, :])
    patches = jnp.stack(cols, axis=3)                  # (N, OH, OW, KH*KW, C)
    return patches.reshape(n * oh * ow, kh * kw * c), n, oh, ow


def _im2col_up2_3x3(x):
    """Fused nearest-2x upsample + im2col for a 3x3 / stride 1 / pad 1 conv.

    Gathers directly from the small pre-upsample tensor, so the 4x-larger
    upsampled activation is never materialized in HBM.
    """
    n, h, w, c = x.shape
    oh, ow = 2 * h, 2 * w
    xp = jnp.pad(x, ((0, 0), (1, 1), (1, 1), (0, 0)))  # pad in original coords
    cols = []
    for ky in range(3):
        # index into padded original rows: floor((oy+ky-1)/2) + 1, in [0, h+1]
        ridx = (np.arange(oh) + ky - 1) // 2 + 1
        for kx in range(3):
            cidx = (np.arange(ow) + kx - 1) // 2 + 1
            cols.append(xp[:, ridx, :, :][:, :, cidx, :])
    patches = jnp.stack(cols, axis=3)                  # (N, OH, OW, 9, C)
    return patches.reshape(n * oh * ow, 9 * c), n, oh, ow


def conv_fused(x, p, *, stride, pad, relu, residual=None, upsample_before=False):
    """Conv2d (+ BN fold + optional residual + optional ReLU) via Pallas matmul."""
    w = p["w"]                                   # (OC, IC, KH, KW), scale folded
    oc, ic, kh, kw = w.shape
    if upsample_before:
        patches, n, oh, ow = _im2col_up2_3x3(x)
    else:
        patches, n, oh, ow = _im2col(x, kh, kw, stride, pad)
    w2 = jnp.transpose(w, (2, 3, 1, 0)).reshape(kh * kw * ic, oc)   # (K, OC)
    out = fused_matmul(patches, w2, p["shift"], apply_relu=relu, residual=residual)
    return out.reshape(n, oh, ow, oc)


# ----------------------------------------------------------------------------
# Glue ops (plain JAX): maxpool, final nearest upsample.
# ----------------------------------------------------------------------------
def maxpool_3x3_s2_p1(x):  # NHWC
    return jax.lax.reduce_window(
        x, -jnp.inf, jax.lax.max,
        window_dimensions=(1, 3, 3, 1),
        window_strides=(1, 2, 2, 1),
        padding=((0, 0), (1, 1), (1, 1), (0, 0)))


def upsample2_nearest(x):  # NHWC — only used for the trailing upsample (no conv after)
    return jnp.repeat(jnp.repeat(x, 2, axis=1), 2, axis=2)


def basic_block(x, blk, stride):
    if blk["downsample"] is not None:
        identity = conv_fused(x, blk["downsample"], stride=stride, pad=0, relu=False)
    else:
        identity = x
    out = conv_fused(x, blk["conv1"], stride=stride, pad=1, relu=True)
    n, oh, ow, oc = identity.shape
    res = identity.reshape(n * oh * ow, oc)
    # residual add + ReLU fused into conv2's epilogue
    out = conv_fused(out, blk["conv2"], stride=1, pad=1, relu=True, residual=res)
    return out


# ----------------------------------------------------------------------------
# Deterministic synthetic parameter construction (no checkpoint loading).
# BN (eval) scale is folded into the conv weight; bias/mean/beta fold into shift.
# ----------------------------------------------------------------------------
def _make_conv_bn(keys, oc, ic, kh, kw, has_bias=False, has_bn=True, sum_rgb=False):
    fan_in = (3 if sum_rgb else ic) * kh * kw
    if sum_rgb:
        # mimic: resnet.conv1.weight.sum(dim=1).unsqueeze(1)
        w3 = jax.random.normal(next(keys), (oc, 3, kh, kw), jnp.float32) / math.sqrt(fan_in)
        w = jnp.sum(w3, axis=1, keepdims=True)
    else:
        w = jax.random.normal(next(keys), (oc, ic, kh, kw), jnp.float32) / math.sqrt(fan_in)

    bias = (0.1 * jax.random.normal(next(keys), (oc,), jnp.float32)
            if has_bias else jnp.zeros((oc,), jnp.float32))

    if has_bn:
        gamma = 1.0 + 0.1 * jax.random.normal(next(keys), (oc,), jnp.float32)
        beta = 0.1 * jax.random.normal(next(keys), (oc,), jnp.float32)
        mean = 0.1 * jax.random.normal(next(keys), (oc,), jnp.float32)
        var = jax.random.uniform(next(keys), (oc,), jnp.float32, minval=0.5, maxval=1.5)
        scale = gamma / jnp.sqrt(var + BN_EPS)
        shift = scale * (bias - mean) + beta
    else:
        scale = jnp.ones((oc,), jnp.float32)
        shift = bias
    # fold BN scale into the conv weight (per output channel)
    w_folded = w * scale.reshape(-1, 1, 1, 1)
    return {"w": w_folded, "shift": shift}


def init_params(seed=0):
    keys = iter(jax.random.split(jax.random.PRNGKey(seed), 256))

    def block(in_c, out_c, downsample):
        return {
            "conv1": _make_conv_bn(keys, out_c, in_c, 3, 3),
            "conv2": _make_conv_bn(keys, out_c, out_c, 3, 3),
            "downsample": _make_conv_bn(keys, out_c, in_c, 1, 1) if downsample else None,
        }

    params = {
        # midlevel_resnet = resnet18 children [0:6]: conv1, bn1, relu, maxpool, layer1, layer2
        "conv1": _make_conv_bn(keys, 64, 1, 7, 7, sum_rgb=True),
        "layer1": [block(64, 64, False), block(64, 64, False)],
        "layer2": [block(64, 128, True), block(128, 128, False)],
        # upsample head
        "head": [
            _make_conv_bn(keys, 128, 128, 3, 3, has_bias=True),
            _make_conv_bn(keys, 64, 128, 3, 3, has_bias=True),
            _make_conv_bn(keys, 32, 64, 3, 3, has_bias=True),
            _make_conv_bn(keys, 2, 32, 3, 3, has_bias=True, has_bn=False),
        ],
    }
    return params


# ----------------------------------------------------------------------------
# Full forward pass (NCHW in, NCHW out — matches the PyTorch module).
# ----------------------------------------------------------------------------
def colorization_forward(x_nchw, params):
    x = jnp.transpose(x_nchw, (0, 2, 3, 1)).astype(jnp.float32)  # -> NHWC

    # midlevel resnet trunk
    x = conv_fused(x, params["conv1"], stride=2, pad=3, relu=True)   # conv1+bn1+relu
    x = maxpool_3x3_s2_p1(x)                                         # maxpool
    for blk in params["layer1"]:                                     # layer1
        x = basic_block(x, blk, stride=1)
    x = basic_block(x, params["layer2"][0], stride=2)                # layer2
    x = basic_block(x, params["layer2"][1], stride=1)

    # upsample head: conv -> (up+conv) -> (up+conv) -> conv -> up
    x = conv_fused(x, params["head"][0], stride=1, pad=1, relu=True)
    x = conv_fused(x, params["head"][1], stride=1, pad=1, relu=True, upsample_before=True)
    x = conv_fused(x, params["head"][2], stride=1, pad=1, relu=True, upsample_before=True)
    x = conv_fused(x, params["head"][3], stride=1, pad=1, relu=False)
    x = upsample2_nearest(x)

    return jnp.transpose(x, (0, 3, 1, 2))  # -> NCHW


if __name__ == "__main__":
    params = init_params(seed=0)

    # grayscale input (conv1 was rewritten to 1 input channel): NCHW
    x = jax.random.normal(jax.random.PRNGKey(0), (2, 1, 32, 32), jnp.float32)

    fwd = jax.jit(colorization_forward)
    out = fwd(x, params)
    out = jax.block_until_ready(out)

    assert out.shape == (2, 2, 32, 32), out.shape
    assert out.dtype == jnp.float32
    assert bool(jnp.all(jnp.isfinite(out)))
    print("KERNEL_OK")
</pallas_src>

<mosaic_0001>
module attributes {stable_mosaic.version = 11 : i64} {
  func.func @_conv_mm_kernel(%arg0: i32, %arg1: memref<256x49xbf16, #tpu.memory_space<vmem>>, %arg2: memref<49x64xbf16, #tpu.memory_space<vmem>>, %arg3: memref<1x64xf32, #tpu.memory_space<vmem>>, %arg4: memref<256x64xf32, #tpu.memory_space<vmem>>) attributes {dimension_semantics = [#tpu.dimension_semantics<parallel>], iteration_bounds = array<i64: 2>, scalar_prefetch = 0 : i64, scratch_operands = 0 : i64, tpu.core_type = #tpu.core_type<tc>, window_params = [{transform_indices = @transform_0, window_bounds = array<i64: 256, 49>}, {pipeline_mode = #tpu.pipeline_mode<synchronous>, transform_indices = @transform_1, window_bounds = array<i64: 49, 64>}, {pipeline_mode = #tpu.pipeline_mode<synchronous>, transform_indices = @transform_2, window_bounds = array<i64: 1, 64>}, {transform_indices = @transform_3, window_bounds = array<i64: 256, 64>}]} {
    %c0 = arith.constant 0 : index
    %c0_0 = arith.constant 0 : index
    %0 = vector.load %arg1[%c0, %c0_0] : memref<256x49xbf16, #tpu.memory_space<vmem>>, vector<256x49xbf16>
    %c0_1 = arith.constant 0 : index
    %c0_2 = arith.constant 0 : index
    %1 = vector.load %arg2[%c0_1, %c0_2] : memref<49x64xbf16, #tpu.memory_space<vmem>>, vector<49x64xbf16>
    %cst = arith.constant dense<0.000000e+00> : vector<256x64xf32>
    %2 = tpu.matmul %0, %1, %cst {dimension_numbers = #tpu.dot_dimension_numbers<[1], [0], [0], [1], [0, 0, 1, 1], [], []>} : vector<256x49xbf16>, vector<49x64xbf16>, vector<256x64xf32> -> vector<256x64xf32>
    %c0_3 = arith.constant 0 : index
    %c0_4 = arith.constant 0 : index
    %3 = vector.load %arg3[%c0_3, %c0_4] : memref<1x64xf32, #tpu.memory_space<vmem>>, vector<1x64xf32>
    %4 = vector.broadcast %3 : vector<1x64xf32> to vector<256x64xf32>
    %5 = arith.addf %2, %4 : vector<256x64xf32>
    %cst_5 = arith.constant 0.000000e+00 : f32
    %6 = vector.broadcast %cst_5 : f32 to vector<256x64xf32>
    %7 = arith.maximumf %5, %6 : vector<256x64xf32>
    %c0_6 = arith.constant 0 : index
    %c0_7 = arith.constant 0 : index
    %8 = vector.load %arg4[%c0_6, %c0_7] : memref<256x64xf32, #tpu.memory_space<vmem>>, vector<256x64xf32>
    tpu.vector_store %arg4[%c0_6, %c0_7], %7 {strides = array<i32>} : memref<256x64xf32, #tpu.memory_space<vmem>>, vector<256x64xf32>,
    return
  }
  func.func @transform_0(%arg0: i32) -> (i32, i32) {
    %c0_i32 = arith.constant 0 : i32
    %c0_i32_0 = arith.constant 0 : i32
    return %arg0, %c0_i32 : i32, i32
  }
  func.func @transform_1(%arg0: i32) -> (i32, i32) {
    %c0_i32 = arith.constant 0 : i32
    %c0_i32_0 = arith.constant 0 : i32
    %c0_i32_1 = arith.constant 0 : i32
    return %c0_i32, %c0_i32_0 : i32, i32
  }
  func.func @transform_2(%arg0: i32) -> (i32, i32) {
    %c0_i32 = arith.constant 0 : i32
    %c0_i32_0 = arith.constant 0 : i32
    %c0_i32_1 = arith.constant 0 : i32
    return %c0_i32, %c0_i32_0 : i32, i32
  }
  func.func @transform_3(%arg0: i32) -> (i32, i32) {
    %c0_i32 = arith.constant 0 : i32
    %c0_i32_0 = arith.constant 0 : i32
    return %arg0, %c0_i32 : i32, i32
  }
}

module attributes {stable_mosaic.version = 11 : i64} {
  func.func @_conv_mm_kernel(%arg0: i32, %arg1: memref<128x576xbf16, #tpu.memory_space<vmem>>, %arg2: memref<576x64xbf16, #tpu.memory_space<vmem>>, %arg3: memref<1x64xf32, #tpu.memory_space<vmem>>, %arg4: memref<128x64xf32, #tpu.memory_space<vmem>>) attributes {dimension_semantics = [#tpu.dimension_semantics<parallel>], iteration_bounds = array<i64: 1>, scalar_prefetch = 0 : i64, scratch_operands = 0 : i64, tpu.core_type = #tpu.core_type<tc>, window_params = [{transform_indices = @transform_0, window_bounds = array<i64: 128, 576>}, {pipeline_mode = #tpu.pipeline_mode<synchronous>, transform_indices = @transform_1, window_bounds = array<i64: 576, 64>}, {pipeline_mode = #tpu.pipeline_mode<synchronous>, transform_indices = @transform_2, window_bounds = array<i64: 1, 64>}, {transform_indices = @transform_3, window_bounds = array<i64: 128, 64>}]} {
    %c0 = arith.constant 0 : index
    %c0_0 = arith.constant 0 : index
    %0 = vector.load %arg1[%c0, %c0_0] : memref<128x576xbf16, #tpu.memory_space<vmem>>, vector<128x576xbf16>
    %c0_1 = arith.constant 0 : index
    %c0_2 = arith.constant 0 : index
    %1 = vector.load %arg2[%c0_1, %c0_2] : memref<576x64xbf16, #tpu.memory_space<vmem>>, vector<576x64xbf16>
    %cst = arith.constant dense<0.000000e+00> : vector<128x64xf32>
    %2 = tpu.matmul %0, %1, %cst {dimension_numbers = #tpu.dot_dimension_numbers<[1], [0], [0], [1], [0, 0, 1, 1], [], []>} : vector<128x576xbf16>, vector<576x64xbf16>, vector<128x64xf32> -> vector<128x64xf32>
    %c0_3 = arith.constant 0 : index
    %c0_4 = arith.constant 0 : index
    %3 = vector.load %arg3[%c0_3, %c0_4] : memref<1x64xf32, #tpu.memory_space<vmem>>, vector<1x64xf32>
    %4 = vector.broadcast %3 : vector<1x64xf32> to vector<128x64xf32>
    %5 = arith.addf %2, %4 : vector<128x64xf32>
    %cst_5 = arith.constant 0.000000e+00 : f32
    %6 = vector.broadcast %cst_5 : f32 to vector<128x64xf32>
    %7 = arith.maximumf %5, %6 : vector<128x64xf32>
    %c0_6 = arith.constant 0 : index
    %c0_7 = arith.constant 0 : index
    %8 = vector.load %arg4[%c0_6, %c0_7] : memref<128x64xf32, #tpu.memory_space<vmem>>, vector<128x64xf32>
    tpu.vector_store %arg4[%c0_6, %c0_7], %7 {strides = array<i32>} : memref<128x64xf32, #tpu.memory_space<vmem>>, vector<128x64xf32>,
    return
  }
  func.func @transform_0(%arg0: i32) -> (i32, i32) {
    %c0_i32 = arith.constant 0 : i32
    %c0_i32_0 = arith.constant 0 : i32
    return %arg0, %c0_i32 : i32, i32
  }
  func.func @transform_1(%arg0: i32) -> (i32, i32) {
    %c0_i32 = arith.constant 0 : i32
    %c0_i32_0 = arith.constant 0 : i32
    %c0_i32_1 = arith.constant 0 : i32
    return %c0_i32, %c0_i32_0 : i32, i32
  }
  func.func @transform_2(%arg0: i32) -> (i32, i32) {
    %c0_i32 = arith.constant 0 : i32
    %c0_i32_0 = arith.constant 0 : i32
    %c0_i32_1 = arith.constant 0 : i32
    return %c0_i32, %c0_i32_0 : i32, i32
  }
  func.func @transform_3(%arg0: i32) -> (i32, i32) {
    %c0_i32 = arith.constant 0 : i32
    %c0_i32_0 = arith.constant 0 : i32
    return %arg0, %c0_i32 : i32, i32
  }
}

module attributes {stable_mosaic.version = 11 : i64} {
  func.func @_conv_mm_kernel(%arg0: i32, %arg1: memref<128x576xbf16, #tpu.memory_space<vmem>>, %arg2: memref<576x64xbf16, #tpu.memory_space<vmem>>, %arg3: memref<1x64xf32, #tpu.memory_space<vmem>>, %arg4: memref<128x64xf32, #tpu.memory_space<vmem>>, %arg5: memref<128x64xf32, #tpu.memory_space<vmem>>) attributes {dimension_semantics = [#tpu.dimension_semantics<parallel>], iteration_bounds = array<i64: 1>, scalar_prefetch = 0 : i64, scratch_operands = 0 : i64, tpu.core_type = #tpu.core_type<tc>, window_params = [{transform_indices = @transform_0, window_bounds = array<i64: 128, 576>}, {pipeline_mode = #tpu.pipeline_mode<synchronous>, transform_indices = @transform_1, window_bounds = array<i64: 576, 64>}, {pipeline_mode = #tpu.pipeline_mode<synchronous>, transform_indices = @transform_2, window_bounds = array<i64: 1, 64>}, {transform_indices = @transform_3, window_bounds = array<i64: 128, 64>}, {transform_indices = @transform_4, window_bounds = array<i64: 128, 64>}]} {
    %c0 = arith.constant 0 : index
    %c0_0 = arith.constant 0 : index
    %0 = vector.load %arg1[%c0, %c0_0] : memref<128x576xbf16, #tpu.memory_space<vmem>>, vector<128x576xbf16>
    %c0_1 = arith.constant 0 : index
    %c0_2 = arith.constant 0 : index
    %1 = vector.load %arg2[%c0_1, %c0_2] : memref<576x64xbf16, #tpu.memory_space<vmem>>, vector<576x64xbf16>
    %cst = arith.constant dense<0.000000e+00> : vector<128x64xf32>
    %2 = tpu.matmul %0, %1, %cst {dimension_numbers = #tpu.dot_dimension_numbers<[1], [0], [0], [1], [0, 0, 1, 1], [], []>} : vector<128x576xbf16>, vector<576x64xbf16>, vector<128x64xf32> -> vector<128x64xf32>
    %c0_3 = arith.constant 0 : index
    %c0_4 = arith.constant 0 : index
    %3 = vector.load %arg3[%c0_3, %c0_4] : memref<1x64xf32, #tpu.memory_space<vmem>>, vector<1x64xf32>
    %4 = vector.broadcast %3 : vector<1x64xf32> to vector<128x64xf32>
    %5 = arith.addf %2, %4 : vector<128x64xf32>
    %c0_5 = arith.constant 0 : index
    %c0_6 = arith.constant 0 : index
    %6 = vector.load %arg4[%c0_5, %c0_6] : memref<128x64xf32, #tpu.memory_space<vmem>>, vector<128x64xf32>
    %7 = arith.addf %5, %6 : vector<128x64xf32>
    %cst_7 = arith.constant 0.000000e+00 : f32
    %8 = vector.broadcast %cst_7 : f32 to vector<128x64xf32>
    %9 = arith.maximumf %7, %8 : vector<128x64xf32>
    %c0_8 = arith.constant 0 : index
    %c0_9 = arith.constant 0 : index
    %10 = vector.load %arg5[%c0_8, %c0_9] : memref<128x64xf32, #tpu.memory_space<vmem>>, vector<128x64xf32>
    tpu.vector_store %arg5[%c0_8, %c0_9], %9 {strides = array<i32>} : memref<128x64xf32, #tpu.memory_space<vmem>>, vector<128x64xf32>,
    return
  }
  func.func @transform_0(%arg0: i32) -> (i32, i32) {
    %c0_i32 = arith.constant 0 : i32
    %c0_i32_0 = arith.constant 0 : i32
    return %arg0, %c0_i32 : i32, i32
  }
  func.func @transform_1(%arg0: i32) -> (i32, i32) {
    %c0_i32 = arith.constant 0 : i32
    %c0_i32_0 = arith.constant 0 : i32
    %c0_i32_1 = arith.constant 0 : i32
    return %c0_i32, %c0_i32_0 : i32, i32
  }
  func.func @transform_2(%arg0: i32) -> (i32, i32) {
    %c0_i32 = arith.constant 0 : i32
    %c0_i32_0 = arith.constant 0 : i32
    %c0_i32_1 = arith.constant 0 : i32
    return %c0_i32, %c0_i32_0 : i32, i32
  }
  func.func @transform_3(%arg0: i32) -> (i32, i32) {
    %c0_i32 = arith.constant 0 : i32
    %c0_i32_0 = arith.constant 0 : i32
    return %arg0, %c0_i32 : i32, i32
  }
  func.func @transform_4(%arg0: i32) -> (i32, i32) {
    %c0_i32 = arith.constant 0 : i32
    %c0_i32_0 = arith.constant 0 : i32
    return %arg0, %c0_i32 : i32, i32
  }
}

module attributes {stable_mosaic.version = 11 : i64} {
  func.func @_conv_mm_kernel(%arg0: i32, %arg1: memref<32x576xbf16, #tpu.memory_space<vmem>>, %arg2: memref<576x128xbf16, #tpu.memory_space<vmem>>, %arg3: memref<1x128xf32, #tpu.memory_space<vmem>>, %arg4: memref<32x128xf32, #tpu.memory_space<vmem>>) attributes {dimension_semantics = [#tpu.dimension_semantics<parallel>], iteration_bounds = array<i64: 1>, scalar_prefetch = 0 : i64, scratch_operands = 0 : i64, tpu.core_type = #tpu.core_type<tc>, window_params = [{transform_indices = @transform_0, window_bounds = array<i64: 32, 576>}, {pipeline_mode = #tpu.pipeline_mode<synchronous>, transform_indices = @transform_1, window_bounds = array<i64: 576, 128>}, {pipeline_mode = #tpu.pipeline_mode<synchronous>, transform_indices = @transform_2, window_bounds = array<i64: 1, 128>}, {transform_indices = @transform_3, window_bounds = array<i64: 32, 128>}]} {
    %c0 = arith.constant 0 : index
    %c0_0 = arith.constant 0 : index
    %0 = vector.load %arg1[%c0, %c0_0] : memref<32x576xbf16, #tpu.memory_space<vmem>>, vector<32x576xbf16>
    %c0_1 = arith.constant 0 : index
    %c0_2 = arith.constant 0 : index
    %1 = vector.load %arg2[%c0_1, %c0_2] : memref<576x128xbf16, #tpu.memory_space<vmem>>, vector<576x128xbf16>
    %cst = arith.constant dense<0.000000e+00> : vector<32x128xf32>
    %2 = tpu.matmul %0, %1, %cst {dimension_numbers = #tpu.dot_dimension_numbers<[1], [0], [0], [1], [0, 0, 1, 1], [], []>} : vector<32x576xbf16>, vector<576x128xbf16>, vector<32x128xf32> -> vector<32x128xf32>
    %c0_3 = arith.constant 0 : index
    %c0_4 = arith.constant 0 : index
    %3 = vector.load %arg3[%c0_3, %c0_4] : memref<1x128xf32, #tpu.memory_space<vmem>>, vector<1x128xf32>
    %4 = vector.broadcast %3 : vector<1x128xf32> to vector<32x128xf32>
    %5 = arith.addf %2, %4 : vector<32x128xf32>
    %cst_5 = arith.constant 0.000000e+00 : f32
    %6 = vector.broadcast %cst_5 : f32 to vector<32x128xf32>
    %7 = arith.maximumf %5, %6 : vector<32x128xf32>
    %c0_6 = arith.constant 0 : index
    %c0_7 = arith.constant 0 : index
    %8 = vector.load %arg4[%c0_6, %c0_7] : memref<32x128xf32, #tpu.memory_space<vmem>>, vector<32x128xf32>
    tpu.vector_store %arg4[%c0_6, %c0_7], %7 {strides = array<i32>} : memref<32x128xf32, #tpu.memory_space<vmem>>, vector<32x128xf32>,
    return
  }
  func.func @transform_0(%arg0: i32) -> (i32, i32) {
    %c0_i32 = arith.constant 0 : i32
    %c0_i32_0 = arith.constant 0 : i32
    return %arg0, %c0_i32 : i32, i32
  }
  func.func @transform_1(%arg0: i32) -> (i32, i32) {
    %c0_i32 = arith.constant 0 : i32
    %c0_i32_0 = arith.constant 0 : i32
    %c0_i32_1 = arith.constant 0 : i32
    return %c0_i32, %c0_i32_0 : i32, i32
  }
  func.func @transform_2(%arg0: i32) -> (i32, i32) {
    %c0_i32 = arith.constant 0 : i32
    %c0_i32_0 = arith.constant 0 : i32
    %c0_i32_1 = arith.constant 0 : i32
    return %c0_i32, %c0_i32_0 : i32, i32
  }
  func.func @transform_3(%arg0: i32) -> (i32, i32) {
    %c0_i32 = arith.constant 0 : i32
    %c0_i32_0 = arith.constant 0 : i32
    return %arg0, %c0_i32 : i32, i32
  }
}

module attributes {stable_mosaic.version = 11 : i64} {
  func.func @_conv_mm_kernel(%arg0: i32, %arg1: memref<32x1152xbf16, #tpu.memory_space<vmem>>, %arg2: memref<1152x128xbf16, #tpu.memory_space<vmem>>, %arg3: memref<1x128xf32, #tpu.memory_space<vmem>>, %arg4: memref<32x128xf32, #tpu.memory_space<vmem>>, %arg5: memref<32x128xf32, #tpu.memory_space<vmem>>) attributes {dimension_semantics = [#tpu.dimension_semantics<parallel>], iteration_bounds = array<i64: 1>, scalar_prefetch = 0 : i64, scratch_operands = 0 : i64, tpu.core_type = #tpu.core_type<tc>, window_params = [{transform_indices = @transform_0, window_bounds = array<i64: 32, 1152>}, {pipeline_mode = #tpu.pipeline_mode<synchronous>, transform_indices = @transform_1, window_bounds = array<i64: 1152, 128>}, {pipeline_mode = #tpu.pipeline_mode<synchronous>, transform_indices = @transform_2, window_bounds = array<i64: 1, 128>}, {transform_indices = @transform_3, window_bounds = array<i64: 32, 128>}, {transform_indices = @transform_4, window_bounds = array<i64: 32, 128>}]} {
    %c0 = arith.constant 0 : index
    %c0_0 = arith.constant 0 : index
    %0 = vector.load %arg1[%c0, %c0_0] : memref<32x1152xbf16, #tpu.memory_space<vmem>>, vector<32x1152xbf16>
    %c0_1 = arith.constant 0 : index
    %c0_2 = arith.constant 0 : index
    %1 = vector.load %arg2[%c0_1, %c0_2] : memref<1152x128xbf16, #tpu.memory_space<vmem>>, vector<1152x128xbf16>
    %cst = arith.constant dense<0.000000e+00> : vector<32x128xf32>
    %2 = tpu.matmul %0, %1, %cst {dimension_numbers = #tpu.dot_dimension_numbers<[1], [0], [0], [1], [0, 0, 1, 1], [], []>} : vector<32x1152xbf16>, vector<1152x128xbf16>, vector<32x128xf32> -> vector<32x128xf32>
    %c0_3 = arith.constant 0 : index
    %c0_4 = arith.constant 0 : index
    %3 = vector.load %arg3[%c0_3, %c0_4] : memref<1x128xf32, #tpu.memory_space<vmem>>, vector<1x128xf32>
    %4 = vector.broadcast %3 : vector<1x128xf32> to vector<32x128xf32>
    %5 = arith.addf %2, %4 : vector<32x128xf32>
    %c0_5 = arith.constant 0 : index
    %c0_6 = arith.constant 0 : index
    %6 = vector.load %arg4[%c0_5, %c0_6] : memref<32x128xf32, #tpu.memory_space<vmem>>, vector<32x128xf32>
    %7 = arith.addf %5, %6 : vector<32x128xf32>
    %cst_7 = arith.constant 0.000000e+00 : f32
    %8 = vector.broadcast %cst_7 : f32 to vector<32x128xf32>
    %9 = arith.maximumf %7, %8 : vector<32x128xf32>
    %c0_8 = arith.constant 0 : index
    %c0_9 = arith.constant 0 : index
    %10 = vector.load %arg5[%c0_8, %c0_9] : memref<32x128xf32, #tpu.memory_space<vmem>>, vector<32x128xf32>
    tpu.vector_store %arg5[%c0_8, %c0_9], %9 {strides = array<i32>} : memref<32x128xf32, #tpu.memory_space<vmem>>, vector<32x128xf32>,
    return
  }
  func.func @transform_0(%arg0: i32) -> (i32, i32) {
    %c0_i32 = arith.constant 0 : i32
    %c0_i32_0 = arith.constant 0 : i32
    return %arg0, %c0_i32 : i32, i32
  }
  func.func @transform_1(%arg0: i32) -> (i32, i32) {
    %c0_i32 = arith.constant 0 : i32
    %c0_i32_0 = arith.constant 0 : i32
    %c0_i32_1 = arith.constant 0 : i32
    return %c0_i32, %c0_i32_0 : i32, i32
  }
  func.func @transform_2(%arg0: i32) -> (i32, i32) {
    %c0_i32 = arith.constant 0 : i32
    %c0_i32_0 = arith.constant 0 : i32
    %c0_i32_1 = arith.constant 0 : i32
    return %c0_i32, %c0_i32_0 : i32, i32
  }
  func.func @transform_3(%arg0: i32) -> (i32, i32) {
    %c0_i32 = arith.constant 0 : i32
    %c0_i32_0 = arith.constant 0 : i32
    return %arg0, %c0_i32 : i32, i32
  }
  func.func @transform_4(%arg0: i32) -> (i32, i32) {
    %c0_i32 = arith.constant 0 : i32
    %c0_i32_0 = arith.constant 0 : i32
    return %arg0, %c0_i32 : i32, i32
  }
}

module attributes {stable_mosaic.version = 11 : i64} {
  func.func @_conv_mm_kernel(%arg0: i32, %arg1: memref<32x64xbf16, #tpu.memory_space<vmem>>, %arg2: memref<64x128xbf16, #tpu.memory_space<vmem>>, %arg3: memref<1x128xf32, #tpu.memory_space<vmem>>, %arg4: memref<32x128xf32, #tpu.memory_space<vmem>>) attributes {dimension_semantics = [#tpu.dimension_semantics<parallel>], iteration_bounds = array<i64: 1>, scalar_prefetch = 0 : i64, scratch_operands = 0 : i64, tpu.core_type = #tpu.core_type<tc>, window_params = [{transform_indices = @transform_0, window_bounds = array<i64: 32, 64>}, {pipeline_mode = #tpu.pipeline_mode<synchronous>, transform_indices = @transform_1, window_bounds = array<i64: 64, 128>}, {pipeline_mode = #tpu.pipeline_mode<synchronous>, transform_indices = @transform_2, window_bounds = array<i64: 1, 128>}, {transform_indices = @transform_3, window_bounds = array<i64: 32, 128>}]} {
    %c0 = arith.constant 0 : index
    %c0_0 = arith.constant 0 : index
    %0 = vector.load %arg1[%c0, %c0_0] : memref<32x64xbf16, #tpu.memory_space<vmem>>, vector<32x64xbf16>
    %c0_1 = arith.constant 0 : index
    %c0_2 = arith.constant 0 : index
    %1 = vector.load %arg2[%c0_1, %c0_2] : memref<64x128xbf16, #tpu.memory_space<vmem>>, vector<64x128xbf16>
    %cst = arith.constant dense<0.000000e+00> : vector<32x128xf32>
    %2 = tpu.matmul %0, %1, %cst {dimension_numbers = #tpu.dot_dimension_numbers<[1], [0], [0], [1], [0, 0, 1, 1], [], []>} : vector<32x64xbf16>, vector<64x128xbf16>, vector<32x128xf32> -> vector<32x128xf32>
    %c0_3 = arith.constant 0 : index
    %c0_4 = arith.constant 0 : index
    %3 = vector.load %arg3[%c0_3, %c0_4] : memref<1x128xf32, #tpu.memory_space<vmem>>, vector<1x128xf32>
    %4 = vector.broadcast %3 : vector<1x128xf32> to vector<32x128xf32>
    %5 = arith.addf %2, %4 : vector<32x128xf32>
    %c0_5 = arith.constant 0 : index
    %c0_6 = arith.constant 0 : index
    %6 = vector.load %arg4[%c0_5, %c0_6] : memref<32x128xf32, #tpu.memory_space<vmem>>, vector<32x128xf32>
    tpu.vector_store %arg4[%c0_5, %c0_6], %5 {strides = array<i32>} : memref<32x128xf32, #tpu.memory_space<vmem>>, vector<32x128xf32>,
    return
  }
  func.func @transform_0(%arg0: i32) -> (i32, i32) {
    %c0_i32 = arith.constant 0 : i32
    %c0_i32_0 = arith.constant 0 : i32
    return %arg0, %c0_i32 : i32, i32
  }
  func.func @transform_1(%arg0: i32) -> (i32, i32) {
    %c0_i32 = arith.constant 0 : i32
    %c0_i32_0 = arith.constant 0 : i32
    %c0_i32_1 = arith.constant 0 : i32
    return %c0_i32, %c0_i32_0 : i32, i32
  }
  func.func @transform_2(%arg0: i32) -> (i32, i32) {
    %c0_i32 = arith.constant 0 : i32
    %c0_i32_0 = arith.constant 0 : i32
    %c0_i32_1 = arith.constant 0 : i32
    return %c0_i32, %c0_i32_0 : i32, i32
  }
  func.func @transform_3(%arg0: i32) -> (i32, i32) {
    %c0_i32 = arith.constant 0 : i32
    %c0_i32_0 = arith.constant 0 : i32
    return %arg0, %c0_i32 : i32, i32
  }
}

module attributes {stable_mosaic.version = 11 : i64} {
  func.func @_conv_mm_kernel(%arg0: i32, %arg1: memref<32x1152xbf16, #tpu.memory_space<vmem>>, %arg2: memref<1152x128xbf16, #tpu.memory_space<vmem>>, %arg3: memref<1x128xf32, #tpu.memory_space<vmem>>, %arg4: memref<32x128xf32, #tpu.memory_space<vmem>>) attributes {dimension_semantics = [#tpu.dimension_semantics<parallel>], iteration_bounds = array<i64: 1>, scalar_prefetch = 0 : i64, scratch_operands = 0 : i64, tpu.core_type = #tpu.core_type<tc>, window_params = [{transform_indices = @transform_0, window_bounds = array<i64: 32, 1152>}, {pipeline_mode = #tpu.pipeline_mode<synchronous>, transform_indices = @transform_1, window_bounds = array<i64: 1152, 128>}, {pipeline_mode = #tpu.pipeline_mode<synchronous>, transform_indices = @transform_2, window_bounds = array<i64: 1, 128>}, {transform_indices = @transform_3, window_bounds = array<i64: 32, 128>}]} {
    %c0 = arith.constant 0 : index
    %c0_0 = arith.constant 0 : index
    %0 = vector.load %arg1[%c0, %c0_0] : memref<32x1152xbf16, #tpu.memory_space<vmem>>, vector<32x1152xbf16>
    %c0_1 = arith.constant 0 : index
    %c0_2 = arith.constant 0 : index
    %1 = vector.load %arg2[%c0_1, %c0_2] : memref<1152x128xbf16, #tpu.memory_space<vmem>>, vector<1152x128xbf16>
    %cst = arith.constant dense<0.000000e+00> : vector<32x128xf32>
    %2 = tpu.matmul %0, %1, %cst {dimension_numbers = #tpu.dot_dimension_numbers<[1], [0], [0], [1], [0, 0, 1, 1], [], []>} : vector<32x1152xbf16>, vector<1152x128xbf16>, vector<32x128xf32> -> vector<32x128xf32>
    %c0_3 = arith.constant 0 : index
    %c0_4 = arith.constant 0 : index
    %3 = vector.load %arg3[%c0_3, %c0_4] : memref<1x128xf32, #tpu.memory_space<vmem>>, vector<1x128xf32>
    %4 = vector.broadcast %3 : vector<1x128xf32> to vector<32x128xf32>
    %5 = arith.addf %2, %4 : vector<32x128xf32>
    %cst_5 = arith.constant 0.000000e+00 : f32
    %6 = vector.broadcast %cst_5 : f32 to vector<32x128xf32>
    %7 = arith.maximumf %5, %6 : vector<32x128xf32>
    %c0_6 = arith.constant 0 : index
    %c0_7 = arith.constant 0 : index
    %8 = vector.load %arg4[%c0_6, %c0_7] : memref<32x128xf32, #tpu.memory_space<vmem>>, vector<32x128xf32>
    tpu.vector_store %arg4[%c0_6, %c0_7], %7 {strides = array<i32>} : memref<32x128xf32, #tpu.memory_space<vmem>>, vector<32x128xf32>,
    return
  }
  func.func @transform_0(%arg0: i32) -> (i32, i32) {
    %c0_i32 = arith.constant 0 : i32
    %c0_i32_0 = arith.constant 0 : i32
    return %arg0, %c0_i32 : i32, i32
  }
  func.func @transform_1(%arg0: i32) -> (i32, i32) {
    %c0_i32 = arith.constant 0 : i32
    %c0_i32_0 = arith.constant 0 : i32
    %c0_i32_1 = arith.constant 0 : i32
    return %c0_i32, %c0_i32_0 : i32, i32
  }
  func.func @transform_2(%arg0: i32) -> (i32, i32) {
    %c0_i32 = arith.constant 0 : i32
    %c0_i32_0 = arith.constant 0 : i32
    %c0_i32_1 = arith.constant 0 : i32
    return %c0_i32, %c0_i32_0 : i32, i32
  }
  func.func @transform_3(%arg0: i32) -> (i32, i32) {
    %c0_i32 = arith.constant 0 : i32
    %c0_i32_0 = arith.constant 0 : i32
    return %arg0, %c0_i32 : i32, i32
  }
}

module attributes {stable_mosaic.version = 11 : i64} {
  func.func @_conv_mm_kernel(%arg0: i32, %arg1: memref<128x1152xbf16, #tpu.memory_space<vmem>>, %arg2: memref<1152x64xbf16, #tpu.memory_space<vmem>>, %arg3: memref<1x64xf32, #tpu.memory_space<vmem>>, %arg4: memref<128x64xf32, #tpu.memory_space<vmem>>) attributes {dimension_semantics = [#tpu.dimension_semantics<parallel>], iteration_bounds = array<i64: 1>, scalar_prefetch = 0 : i64, scratch_operands = 0 : i64, tpu.core_type = #tpu.core_type<tc>, window_params = [{transform_indices = @transform_0, window_bounds = array<i64: 128, 1152>}, {pipeline_mode = #tpu.pipeline_mode<synchronous>, transform_indices = @transform_1, window_bounds = array<i64: 1152, 64>}, {pipeline_mode = #tpu.pipeline_mode<synchronous>, transform_indices = @transform_2, window_bounds = array<i64: 1, 64>}, {transform_indices = @transform_3, window_bounds = array<i64: 128, 64>}]} {
    %c0 = arith.constant 0 : index
    %c0_0 = arith.constant 0 : index
    %0 = vector.load %arg1[%c0, %c0_0] : memref<128x1152xbf16, #tpu.memory_space<vmem>>, vector<128x1152xbf16>
    %c0_1 = arith.constant 0 : index
    %c0_2 = arith.constant 0 : index
    %1 = vector.load %arg2[%c0_1, %c0_2] : memref<1152x64xbf16, #tpu.memory_space<vmem>>, vector<1152x64xbf16>
    %cst = arith.constant dense<0.000000e+00> : vector<128x64xf32>
    %2 = tpu.matmul %0, %1, %cst {dimension_numbers = #tpu.dot_dimension_numbers<[1], [0], [0], [1], [0, 0, 1, 1], [], []>} : vector<128x1152xbf16>, vector<1152x64xbf16>, vector<128x64xf32> -> vector<128x64xf32>
    %c0_3 = arith.constant 0 : index
    %c0_4 = arith.constant 0 : index
    %3 = vector.load %arg3[%c0_3, %c0_4] : memref<1x64xf32, #tpu.memory_space<vmem>>, vector<1x64xf32>
    %4 = vector.broadcast %3 : vector<1x64xf32> to vector<128x64xf32>
    %5 = arith.addf %2, %4 : vector<128x64xf32>
    %cst_5 = arith.constant 0.000000e+00 : f32
    %6 = vector.broadcast %cst_5 : f32 to vector<128x64xf32>
    %7 = arith.maximumf %5, %6 : vector<128x64xf32>
    %c0_6 = arith.constant 0 : index
    %c0_7 = arith.constant 0 : index
    %8 = vector.load %arg4[%c0_6, %c0_7] : memref<128x64xf32, #tpu.memory_space<vmem>>, vector<128x64xf32>
    tpu.vector_store %arg4[%c0_6, %c0_7], %7 {strides = array<i32>} : memref<128x64xf32, #tpu.memory_space<vmem>>, vector<128x64xf32>,
    return
  }
  func.func @transform_0(%arg0: i32) -> (i32, i32) {
    %c0_i32 = arith.constant 0 : i32
    %c0_i32_0 = arith.constant 0 : i32
    return %arg0, %c0_i32 : i32, i32
  }
  func.func @transform_1(%arg0: i32) -> (i32, i32) {
    %c0_i32 = arith.constant 0 : i32
    %c0_i32_0 = arith.constant 0 : i32
    %c0_i32_1 = arith.constant 0 : i32
    return %c0_i32, %c0_i32_0 : i32, i32
  }
  func.func @transform_2(%arg0: i32) -> (i32, i32) {
    %c0_i32 = arith.constant 0 : i32
    %c0_i32_0 = arith.constant 0 : i32
    %c0_i32_1 = arith.constant 0 : i32
    return %c0_i32, %c0_i32_0 : i32, i32
  }
  func.func @transform_3(%arg0: i32) -> (i32, i32) {
    %c0_i32 = arith.constant 0 : i32
    %c0_i32_0 = arith.constant 0 : i32
    return %arg0, %c0_i32 : i32, i32
  }
}

module attributes {stable_mosaic.version = 11 : i64} {
  func.func @_conv_mm_kernel(%arg0: i32, %arg1: memref<256x576xbf16, #tpu.memory_space<vmem>>, %arg2: memref<576x32xbf16, #tpu.memory_space<vmem>>, %arg3: memref<1x32xf32, #tpu.memory_space<vmem>>, %arg4: memref<256x32xf32, #tpu.memory_space<vmem>>) attributes {dimension_semantics = [#tpu.dimension_semantics<parallel>], iteration_bounds = array<i64: 2>, scalar_prefetch = 0 : i64, scratch_operands = 0 : i64, tpu.core_type = #tpu.core_type<tc>, window_params = [{transform_indices = @transform_0, window_bounds = array<i64: 256, 576>}, {pipeline_mode = #tpu.pipeline_mode<synchronous>, transform_indices = @transform_1, window_bounds = array<i64: 576, 32>}, {pipeline_mode = #tpu.pipeline_mode<synchronous>, transform_indices = @transform_2, window_bounds = array<i64: 1, 32>}, {transform_indices = @transform_3, window_bounds = array<i64: 256, 32>}]} {
    %c0 = arith.constant 0 : index
    %c0_0 = arith.constant 0 : index
    %0 = vector.load %arg1[%c0, %c0_0] : memref<256x576xbf16, #tpu.memory_space<vmem>>, vector<256x576xbf16>
    %c0_1 = arith.constant 0 : index
    %c0_2 = arith.constant 0 : index
    %1 = vector.load %arg2[%c0_1, %c0_2] : memref<576x32xbf16, #tpu.memory_space<vmem>>, vector<576x32xbf16>
    %cst = arith.constant dense<0.000000e+00> : vector<256x32xf32>
    %2 = tpu.matmul %0, %1, %cst {dimension_numbers = #tpu.dot_dimension_numbers<[1], [0], [0], [1], [0, 0, 1, 1], [], []>} : vector<256x576xbf16>, vector<576x32xbf16>, vector<256x32xf32> -> vector<256x32xf32>
    %c0_3 = arith.constant 0 : index
    %c0_4 = arith.constant 0 : index
    %3 = vector.load %arg3[%c0_3, %c0_4] : memref<1x32xf32, #tpu.memory_space<vmem>>, vector<1x32xf32>
    %4 = vector.broadcast %3 : vector<1x32xf32> to vector<256x32xf32>
    %5 = arith.addf %2, %4 : vector<256x32xf32>
    %cst_5 = arith.constant 0.000000e+00 : f32
    %6 = vector.broadcast %cst_5 : f32 to vector<256x32xf32>
    %7 = arith.maximumf %5, %6 : vector<256x32xf32>
    %c0_6 = arith.constant 0 : index
    %c0_7 = arith.constant 0 : index
    %8 = vector.load %arg4[%c0_6, %c0_7] : memref<256x32xf32, #tpu.memory_space<vmem>>, vector<256x32xf32>
    tpu.vector_store %arg4[%c0_6, %c0_7], %7 {strides = array<i32>} : memref<256x32xf32, #tpu.memory_space<vmem>>, vector<256x32xf32>,
    return
  }
  func.func @transform_0(%arg0: i32) -> (i32, i32) {
    %c0_i32 = arith.constant 0 : i32
    %c0_i32_0 = arith.constant 0 : i32
    return %arg0, %c0_i32 : i32, i32
  }
  func.func @transform_1(%arg0: i32) -> (i32, i32) {
    %c0_i32 = arith.constant 0 : i32
    %c0_i32_0 = arith.constant 0 : i32
    %c0_i32_1 = arith.constant 0 : i32
    return %c0_i32, %c0_i32_0 : i32, i32
  }
  func.func @transform_2(%arg0: i32) -> (i32, i32) {
    %c0_i32 = arith.constant 0 : i32
    %c0_i32_0 = arith.constant 0 : i32
    %c0_i32_1 = arith.constant 0 : i32
    return %c0_i32, %c0_i32_0 : i32, i32
  }
  func.func @transform_3(%arg0: i32) -> (i32, i32) {
    %c0_i32 = arith.constant 0 : i32
    %c0_i32_0 = arith.constant 0 : i32
    return %arg0, %c0_i32 : i32, i32
  }
}

module attributes {stable_mosaic.version = 11 : i64} {
  func.func @_conv_mm_kernel(%arg0: i32, %arg1: memref<256x288xbf16, #tpu.memory_space<vmem>>, %arg2: memref<288x2xbf16, #tpu.memory_space<vmem>>, %arg3: memref<1x2xf32, #tpu.memory_space<vmem>>, %arg4: memref<256x2xf32, #tpu.memory_space<vmem>>) attributes {dimension_semantics = [#tpu.dimension_semantics<parallel>], iteration_bounds = array<i64: 2>, scalar_prefetch = 0 : i64, scratch_operands = 0 : i64, tpu.core_type = #tpu.core_type<tc>, window_params = [{transform_indices = @transform_0, window_bounds = array<i64: 256, 288>}, {pipeline_mode = #tpu.pipeline_mode<synchronous>, transform_indices = @transform_1, window_bounds = array<i64: 288, 2>}, {pipeline_mode = #tpu.pipeline_mode<synchronous>, transform_indices = @transform_2, window_bounds = array<i64: 1, 2>}, {transform_indices = @transform_3, window_bounds = array<i64: 256, 2>}]} {
    %c0 = arith.constant 0 : index
    %c0_0 = arith.constant 0 : index
    %0 = vector.load %arg1[%c0, %c0_0] : memref<256x288xbf16, #tpu.memory_space<vmem>>, vector<256x288xbf16>
    %c0_1 = arith.constant 0 : index
    %c0_2 = arith.constant 0 : index
    %1 = vector.load %arg2[%c0_1, %c0_2] : memref<288x2xbf16, #tpu.memory_space<vmem>>, vector<288x2xbf16>
    %cst = arith.constant dense<0.000000e+00> : vector<256x2xf32>
    %2 = tpu.matmul %0, %1, %cst {dimension_numbers = #tpu.dot_dimension_numbers<[1], [0], [0], [1], [0, 0, 1, 1], [], []>} : vector<256x288xbf16>, vector<288x2xbf16>, vector<256x2xf32> -> vector<256x2xf32>
    %c0_3 = arith.constant 0 : index
    %c0_4 = arith.constant 0 : index
    %3 = vector.load %arg3[%c0_3, %c0_4] : memref<1x2xf32, #tpu.memory_space<vmem>>, vector<1x2xf32>
    %4 = vector.broadcast %3 : vector<1x2xf32> to vector<256x2xf32>
    %5 = arith.addf %2, %4 : vector<256x2xf32>
    %c0_5 = arith.constant 0 : index
    %c0_6 = arith.constant 0 : index
    %6 = vector.load %arg4[%c0_5, %c0_6] : memref<256x2xf32, #tpu.memory_space<vmem>>, vector<256x2xf32>
    tpu.vector_store %arg4[%c0_5, %c0_6], %5 {strides = array<i32>} : memref<256x2xf32, #tpu.memory_space<vmem>>, vector<256x2xf32>,
    return
  }
  func.func @transform_0(%arg0: i32) -> (i32, i32) {
    %c0_i32 = arith.constant 0 : i32
    %c0_i32_0 = arith.constant 0 : i32
    return %arg0, %c0_i32 : i32, i32
  }
  func.func @transform_1(%arg0: i32) -> (i32, i32) {
    %c0_i32 = arith.constant 0 : i32
    %c0_i32_0 = arith.constant 0 : i32
    %c0_i32_1 = arith.constant 0 : i32
    return %c0_i32, %c0_i32_0 : i32, i32
  }
  func.func @transform_2(%arg0: i32) -> (i32, i32) {
    %c0_i32 = arith.constant 0 : i32
    %c0_i32_0 = arith.constant 0 : i32
    %c0_i32_1 = arith.constant 0 : i32
    return %c0_i32, %c0_i32_0 : i32, i32
  }
  func.func @transform_3(%arg0: i32) -> (i32, i32) {
    %c0_i32 = arith.constant 0 : i32
    %c0_i32_0 = arith.constant 0 : i32
    return %arg0, %c0_i32 : i32, i32
  }
}

</mosaic_0001>

<llo_original>
// kernel: colorization_forward.14
$region0: #{colorization_forward.14}
  #allocation0 [shape = 'u32[]', space=smem, size = 0x4, offset = 0x4, fixed_abs, tag = 'smem constant byte address 0x4 - core index']
  #allocation1 [shape = 'u32[144,128]{1,0:T(1,128)}', space=vmem, size = 0x12000, scoped, tag = 'internal scratch']
  %s0 = inlined_call_operand.vmem [shape: bf16[512,49], index: 0, kind: input, shape index: {}]
  %s1 = inlined_call_operand.vmem [shape: bf16[49,64], index: 1, kind: input, shape index: {}]
  %s2 = inlined_call_operand.vmem [shape: f32[1,64], index: 2, kind: input, shape index: {}]
  %s3 = inlined_call_operand.vmem [shape: f32[512,64], index: 3, kind: output, shape index: {}]
  %s4 = sld [smem:[#allocation0]]
  $region45: #{colorization_forward.14} parent=0
    _
  %s6 = ssub.s32 1, %s4
  %s7 = scalar_select 0, %s6, %s4
  loop: start=0, step=1, limit=4
  $region2: #{colorization_forward.14} parent=0 // loop_pre_header
    _
  $region3: #{colorization_forward.14} parent=0 // loop_header
    %s9 = sphi 0, %s13
    %p10 = scmp.ge.s32.totalorder %s9, 4
    %s19 = sphi 0, %s21
    %s22 = sphi 0, %s19
    %s23 = sphi 0, %s22
    %s39 = sphi 0, %s23
    %s43 = sphi 0, %s43
    %s45 = sphi 0, %s43
    %s46 = sphi 0, %s45
    %s60 = sphi 0, %s46
    %s64 = sphi 0, %s64
    %s66 = sphi 0, %s64
    %s67 = sphi 0, %s66
    %s81 = sphi 0, %s67
    %s87 = sphi 0, %s89
    %s90 = sphi 0, %s87
    %s91 = sphi 0, %s90
    %s107 = sphi 0, %s91
  $region4: #{colorization_forward.14} parent=0 // loop_header_branch
    %12 = sbr.rel (%p10) target = $region8
  $region5: #{colorization_forward.14} parent=0 // loop_body
    %s14 = ssub.s32 %s9, 1
    %s15 = ssub.s32 %s9, 2
    %s16 = sadd.s32 %s9, 1
    %s17 = ssub.s32 %s9, %s16
    %p18 = scmp.eq.s32.totalorder %s17, 0
    %s20 = sadd.s32 %s19, 1
    %s21 = scalar_select %p18, %s19, %s20
    %p24 = pneg %p18
    %p25 = scmp.eq.s32.totalorder %s9, 1
    %p26 = por %p24, %p25
    %p27 = scmp.ne.s32.totalorder %s19, %s22
    %p28 = scmp.eq.s32.totalorder %s9, 0
    %p29 = por %p27, %p28
    %p30 = scmp.ne.s32.totalorder %s19, %s22
    %p31 = scmp.eq.s32.totalorder %s14, 1
    %p32 = por %p30, %p31
    %p33 = scmp.ne.s32.totalorder %s22, %s23
    %p34 = scmp.eq.s32.totalorder %s14, 0
    %p35 = por %p33, %p34
    %p36 = scmp.ne.s32.totalorder %s22, %s23
    %p37 = scmp.eq.s32.totalorder %s15, 1
    %p38 = por %p36, %p37
    %p40 = scmp.ne.s32.totalorder %s23, %s39
    %p41 = scmp.eq.s32.totalorder %s15, 0
    %p42 = por %p40, %p41
    %s44 = sadd.s32 %s43, 1
    %p47 = scmp.eq.s32.totalorder %s9, 1
    %p48 = scmp.ne.s32.totalorder %s43, %s45
    %p49 = scmp.eq.s32.totalorder %s9, 0
    %p50 = por %p48, %p49
    %p51 = scmp.ne.s32.totalorder %s43, %s45
    %p52 = scmp.eq.s32.totalorder %s14, 1
    %p53 = por %p51, %p52
    %p54 = scmp.ne.s32.totalorder %s45, %s46
    %p55 = scmp.eq.s32.totalorder %s14, 0
    %p56 = por %p54, %p55
    %p57 = scmp.ne.s32.totalorder %s45, %s46
    %p58 = scmp.eq.s32.totalorder %s15, 1
    %p59 = por %p57, %p58
    %p61 = scmp.ne.s32.totalorder %s46, %s60
    %p62 = scmp.eq.s32.totalorder %s15, 0
    %p63 = por %p61, %p62
    %s65 = sadd.s32 %s64, 1
    %p68 = scmp.eq.s32.totalorder %s9, 1
    %p69 = scmp.ne.s32.totalorder %s64, %s66
    %p70 = scmp.eq.s32.totalorder %s9, 0
    %p71 = por %p69, %p70
    %p72 = scmp.ne.s32.totalorder %s64, %s66
    %p73 = scmp.eq.s32.totalorder %s14, 1
    %p74 = por %p72, %p73
    %p75 = scmp.ne.s32.totalorder %s66, %s67
    %p76 = scmp.eq.s32.totalorder %s14, 0
    %p77 = por %p75, %p76
    %p78 = scmp.ne.s32.totalorder %s66, %s67
    %p79 = scmp.eq.s32.totalorder %s15, 1
    %p80 = por %p78, %p79
    %p82 = scmp.ne.s32.totalorder %s67, %s81
    %p83 = scmp.eq.s32.totalorder %s15, 0
    %p84 = por %p82, %p83
    %s85 = ssub.s32 %s9, %s16
    %p86 = scmp.eq.s32.totalorder %s85, 0
    %s88 = sadd.s32 %s87, 1
    %s89 = scalar_select %p86, %s87, %s88
    %p92 = pneg %p86
    %p93 = scmp.eq.s32.totalorder %s9, 1
    %p94 = por %p92, %p93
    %p95 = scmp.ne.s32.totalorder %s87, %s90
    %p96 = scmp.eq.s32.totalorder %s9, 0
    %p97 = por %p95, %p96
    %p98 = scmp.ne.s32.totalorder %s87, %s90
    %p99 = scmp.eq.s32.totalorder %s14, 1
    %p100 = por %p98, %p99
    %p101 = scmp.ne.s32.totalorder %s90, %s91
    %p102 = scmp.eq.s32.totalorder %s14, 0
    %p103 = por %p101, %p102
    %p104 = scmp.ne.s32.totalorder %s90, %s91
    %p105 = scmp.eq.s32.totalorder %s15, 1
    %p106 = por %p104, %p105
    %p108 = scmp.ne.s32.totalorder %s91, %s107
    %p109 = scmp.eq.s32.totalorder %s15, 0
    %p110 = por %p108, %p109
    %p111 = scmp.le.s32.totalorder 1, %s9
    %p112 = scmp.lt.s32.totalorder %s9, 3
    %p113 = pnand %p111, %p112
    %p114 = pneg %p113
    // Predicated region
    $region9: #{colorization_forward.14} parent=5 // pred_check
      _
    $region10: #{colorization_forward.14} parent=5 // pred_check_branch
      %116 = sbr.rel (%p113) target = $region12
    $region11: #{colorization_forward.14} parent=5 // pred_region
      %s117 = ssub.s32 %s9, 1
      // Predicated region
      $region13: #{colorization_forward.14} parent=11 // pred_check
        %p118 = pneg %p56
      $region14: #{colorization_forward.14} parent=11 // pred_check_branch
        %120 = sbr.rel (%p118) target = $region16
      $region15: #{colorization_forward.14} parent=11 // pred_region
        _
      $region16: #{colorization_forward.14} parent=11 // pred_fallthru
        _
      // Predicated region
      $region17: #{colorization_forward.14} parent=11 // pred_check
        %p121 = pneg %p77
      $region18: #{colorization_forward.14} parent=11 // pred_check_branch
        %123 = sbr.rel (%p121) target = $region20
      $region19: #{colorization_forward.14} parent=11 // pred_region
        _
      $region20: #{colorization_forward.14} parent=11 // pred_fallthru
        _
    $region12: #{colorization_forward.14} parent=5 // pred_fallthru
      _
    %p124 = scmp.lt.s32.totalorder %s9, 2
    // Predicated region
    $region21: #{colorization_forward.14} parent=5 // pred_check
      %p125 = pneg %p124
    $region22: #{colorization_forward.14} parent=5 // pred_check_branch
      %127 = sbr.rel (%p125) target = $region24
    $region23: #{colorization_forward.14} parent=5 // pred_region
      // Predicated region
      $region25: #{colorization_forward.14} parent=23 // pred_check
        %p128 = pneg %p29
      $region26: #{colorization_forward.14} parent=23 // pred_check_branch
        %130 = sbr.rel (%p128) target = $region28
      $region27: #{colorization_forward.14} parent=23 // pred_region
        %s131 = smul.u32 32, %s9
        %p132 = scmp.lt.s32.totalorder %s131, 63
        %s133 = scalar_select %p132, %s131, 63
        %s134 = smul.addr %s133, 4
        %s135 = scalar_lea.vmem %s0, %s134
        %s136 = smul.u32 32, %s9
      $region28: #{colorization_forward.14} parent=23 // pred_fallthru
        _
    $region24: #{colorization_forward.14} parent=5 // pred_fallthru
      _
    %p137 = scmp.le.s32.totalorder 1, %s9
    %p138 = scmp.lt.s32.totalorder %s9, 3
    %p139 = pnand %p137, %p138
    %p140 = pneg %p139
    // Predicated region
    $region29: #{colorization_forward.14} parent=5 // pred_check
      _
    $region30: #{colorization_forward.14} parent=5 // pred_check_branch
      %142 = sbr.rel (%p139) target = $region32
    $region31: #{colorization_forward.14} parent=5 // pred_region
      %s143 = ssub.s32 %s9, 1
      %s144 = smul.u32 32, %s14
      %p145 = scmp.lt.s32.totalorder %s144, 63
      %s146 = scalar_select %p145, %s144, 63
      %s147 = smul.addr %s146, 4
      %s148 = scalar_lea.vmem %s0, %s147
      %p149 = pneg %p35
      %p150 = pneg %p32
      %p151 = pneg %p56
      %p152 = pneg %p53
      %p153 = pneg %p77
      %p154 = pneg %p74
      %p155 = pneg %p103
      %p156 = pneg %p100
      %s157 = smul.u32 32, %s14
      %p158 = scmp.lt.s32.totalorder %s157, 63
      %s159 = scalar_select %p158, %s157, 63
      %s160 = smul.addr %s159, 8
      %s161 = scalar_lea.vmem %s3, %s160
      %s162 = smul.u32 32, %s14
      %p163 = scmp.lt.s32.totalorder %s162, 63
      %s164 = scalar_select %p163, %s162, 63
      %s165 = smul.addr %s164, 4
      %s166 = scalar_lea.vmem %s0, %s165
      %s167 = smul.u32 32, %s14
      %s168 = smul.u32 32, %s14
      %p169 = scmp.lt.s32.totalorder %s168, 63
      %s170 = scalar_select %p169, %s168, 63
      %s171 = smul.addr %s170, 8
      %s172 = scalar_lea.vmem %s3, %s171
      %s173 = smul.u32 32, %s14
      %v175 = vld [vmem:[%s166] sm:$0xf]
      %v176 = vld [vmem:[%s166 + $0x4] sm:$0xf]
      %v177 = vld [vmem:[%s166 + $0x8] sm:$0xf]
      %v178 = vld [vmem:[%s166 + $0xc] sm:$0xf]
      %v179 = vld [vmem:[%s166 + $0x10] sm:$0xf]
      %v180 = vld [vmem:[%s166 + $0x14] sm:$0xf]
      %v181 = vld [vmem:[%s166 + $0x18] sm:$0xf]
      %v182 = vld [vmem:[%s166 + $0x1c] sm:$0xf]
      %v183 = vld [vmem:[%s166 + $0x20] sm:$0xf]
      %v184 = vld [vmem:[%s166 + $0x24] sm:$0xf]
      %v185 = vld [vmem:[%s166 + $0x28] sm:$0xf]
      %v186 = vld [vmem:[%s166 + $0x2c] sm:$0xf]
      %v187 = vld [vmem:[%s166 + $0x30] sm:$0xf]
      %v188 = vld [vmem:[%s166 + $0x34] sm:$0xf]
      %v189 = vld [vmem:[%s166 + $0x38] sm:$0xf]
      %v190 = vld [vmem:[%s166 + $0x3c] sm:$0xf]
      %v191 = vld [vmem:[%s166 + $0x40] sm:$0xf]
      %v192 = vld [vmem:[%s166 + $0x44] sm:$0xf]
      %v193 = vld [vmem:[%s166 + $0x48] sm:$0xf]
      %v194 = vld [vmem:[%s166 + $0x4c] sm:$0xf]
      %v195 = vld [vmem:[%s166 + $0x50] sm:$0xf]
      %v196 = vld [vmem:[%s166 + $0x54] sm:$0xf]
      %v197 = vld [vmem:[%s166 + $0x58] sm:$0xf]
      %v198 = vld [vmem:[%s166 + $0x5c] sm:$0xf]
      %v199 = vld [vmem:[%s166 + $0x60] sm:$0xf]
      %v200 = vld [vmem:[%s166 + $0x64] sm:$0xf]
      %v201 = vld [vmem:[%s166 + $0x68] sm:$0xf]
      %v202 = vld [vmem:[%s166 + $0x6c] sm:$0xf]
      %v203 = vld [vmem:[%s166 + $0x70] sm:$0xf]
      %v204 = vld [vmem:[%s166 + $0x74] sm:$0xf]
      %v205 = vld [vmem:[%s166 + $0x78] sm:$0xf]
      %v206 = vld [vmem:[%s166 + $0x7c] sm:$0xf]
      %v207 = vld [vmem:[%s1] sm:$0xf]
      %v208 = vld [vmem:[%s1 + $0x4] sm:$0xf]
      %v209 = vld [vmem:[%s1 + $0x8] sm:$0xf]
      %v210 = vld [vmem:[%s1 + $0xc] sm:$0xf]
      %v211 = vld [vmem:[%s1 + $0x10] sm:$0xf]
      %v212 = vld [vmem:[%s1 + $0x14] sm:$0xf]
      %v213 = vld [vmem:[%s1 + $0x18] sm:$0x1]
      %v214 = vld [vmem:[%s2] sm:$0x1]
      %v216 = vlaneseq
      %v217 = vshrl.u32 %v216, 7
      %v218 = vsub.s32 0, %v217
      %v219 = vrot.slane %v214, %v218
      %v253 = vunpack.c.l.b16 %v175
      %v254 = vunpack.c.l.b16 %v176
      %v255 = vunpack.c.l.b16 %v177
      %v256 = vunpack.c.l.b16 %v178
      %v257 = vunpack.c.l.b16 %v179
      %v258 = vunpack.c.l.b16 %v180
      %v259 = vunpack.c.l.b16 %v181
      %v260 = vunpack.c.l.b16 %v182
      %v261 = vunpack.c.l.b16 %v183
      %v262 = vunpack.c.l.b16 %v184
      %v263 = vunpack.c.l.b16 %v185
      %v264 = vunpack.c.l.b16 %v186
      %v265 = vunpack.c.l.b16 %v187
      %v266 = vunpack.c.l.b16 %v188
      %v267 = vunpack.c.l.b16 %v189
      %v268 = vunpack.c.l.b16 %v190
      %v269 = vunpack.c.l.b16 %v191
      %v270 = vunpack.c.l.b16 %v192
      %v271 = vunpack.c.l.b16 %v193
      %v272 = vunpack.c.l.b16 %v194
      %v273 = vunpack.c.l.b16 %v195
      %v274 = vunpack.c.l.b16 %v196
      %v275 = vunpack.c.l.b16 %v197
      %v276 = vunpack.c.l.b16 %v198
      %v277 = vunpack.c.l.b16 %v199
      %v278 = vunpack.c.l.b16 %v200
      %v279 = vunpack.c.l.b16 %v201
      %v280 = vunpack.c.l.b16 %v202
      %v281 = vunpack.c.l.b16 %v203
      %v282 = vunpack.c.l.b16 %v204
      %v283 = vunpack.c.l.b16 %v205
      %v284 = vunpack.c.l.b16 %v206
      %v285 = vpack.c.b16 %v254, %v253
      %v286 = vpack.c.b16 %v256, %v255
      %v287 = vpack.c.b16 %v258, %v257
      %v288 = vpack.c.b16 %v260, %v259
      %v289 = vpack.c.b16 %v262, %v261
      %v290 = vpack.c.b16 %v264, %v263
      %v291 = vpack.c.b16 %v266, %v265
      %v292 = vpack.c.b16 %v268, %v267
      %v293 = vpack.c.b16 %v270, %v269
      %v294 = vpack.c.b16 %v272, %v271
      %v295 = vpack.c.b16 %v274, %v273
      %v296 = vpack.c.b16 %v276, %v275
      %v297 = vpack.c.b16 %v278, %v277
      %v298 = vpack.c.b16 %v280, %v279
      %v299 = vpack.c.b16 %v282, %v281
      %v300 = vpack.c.b16 %v284, %v283
      %v308 = vunpack.c.l.b16 %v207
      %v309 = vunpack.c.l.b16 %v208
      %v310 = vunpack.c.l.b16 %v209
      %v311 = vunpack.c.l.b16 %v210
      %v312 = vunpack.c.l.b16 %v211
      %v313 = vunpack.c.l.b16 %v212
      %v314 = vunpack.c.l.b16 %v213
      %v315 = vpack.c.b16 %v309, %v308
      %v316 = vpack.c.b16 %v311, %v310
      %v317 = vpack.c.b16 %v313, %v312
      %v318 = vpack.c.b16 %v314, %v314
      %vm322 = vcmask 400384
      %v324 = vsel %vm322, %v285, 0
      %v327 = vsel %vm322, %v286, 0
      %v330 = vsel %vm322, %v287, 0
      %v333 = vsel %vm322, %v288, 0
      %v336 = vsel %vm322, %v289, 0
      %v339 = vsel %vm322, %v290, 0
      %v342 = vsel %vm322, %v291, 0
      %v345 = vsel %vm322, %v292, 0
      %v348 = vsel %vm322, %v293, 0
      %v351 = vsel %vm322, %v294, 0
      %v354 = vsel %vm322, %v295, 0
      %v357 = vsel %vm322, %v296, 0
      %v360 = vsel %vm322, %v297, 0
      %v363 = vsel %vm322, %v298, 0
      %v366 = vsel %vm322, %v299, 0
      %v369 = vsel %vm322, %v300, 0
      %vm371 = vcmask 1040384
      %v372 = vsel 0, 4294967295, 65535
      %v373 = vsel %vm371, %v372, 0
      %v375 = vand.u32 %v318, %v373
      %377 = vmatprep.subr.bf16.mxu0 0
      %378 = vmatpush1.bf16.msra.mxu0 %v315
      %379 = vmatprep.subr.bf16.mxu0 0
      %380 = vmatpush1.bf16.msra.mxu0 %v316
      %381 = vmatprep.subr.bf16.mxu0 0
      %382 = vmatpush1.bf16.msra.mxu0 %v317
      %383 = vmatprep.subr.bf16.mxu0 0
      %384 = vmatpush1.bf16.msra.mxu0 %v375
      %385 = vmatprep.subr.bf16.mxu0 0
      %386 = vmatpush1.bf16.msra.mxu0 0
      %387 = vmatprep.subr.bf16.mxu0 0
      %388 = vmatpush1.bf16.msra.mxu0 0
      %389 = vmatprep.subr.bf16.mxu0 0
      %390 = vmatpush1.bf16.msra.mxu0 0
      %391 = vmatprep.subr.bf16.mxu0 0
      %392 = vmatpush1.bf16.msra.mxu0 0
      %393 = vmatprep.subr.bf16.mxu0 0
      %394 = vmatpush1.bf16.msra.mxu0 0
      %395 = vmatprep.subr.bf16.mxu0 0
      %396 = vmatpush1.bf16.msra.mxu0 0
      %397 = vmatprep.subr.bf16.mxu0 0
      %398 = vmatpush1.bf16.msra.mxu0 0
      %399 = vmatprep.subr.bf16.mxu0 0
      %400 = vmatpush1.bf16.msra.mxu0 0
      %401 = vmatprep.subr.bf16.mxu0 0
      %402 = vmatpush1.bf16.msra.mxu0 0
      %403 = vmatprep.subr.bf16.mxu0 0
      %404 = vmatpush1.bf16.msra.mxu0 0
      %405 = vmatprep.subr.bf16.mxu0 0
      %406 = vmatpush1.bf16.msra.mxu0 0
      %407 = vmatprep.subr.bf16.mxu0 0
      %408 = vmatpush1.bf16.msra.mxu0 0
      %409 = vmatprep.mubr.bf16.mxu0 0
      %410 = vmatmul.mubr.bf16.gmra.mrb[0].mxu0 %v324
      %v411 = vpop.f32.mrb[0].mxu0
      %v412 = vadd.f32 %v219, %v411
      %v413 = vpop.f32.mrb[0].mxu0
      %v414 = vpop.f32.mrb[0].mxu0
      %v415 = vadd.f32 %v219, %v414
      %v416 = vpop.f32.mrb[0].mxu0
      %417 = vmatprep.mubr.bf16.mxu0 0
      %418 = vmatmul.mubr.bf16.gmra.mrb[0].mxu0 %v327
      %v419 = vpop.f32.mrb[0].mxu0
      %v420 = vadd.f32 %v219, %v419
      %v421 = vpop.f32.mrb[0].mxu0
      %v422 = vpop.f32.mrb[0].mxu0
      %v423 = vadd.f32 %v219, %v422
      %v424 = vpop.f32.mrb[0].mxu0
      %425 = vmatprep.mubr.bf16.mxu0 0
      %426 = vmatmul.mubr.bf16.gmra.mrb[0].mxu0 %v330
      %v427 = vpop.f32.mrb[0].mxu0
      %v428 = vadd.f32 %v219, %v427
      %v429 = vpop.f32.mrb[0].mxu0
      %v430 = vpop.f32.mrb[0].mxu0
      %v431 = vadd.f32 %v219, %v430
      %v432 = vpop.f32.mrb[0].mxu0
      %433 = vmatprep.mubr.bf16.mxu0 0
      %434 = vmatmul.mubr.bf16.gmra.mrb[0].mxu0 %v333
      %v435 = vpop.f32.mrb[0].mxu0
      %v436 = vadd.f32 %v219, %v435
      %v437 = vpop.f32.mrb[0].mxu0
      %v438 = vpop.f32.mrb[0].mxu0
      %v439 = vadd.f32 %v219, %v438
      %v440 = vpop.f32.mrb[0].mxu0
      %441 = vmatprep.mubr.bf16.mxu0 0
      %442 = vmatmul.mubr.bf16.gmra.mrb[0].mxu0 %v336
      %v443 = vpop.f32.mrb[0].mxu0
      %v444 = vadd.f32 %v219, %v443
      %v445 = vpop.f32.mrb[0].mxu0
      %v446 = vpop.f32.mrb[0].mxu0
      %v447 = vadd.f32 %v219, %v446
      %v448 = vpop.f32.mrb[0].mxu0
      %449 = vmatprep.mubr.bf16.mxu0 0
      %450 = vmatmul.mubr.bf16.gmra.mrb[0].mxu0 %v339
      %v451 = vpop.f32.mrb[0].mxu0
      %v452 = vadd.f32 %v219, %v451
      %v453 = vpop.f32.mrb[0].mxu0
      %v454 = vpop.f32.mrb[0].mxu0
      %v455 = vadd.f32 %v219, %v454
      %v456 = vpop.f32.mrb[0].mxu0
      %457 = vmatprep.mubr.bf16.mxu0 0
      %458 = vmatmul.mubr.bf16.gmra.mrb[0].mxu0 %v342
      %v459 = vpop.f32.mrb[0].mxu0
      %v460 = vadd.f32 %v219, %v459
      %v461 = vpop.f32.mrb[0].mxu0
      %v462 = vpop.f32.mrb[0].mxu0
      %v463 = vadd.f32 %v219, %v462
      %v464 = vpop.f32.mrb[0].mxu0
      %465 = vmatprep.mubr.bf16.mxu0 0
      %466 = vmatmul.mubr.bf16.gmra.mrb[0].mxu0 %v345
      %v467 = vpop.f32.mrb[0].mxu0
      %v468 = vadd.f32 %v219, %v467
      %v469 = vpop.f32.mrb[0].mxu0
      %v470 = vpop.f32.mrb[0].mxu0
      %v471 = vadd.f32 %v219, %v470
      %v472 = vpop.f32.mrb[0].mxu0
      %473 = vmatprep.mubr.bf16.mxu0 0
      %474 = vmatmul.mubr.bf16.gmra.mrb[0].mxu0 %v348
      %v475 = vpop.f32.mrb[0].mxu0
      %v476 = vadd.f32 %v219, %v475
      %v477 = vpop.f32.mrb[0].mxu0
      %v478 = vpop.f32.mrb[0].mxu0
      %v479 = vadd.f32 %v219, %v478
      %v480 = vpop.f32.mrb[0].mxu0
      %481 = vmatprep.mubr.bf16.mxu0 0
      %482 = vmatmul.mubr.bf16.gmra.mrb[0].mxu0 %v351
      %v483 = vpop.f32.mrb[0].mxu0
      %v484 = vadd.f32 %v219, %v483
      %v485 = vpop.f32.mrb[0].mxu0
      %v486 = vpop.f32.mrb[0].mxu0
      %v487 = vadd.f32 %v219, %v486
      %v488 = vpop.f32.mrb[0].mxu0
      %489 = vmatprep.mubr.bf16.mxu0 0
      %490 = vmatmul.mubr.bf16.gmra.mrb[0].mxu0 %v354
      %v491 = vpop.f32.mrb[0].mxu0
      %v492 = vadd.f32 %v219, %v491
      %v493 = vpop.f32.mrb[0].mxu0
      %v494 = vpop.f32.mrb[0].mxu0
      %v495 = vadd.f32 %v219, %v494
      %v496 = vpop.f32.mrb[0].mxu0
      %497 = vmatprep.mubr.bf16.mxu0 0
      %498 = vmatmul.mubr.bf16.gmra.mrb[0].mxu0 %v357
      %v499 = vpop.f32.mrb[0].mxu0
      %v500 = vadd.f32 %v219, %v499
      %v501 = vpop.f32.mrb[0].mxu0
      %v502 = vpop.f32.mrb[0].mxu0
      %v503 = vadd.f32 %v219, %v502
      %v504 = vpop.f32.mrb[0].mxu0
      %505 = vmatprep.mubr.bf16.mxu0 0
      %506 = vmatmul.mubr.bf16.gmra.mrb[0].mxu0 %v360
      %v507 = vpop.f32.mrb[0].mxu0
      %v508 = vadd.f32 %v219, %v507
      %v509 = vpop.f32.mrb[0].mxu0
      %v510 = vpop.f32.mrb[0].mxu0
      %v511 = vadd.f32 %v219, %v510
      %v512 = vpop.f32.mrb[0].mxu0
      %513 = vmatprep.mubr.bf16.mxu0 0
      %514 = vmatmul.mubr.bf16.gmra.mrb[0].mxu0 %v363
      %v515 = vpop.f32.mrb[0].mxu0
      %v516 = vadd.f32 %v219, %v515
      %v517 = vpop.f32.mrb[0].mxu0
      %v518 = vpop.f32.mrb[0].mxu0
      %v519 = vadd.f32 %v219, %v518
      %v520 = vpop.f32.mrb[0].mxu0
      %521 = vmatprep.mubr.bf16.mxu0 0
      %522 = vmatmul.mubr.bf16.gmra.mrb[0].mxu0 %v366
      %v523 = vpop.f32.mrb[0].mxu0
      %v524 = vadd.f32 %v219, %v523
      %v525 = vpop.f32.mrb[0].mxu0
      %v526 = vpop.f32.mrb[0].mxu0
      %v527 = vadd.f32 %v219, %v526
      %v528 = vpop.f32.mrb[0].mxu0
      %529 = vmatprep.mubr.bf16.mxu0 0
      %530 = vmatmul.mubr.bf16.gmra.mrb[0].mxu0 %v369
      %v531 = vpop.f32.mrb[0].mxu0
      %v532 = vadd.f32 %v219, %v531
      %v533 = vpop.f32.mrb[0].mxu0
      %v534 = vpop.f32.mrb[0].mxu0
      %v535 = vadd.f32 %v219, %v534
      %v536 = vpop.f32.mrb[0].mxu0
      %537 = vdwg.mxu0
      %v538 = vmax.f32 %v412, 0.0
      %v539 = vmax.f32 %v415, 0.0
      %v540 = vmax.f32 %v420, 0.0
      %v541 = vmax.f32 %v423, 0.0
      %v542 = vmax.f32 %v428, 0.0
      %v543 = vmax.f32 %v431, 0.0
      %v544 = vmax.f32 %v436, 0.0
      %v545 = vmax.f32 %v439, 0.0
      %v546 = vmax.f32 %v444, 0.0
      %v547 = vmax.f32 %v447, 0.0
      %v548 = vmax.f32 %v452, 0.0
      %v549 = vmax.f32 %v455, 0.0
      %v550 = vmax.f32 %v460, 0.0
      %v551 = vmax.f32 %v463, 0.0
      %v552 = vmax.f32 %v468, 0.0
      %v553 = vmax.f32 %v471, 0.0
      %v554 = vmax.f32 %v476, 0.0
      %v555 = vmax.f32 %v479, 0.0
      %v556 = vmax.f32 %v484, 0.0
      %v557 = vmax.f32 %v487, 0.0
      %v558 = vmax.f32 %v492, 0.0
      %v559 = vmax.f32 %v495, 0.0
      %v560 = vmax.f32 %v500, 0.0
      %v561 = vmax.f32 %v503, 0.0
      %v562 = vmax.f32 %v508, 0.0
      %v563 = vmax.f32 %v511, 0.0
      %v564 = vmax.f32 %v516, 0.0
      %v565 = vmax.f32 %v519, 0.0
      %v566 = vmax.f32 %v524, 0.0
      %v567 = vmax.f32 %v527, 0.0
      %v568 = vmax.f32 %v532, 0.0
      %v569 = vmax.f32 %v535, 0.0
      %vm570 = vcmask 523264
      %571 = vst.msk [vmem:[%s172] sm:$0xff] %vm570, %v538
      %572 = vst.msk [vmem:[%s172 + $0x8] sm:$0xff] %vm570, %v539
      %573 = vst.msk [vmem:[%s172 + $0x10] sm:$0xff] %vm570, %v540
      %574 = vst.msk [vmem:[%s172 + $0x18] sm:$0xff] %vm570, %v541
      %575 = vst.msk [vmem:[%s172 + $0x20] sm:$0xff] %vm570, %v542
      %576 = vst.msk [vmem:[%s172 + $0x28] sm:$0xff] %vm570, %v543
      %577 = vst.msk [vmem:[%s172 + $0x30] sm:$0xff] %vm570, %v544
      %578 = vst.msk [vmem:[%s172 + $0x38] sm:$0xff] %vm570, %v545
      %579 = vst.msk [vmem:[%s172 + $0x40] sm:$0xff] %vm570, %v546
      %580 = vst.msk [vmem:[%s172 + $0x48] sm:$0xff] %vm570, %v547
      %581 = vst.msk [vmem:[%s172 + $0x50] sm:$0xff] %vm570, %v548
      %582 = vst.msk [vmem:[%s172 + $0x58] sm:$0xff] %vm570, %v549
      %583 = vst.msk [vmem:[%s172 + $0x60] sm:$0xff] %vm570, %v550
      %584 = vst.msk [vmem:[%s172 + $0x68] sm:$0xff] %vm570, %v551
      %585 = vst.msk [vmem:[%s172 + $0x70] sm:$0xff] %vm570, %v552
      %586 = vst.msk [vmem:[%s172 + $0x78] sm:$0xff] %vm570, %v553
      %587 = vst.msk [vmem:[%s172 + $0x80] sm:$0xff] %vm570, %v554
      %588 = vst.msk [vmem:[%s172 + $0x88] sm:$0xff] %vm570, %v555
      %589 = vst.msk [vmem:[%s172 + $0x90] sm:$0xff] %vm570, %v556
      %590 = vst.msk [vmem:[%s172 + $0x98] sm:$0xff] %vm570, %v557
      %591 = vst.msk [vmem:[%s172 + $0xa0] sm:$0xff] %vm570, %v558
      %592 = vst.msk [vmem:[%s172 + $0xa8] sm:$0xff] %vm570, %v559
      %593 = vst.msk [vmem:[%s172 + $0xb0] sm:$0xff] %vm570, %v560
      %594 = vst.msk [vmem:[%s172 + $0xb8] sm:$0xff] %vm570, %v561
      %595 = vst.msk [vmem:[%s172 + $0xc0] sm:$0xff] %vm570, %v562
      %596 = vst.msk [vmem:[%s172 + $0xc8] sm:$0xff] %vm570, %v563
      %597 = vst.msk [vmem:[%s172 + $0xd0] sm:$0xff] %vm570, %v564
      %598 = vst.msk [vmem:[%s172 + $0xd8] sm:$0xff] %vm570, %v565
      %599 = vst.msk [vmem:[%s172 + $0xe0] sm:$0xff] %vm570, %v566
      %600 = vst.msk [vmem:[%s172 + $0xe8] sm:$0xff] %vm570, %v567
      %601 = vst.msk [vmem:[%s172 + $0xf0] sm:$0xff] %vm570, %v568
      %602 = vst.msk [vmem:[%s172 + $0xf8] sm:$0xff] %vm570, %v569
      %s603 = smul.u32 32, %s14
      %p604 = scmp.lt.s32.totalorder %s603, 63
      %s605 = scalar_select %p604, %s603, 63
      %s606 = smul.addr %s605, 8
      %s607 = scalar_lea.vmem %s3, %s606
      // Predicated region
      $region33: #{colorization_forward.14} parent=31 // pred_check
        %p608 = pneg %p100
      $region34: #{colorization_forward.14} parent=31 // pred_check_branch
        %610 = sbr.rel (%p608) target = $region36
      $region35: #{colorization_forward.14} parent=31 // pred_region
        %s611 = smul.u32 32, %s14
      $region36: #{colorization_forward.14} parent=31 // pred_fallthru
        _
    $region32: #{colorization_forward.14} parent=5 // pred_fallthru
      _
    %p612 = scmp.le.s32.totalorder 2, %s9
    // Predicated region
    $region37: #{colorization_forward.14} parent=5 // pred_check
      %p613 = pneg %p612
    $region38: #{colorization_forward.14} parent=5 // pred_check_branch
      %615 = sbr.rel (%p613) target = $region40
    $region39: #{colorization_forward.14} parent=5 // pred_region
      %s616 = ssub.s32 %s9, 2
      // Predicated region
      $region41: #{colorization_forward.14} parent=39 // pred_check
        %p617 = pneg %p106
      $region42: #{colorization_forward.14} parent=39 // pred_check_branch
        %619 = sbr.rel (%p617) target = $region44
      $region43: #{colorization_forward.14} parent=39 // pred_region
        %s620 = smul.u32 32, %s15
        %p621 = scmp.lt.s32.totalorder %s620, 63
        %s622 = scalar_select %p621, %s620, 63
        %s623 = smul.addr %s622, 8
        %s624 = scalar_lea.vmem %s3, %s623
      $region44: #{colorization_forward.14} parent=39 // pred_fallthru
        _
    $region40: #{colorization_forward.14} parent=5 // pred_fallthru
      _
  $region6: #{colorization_forward.14} parent=0 // loop_footer
    %s13 = sadd.s32 1, %s9
  $region7: #{colorization_forward.14} parent=0 // loop_footer_branch
    %8 = sbr.rel target = $region3
  $region8: #{colorization_forward.14} parent=0 // loop_exit
    _

// kernel: colorization_forward.15
$region0: #{colorization_forward.15}
  #allocation0 [shape = 'u32[]', space=smem, size = 0x4, offset = 0x4, fixed_abs, tag = 'smem constant byte address 0x4 - core index']
  #allocation1 [shape = 'u32[144,128]{1,0:T(1,128)}', space=vmem, size = 0x12000, scoped, tag = 'internal scratch']
  %s0 = inlined_call_operand.vmem [shape: bf16[128,576], index: 0, kind: input, shape index: {}]
  %s1 = inlined_call_operand.vmem [shape: bf16[576,64], index: 1, kind: input, shape index: {}]
  %s2 = inlined_call_operand.vmem [shape: f32[1,64], index: 2, kind: input, shape index: {}]
  %s3 = inlined_call_operand.vmem [shape: f32[128,64], index: 3, kind: output, shape index: {}]
  %s4 = sld [smem:[#allocation0]]
  $region22: #{colorization_forward.15} parent=0
    _
  %s6 = ssub.s32 1, %s4
  %s7 = scalar_select 0, %s6, %s4
  // Predicated region
  $region2: #{colorization_forward.15} parent=0 // pred_check
    _
  $region3: #{colorization_forward.15} parent=0 // pred_check_branch
    %9 = sbr.rel (0) target = $region5
  $region4: #{colorization_forward.15} parent=0 // pred_region
    _
  $region5: #{colorization_forward.15} parent=0 // pred_fallthru
    _
  // Predicated region
  $region6: #{colorization_forward.15} parent=0 // pred_check
    _
  $region7: #{colorization_forward.15} parent=0 // pred_check_branch
    %11 = sbr.rel (0) target = $region9
  $region8: #{colorization_forward.15} parent=0 // pred_region
    _
  $region9: #{colorization_forward.15} parent=0 // pred_fallthru
    _
  // Predicated region
  $region10: #{colorization_forward.15} parent=0 // pred_check
    _
  $region11: #{colorization_forward.15} parent=0 // pred_check_branch
    %13 = sbr.rel (0) target = $region13
  $region12: #{colorization_forward.15} parent=0 // pred_region
    _
  $region13: #{colorization_forward.15} parent=0 // pred_fallthru
    _
  %v15 = vld [vmem:[%s0] sm:$0xff]
  %v16 = vld [vmem:[%s0 + $0x8] sm:$0xff]
  %v17 = vld [vmem:[%s0 + $0x10] sm:$0xf]
  %v18 = vld [vmem:[%s0 + $0x14] sm:$0xff]
  %v19 = vld [vmem:[%s0 + $0x1c] sm:$0xff]
  %v20 = vld [vmem:[%s0 + $0x24] sm:$0xf]
  %v21 = vld [vmem:[%s0 + $0x28] sm:$0xff]
  %v22 = vld [vmem:[%s0 + $0x30] sm:$0xff]
  %v23 = vld [vmem:[%s0 + $0x38] sm:$0xf]
  %v24 = vld [vmem:[%s0 + $0x3c] sm:$0xff]
  %v25 = vld [vmem:[%s0 + $0x44] sm:$0xff]
  %v26 = vld [vmem:[%s0 + $0x4c] sm:$0xf]
  %v27 = vld [vmem:[%s0 + $0x50] sm:$0xff]
  %v28 = vld [vmem:[%s0 + $0x58] sm:$0xff]
  %v29 = vld [vmem:[%s0 + $0x60] sm:$0xf]
  %v30 = vld [vmem:[%s0 + $0x64] sm:$0xff]
  %v31 = vld [vmem:[%s0 + $0x6c] sm:$0xff]
  %v32 = vld [vmem:[%s0 + $0x74] sm:$0xf]
  %v33 = vld [vmem:[%s0 + $0x78] sm:$0xff]
  %v34 = vld [vmem:[%s0 + $0x80] sm:$0xff]
  %v35 = vld [vmem:[%s0 + $0x88] sm:$0xf]
  %v36 = vld [vmem:[%s0 + $0x8c] sm:$0xff]
  %v37 = vld [vmem:[%s0 + $0x94] sm:$0xff]
  %v38 = vld [vmem:[%s0 + $0x9c] sm:$0xf]
  %v39 = vld [vmem:[%s0 + $0xa0] sm:$0xff]
  %v40 = vld [vmem:[%s0 + $0xa8] sm:$0xff]
  %v41 = vld [vmem:[%s0 + $0xb0] sm:$0xf]
  %v42 = vld [vmem:[%s0 + $0xb4] sm:$0xff]
  %v43 = vld [vmem:[%s0 + $0xbc] sm:$0xff]
  %v44 = vld [vmem:[%s0 + $0xc4] sm:$0xf]
  %v45 = vld [vmem:[%s0 + $0xc8] sm:$0xff]
  %v46 = vld [vmem:[%s0 + $0xd0] sm:$0xff]
  %v47 = vld [vmem:[%s0 + $0xd8] sm:$0xf]
  %v48 = vld [vmem:[%s0 + $0xdc] sm:$0xff]
  %v49 = vld [vmem:[%s0 + $0xe4] sm:$0xff]
  %v50 = vld [vmem:[%s0 + $0xec] sm:$0xf]
  %v51 = vld [vmem:[%s0 + $0xf0] sm:$0xff]
  %v52 = vld [vmem:[%s0 + $0xf8] sm:$0xff]
  %v53 = vld [vmem:[%s0 + $0x100] sm:$0xf]
  %v54 = vld [vmem:[%s0 + $0x104] sm:$0xff]
  %v55 = vld [vmem:[%s0 + $0x10c] sm:$0xff]
  %v56 = vld [vmem:[%s0 + $0x114] sm:$0xf]
  %v57 = vld [vmem:[%s0 + $0x118] sm:$0xff]
  %v58 = vld [vmem:[%s0 + $0x120] sm:$0xff]
  %v59 = vld [vmem:[%s0 + $0x128] sm:$0xf]
  %v60 = vld [vmem:[%s0 + $0x12c] sm:$0xff]
  %v61 = vld [vmem:[%s0 + $0x134] sm:$0xff]
  %v62 = vld [vmem:[%s0 + $0x13c] sm:$0xf]
  %v63 = vld [vmem:[%s1] sm:$0xf]
  %v64 = vld [vmem:[%s1 + $0x4] sm:$0xf]
  %v65 = vld [vmem:[%s1 + $0x8] sm:$0xf]
  %v66 = vld [vmem:[%s1 + $0xc] sm:$0xf]
  %v67 = vld [vmem:[%s1 + $0x10] sm:$0xf]
  %v68 = vld [vmem:[%s1 + $0x14] sm:$0xf]
  %v69 = vld [vmem:[%s1 + $0x18] sm:$0xf]
  %v70 = vld [vmem:[%s1 + $0x1c] sm:$0xf]
  %v71 = vld [vmem:[%s1 + $0x20] sm:$0xf]
  %v72 = vld [vmem:[%s1 + $0x24] sm:$0xf]
  %v73 = vld [vmem:[%s1 + $0x28] sm:$0xf]
  %v74 = vld [vmem:[%s1 + $0x2c] sm:$0xf]
  %v75 = vld [vmem:[%s1 + $0x30] sm:$0xf]
  %v76 = vld [vmem:[%s1 + $0x34] sm:$0xf]
  %v77 = vld [vmem:[%s1 + $0x38] sm:$0xf]
  %v78 = vld [vmem:[%s1 + $0x3c] sm:$0xf]
  %v79 = vld [vmem:[%s1 + $0x40] sm:$0xf]
  %v80 = vld [vmem:[%s1 + $0x44] sm:$0xf]
  %v81 = vld [vmem:[%s1 + $0x48] sm:$0xf]
  %v82 = vld [vmem:[%s1 + $0x4c] sm:$0xf]
  %v83 = vld [vmem:[%s1 + $0x50] sm:$0xf]
  %v84 = vld [vmem:[%s1 + $0x54] sm:$0xf]
  %v85 = vld [vmem:[%s1 + $0x58] sm:$0xf]
  %v86 = vld [vmem:[%s1 + $0x5c] sm:$0xf]
  %v87 = vld [vmem:[%s1 + $0x60] sm:$0xf]
  %v88 = vld [vmem:[%s1 + $0x64] sm:$0xf]
  %v89 = vld [vmem:[%s1 + $0x68] sm:$0xf]
  %v90 = vld [vmem:[%s1 + $0x6c] sm:$0xf]
  %v91 = vld [vmem:[%s1 + $0x70] sm:$0xf]
  %v92 = vld [vmem:[%s1 + $0x74] sm:$0xf]
  %v93 = vld [vmem:[%s1 + $0x78] sm:$0xf]
  %v94 = vld [vmem:[%s1 + $0x7c] sm:$0xf]
  %v95 = vld [vmem:[%s1 + $0x80] sm:$0xf]
  %v96 = vld [vmem:[%s1 + $0x84] sm:$0xf]
  %v97 = vld [vmem:[%s1 + $0x88] sm:$0xf]
  %v98 = vld [vmem:[%s1 + $0x8c] sm:$0xf]
  %v99 = vld [vmem:[%s1 + $0x90] sm:$0xf]
  %v100 = vld [vmem:[%s1 + $0x94] sm:$0xf]
  %v101 = vld [vmem:[%s1 + $0x98] sm:$0xf]
  %v102 = vld [vmem:[%s1 + $0x9c] sm:$0xf]
  %v103 = vld [vmem:[%s1 + $0xa0] sm:$0xf]
  %v104 = vld [vmem:[%s1 + $0xa4] sm:$0xf]
  %v105 = vld [vmem:[%s1 + $0xa8] sm:$0xf]
  %v106 = vld [vmem:[%s1 + $0xac] sm:$0xf]
  %v107 = vld [vmem:[%s1 + $0xb0] sm:$0xf]
  %v108 = vld [vmem:[%s1 + $0xb4] sm:$0xf]
  %v109 = vld [vmem:[%s1 + $0xb8] sm:$0xf]
  %v110 = vld [vmem:[%s1 + $0xbc] sm:$0xf]
  %v111 = vld [vmem:[%s1 + $0xc0] sm:$0xf]
  %v112 = vld [vmem:[%s1 + $0xc4] sm:$0xf]
  %v113 = vld [vmem:[%s1 + $0xc8] sm:$0xf]
  %v114 = vld [vmem:[%s1 + $0xcc] sm:$0xf]
  %v115 = vld [vmem:[%s1 + $0xd0] sm:$0xf]
  %v116 = vld [vmem:[%s1 + $0xd4] sm:$0xf]
  %v117 = vld [vmem:[%s1 + $0xd8] sm:$0xf]
  %v118 = vld [vmem:[%s1 + $0xdc] sm:$0xf]
  %v119 = vld [vmem:[%s1 + $0xe0] sm:$0xf]
  %v120 = vld [vmem:[%s1 + $0xe4] sm:$0xf]
  %v121 = vld [vmem:[%s1 + $0xe8] sm:$0xf]
  %v122 = vld [vmem:[%s1 + $0xec] sm:$0xf]
  %v123 = vld [vmem:[%s1 + $0xf0] sm:$0xf]
  %v124 = vld [vmem:[%s1 + $0xf4] sm:$0xf]
  %v125 = vld [vmem:[%s1 + $0xf8] sm:$0xf]
  %v126 = vld [vmem:[%s1 + $0xfc] sm:$0xf]
  %v127 = vld [vmem:[%s1 + $0x100] sm:$0xf]
  %v128 = vld [vmem:[%s1 + $0x104] sm:$0xf]
  %v129 = vld [vmem:[%s1 + $0x108] sm:$0xf]
  %v130 = vld [vmem:[%s1 + $0x10c] sm:$0xf]
  %v131 = vld [vmem:[%s1 + $0x110] sm:$0xf]
  %v132 = vld [vmem:[%s1 + $0x114] sm:$0xf]
  %v133 = vld [vmem:[%s1 + $0x118] sm:$0xf]
  %v134 = vld [vmem:[%s1 + $0x11c] sm:$0xf]
  %v135 = vld [vmem:[%s2] sm:$0x1]
  %v137 = vlaneseq
  %v138 = vshrl.u32 %v137, 7
  %v139 = vsub.s32 0, %v138
  %v140 = vrot.slane %v135, %v139
  %v190 = vunpack.c.l.b16 %v15
  %v191 = vunpack.c.h.b16 %v15
  %v192 = vunpack.c.l.b16 %v16
  %v193 = vunpack.c.h.b16 %v16
  %v194 = vunpack.c.l.b16 %v17
  %v195 = vunpack.c.l.b16 %v18
  %v196 = vunpack.c.h.b16 %v18
  %v197 = vunpack.c.l.b16 %v19
  %v198 = vunpack.c.h.b16 %v19
  %v199 = vunpack.c.l.b16 %v20
  %v200 = vunpack.c.l.b16 %v21
  %v201 = vunpack.c.h.b16 %v21
  %v202 = vunpack.c.l.b16 %v22
  %v203 = vunpack.c.h.b16 %v22
  %v204 = vunpack.c.l.b16 %v23
  %v205 = vunpack.c.l.b16 %v24
  %v206 = vunpack.c.h.b16 %v24
  %v207 = vunpack.c.l.b16 %v25
  %v208 = vunpack.c.h.b16 %v25
  %v209 = vunpack.c.l.b16 %v26
  %v210 = vunpack.c.l.b16 %v27
  %v211 = vunpack.c.h.b16 %v27
  %v212 = vunpack.c.l.b16 %v28
  %v213 = vunpack.c.h.b16 %v28
  %v214 = vunpack.c.l.b16 %v29
  %v215 = vunpack.c.l.b16 %v30
  %v216 = vunpack.c.h.b16 %v30
  %v217 = vunpack.c.l.b16 %v31
  %v218 = vunpack.c.h.b16 %v31
  %v219 = vunpack.c.l.b16 %v32
  %v220 = vunpack.c.l.b16 %v33
  %v221 = vunpack.c.h.b16 %v33
  %v222 = vunpack.c.l.b16 %v34
  %v223 = vunpack.c.h.b16 %v34
  %v224 = vunpack.c.l.b16 %v35
  %v225 = vunpack.c.l.b16 %v36
  %v226 = vunpack.c.h.b16 %v36
  %v227 = vunpack.c.l.b16 %v37
  %v228 = vunpack.c.h.b16 %v37
  %v229 = vunpack.c.l.b16 %v38
  %v230 = vunpack.c.l.b16 %v39
  %v231 = vunpack.c.h.b16 %v39
  %v232 = vunpack.c.l.b16 %v40
  %v233 = vunpack.c.h.b16 %v40
  %v234 = vunpack.c.l.b16 %v41
  %v235 = vunpack.c.l.b16 %v42
  %v236 = vunpack.c.h.b16 %v42
  %v237 = vunpack.c.l.b16 %v43
  %v238 = vunpack.c.h.b16 %v43
  %v239 = vunpack.c.l.b16 %v44
  %v240 = vunpack.c.l.b16 %v45
  %v241 = vunpack.c.h.b16 %v45
  %v242 = vunpack.c.l.b16 %v46
  %v243 = vunpack.c.h.b16 %v46
  %v244 = vunpack.c.l.b16 %v47
  %v245 = vunpack.c.l.b16 %v48
  %v246 = vunpack.c.h.b16 %v48
  %v247 = vunpack.c.l.b16 %v49
  %v248 = vunpack.c.h.b16 %v49
  %v249 = vunpack.c.l.b16 %v50
  %v250 = vunpack.c.l.b16 %v51
  %v251 = vunpack.c.h.b16 %v51
  %v252 = vunpack.c.l.b16 %v52
  %v253 = vunpack.c.h.b16 %v52
  %v254 = vunpack.c.l.b16 %v53
  %v255 = vunpack.c.l.b16 %v54
  %v256 = vunpack.c.h.b16 %v54
  %v257 = vunpack.c.l.b16 %v55
  %v258 = vunpack.c.h.b16 %v55
  %v259 = vunpack.c.l.b16 %v56
  %v260 = vunpack.c.l.b16 %v57
  %v261 = vunpack.c.h.b16 %v57
  %v262 = vunpack.c.l.b16 %v58
  %v263 = vunpack.c.h.b16 %v58
  %v264 = vunpack.c.l.b16 %v59
  %v265 = vunpack.c.l.b16 %v60
  %v266 = vunpack.c.h.b16 %v60
  %v267 = vunpack.c.l.b16 %v61
  %v268 = vunpack.c.h.b16 %v61
  %v269 = vunpack.c.l.b16 %v62
  %v270 = vpack.c.b16 %v195, %v190
  %v271 = vpack.c.b16 %v196, %v191
  %v272 = vpack.c.b16 %v197, %v192
  %v273 = vpack.c.b16 %v198, %v193
  %v274 = vpack.c.b16 %v199, %v194
  %v275 = vpack.c.b16 %v205, %v200
  %v276 = vpack.c.b16 %v206, %v201
  %v277 = vpack.c.b16 %v207, %v202
  %v278 = vpack.c.b16 %v208, %v203
  %v279 = vpack.c.b16 %v209, %v204
  %v280 = vpack.c.b16 %v215, %v210
  %v281 = vpack.c.b16 %v216, %v211
  %v282 = vpack.c.b16 %v217, %v212
  %v283 = vpack.c.b16 %v218, %v213
  %v284 = vpack.c.b16 %v219, %v214
  %v285 = vpack.c.b16 %v225, %v220
  %v286 = vpack.c.b16 %v226, %v221
  %v287 = vpack.c.b16 %v227, %v222
  %v288 = vpack.c.b16 %v228, %v223
  %v289 = vpack.c.b16 %v229, %v224
  %v290 = vpack.c.b16 %v235, %v230
  %v291 = vpack.c.b16 %v236, %v231
  %v292 = vpack.c.b16 %v237, %v232
  %v293 = vpack.c.b16 %v238, %v233
  %v294 = vpack.c.b16 %v239, %v234
  %v295 = vpack.c.b16 %v245, %v240
  %v296 = vpack.c.b16 %v246, %v241
  %v297 = vpack.c.b16 %v247, %v242
  %v298 = vpack.c.b16 %v248, %v243
  %v299 = vpack.c.b16 %v249, %v244
  %v300 = vpack.c.b16 %v255, %v250
  %v301 = vpack.c.b16 %v256, %v251
  %v302 = vpack.c.b16 %v257, %v252
  %v303 = vpack.c.b16 %v258, %v253
  %v304 = vpack.c.b16 %v259, %v254
  %v305 = vpack.c.b16 %v265, %v260
  %v306 = vpack.c.b16 %v266, %v261
  %v307 = vpack.c.b16 %v267, %v262
  %v308 = vpack.c.b16 %v268, %v263
  %v309 = vpack.c.b16 %v269, %v264
  %v414 = vunpack.c.l.b16 %v63
  %v415 = vunpack.c.l.b16 %v64
  %v416 = vunpack.c.l.b16 %v65
  %v417 = vunpack.c.l.b16 %v66
  %v418 = vunpack.c.l.b16 %v67
  %v419 = vunpack.c.l.b16 %v68
  %v420 = vunpack.c.l.b16 %v69
  %v421 = vunpack.c.l.b16 %v70
  %v422 = vunpack.c.l.b16 %v71
  %v423 = vunpack.c.l.b16 %v72
  %v424 = vunpack.c.l.b16 %v73
  %v425 = vunpack.c.l.b16 %v74
  %v426 = vunpack.c.l.b16 %v75
  %v427 = vunpack.c.l.b16 %v76
  %v428 = vunpack.c.l.b16 %v77
  %v429 = vunpack.c.l.b16 %v78
  %v430 = vunpack.c.l.b16 %v79
  %v431 = vunpack.c.l.b16 %v80
  %v432 = vunpack.c.l.b16 %v81
  %v433 = vunpack.c.l.b16 %v82
  %v434 = vunpack.c.l.b16 %v83
  %v435 = vunpack.c.l.b16 %v84
  %v436 = vunpack.c.l.b16 %v85
  %v437 = vunpack.c.l.b16 %v86
  %v438 = vunpack.c.l.b16 %v87
  %v439 = vunpack.c.l.b16 %v88
  %v440 = vunpack.c.l.b16 %v89
  %v441 = vunpack.c.l.b16 %v90
  %v442 = vunpack.c.l.b16 %v91
  %v443 = vunpack.c.l.b16 %v92
  %v444 = vunpack.c.l.b16 %v93
  %v445 = vunpack.c.l.b16 %v94
  %v446 = vunpack.c.l.b16 %v95
  %v447 = vunpack.c.l.b16 %v96
  %v448 = vunpack.c.l.b16 %v97
  %v449 = vunpack.c.l.b16 %v98
  %v450 = vunpack.c.l.b16 %v99
  %v451 = vunpack.c.l.b16 %v100
  %v452 = vunpack.c.l.b16 %v101
  %v453 = vunpack.c.l.b16 %v102
  %v454 = vunpack.c.l.b16 %v103
  %v455 = vunpack.c.l.b16 %v104
  %v456 = vunpack.c.l.b16 %v105
  %v457 = vunpack.c.l.b16 %v106
  %v458 = vunpack.c.l.b16 %v107
  %v459 = vunpack.c.l.b16 %v108
  %v460 = vunpack.c.l.b16 %v109
  %v461 = vunpack.c.l.b16 %v110
  %v462 = vunpack.c.l.b16 %v111
  %v463 = vunpack.c.l.b16 %v112
  %v464 = vunpack.c.l.b16 %v113
  %v465 = vunpack.c.l.b16 %v114
  %v466 = vunpack.c.l.b16 %v115
  %v467 = vunpack.c.l.b16 %v116
  %v468 = vunpack.c.l.b16 %v117
  %v469 = vunpack.c.l.b16 %v118
  %v470 = vunpack.c.l.b16 %v119
  %v471 = vunpack.c.l.b16 %v120
  %v472 = vunpack.c.l.b16 %v121
  %v473 = vunpack.c.l.b16 %v122
  %v474 = vunpack.c.l.b16 %v123
  %v475 = vunpack.c.l.b16 %v124
  %v476 = vunpack.c.l.b16 %v125
  %v477 = vunpack.c.l.b16 %v126
  %v478 = vunpack.c.l.b16 %v127
  %v479 = vunpack.c.l.b16 %v128
  %v480 = vunpack.c.l.b16 %v129
  %v481 = vunpack.c.l.b16 %v130
  %v482 = vunpack.c.l.b16 %v131
  %v483 = vunpack.c.l.b16 %v132
  %v484 = vunpack.c.l.b16 %v133
  %v485 = vunpack.c.l.b16 %v134
  %v486 = vpack.c.b16 %v415, %v414
  %v487 = vpack.c.b16 %v417, %v416
  %v488 = vpack.c.b16 %v419, %v418
  %v489 = vpack.c.b16 %v421, %v420
  %v490 = vpack.c.b16 %v423, %v422
  %v491 = vpack.c.b16 %v425, %v424
  %v492 = vpack.c.b16 %v427, %v426
  %v493 = vpack.c.b16 %v429, %v428
  %v494 = vpack.c.b16 %v431, %v430
  %v495 = vpack.c.b16 %v433, %v432
  %v496 = vpack.c.b16 %v435, %v434
  %v497 = vpack.c.b16 %v437, %v436
  %v498 = vpack.c.b16 %v439, %v438
  %v499 = vpack.c.b16 %v441, %v440
  %v500 = vpack.c.b16 %v443, %v442
  %v501 = vpack.c.b16 %v445, %v444
  %v502 = vpack.c.b16 %v447, %v446
  %v503 = vpack.c.b16 %v449, %v448
  %v504 = vpack.c.b16 %v451, %v450
  %v505 = vpack.c.b16 %v453, %v452
  %v506 = vpack.c.b16 %v455, %v454
  %v507 = vpack.c.b16 %v457, %v456
  %v508 = vpack.c.b16 %v459, %v458
  %v509 = vpack.c.b16 %v461, %v460
  %v510 = vpack.c.b16 %v463, %v462
  %v511 = vpack.c.b16 %v465, %v464
  %v512 = vpack.c.b16 %v467, %v466
  %v513 = vpack.c.b16 %v469, %v468
  %v514 = vpack.c.b16 %v471, %v470
  %v515 = vpack.c.b16 %v473, %v472
  %v516 = vpack.c.b16 %v475, %v474
  %v517 = vpack.c.b16 %v477, %v476
  %v518 = vpack.c.b16 %v479, %v478
  %v519 = vpack.c.b16 %v481, %v480
  %v520 = vpack.c.b16 %v483, %v482
  %v521 = vpack.c.b16 %v485, %v484
  %vm558 = vcmask 523264
  %v560 = vsel %vm558, %v274, 0
  %v563 = vsel %vm558, %v279, 0
  %v566 = vsel %vm558, %v284, 0
  %v569 = vsel %vm558, %v289, 0
  %v572 = vsel %vm558, %v294, 0
  %v575 = vsel %vm558, %v299, 0
  %v578 = vsel %vm558, %v304, 0
  %v581 = vsel %vm558, %v309, 0
  %583 = vmatprep.subr.bf16.mxu0 0
  %584 = vmatpush1.bf16.msra.mxu0 %v486
  %585 = vmatprep.subr.bf16.mxu0 0
  %586 = vmatpush1.bf16.msra.mxu0 %v487
  %587 = vmatprep.subr.bf16.mxu0 0
  %588 = vmatpush1.bf16.msra.mxu0 %v488
  %589 = vmatprep.subr.bf16.mxu0 0
  %590 = vmatpush1.bf16.msra.mxu0 %v489
  %591 = vmatprep.subr.bf16.mxu0 0
  %592 = vmatpush1.bf16.msra.mxu0 %v490
  %593 = vmatprep.subr.bf16.mxu0 0
  %594 = vmatpush1.bf16.msra.mxu0 %v491
  %595 = vmatprep.subr.bf16.mxu0 0
  %596 = vmatpush1.bf16.msra.mxu0 %v492
  %597 = vmatprep.subr.bf16.mxu0 0
  %598 = vmatpush1.bf16.msra.mxu0 %v493
  %599 = vmatprep.subr.bf16.mxu0 0
  %600 = vmatpush1.bf16.msra.mxu0 %v494
  %601 = vmatprep.subr.bf16.mxu0 0
  %602 = vmatpush1.bf16.msra.mxu0 %v495
  %603 = vmatprep.subr.bf16.mxu0 0
  %604 = vmatpush1.bf16.msra.mxu0 %v496
  %605 = vmatprep.subr.bf16.mxu0 0
  %606 = vmatpush1.bf16.msra.mxu0 %v497
  %607 = vmatprep.subr.bf16.mxu0 0
  %608 = vmatpush1.bf16.msra.mxu0 %v498
  %609 = vmatprep.subr.bf16.mxu0 0
  %610 = vmatpush1.bf16.msra.mxu0 %v499
  %611 = vmatprep.subr.bf16.mxu0 0
  %612 = vmatpush1.bf16.msra.mxu0 %v500
  %613 = vmatprep.subr.bf16.mxu0 0
  %614 = vmatpush1.bf16.msra.mxu0 %v501
  %615 = vmatprep.mubr.bf16.mxu0 %v271
  %616 = vmatmul.mubr.bf16.gmra.mrb[0].mxu0 %v270
  %v617 = vpop.f32.mrb[0].mxu0
  %v618 = vadd.f32 %v140, %v617
  %v619 = vpop.f32.mrb[0].mxu0
  %v620 = vpop.f32.mrb[0].mxu0
  %v621 = vadd.f32 %v140, %v620
  %v622 = vpop.f32.mrb[0].mxu0
  %623 = vmatprep.mubr.bf16.mxu0 %v276
  %624 = vmatmul.mubr.bf16.gmra.mrb[0].mxu0 %v275
  %v625 = vpop.f32.mrb[0].mxu0
  %v626 = vadd.f32 %v140, %v625
  %v627 = vpop.f32.mrb[0].mxu0
  %v628 = vpop.f32.mrb[0].mxu0
  %v629 = vadd.f32 %v140, %v628
  %v630 = vpop.f32.mrb[0].mxu0
  %631 = vmatprep.mubr.bf16.mxu0 %v281
  %632 = vmatmul.mubr.bf16.gmra.mrb[0].mxu0 %v280
  %v633 = vpop.f32.mrb[0].mxu0
  %v634 = vadd.f32 %v140, %v633
  %v635 = vpop.f32.mrb[0].mxu0
  %v636 = vpop.f32.mrb[0].mxu0
  %v637 = vadd.f32 %v140, %v636
  %v638 = vpop.f32.mrb[0].mxu0
  %639 = vmatprep.mubr.bf16.mxu0 %v286
  %640 = vmatmul.mubr.bf16.gmra.mrb[0].mxu0 %v285
  %v641 = vpop.f32.mrb[0].mxu0
  %v642 = vadd.f32 %v140, %v641
  %v643 = vpop.f32.mrb[0].mxu0
  %v644 = vpop.f32.mrb[0].mxu0
  %v645 = vadd.f32 %v140, %v644
  %v646 = vpop.f32.mrb[0].mxu0
  %647 = vmatprep.mubr.bf16.mxu0 %v291
  %648 = vmatmul.mubr.bf16.gmra.mrb[0].mxu0 %v290
  %v649 = vpop.f32.mrb[0].mxu0
  %v650 = vadd.f32 %v140, %v649
  %v651 = vpop.f32.mrb[0].mxu0
  %v652 = vpop.f32.mrb[0].mxu0
  %v653 = vadd.f32 %v140, %v652
  %v654 = vpop.f32.mrb[0].mxu0
  %655 = vmatprep.mubr.bf16.mxu0 %v296
  %656 = vmatmul.mubr.bf16.gmra.mrb[0].mxu0 %v295
  %v657 = vpop.f32.mrb[0].mxu0
  %v658 = vadd.f32 %v140, %v657
  %v659 = vpop.f32.mrb[0].mxu0
  %v660 = vpop.f32.mrb[0].mxu0
  %v661 = vadd.f32 %v140, %v660
  %v662 = vpop.f32.mrb[0].mxu0
  %663 = vmatprep.mubr.bf16.mxu0 %v301
  %664 = vmatmul.mubr.bf16.gmra.mrb[0].mxu0 %v300
  %v665 = vpop.f32.mrb[0].mxu0
  %v666 = vadd.f32 %v140, %v665
  %v667 = vpop.f32.mrb[0].mxu0
  %v668 = vpop.f32.mrb[0].mxu0
  %v669 = vadd.f32 %v140, %v668
  %v670 = vpop.f32.mrb[0].mxu0
  %671 = vmatprep.mubr.bf16.mxu0 %v306
  %672 = vmatmul.mubr.bf16.gmra.mrb[0].mxu0 %v305
  %v673 = vpop.f32.mrb[0].mxu0
  %v674 = vadd.f32 %v140, %v673
  %v675 = vpop.f32.mrb[0].mxu0
  %v676 = vpop.f32.mrb[0].mxu0
  %v677 = vadd.f32 %v140, %v676
  %v678 = vpop.f32.mrb[0].mxu0
  %679 = vdwg.mxu0
  %680 = vmatprep.subr.bf16.mxu0 0
  %681 = vmatpush1.bf16.msra.mxu0 %v502
  %682 = vmatprep.subr.bf16.mxu0 0
  %683 = vmatpush1.bf16.msra.mxu0 %v503
  %684 = vmatprep.subr.bf16.mxu0 0
  %685 = vmatpush1.bf16.msra.mxu0 %v504
  %686 = vmatprep.subr.bf16.mxu0 0
  %687 = vmatpush1.bf16.msra.mxu0 %v505
  %688 = vmatprep.subr.bf16.mxu0 0
  %689 = vmatpush1.bf16.msra.mxu0 %v506
  %690 = vmatprep.subr.bf16.mxu0 0
  %691 = vmatpush1.bf16.msra.mxu0 %v507
  %692 = vmatprep.subr.bf16.mxu0 0
  %693 = vmatpush1.bf16.msra.mxu0 %v508
  %694 = vmatprep.subr.bf16.mxu0 0
  %695 = vmatpush1.bf16.msra.mxu0 %v509
  %696 = vmatprep.subr.bf16.mxu0 0
  %697 = vmatpush1.bf16.msra.mxu0 %v510
  %698 = vmatprep.subr.bf16.mxu0 0
  %699 = vmatpush1.bf16.msra.mxu0 %v511
  %700 = vmatprep.subr.bf16.mxu0 0
  %701 = vmatpush1.bf16.msra.mxu0 %v512
  %702 = vmatprep.subr.bf16.mxu0 0
  %703 = vmatpush1.bf16.msra.mxu0 %v513
  %704 = vmatprep.subr.bf16.mxu0 0
  %705 = vmatpush1.bf16.msra.mxu0 %v514
  %706 = vmatprep.subr.bf16.mxu0 0
  %707 = vmatpush1.bf16.msra.mxu0 %v515
  %708 = vmatprep.subr.bf16.mxu0 0
  %709 = vmatpush1.bf16.msra.mxu0 %v516
  %710 = vmatprep.subr.bf16.mxu0 0
  %711 = vmatpush1.bf16.msra.mxu0 %v517
  %712 = vmatprep.mubr.bf16.mxu0 %v273
  %713 = vmatmul.mubr.bf16.gmra.mrb[0].mxu0 %v272
  %v714 = vpop.f32.mrb[0].mxu0
  %v715 = vadd.f32 %v618, %v714
  %v716 = vpop.f32.mrb[0].mxu0
  %v717 = vpop.f32.mrb[0].mxu0
  %v718 = vadd.f32 %v621, %v717
  %v719 = vpop.f32.mrb[0].mxu0
  %720 = vmatprep.mubr.bf16.mxu0 %v278
  %721 = vmatmul.mubr.bf16.gmra.mrb[0].mxu0 %v277
  %v722 = vpop.f32.mrb[0].mxu0
  %v723 = vadd.f32 %v626, %v722
  %v724 = vpop.f32.mrb[0].mxu0
  %v725 = vpop.f32.mrb[0].mxu0
  %v726 = vadd.f32 %v629, %v725
  %v727 = vpop.f32.mrb[0].mxu0
  %728 = vmatprep.mubr.bf16.mxu0 %v283
  %729 = vmatmul.mubr.bf16.gmra.mrb[0].mxu0 %v282
  %v730 = vpop.f32.mrb[0].mxu0
  %v731 = vadd.f32 %v634, %v730
  %v732 = vpop.f32.mrb[0].mxu0
  %v733 = vpop.f32.mrb[0].mxu0
  %v734 = vadd.f32 %v637, %v733
  %v735 = vpop.f32.mrb[0].mxu0
  %736 = vmatprep.mubr.bf16.mxu0 %v288
  %737 = vmatmul.mubr.bf16.gmra.mrb[0].mxu0 %v287
  %v738 = vpop.f32.mrb[0].mxu0
  %v739 = vadd.f32 %v642, %v738
  %v740 = vpop.f32.mrb[0].mxu0
  %v741 = vpop.f32.mrb[0].mxu0
  %v742 = vadd.f32 %v645, %v741
  %v743 = vpop.f32.mrb[0].mxu0
  %744 = vmatprep.mubr.bf16.mxu0 %v293
  %745 = vmatmul.mubr.bf16.gmra.mrb[0].mxu0 %v292
  %v746 = vpop.f32.mrb[0].mxu0
  %v747 = vadd.f32 %v650, %v746
  %v748 = vpop.f32.mrb[0].mxu0
  %v749 = vpop.f32.mrb[0].mxu0
  %v750 = vadd.f32 %v653, %v749
  %v751 = vpop.f32.mrb[0].mxu0
  %752 = vmatprep.mubr.bf16.mxu0 %v298
  %753 = vmatmul.mubr.bf16.gmra.mrb[0].mxu0 %v297
  %v754 = vpop.f32.mrb[0].mxu0
  %v755 = vadd.f32 %v658, %v754
  %v756 = vpop.f32.mrb[0].mxu0
  %v757 = vpop.f32.mrb[0].mxu0
  %v758 = vadd.f32 %v661, %v757
  %v759 = vpop.f32.mrb[0].mxu0
  %760 = vmatprep.mubr.bf16.mxu0 %v303
  %761 = vmatmul.mubr.bf16.gmra.mrb[0].mxu0 %v302
  %v762 = vpop.f32.mrb[0].mxu0
  %v763 = vadd.f32 %v666, %v762
  %v764 = vpop.f32.mrb[0].mxu0
  %v765 = vpop.f32.mrb[0].mxu0
  %v766 = vadd.f32 %v669, %v765
  %v767 = vpop.f32.mrb[0].mxu0
  %768 = vmatprep.mubr.bf16.mxu0 %v308
  %769 = vmatmul.mubr.bf16.gmra.mrb[0].mxu0 %v307
  %v770 = vpop.f32.mrb[0].mxu0
  %v771 = vadd.f32 %v674, %v770
  %v772 = vpop.f32.mrb[0].mxu0
  %v773 = vpop.f32.mrb[0].mxu0
  %v774 = vadd.f32 %v677, %v773
  %v775 = vpop.f32.mrb[0].mxu0
  %776 = vdwg.mxu0
  %777 = vmatprep.subr.bf16.mxu0 0
  %778 = vmatpush1.bf16.msra.mxu0 %v518
  %779 = vmatprep.subr.bf16.mxu0 0
  %780 = vmatpush1.bf16.msra.mxu0 %v519
  %781 = vmatprep.subr.bf16.mxu0 0
  %782 = vmatpush1.bf16.msra.mxu0 %v520
  %783 = vmatprep.subr.bf16.mxu0 0
  %784 = vmatpush1.bf16.msra.mxu0 %v521
  %785 = vmatprep.subr.bf16.mxu0 0
  %786 = vmatpush1.bf16.msra.mxu0 0
  %787 = vmatprep.subr.bf16.mxu0 0
  %788 = vmatpush1.bf16.msra.mxu0 0
  %789 = vmatprep.subr.bf16.mxu0 0
  %790 = vmatpush1.bf16.msra.mxu0 0
  %791 = vmatprep.subr.bf16.mxu0 0
  %792 = vmatpush1.bf16.msra.mxu0 0
  %793 = vmatprep.subr.bf16.mxu0 0
  %794 = vmatpush1.bf16.msra.mxu0 0
  %795 = vmatprep.subr.bf16.mxu0 0
  %796 = vmatpush1.bf16.msra.mxu0 0
  %797 = vmatprep.subr.bf16.mxu0 0
  %798 = vmatpush1.bf16.msra.mxu0 0
  %799 = vmatprep.subr.bf16.mxu0 0
  %800 = vmatpush1.bf16.msra.mxu0 0
  %801 = vmatprep.subr.bf16.mxu0 0
  %802 = vmatpush1.bf16.msra.mxu0 0
  %803 = vmatprep.subr.bf16.mxu0 0
  %804 = vmatpush1.bf16.msra.mxu0 0
  %805 = vmatprep.subr.bf16.mxu0 0
  %806 = vmatpush1.bf16.msra.mxu0 0
  %807 = vmatprep.subr.bf16.mxu0 0
  %808 = vmatpush1.bf16.msra.mxu0 0
  %809 = vmatprep.mubr.bf16.mxu0 0
  %810 = vmatmul.mubr.bf16.gmra.mrb[0].mxu0 %v560
  %v811 = vpop.f32.mrb[0].mxu0
  %v812 = vadd.f32 %v715, %v811
  %v813 = vpop.f32.mrb[0].mxu0
  %v814 = vpop.f32.mrb[0].mxu0
  %v815 = vadd.f32 %v718, %v814
  %v816 = vpop.f32.mrb[0].mxu0
  %817 = vmatprep.mubr.bf16.mxu0 0
  %818 = vmatmul.mubr.bf16.gmra.mrb[0].mxu0 %v563
  %v819 = vpop.f32.mrb[0].mxu0
  %v820 = vadd.f32 %v723, %v819
  %v821 = vpop.f32.mrb[0].mxu0
  %v822 = vpop.f32.mrb[0].mxu0
  %v823 = vadd.f32 %v726, %v822
  %v824 = vpop.f32.mrb[0].mxu0
  %825 = vmatprep.mubr.bf16.mxu0 0
  %826 = vmatmul.mubr.bf16.gmra.mrb[0].mxu0 %v566
  %v827 = vpop.f32.mrb[0].mxu0
  %v828 = vadd.f32 %v731, %v827
  %v829 = vpop.f32.mrb[0].mxu0
  %v830 = vpop.f32.mrb[0].mxu0
  %v831 = vadd.f32 %v734, %v830
  %v832 = vpop.f32.mrb[0].mxu0
  %833 = vmatprep.mubr.bf16.mxu0 0
  %834 = vmatmul.mubr.bf16.gmra.mrb[0].mxu0 %v569
  %v835 = vpop.f32.mrb[0].mxu0
  %v836 = vadd.f32 %v739, %v835
  %v837 = vpop.f32.mrb[0].mxu0
  %v838 = vpop.f32.mrb[0].mxu0
  %v839 = vadd.f32 %v742, %v838
  %v840 = vpop.f32.mrb[0].mxu0
  %841 = vmatprep.mubr.bf16.mxu0 0
  %842 = vmatmul.mubr.bf16.gmra.mrb[0].mxu0 %v572
  %v843 = vpop.f32.mrb[0].mxu0
  %v844 = vadd.f32 %v747, %v843
  %v845 = vpop.f32.mrb[0].mxu0
  %v846 = vpop.f32.mrb[0].mxu0
  %v847 = vadd.f32 %v750, %v846
  %v848 = vpop.f32.mrb[0].mxu0
  %849 = vmatprep.mubr.bf16.mxu0 0
  %850 = vmatmul.mubr.bf16.gmra.mrb[0].mxu0 %v575
  %v851 = vpop.f32.mrb[0].mxu0
  %v852 = vadd.f32 %v755, %v851
  %v853 = vpop.f32.mrb[0].mxu0
  %v854 = vpop.f32.mrb[0].mxu0
  %v855 = vadd.f32 %v758, %v854
  %v856 = vpop.f32.mrb[0].mxu0
  %857 = vmatprep.mubr.bf16.mxu0 0
  %858 = vmatmul.mubr.bf16.gmra.mrb[0].mxu0 %v578
  %v859 = vpop.f32.mrb[0].mxu0
  %v860 = vadd.f32 %v763, %v859
  %v861 = vpop.f32.mrb[0].mxu0
  %v862 = vpop.f32.mrb[0].mxu0
  %v863 = vadd.f32 %v766, %v862
  %v864 = vpop.f32.mrb[0].mxu0
  %865 = vmatprep.mubr.bf16.mxu0 0
  %866 = vmatmul.mubr.bf16.gmra.mrb[0].mxu0 %v581
  %v867 = vpop.f32.mrb[0].mxu0
  %v868 = vadd.f32 %v771, %v867
  %v869 = vpop.f32.mrb[0].mxu0
  %v870 = vpop.f32.mrb[0].mxu0
  %v871 = vadd.f32 %v774, %v870
  %v872 = vpop.f32.mrb[0].mxu0
  %873 = vdwg.mxu0
  %v874 = vmax.f32 %v812, 0.0
  %v875 = vmax.f32 %v815, 0.0
  %v876 = vmax.f32 %v820, 0.0
  %v877 = vmax.f32 %v823, 0.0
  %v878 = vmax.f32 %v828, 0.0
  %v879 = vmax.f32 %v831, 0.0
  %v880 = vmax.f32 %v836, 0.0
  %v881 = vmax.f32 %v839, 0.0
  %v882 = vmax.f32 %v844, 0.0
  %v883 = vmax.f32 %v847, 0.0
  %v884 = vmax.f32 %v852, 0.0
  %v885 = vmax.f32 %v855, 0.0
  %v886 = vmax.f32 %v860, 0.0
  %v887 = vmax.f32 %v863, 0.0
  %v888 = vmax.f32 %v868, 0.0
  %v889 = vmax.f32 %v871, 0.0
  %890 = vst.msk [vmem:[%s3] sm:$0xff] %vm558, %v874
  %891 = vst.msk [vmem:[%s3 + $0x8] sm:$0xff] %vm558, %v875
  %892 = vst.msk [vmem:[%s3 + $0x10] sm:$0xff] %vm558, %v876
  %893 = vst.msk [vmem:[%s3 + $0x18] sm:$0xff] %vm558, %v877
  %894 = vst.msk [vmem:[%s3 + $0x20] sm:$0xff] %vm558, %v878
  %895 = vst.msk [vmem:[%s3 + $0x28] sm:$0xff] %vm558, %v879
  %896 = vst.msk [vmem:[%s3 + $0x30] sm:$0xff] %vm558, %v880
  %897 = vst.msk [vmem:[%s3 + $0x38] sm:$0xff] %vm558, %v881
  %898 = vst.msk [vmem:[%s3 + $0x40] sm:$0xff] %vm558, %v882
  %899 = vst.msk [vmem:[%s3 + $0x48] sm:$0xff] %vm558, %v883
  %900 = vst.msk [vmem:[%s3 + $0x50] sm:$0xff] %vm558, %v884
  %901 = vst.msk [vmem:[%s3 + $0x58] sm:$0xff] %vm558, %v885
  %902 = vst.msk [vmem:[%s3 + $0x60] sm:$0xff] %vm558, %v886
  %903 = vst.msk [vmem:[%s3 + $0x68] sm:$0xff] %vm558, %v887
  %904 = vst.msk [vmem:[%s3 + $0x70] sm:$0xff] %vm558, %v888
  %905 = vst.msk [vmem:[%s3 + $0x78] sm:$0xff] %vm558, %v889
  // Predicated region
  $region14: #{colorization_forward.15} parent=0 // pred_check
    _
  $region15: #{colorization_forward.15} parent=0 // pred_check_branch
    %907 = sbr.rel (0) target = $region17
  $region16: #{colorization_forward.15} parent=0 // pred_region
    _
  $region17: #{colorization_forward.15} parent=0 // pred_fallthru
    _
  // Predicated region
  $region18: #{colorization_forward.15} parent=0 // pred_check
    _
  $region19: #{colorization_forward.15} parent=0 // pred_check_branch
    %909 = sbr.rel (0) target = $region21
  $region20: #{colorization_forward.15} parent=0 // pred_region
    _
  $region21: #{colorization_forward.15} parent=0 // pred_fallthru
    _

// kernel: colorization_forward.16
$region0: #{colorization_forward.16}
  #allocation0 [shape = 'u32[]', space=smem, size = 0x4, offset = 0x4, fixed_abs, tag = 'smem constant byte address 0x4 - core index']
  #allocation1 [shape = 'u32[144,128]{1,0:T(1,128)}', space=vmem, size = 0x12000, scoped, tag = 'internal scratch']
  %s0 = inlined_call_operand.vmem [shape: bf16[128,576], index: 0, kind: input, shape index: {}]
  %s1 = inlined_call_operand.vmem [shape: bf16[576,64], index: 1, kind: input, shape index: {}]
  %s2 = inlined_call_operand.vmem [shape: f32[1,64], index: 2, kind: input, shape index: {}]
  %s3 = inlined_call_operand.vmem [shape: f32[128,64], index: 3, kind: input, shape index: {}]
  %s4 = inlined_call_operand.vmem [shape: f32[128,64], index: 4, kind: output, shape index: {}]
  %s5 = sld [smem:[#allocation0]]
  $region26: #{colorization_forward.16} parent=0
    _
  %s7 = ssub.s32 1, %s5
  %s8 = scalar_select 0, %s7, %s5
  // Predicated region
  $region2: #{colorization_forward.16} parent=0 // pred_check
    _
  $region3: #{colorization_forward.16} parent=0 // pred_check_branch
    %10 = sbr.rel (0) target = $region5
  $region4: #{colorization_forward.16} parent=0 // pred_region
    _
  $region5: #{colorization_forward.16} parent=0 // pred_fallthru
    _
  // Predicated region
  $region6: #{colorization_forward.16} parent=0 // pred_check
    _
  $region7: #{colorization_forward.16} parent=0 // pred_check_branch
    %12 = sbr.rel (0) target = $region9
  $region8: #{colorization_forward.16} parent=0 // pred_region
    _
  $region9: #{colorization_forward.16} parent=0 // pred_fallthru
    _
  // Predicated region
  $region10: #{colorization_forward.16} parent=0 // pred_check
    _
  $region11: #{colorization_forward.16} parent=0 // pred_check_branch
    %14 = sbr.rel (0) target = $region13
  $region12: #{colorization_forward.16} parent=0 // pred_region
    _
  $region13: #{colorization_forward.16} parent=0 // pred_fallthru
    _
  // Predicated region
  $region14: #{colorization_forward.16} parent=0 // pred_check
    _
  $region15: #{colorization_forward.16} parent=0 // pred_check_branch
    %16 = sbr.rel (0) target = $region17
  $region16: #{colorization_forward.16} parent=0 // pred_region
    _
  $region17: #{colorization_forward.16} parent=0 // pred_fallthru
    _
  %v18 = vld [vmem:[%s0] sm:$0xff]
  %v19 = vld [vmem:[%s0 + $0x8] sm:$0xff]
  %v20 = vld [vmem:[%s0 + $0x10] sm:$0xf]
  %v21 = vld [vmem:[%s0 + $0x14] sm:$0xff]
  %v22 = vld [vmem:[%s0 + $0x1c] sm:$0xff]
  %v23 = vld [vmem:[%s0 + $0x24] sm:$0xf]
  %v24 = vld [vmem:[%s0 + $0x28] sm:$0xff]
  %v25 = vld [vmem:[%s0 + $0x30] sm:$0xff]
  %v26 = vld [vmem:[%s0 + $0x38] sm:$0xf]
  %v27 = vld [vmem:[%s0 + $0x3c] sm:$0xff]
  %v28 = vld [vmem:[%s0 + $0x44] sm:$0xff]
  %v29 = vld [vmem:[%s0 + $0x4c] sm:$0xf]
  %v30 = vld [vmem:[%s0 + $0x50] sm:$0xff]
  %v31 = vld [vmem:[%s0 + $0x58] sm:$0xff]
  %v32 = vld [vmem:[%s0 + $0x60] sm:$0xf]
  %v33 = vld [vmem:[%s0 + $0x64] sm:$0xff]
  %v34 = vld [vmem:[%s0 + $0x6c] sm:$0xff]
  %v35 = vld [vmem:[%s0 + $0x74] sm:$0xf]
  %v36 = vld [vmem:[%s0 + $0x78] sm:$0xff]
  %v37 = vld [vmem:[%s0 + $0x80] sm:$0xff]
  %v38 = vld [vmem:[%s0 + $0x88] sm:$0xf]
  %v39 = vld [vmem:[%s0 + $0x8c] sm:$0xff]
  %v40 = vld [vmem:[%s0 + $0x94] sm:$0xff]
  %v41 = vld [vmem:[%s0 + $0x9c] sm:$0xf]
  %v42 = vld [vmem:[%s0 + $0xa0] sm:$0xff]
  %v43 = vld [vmem:[%s0 + $0xa8] sm:$0xff]
  %v44 = vld [vmem:[%s0 + $0xb0] sm:$0xf]
  %v45 = vld [vmem:[%s0 + $0xb4] sm:$0xff]
  %v46 = vld [vmem:[%s0 + $0xbc] sm:$0xff]
  %v47 = vld [vmem:[%s0 + $0xc4] sm:$0xf]
  %v48 = vld [vmem:[%s0 + $0xc8] sm:$0xff]
  %v49 = vld [vmem:[%s0 + $0xd0] sm:$0xff]
  %v50 = vld [vmem:[%s0 + $0xd8] sm:$0xf]
  %v51 = vld [vmem:[%s0 + $0xdc] sm:$0xff]
  %v52 = vld [vmem:[%s0 + $0xe4] sm:$0xff]
  %v53 = vld [vmem:[%s0 + $0xec] sm:$0xf]
  %v54 = vld [vmem:[%s0 + $0xf0] sm:$0xff]
  %v55 = vld [vmem:[%s0 + $0xf8] sm:$0xff]
  %v56 = vld [vmem:[%s0 + $0x100] sm:$0xf]
  %v57 = vld [vmem:[%s0 + $0x104] sm:$0xff]
  %v58 = vld [vmem:[%s0 + $0x10c] sm:$0xff]
  %v59 = vld [vmem:[%s0 + $0x114] sm:$0xf]
  %v60 = vld [vmem:[%s0 + $0x118] sm:$0xff]
  %v61 = vld [vmem:[%s0 + $0x120] sm:$0xff]
  %v62 = vld [vmem:[%s0 + $0x128] sm:$0xf]
  %v63 = vld [vmem:[%s0 + $0x12c] sm:$0xff]
  %v64 = vld [vmem:[%s0 + $0x134] sm:$0xff]
  %v65 = vld [vmem:[%s0 + $0x13c] sm:$0xf]
  %v66 = vld [vmem:[%s1] sm:$0xf]
  %v67 = vld [vmem:[%s1 + $0x4] sm:$0xf]
  %v68 = vld [vmem:[%s1 + $0x8] sm:$0xf]
  %v69 = vld [vmem:[%s1 + $0xc] sm:$0xf]
  %v70 = vld [vmem:[%s1 + $0x10] sm:$0xf]
  %v71 = vld [vmem:[%s1 + $0x14] sm:$0xf]
  %v72 = vld [vmem:[%s1 + $0x18] sm:$0xf]
  %v73 = vld [vmem:[%s1 + $0x1c] sm:$0xf]
  %v74 = vld [vmem:[%s1 + $0x20] sm:$0xf]
  %v75 = vld [vmem:[%s1 + $0x24] sm:$0xf]
  %v76 = vld [vmem:[%s1 + $0x28] sm:$0xf]
  %v77 = vld [vmem:[%s1 + $0x2c] sm:$0xf]
  %v78 = vld [vmem:[%s1 + $0x30] sm:$0xf]
  %v79 = vld [vmem:[%s1 + $0x34] sm:$0xf]
  %v80 = vld [vmem:[%s1 + $0x38] sm:$0xf]
  %v81 = vld [vmem:[%s1 + $0x3c] sm:$0xf]
  %v82 = vld [vmem:[%s1 + $0x40] sm:$0xf]
  %v83 = vld [vmem:[%s1 + $0x44] sm:$0xf]
  %v84 = vld [vmem:[%s1 + $0x48] sm:$0xf]
  %v85 = vld [vmem:[%s1 + $0x4c] sm:$0xf]
  %v86 = vld [vmem:[%s1 + $0x50] sm:$0xf]
  %v87 = vld [vmem:[%s1 + $0x54] sm:$0xf]
  %v88 = vld [vmem:[%s1 + $0x58] sm:$0xf]
  %v89 = vld [vmem:[%s1 + $0x5c] sm:$0xf]
  %v90 = vld [vmem:[%s1 + $0x60] sm:$0xf]
  %v91 = vld [vmem:[%s1 + $0x64] sm:$0xf]
  %v92 = vld [vmem:[%s1 + $0x68] sm:$0xf]
  %v93 = vld [vmem:[%s1 + $0x6c] sm:$0xf]
  %v94 = vld [vmem:[%s1 + $0x70] sm:$0xf]
  %v95 = vld [vmem:[%s1 + $0x74] sm:$0xf]
  %v96 = vld [vmem:[%s1 + $0x78] sm:$0xf]
  %v97 = vld [vmem:[%s1 + $0x7c] sm:$0xf]
  %v98 = vld [vmem:[%s1 + $0x80] sm:$0xf]
  %v99 = vld [vmem:[%s1 + $0x84] sm:$0xf]
  %v100 = vld [vmem:[%s1 + $0x88] sm:$0xf]
  %v101 = vld [vmem:[%s1 + $0x8c] sm:$0xf]
  %v102 = vld [vmem:[%s1 + $0x90] sm:$0xf]
  %v103 = vld [vmem:[%s1 + $0x94] sm:$0xf]
  %v104 = vld [vmem:[%s1 + $0x98] sm:$0xf]
  %v105 = vld [vmem:[%s1 + $0x9c] sm:$0xf]
  %v106 = vld [vmem:[%s1 + $0xa0] sm:$0xf]
  %v107 = vld [vmem:[%s1 + $0xa4] sm:$0xf]
  %v108 = vld [vmem:[%s1 + $0xa8] sm:$0xf]
  %v109 = vld [vmem:[%s1 + $0xac] sm:$0xf]
  %v110 = vld [vmem:[%s1 + $0xb0] sm:$0xf]
  %v111 = vld [vmem:[%s1 + $0xb4] sm:$0xf]
  %v112 = vld [vmem:[%s1 + $0xb8] sm:$0xf]
  %v113 = vld [vmem:[%s1 + $0xbc] sm:$0xf]
  %v114 = vld [vmem:[%s1 + $0xc0] sm:$0xf]
  %v115 = vld [vmem:[%s1 + $0xc4] sm:$0xf]
  %v116 = vld [vmem:[%s1 + $0xc8] sm:$0xf]
  %v117 = vld [vmem:[%s1 + $0xcc] sm:$0xf]
  %v118 = vld [vmem:[%s1 + $0xd0] sm:$0xf]
  %v119 = vld [vmem:[%s1 + $0xd4] sm:$0xf]
  %v120 = vld [vmem:[%s1 + $0xd8] sm:$0xf]
  %v121 = vld [vmem:[%s1 + $0xdc] sm:$0xf]
  %v122 = vld [vmem:[%s1 + $0xe0] sm:$0xf]
  %v123 = vld [vmem:[%s1 + $0xe4] sm:$0xf]
  %v124 = vld [vmem:[%s1 + $0xe8] sm:$0xf]
  %v125 = vld [vmem:[%s1 + $0xec] sm:$0xf]
  %v126 = vld [vmem:[%s1 + $0xf0] sm:$0xf]
  %v127 = vld [vmem:[%s1 + $0xf4] sm:$0xf]
  %v128 = vld [vmem:[%s1 + $0xf8] sm:$0xf]
  %v129 = vld [vmem:[%s1 + $0xfc] sm:$0xf]
  %v130 = vld [vmem:[%s1 + $0x100] sm:$0xf]
  %v131 = vld [vmem:[%s1 + $0x104] sm:$0xf]
  %v132 = vld [vmem:[%s1 + $0x108] sm:$0xf]
  %v133 = vld [vmem:[%s1 + $0x10c] sm:$0xf]
  %v134 = vld [vmem:[%s1 + $0x110] sm:$0xf]
  %v135 = vld [vmem:[%s1 + $0x114] sm:$0xf]
  %v136 = vld [vmem:[%s1 + $0x118] sm:$0xf]
  %v137 = vld [vmem:[%s1 + $0x11c] sm:$0xf]
  %v138 = vld [vmem:[%s2] sm:$0x1]
  %v140 = vlaneseq
  %v141 = vshrl.u32 %v140, 7
  %v142 = vsub.s32 0, %v141
  %v143 = vrot.slane %v138, %v142
  %v193 = vunpack.c.l.b16 %v18
  %v194 = vunpack.c.h.b16 %v18
  %v195 = vunpack.c.l.b16 %v19
  %v196 = vunpack.c.h.b16 %v19
  %v197 = vunpack.c.l.b16 %v20
  %v198 = vunpack.c.l.b16 %v21
  %v199 = vunpack.c.h.b16 %v21
  %v200 = vunpack.c.l.b16 %v22
  %v201 = vunpack.c.h.b16 %v22
  %v202 = vunpack.c.l.b16 %v23
  %v203 = vunpack.c.l.b16 %v24
  %v204 = vunpack.c.h.b16 %v24
  %v205 = vunpack.c.l.b16 %v25
  %v206 = vunpack.c.h.b16 %v25
  %v207 = vunpack.c.l.b16 %v26
  %v208 = vunpack.c.l.b16 %v27
  %v209 = vunpack.c.h.b16 %v27
  %v210 = vunpack.c.l.b16 %v28
  %v211 = vunpack.c.h.b16 %v28
  %v212 = vunpack.c.l.b16 %v29
  %v213 = vunpack.c.l.b16 %v30
  %v214 = vunpack.c.h.b16 %v30
  %v215 = vunpack.c.l.b16 %v31
  %v216 = vunpack.c.h.b16 %v31
  %v217 = vunpack.c.l.b16 %v32
  %v218 = vunpack.c.l.b16 %v33
  %v219 = vunpack.c.h.b16 %v33
  %v220 = vunpack.c.l.b16 %v34
  %v221 = vunpack.c.h.b16 %v34
  %v222 = vunpack.c.l.b16 %v35
  %v223 = vunpack.c.l.b16 %v36
  %v224 = vunpack.c.h.b16 %v36
  %v225 = vunpack.c.l.b16 %v37
  %v226 = vunpack.c.h.b16 %v37
  %v227 = vunpack.c.l.b16 %v38
  %v228 = vunpack.c.l.b16 %v39
  %v229 = vunpack.c.h.b16 %v39
  %v230 = vunpack.c.l.b16 %v40
  %v231 = vunpack.c.h.b16 %v40
  %v232 = vunpack.c.l.b16 %v41
  %v233 = vunpack.c.l.b16 %v42
  %v234 = vunpack.c.h.b16 %v42
  %v235 = vunpack.c.l.b16 %v43
  %v236 = vunpack.c.h.b16 %v43
  %v237 = vunpack.c.l.b16 %v44
  %v238 = vunpack.c.l.b16 %v45
  %v239 = vunpack.c.h.b16 %v45
  %v240 = vunpack.c.l.b16 %v46
  %v241 = vunpack.c.h.b16 %v46
  %v242 = vunpack.c.l.b16 %v47
  %v243 = vunpack.c.l.b16 %v48
  %v244 = vunpack.c.h.b16 %v48
  %v245 = vunpack.c.l.b16 %v49
  %v246 = vunpack.c.h.b16 %v49
  %v247 = vunpack.c.l.b16 %v50
  %v248 = vunpack.c.l.b16 %v51
  %v249 = vunpack.c.h.b16 %v51
  %v250 = vunpack.c.l.b16 %v52
  %v251 = vunpack.c.h.b16 %v52
  %v252 = vunpack.c.l.b16 %v53
  %v253 = vunpack.c.l.b16 %v54
  %v254 = vunpack.c.h.b16 %v54
  %v255 = vunpack.c.l.b16 %v55
  %v256 = vunpack.c.h.b16 %v55
  %v257 = vunpack.c.l.b16 %v56
  %v258 = vunpack.c.l.b16 %v57
  %v259 = vunpack.c.h.b16 %v57
  %v260 = vunpack.c.l.b16 %v58
  %v261 = vunpack.c.h.b16 %v58
  %v262 = vunpack.c.l.b16 %v59
  %v263 = vunpack.c.l.b16 %v60
  %v264 = vunpack.c.h.b16 %v60
  %v265 = vunpack.c.l.b16 %v61
  %v266 = vunpack.c.h.b16 %v61
  %v267 = vunpack.c.l.b16 %v62
  %v268 = vunpack.c.l.b16 %v63
  %v269 = vunpack.c.h.b16 %v63
  %v270 = vunpack.c.l.b16 %v64
  %v271 = vunpack.c.h.b16 %v64
  %v272 = vunpack.c.l.b16 %v65
  %v273 = vpack.c.b16 %v198, %v193
  %v274 = vpack.c.b16 %v199, %v194
  %v275 = vpack.c.b16 %v200, %v195
  %v276 = vpack.c.b16 %v201, %v196
  %v277 = vpack.c.b16 %v202, %v197
  %v278 = vpack.c.b16 %v208, %v203
  %v279 = vpack.c.b16 %v209, %v204
  %v280 = vpack.c.b16 %v210, %v205
  %v281 = vpack.c.b16 %v211, %v206
  %v282 = vpack.c.b16 %v212, %v207
  %v283 = vpack.c.b16 %v218, %v213
  %v284 = vpack.c.b16 %v219, %v214
  %v285 = vpack.c.b16 %v220, %v215
  %v286 = vpack.c.b16 %v221, %v216
  %v287 = vpack.c.b16 %v222, %v217
  %v288 = vpack.c.b16 %v228, %v223
  %v289 = vpack.c.b16 %v229, %v224
  %v290 = vpack.c.b16 %v230, %v225
  %v291 = vpack.c.b16 %v231, %v226
  %v292 = vpack.c.b16 %v232, %v227
  %v293 = vpack.c.b16 %v238, %v233
  %v294 = vpack.c.b16 %v239, %v234
  %v295 = vpack.c.b16 %v240, %v235
  %v296 = vpack.c.b16 %v241, %v236
  %v297 = vpack.c.b16 %v242, %v237
  %v298 = vpack.c.b16 %v248, %v243
  %v299 = vpack.c.b16 %v249, %v244
  %v300 = vpack.c.b16 %v250, %v245
  %v301 = vpack.c.b16 %v251, %v246
  %v302 = vpack.c.b16 %v252, %v247
  %v303 = vpack.c.b16 %v258, %v253
  %v304 = vpack.c.b16 %v259, %v254
  %v305 = vpack.c.b16 %v260, %v255
  %v306 = vpack.c.b16 %v261, %v256
  %v307 = vpack.c.b16 %v262, %v257
  %v308 = vpack.c.b16 %v268, %v263
  %v309 = vpack.c.b16 %v269, %v264
  %v310 = vpack.c.b16 %v270, %v265
  %v311 = vpack.c.b16 %v271, %v266
  %v312 = vpack.c.b16 %v272, %v267
  %v417 = vunpack.c.l.b16 %v66
  %v418 = vunpack.c.l.b16 %v67
  %v419 = vunpack.c.l.b16 %v68
  %v420 = vunpack.c.l.b16 %v69
  %v421 = vunpack.c.l.b16 %v70
  %v422 = vunpack.c.l.b16 %v71
  %v423 = vunpack.c.l.b16 %v72
  %v424 = vunpack.c.l.b16 %v73
  %v425 = vunpack.c.l.b16 %v74
  %v426 = vunpack.c.l.b16 %v75
  %v427 = vunpack.c.l.b16 %v76
  %v428 = vunpack.c.l.b16 %v77
  %v429 = vunpack.c.l.b16 %v78
  %v430 = vunpack.c.l.b16 %v79
  %v431 = vunpack.c.l.b16 %v80
  %v432 = vunpack.c.l.b16 %v81
  %v433 = vunpack.c.l.b16 %v82
  %v434 = vunpack.c.l.b16 %v83
  %v435 = vunpack.c.l.b16 %v84
  %v436 = vunpack.c.l.b16 %v85
  %v437 = vunpack.c.l.b16 %v86
  %v438 = vunpack.c.l.b16 %v87
  %v439 = vunpack.c.l.b16 %v88
  %v440 = vunpack.c.l.b16 %v89
  %v441 = vunpack.c.l.b16 %v90
  %v442 = vunpack.c.l.b16 %v91
  %v443 = vunpack.c.l.b16 %v92
  %v444 = vunpack.c.l.b16 %v93
  %v445 = vunpack.c.l.b16 %v94
  %v446 = vunpack.c.l.b16 %v95
  %v447 = vunpack.c.l.b16 %v96
  %v448 = vunpack.c.l.b16 %v97
  %v449 = vunpack.c.l.b16 %v98
  %v450 = vunpack.c.l.b16 %v99
  %v451 = vunpack.c.l.b16 %v100
  %v452 = vunpack.c.l.b16 %v101
  %v453 = vunpack.c.l.b16 %v102
  %v454 = vunpack.c.l.b16 %v103
  %v455 = vunpack.c.l.b16 %v104
  %v456 = vunpack.c.l.b16 %v105
  %v457 = vunpack.c.l.b16 %v106
  %v458 = vunpack.c.l.b16 %v107
  %v459 = vunpack.c.l.b16 %v108
  %v460 = vunpack.c.l.b16 %v109
  %v461 = vunpack.c.l.b16 %v110
  %v462 = vunpack.c.l.b16 %v111
  %v463 = vunpack.c.l.b16 %v112
  %v464 = vunpack.c.l.b16 %v113
  %v465 = vunpack.c.l.b16 %v114
  %v466 = vunpack.c.l.b16 %v115
  %v467 = vunpack.c.l.b16 %v116
  %v468 = vunpack.c.l.b16 %v117
  %v469 = vunpack.c.l.b16 %v118
  %v470 = vunpack.c.l.b16 %v119
  %v471 = vunpack.c.l.b16 %v120
  %v472 = vunpack.c.l.b16 %v121
  %v473 = vunpack.c.l.b16 %v122
  %v474 = vunpack.c.l.b16 %v123
  %v475 = vunpack.c.l.b16 %v124
  %v476 = vunpack.c.l.b16 %v125
  %v477 = vunpack.c.l.b16 %v126
  %v478 = vunpack.c.l.b16 %v127
  %v479 = vunpack.c.l.b16 %v128
  %v480 = vunpack.c.l.b16 %v129
  %v481 = vunpack.c.l.b16 %v130
  %v482 = vunpack.c.l.b16 %v131
  %v483 = vunpack.c.l.b16 %v132
  %v484 = vunpack.c.l.b16 %v133
  %v485 = vunpack.c.l.b16 %v134
  %v486 = vunpack.c.l.b16 %v135
  %v487 = vunpack.c.l.b16 %v136
  %v488 = vunpack.c.l.b16 %v137
  %v489 = vpack.c.b16 %v418, %v417
  %v490 = vpack.c.b16 %v420, %v419
  %v491 = vpack.c.b16 %v422, %v421
  %v492 = vpack.c.b16 %v424, %v423
  %v493 = vpack.c.b16 %v426, %v425
  %v494 = vpack.c.b16 %v428, %v427
  %v495 = vpack.c.b16 %v430, %v429
  %v496 = vpack.c.b16 %v432, %v431
  %v497 = vpack.c.b16 %v434, %v433
  %v498 = vpack.c.b16 %v436, %v435
  %v499 = vpack.c.b16 %v438, %v437
  %v500 = vpack.c.b16 %v440, %v439
  %v501 = vpack.c.b16 %v442, %v441
  %v502 = vpack.c.b16 %v444, %v443
  %v503 = vpack.c.b16 %v446, %v445
  %v504 = vpack.c.b16 %v448, %v447
  %v505 = vpack.c.b16 %v450, %v449
  %v506 = vpack.c.b16 %v452, %v451
  %v507 = vpack.c.b16 %v454, %v453
  %v508 = vpack.c.b16 %v456, %v455
  %v509 = vpack.c.b16 %v458, %v457
  %v510 = vpack.c.b16 %v460, %v459
  %v511 = vpack.c.b16 %v462, %v461
  %v512 = vpack.c.b16 %v464, %v463
  %v513 = vpack.c.b16 %v466, %v465
  %v514 = vpack.c.b16 %v468, %v467
  %v515 = vpack.c.b16 %v470, %v469
  %v516 = vpack.c.b16 %v472, %v471
  %v517 = vpack.c.b16 %v474, %v473
  %v518 = vpack.c.b16 %v476, %v475
  %v519 = vpack.c.b16 %v478, %v477
  %v520 = vpack.c.b16 %v480, %v479
  %v521 = vpack.c.b16 %v482, %v481
  %v522 = vpack.c.b16 %v484, %v483
  %v523 = vpack.c.b16 %v486, %v485
  %v524 = vpack.c.b16 %v488, %v487
  %vm561 = vcmask 523264
  %v563 = vsel %vm561, %v277, 0
  %v566 = vsel %vm561, %v282, 0
  %v569 = vsel %vm561, %v287, 0
  %v572 = vsel %vm561, %v292, 0
  %v575 = vsel %vm561, %v297, 0
  %v578 = vsel %vm561, %v302, 0
  %v581 = vsel %vm561, %v307, 0
  %v584 = vsel %vm561, %v312, 0
  %586 = vmatprep.subr.bf16.mxu0 0
  %587 = vmatpush1.bf16.msra.mxu0 %v489
  %588 = vmatprep.subr.bf16.mxu0 0
  %589 = vmatpush1.bf16.msra.mxu0 %v490
  %590 = vmatprep.subr.bf16.mxu0 0
  %591 = vmatpush1.bf16.msra.mxu0 %v491
  %592 = vmatprep.subr.bf16.mxu0 0
  %593 = vmatpush1.bf16.msra.mxu0 %v492
  %594 = vmatprep.subr.bf16.mxu0 0
  %595 = vmatpush1.bf16.msra.mxu0 %v493
  %596 = vmatprep.subr.bf16.mxu0 0
  %597 = vmatpush1.bf16.msra.mxu0 %v494
  %598 = vmatprep.subr.bf16.mxu0 0
  %599 = vmatpush1.bf16.msra.mxu0 %v495
  %600 = vmatprep.subr.bf16.mxu0 0
  %601 = vmatpush1.bf16.msra.mxu0 %v496
  %602 = vmatprep.subr.bf16.mxu0 0
  %603 = vmatpush1.bf16.msra.mxu0 %v497
  %604 = vmatprep.subr.bf16.mxu0 0
  %605 = vmatpush1.bf16.msra.mxu0 %v498
  %606 = vmatprep.subr.bf16.mxu0 0
  %607 = vmatpush1.bf16.msra.mxu0 %v499
  %608 = vmatprep.subr.bf16.mxu0 0
  %609 = vmatpush1.bf16.msra.mxu0 %v500
  %610 = vmatprep.subr.bf16.mxu0 0
  %611 = vmatpush1.bf16.msra.mxu0 %v501
  %612 = vmatprep.subr.bf16.mxu0 0
  %613 = vmatpush1.bf16.msra.mxu0 %v502
  %614 = vmatprep.subr.bf16.mxu0 0
  %615 = vmatpush1.bf16.msra.mxu0 %v503
  %616 = vmatprep.subr.bf16.mxu0 0
  %617 = vmatpush1.bf16.msra.mxu0 %v504
  %618 = vmatprep.mubr.bf16.mxu0 %v274
  %619 = vmatmul.mubr.bf16.gmra.mrb[0].mxu0 %v273
  %v620 = vpop.f32.mrb[0].mxu0
  %v621 = vadd.f32 %v143, %v620
  %v622 = vpop.f32.mrb[0].mxu0
  %v623 = vpop.f32.mrb[0].mxu0
  %v624 = vadd.f32 %v143, %v623
  %v625 = vpop.f32.mrb[0].mxu0
  %626 = vmatprep.mubr.bf16.mxu0 %v279
  %627 = vmatmul.mubr.bf16.gmra.mrb[0].mxu0 %v278
  %v628 = vpop.f32.mrb[0].mxu0
  %v629 = vadd.f32 %v143, %v628
  %v630 = vpop.f32.mrb[0].mxu0
  %v631 = vpop.f32.mrb[0].mxu0
  %v632 = vadd.f32 %v143, %v631
  %v633 = vpop.f32.mrb[0].mxu0
  %634 = vmatprep.mubr.bf16.mxu0 %v284
  %635 = vmatmul.mubr.bf16.gmra.mrb[0].mxu0 %v283
  %v636 = vpop.f32.mrb[0].mxu0
  %v637 = vadd.f32 %v143, %v636
  %v638 = vpop.f32.mrb[0].mxu0
  %v639 = vpop.f32.mrb[0].mxu0
  %v640 = vadd.f32 %v143, %v639
  %v641 = vpop.f32.mrb[0].mxu0
  %642 = vmatprep.mubr.bf16.mxu0 %v289
  %643 = vmatmul.mubr.bf16.gmra.mrb[0].mxu0 %v288
  %v644 = vpop.f32.mrb[0].mxu0
  %v645 = vadd.f32 %v143, %v644
  %v646 = vpop.f32.mrb[0].mxu0
  %v647 = vpop.f32.mrb[0].mxu0
  %v648 = vadd.f32 %v143, %v647
  %v649 = vpop.f32.mrb[0].mxu0
  %650 = vmatprep.mubr.bf16.mxu0 %v294
  %651 = vmatmul.mubr.bf16.gmra.mrb[0].mxu0 %v293
  %v652 = vpop.f32.mrb[0].mxu0
  %v653 = vadd.f32 %v143, %v652
  %v654 = vpop.f32.mrb[0].mxu0
  %v655 = vpop.f32.mrb[0].mxu0
  %v656 = vadd.f32 %v143, %v655
  %v657 = vpop.f32.mrb[0].mxu0
  %658 = vmatprep.mubr.bf16.mxu0 %v299
  %659 = vmatmul.mubr.bf16.gmra.mrb[0].mxu0 %v298
  %v660 = vpop.f32.mrb[0].mxu0
  %v661 = vadd.f32 %v143, %v660
  %v662 = vpop.f32.mrb[0].mxu0
  %v663 = vpop.f32.mrb[0].mxu0
  %v664 = vadd.f32 %v143, %v663
  %v665 = vpop.f32.mrb[0].mxu0
  %666 = vmatprep.mubr.bf16.mxu0 %v304
  %667 = vmatmul.mubr.bf16.gmra.mrb[0].mxu0 %v303
  %v668 = vpop.f32.mrb[0].mxu0
  %v669 = vadd.f32 %v143, %v668
  %v670 = vpop.f32.mrb[0].mxu0
  %v671 = vpop.f32.mrb[0].mxu0
  %v672 = vadd.f32 %v143, %v671
  %v673 = vpop.f32.mrb[0].mxu0
  %674 = vmatprep.mubr.bf16.mxu0 %v309
  %675 = vmatmul.mubr.bf16.gmra.mrb[0].mxu0 %v308
  %v676 = vpop.f32.mrb[0].mxu0
  %v677 = vadd.f32 %v143, %v676
  %v678 = vpop.f32.mrb[0].mxu0
  %v679 = vpop.f32.mrb[0].mxu0
  %v680 = vadd.f32 %v143, %v679
  %v681 = vpop.f32.mrb[0].mxu0
  %682 = vdwg.mxu0
  %683 = vmatprep.subr.bf16.mxu0 0
  %684 = vmatpush1.bf16.msra.mxu0 %v505
  %685 = vmatprep.subr.bf16.mxu0 0
  %686 = vmatpush1.bf16.msra.mxu0 %v506
  %687 = vmatprep.subr.bf16.mxu0 0
  %688 = vmatpush1.bf16.msra.mxu0 %v507
  %689 = vmatprep.subr.bf16.mxu0 0
  %690 = vmatpush1.bf16.msra.mxu0 %v508
  %691 = vmatprep.subr.bf16.mxu0 0
  %692 = vmatpush1.bf16.msra.mxu0 %v509
  %693 = vmatprep.subr.bf16.mxu0 0
  %694 = vmatpush1.bf16.msra.mxu0 %v510
  %695 = vmatprep.subr.bf16.mxu0 0
  %696 = vmatpush1.bf16.msra.mxu0 %v511
  %697 = vmatprep.subr.bf16.mxu0 0
  %698 = vmatpush1.bf16.msra.mxu0 %v512
  %699 = vmatprep.subr.bf16.mxu0 0
  %700 = vmatpush1.bf16.msra.mxu0 %v513
  %701 = vmatprep.subr.bf16.mxu0 0
  %702 = vmatpush1.bf16.msra.mxu0 %v514
  %703 = vmatprep.subr.bf16.mxu0 0
  %704 = vmatpush1.bf16.msra.mxu0 %v515
  %705 = vmatprep.subr.bf16.mxu0 0
  %706 = vmatpush1.bf16.msra.mxu0 %v516
  %707 = vmatprep.subr.bf16.mxu0 0
  %708 = vmatpush1.bf16.msra.mxu0 %v517
  %709 = vmatprep.subr.bf16.mxu0 0
  %710 = vmatpush1.bf16.msra.mxu0 %v518
  %711 = vmatprep.subr.bf16.mxu0 0
  %712 = vmatpush1.bf16.msra.mxu0 %v519
  %713 = vmatprep.subr.bf16.mxu0 0
  %714 = vmatpush1.bf16.msra.mxu0 %v520
  %715 = vmatprep.mubr.bf16.mxu0 %v276
  %716 = vmatmul.mubr.bf16.gmra.mrb[0].mxu0 %v275
  %v717 = vpop.f32.mrb[0].mxu0
  %v718 = vadd.f32 %v621, %v717
  %v719 = vpop.f32.mrb[0].mxu0
  %v720 = vpop.f32.mrb[0].mxu0
  %v721 = vadd.f32 %v624, %v720
  %v722 = vpop.f32.mrb[0].mxu0
  %723 = vmatprep.mubr.bf16.mxu0 %v281
  %724 = vmatmul.mubr.bf16.gmra.mrb[0].mxu0 %v280
  %v725 = vpop.f32.mrb[0].mxu0
  %v726 = vadd.f32 %v629, %v725
  %v727 = vpop.f32.mrb[0].mxu0
  %v728 = vpop.f32.mrb[0].mxu0
  %v729 = vadd.f32 %v632, %v728
  %v730 = vpop.f32.mrb[0].mxu0
  %731 = vmatprep.mubr.bf16.mxu0 %v286
  %732 = vmatmul.mubr.bf16.gmra.mrb[0].mxu0 %v285
  %v733 = vpop.f32.mrb[0].mxu0
  %v734 = vadd.f32 %v637, %v733
  %v735 = vpop.f32.mrb[0].mxu0
  %v736 = vpop.f32.mrb[0].mxu0
  %v737 = vadd.f32 %v640, %v736
  %v738 = vpop.f32.mrb[0].mxu0
  %739 = vmatprep.mubr.bf16.mxu0 %v291
  %740 = vmatmul.mubr.bf16.gmra.mrb[0].mxu0 %v290
  %v741 = vpop.f32.mrb[0].mxu0
  %v742 = vadd.f32 %v645, %v741
  %v743 = vpop.f32.mrb[0].mxu0
  %v744 = vpop.f32.mrb[0].mxu0
  %v745 = vadd.f32 %v648, %v744
  %v746 = vpop.f32.mrb[0].mxu0
  %747 = vmatprep.mubr.bf16.mxu0 %v296
  %748 = vmatmul.mubr.bf16.gmra.mrb[0].mxu0 %v295
  %v749 = vpop.f32.mrb[0].mxu0
  %v750 = vadd.f32 %v653, %v749
  %v751 = vpop.f32.mrb[0].mxu0
  %v752 = vpop.f32.mrb[0].mxu0
  %v753 = vadd.f32 %v656, %v752
  %v754 = vpop.f32.mrb[0].mxu0
  %755 = vmatprep.mubr.bf16.mxu0 %v301
  %756 = vmatmul.mubr.bf16.gmra.mrb[0].mxu0 %v300
  %v757 = vpop.f32.mrb[0].mxu0
  %v758 = vadd.f32 %v661, %v757
  %v759 = vpop.f32.mrb[0].mxu0
  %v760 = vpop.f32.mrb[0].mxu0
  %v761 = vadd.f32 %v664, %v760
  %v762 = vpop.f32.mrb[0].mxu0
  %763 = vmatprep.mubr.bf16.mxu0 %v306
  %764 = vmatmul.mubr.bf16.gmra.mrb[0].mxu0 %v305
  %v765 = vpop.f32.mrb[0].mxu0
  %v766 = vadd.f32 %v669, %v765
  %v767 = vpop.f32.mrb[0].mxu0
  %v768 = vpop.f32.mrb[0].mxu0
  %v769 = vadd.f32 %v672, %v768
  %v770 = vpop.f32.mrb[0].mxu0
  %771 = vmatprep.mubr.bf16.mxu0 %v311
  %772 = vmatmul.mubr.bf16.gmra.mrb[0].mxu0 %v310
  %v773 = vpop.f32.mrb[0].mxu0
  %v774 = vadd.f32 %v677, %v773
  %v775 = vpop.f32.mrb[0].mxu0
  %v776 = vpop.f32.mrb[0].mxu0
  %v777 = vadd.f32 %v680, %v776
  %v778 = vpop.f32.mrb[0].mxu0
  %779 = vdwg.mxu0
  %780 = vmatprep.subr.bf16.mxu0 0
  %781 = vmatpush1.bf16.msra.mxu0 %v521
  %782 = vmatprep.subr.bf16.mxu0 0
  %783 = vmatpush1.bf16.msra.mxu0 %v522
  %784 = vmatprep.subr.bf16.mxu0 0
  %785 = vmatpush1.bf16.msra.mxu0 %v523
  %786 = vmatprep.subr.bf16.mxu0 0
  %787 = vmatpush1.bf16.msra.mxu0 %v524
  %788 = vmatprep.subr.bf16.mxu0 0
  %789 = vmatpush1.bf16.msra.mxu0 0
  %790 = vmatprep.subr.bf16.mxu0 0
  %791 = vmatpush1.bf16.msra.mxu0 0
  %792 = vmatprep.subr.bf16.mxu0 0
  %793 = vmatpush1.bf16.msra.mxu0 0
  %794 = vmatprep.subr.bf16.mxu0 0
  %795 = vmatpush1.bf16.msra.mxu0 0
  %796 = vmatprep.subr.bf16.mxu0 0
  %797 = vmatpush1.bf16.msra.mxu0 0
  %798 = vmatprep.subr.bf16.mxu0 0
  %799 = vmatpush1.bf16.msra.mxu0 0
  %800 = vmatprep.subr.bf16.mxu0 0
  %801 = vmatpush1.bf16.msra.mxu0 0
  %802 = vmatprep.subr.bf16.mxu0 0
  %803 = vmatpush1.bf16.msra.mxu0 0
  %804 = vmatprep.subr.bf16.mxu0 0
  %805 = vmatpush1.bf16.msra.mxu0 0
  %806 = vmatprep.subr.bf16.mxu0 0
  %807 = vmatpush1.bf16.msra.mxu0 0
  %808 = vmatprep.subr.bf16.mxu0 0
  %809 = vmatpush1.bf16.msra.mxu0 0
  %810 = vmatprep.subr.bf16.mxu0 0
  %811 = vmatpush1.bf16.msra.mxu0 0
  %812 = vmatprep.mubr.bf16.mxu0 0
  %813 = vmatmul.mubr.bf16.gmra.mrb[0].mxu0 %v563
  %v814 = vpop.f32.mrb[0].mxu0
  %v815 = vadd.f32 %v718, %v814
  %v816 = vpop.f32.mrb[0].mxu0
  %v817 = vpop.f32.mrb[0].mxu0
  %v818 = vadd.f32 %v721, %v817
  %v819 = vpop.f32.mrb[0].mxu0
  %820 = vmatprep.mubr.bf16.mxu0 0
  %821 = vmatmul.mubr.bf16.gmra.mrb[0].mxu0 %v566
  %v822 = vpop.f32.mrb[0].mxu0
  %v823 = vadd.f32 %v726, %v822
  %v824 = vpop.f32.mrb[0].mxu0
  %v825 = vpop.f32.mrb[0].mxu0
  %v826 = vadd.f32 %v729, %v825
  %v827 = vpop.f32.mrb[0].mxu0
  %828 = vmatprep.mubr.bf16.mxu0 0
  %829 = vmatmul.mubr.bf16.gmra.mrb[0].mxu0 %v569
  %v830 = vpop.f32.mrb[0].mxu0
  %v831 = vadd.f32 %v734, %v830
  %v832 = vpop.f32.mrb[0].mxu0
  %v833 = vpop.f32.mrb[0].mxu0
  %v834 = vadd.f32 %v737, %v833
  %v835 = vpop.f32.mrb[0].mxu0
  %836 = vmatprep.mubr.bf16.mxu0 0
  %837 = vmatmul.mubr.bf16.gmra.mrb[0].mxu0 %v572
  %v838 = vpop.f32.mrb[0].mxu0
  %v839 = vadd.f32 %v742, %v838
  %v840 = vpop.f32.mrb[0].mxu0
  %v841 = vpop.f32.mrb[0].mxu0
  %v842 = vadd.f32 %v745, %v841
  %v843 = vpop.f32.mrb[0].mxu0
  %844 = vmatprep.mubr.bf16.mxu0 0
  %845 = vmatmul.mubr.bf16.gmra.mrb[0].mxu0 %v575
  %v846 = vpop.f32.mrb[0].mxu0
  %v847 = vadd.f32 %v750, %v846
  %v848 = vpop.f32.mrb[0].mxu0
  %v849 = vpop.f32.mrb[0].mxu0
  %v850 = vadd.f32 %v753, %v849
  %v851 = vpop.f32.mrb[0].mxu0
  %852 = vmatprep.mubr.bf16.mxu0 0
  %853 = vmatmul.mubr.bf16.gmra.mrb[0].mxu0 %v578
  %v854 = vpop.f32.mrb[0].mxu0
  %v855 = vadd.f32 %v758, %v854
  %v856 = vpop.f32.mrb[0].mxu0
  %v857 = vpop.f32.mrb[0].mxu0
  %v858 = vadd.f32 %v761, %v857
  %v859 = vpop.f32.mrb[0].mxu0
  %860 = vmatprep.mubr.bf16.mxu0 0
  %861 = vmatmul.mubr.bf16.gmra.mrb[0].mxu0 %v581
  %v862 = vpop.f32.mrb[0].mxu0
  %v863 = vadd.f32 %v766, %v862
  %v864 = vpop.f32.mrb[0].mxu0
  %v865 = vpop.f32.mrb[0].mxu0
  %v866 = vadd.f32 %v769, %v865
  %v867 = vpop.f32.mrb[0].mxu0
  %868 = vmatprep.mubr.bf16.mxu0 0
  %869 = vmatmul.mubr.bf16.gmra.mrb[0].mxu0 %v584
  %v870 = vpop.f32.mrb[0].mxu0
  %v871 = vadd.f32 %v774, %v870
  %v872 = vpop.f32.mrb[0].mxu0
  %v873 = vpop.f32.mrb[0].mxu0
  %v874 = vadd.f32 %v777, %v873
  %v875 = vpop.f32.mrb[0].mxu0
  %876 = vdwg.mxu0
  %v877 = vld [vmem:[%s3] sm:$0xff]
  %v878 = vld [vmem:[%s3 + $0x8] sm:$0xff]
  %v879 = vld [vmem:[%s3 + $0x10] sm:$0xff]
  %v880 = vld [vmem:[%s3 + $0x18] sm:$0xff]
  %v881 = vld [vmem:[%s3 + $0x20] sm:$0xff]
  %v882 = vld [vmem:[%s3 + $0x28] sm:$0xff]
  %v883 = vld [vmem:[%s3 + $0x30] sm:$0xff]
  %v884 = vld [vmem:[%s3 + $0x38] sm:$0xff]
  %v885 = vld [vmem:[%s3 + $0x40] sm:$0xff]
  %v886 = vld [vmem:[%s3 + $0x48] sm:$0xff]
  %v887 = vld [vmem:[%s3 + $0x50] sm:$0xff]
  %v888 = vld [vmem:[%s3 + $0x58] sm:$0xff]
  %v889 = vld [vmem:[%s3 + $0x60] sm:$0xff]
  %v890 = vld [vmem:[%s3 + $0x68] sm:$0xff]
  %v891 = vld [vmem:[%s3 + $0x70] sm:$0xff]
  %v892 = vld [vmem:[%s3 + $0x78] sm:$0xff]
  %v893 = vadd.f32 %v815, %v877
  %v894 = vadd.f32 %v818, %v878
  %v895 = vadd.f32 %v823, %v879
  %v896 = vadd.f32 %v826, %v880
  %v897 = vadd.f32 %v831, %v881
  %v898 = vadd.f32 %v834, %v882
  %v899 = vadd.f32 %v839, %v883
  %v900 = vadd.f32 %v842, %v884
  %v901 = vadd.f32 %v847, %v885
  %v902 = vadd.f32 %v850, %v886
  %v903 = vadd.f32 %v855, %v887
  %v904 = vadd.f32 %v858, %v888
  %v905 = vadd.f32 %v863, %v889
  %v906 = vadd.f32 %v866, %v890
  %v907 = vadd.f32 %v871, %v891
  %v908 = vadd.f32 %v874, %v892
  %v909 = vmax.f32 %v893, 0.0
  %v910 = vmax.f32 %v894, 0.0
  %v911 = vmax.f32 %v895, 0.0
  %v912 = vmax.f32 %v896, 0.0
  %v913 = vmax.f32 %v897, 0.0
  %v914 = vmax.f32 %v898, 0.0
  %v915 = vmax.f32 %v899, 0.0
  %v916 = vmax.f32 %v900, 0.0
  %v917 = vmax.f32 %v901, 0.0
  %v918 = vmax.f32 %v902, 0.0
  %v919 = vmax.f32 %v903, 0.0
  %v920 = vmax.f32 %v904, 0.0
  %v921 = vmax.f32 %v905, 0.0
  %v922 = vmax.f32 %v906, 0.0
  %v923 = vmax.f32 %v907, 0.0
  %v924 = vmax.f32 %v908, 0.0
  %925 = vst.msk [vmem:[%s4] sm:$0xff] %vm561, %v909
  %926 = vst.msk [vmem:[%s4 + $0x8] sm:$0xff] %vm561, %v910
  %927 = vst.msk [vmem:[%s4 + $0x10] sm:$0xff] %vm561, %v911
  %928 = vst.msk [vmem:[%s4 + $0x18] sm:$0xff] %vm561, %v912
  %929 = vst.msk [vmem:[%s4 + $0x20] sm:$0xff] %vm561, %v913
  %930 = vst.msk [vmem:[%s4 + $0x28] sm:$0xff] %vm561, %v914
  %931 = vst.msk [vmem:[%s4 + $0x30] sm:$0xff] %vm561, %v915
  %932 = vst.msk [vmem:[%s4 + $0x38] sm:$0xff] %vm561, %v916
  %933 = vst.msk [vmem:[%s4 + $0x40] sm:$0xff] %vm561, %v917
  %934 = vst.msk [vmem:[%s4 + $0x48] sm:$0xff] %vm561, %v918
  %935 = vst.msk [vmem:[%s4 + $0x50] sm:$0xff] %vm561, %v919
  %936 = vst.msk [vmem:[%s4 + $0x58] sm:$0xff] %vm561, %v920
  %937 = vst.msk [vmem:[%s4 + $0x60] sm:$0xff] %vm561, %v921
  %938 = vst.msk [vmem:[%s4 + $0x68] sm:$0xff] %vm561, %v922
  %939 = vst.msk [vmem:[%s4 + $0x70] sm:$0xff] %vm561, %v923
  %940 = vst.msk [vmem:[%s4 + $0x78] sm:$0xff] %vm561, %v924
  // Predicated region
  $region18: #{colorization_forward.16} parent=0 // pred_check
    _
  $region19: #{colorization_forward.16} parent=0 // pred_check_branch
    %942 = sbr.rel (0) target = $region21
  $region20: #{colorization_forward.16} parent=0 // pred_region
    _
  $region21: #{colorization_forward.16} parent=0 // pred_fallthru
    _
  // Predicated region
  $region22: #{colorization_forward.16} parent=0 // pred_check
    _
  $region23: #{colorization_forward.16} parent=0 // pred_check_branch
    %944 = sbr.rel (0) target = $region25
  $region24: #{colorization_forward.16} parent=0 // pred_region
    _
  $region25: #{colorization_forward.16} parent=0 // pred_fallthru
    _

// kernel: colorization_forward.20
$region0: #{colorization_forward.20}
  #allocation0 [shape = 'u32[]', space=smem, size = 0x4, offset = 0x4, fixed_abs, tag = 'smem constant byte address 0x4 - core index']
  #allocation1 [shape = 'u32[144,128]{1,0:T(1,128)}', space=vmem, size = 0x12000, scoped, tag = 'internal scratch']
  %s0 = inlined_call_operand.vmem [shape: bf16[32,576], index: 0, kind: input, shape index: {}]
  %s1 = inlined_call_operand.vmem [shape: bf16[576,128], index: 1, kind: input, shape index: {}]
  %s2 = inlined_call_operand.vmem [shape: f32[1,128], index: 2, kind: input, shape index: {}]
  %s3 = inlined_call_operand.vmem [shape: f32[32,128], index: 3, kind: output, shape index: {}]
  %s4 = sld [smem:[#allocation0]]
  $region22: #{colorization_forward.20} parent=0
    _
  %s6 = ssub.s32 1, %s4
  %s7 = scalar_select 0, %s6, %s4
  // Predicated region
  $region2: #{colorization_forward.20} parent=0 // pred_check
    _
  $region3: #{colorization_forward.20} parent=0 // pred_check_branch
    %9 = sbr.rel (0) target = $region5
  $region4: #{colorization_forward.20} parent=0 // pred_region
    _
  $region5: #{colorization_forward.20} parent=0 // pred_fallthru
    _
  // Predicated region
  $region6: #{colorization_forward.20} parent=0 // pred_check
    _
  $region7: #{colorization_forward.20} parent=0 // pred_check_branch
    %11 = sbr.rel (0) target = $region9
  $region8: #{colorization_forward.20} parent=0 // pred_region
    _
  $region9: #{colorization_forward.20} parent=0 // pred_fallthru
    _
  // Predicated region
  $region10: #{colorization_forward.20} parent=0 // pred_check
    _
  $region11: #{colorization_forward.20} parent=0 // pred_check_branch
    %13 = sbr.rel (0) target = $region13
  $region12: #{colorization_forward.20} parent=0 // pred_region
    _
  $region13: #{colorization_forward.20} parent=0 // pred_fallthru
    _
  %v15 = vld [vmem:[%s0] sm:$0xff]
  %v16 = vld [vmem:[%s0 + $0x8] sm:$0xff]
  %v17 = vld [vmem:[%s0 + $0x10] sm:$0xf]
  %v18 = vld [vmem:[%s0 + $0x14] sm:$0xff]
  %v19 = vld [vmem:[%s0 + $0x1c] sm:$0xff]
  %v20 = vld [vmem:[%s0 + $0x24] sm:$0xf]
  %v21 = vld [vmem:[%s0 + $0x28] sm:$0xff]
  %v22 = vld [vmem:[%s0 + $0x30] sm:$0xff]
  %v23 = vld [vmem:[%s0 + $0x38] sm:$0xf]
  %v24 = vld [vmem:[%s0 + $0x3c] sm:$0xff]
  %v25 = vld [vmem:[%s0 + $0x44] sm:$0xff]
  %v26 = vld [vmem:[%s0 + $0x4c] sm:$0xf]
  %v27 = vld [vmem:[%s1] sm:$0xf]
  %v28 = vld [vmem:[%s1 + $0x4] sm:$0xf]
  %v29 = vld [vmem:[%s1 + $0x8] sm:$0xf]
  %v30 = vld [vmem:[%s1 + $0xc] sm:$0xf]
  %v31 = vld [vmem:[%s1 + $0x10] sm:$0xf]
  %v32 = vld [vmem:[%s1 + $0x14] sm:$0xf]
  %v33 = vld [vmem:[%s1 + $0x18] sm:$0xf]
  %v34 = vld [vmem:[%s1 + $0x1c] sm:$0xf]
  %v35 = vld [vmem:[%s1 + $0x20] sm:$0xf]
  %v36 = vld [vmem:[%s1 + $0x24] sm:$0xf]
  %v37 = vld [vmem:[%s1 + $0x28] sm:$0xf]
  %v38 = vld [vmem:[%s1 + $0x2c] sm:$0xf]
  %v39 = vld [vmem:[%s1 + $0x30] sm:$0xf]
  %v40 = vld [vmem:[%s1 + $0x34] sm:$0xf]
  %v41 = vld [vmem:[%s1 + $0x38] sm:$0xf]
  %v42 = vld [vmem:[%s1 + $0x3c] sm:$0xf]
  %v43 = vld [vmem:[%s1 + $0x40] sm:$0xf]
  %v44 = vld [vmem:[%s1 + $0x44] sm:$0xf]
  %v45 = vld [vmem:[%s1 + $0x48] sm:$0xf]
  %v46 = vld [vmem:[%s1 + $0x4c] sm:$0xf]
  %v47 = vld [vmem:[%s1 + $0x50] sm:$0xf]
  %v48 = vld [vmem:[%s1 + $0x54] sm:$0xf]
  %v49 = vld [vmem:[%s1 + $0x58] sm:$0xf]
  %v50 = vld [vmem:[%s1 + $0x5c] sm:$0xf]
  %v51 = vld [vmem:[%s1 + $0x60] sm:$0xf]
  %v52 = vld [vmem:[%s1 + $0x64] sm:$0xf]
  %v53 = vld [vmem:[%s1 + $0x68] sm:$0xf]
  %v54 = vld [vmem:[%s1 + $0x6c] sm:$0xf]
  %v55 = vld [vmem:[%s1 + $0x70] sm:$0xf]
  %v56 = vld [vmem:[%s1 + $0x74] sm:$0xf]
  %v57 = vld [vmem:[%s1 + $0x78] sm:$0xf]
  %v58 = vld [vmem:[%s1 + $0x7c] sm:$0xf]
  %v59 = vld [vmem:[%s1 + $0x80] sm:$0xf]
  %v60 = vld [vmem:[%s1 + $0x84] sm:$0xf]
  %v61 = vld [vmem:[%s1 + $0x88] sm:$0xf]
  %v62 = vld [vmem:[%s1 + $0x8c] sm:$0xf]
  %v63 = vld [vmem:[%s1 + $0x90] sm:$0xf]
  %v64 = vld [vmem:[%s1 + $0x94] sm:$0xf]
  %v65 = vld [vmem:[%s1 + $0x98] sm:$0xf]
  %v66 = vld [vmem:[%s1 + $0x9c] sm:$0xf]
  %v67 = vld [vmem:[%s1 + $0xa0] sm:$0xf]
  %v68 = vld [vmem:[%s1 + $0xa4] sm:$0xf]
  %v69 = vld [vmem:[%s1 + $0xa8] sm:$0xf]
  %v70 = vld [vmem:[%s1 + $0xac] sm:$0xf]
  %v71 = vld [vmem:[%s1 + $0xb0] sm:$0xf]
  %v72 = vld [vmem:[%s1 + $0xb4] sm:$0xf]
  %v73 = vld [vmem:[%s1 + $0xb8] sm:$0xf]
  %v74 = vld [vmem:[%s1 + $0xbc] sm:$0xf]
  %v75 = vld [vmem:[%s1 + $0xc0] sm:$0xf]
  %v76 = vld [vmem:[%s1 + $0xc4] sm:$0xf]
  %v77 = vld [vmem:[%s1 + $0xc8] sm:$0xf]
  %v78 = vld [vmem:[%s1 + $0xcc] sm:$0xf]
  %v79 = vld [vmem:[%s1 + $0xd0] sm:$0xf]
  %v80 = vld [vmem:[%s1 + $0xd4] sm:$0xf]
  %v81 = vld [vmem:[%s1 + $0xd8] sm:$0xf]
  %v82 = vld [vmem:[%s1 + $0xdc] sm:$0xf]
  %v83 = vld [vmem:[%s1 + $0xe0] sm:$0xf]
  %v84 = vld [vmem:[%s1 + $0xe4] sm:$0xf]
  %v85 = vld [vmem:[%s1 + $0xe8] sm:$0xf]
  %v86 = vld [vmem:[%s1 + $0xec] sm:$0xf]
  %v87 = vld [vmem:[%s1 + $0xf0] sm:$0xf]
  %v88 = vld [vmem:[%s1 + $0xf4] sm:$0xf]
  %v89 = vld [vmem:[%s1 + $0xf8] sm:$0xf]
  %v90 = vld [vmem:[%s1 + $0xfc] sm:$0xf]
  %v91 = vld [vmem:[%s1 + $0x100] sm:$0xf]
  %v92 = vld [vmem:[%s1 + $0x104] sm:$0xf]
  %v93 = vld [vmem:[%s1 + $0x108] sm:$0xf]
  %v94 = vld [vmem:[%s1 + $0x10c] sm:$0xf]
  %v95 = vld [vmem:[%s1 + $0x110] sm:$0xf]
  %v96 = vld [vmem:[%s1 + $0x114] sm:$0xf]
  %v97 = vld [vmem:[%s1 + $0x118] sm:$0xf]
  %v98 = vld [vmem:[%s1 + $0x11c] sm:$0xf]
  %v99 = vld [vmem:[%s2] sm:$0x1]
  %v101 = vlaneseq
  %v102 = vshrl.u32 %v101, 7
  %v103 = vsub.s32 0, %v102
  %v104 = vrot.slane %v99, %v103
  %v118 = vunpack.c.l.b16 %v15
  %v119 = vunpack.c.h.b16 %v15
  %v120 = vunpack.c.l.b16 %v16
  %v121 = vunpack.c.h.b16 %v16
  %v122 = vunpack.c.l.b16 %v17
  %v123 = vunpack.c.l.b16 %v18
  %v124 = vunpack.c.h.b16 %v18
  %v125 = vunpack.c.l.b16 %v19
  %v126 = vunpack.c.h.b16 %v19
  %v127 = vunpack.c.l.b16 %v20
  %v128 = vunpack.c.l.b16 %v21
  %v129 = vunpack.c.h.b16 %v21
  %v130 = vunpack.c.l.b16 %v22
  %v131 = vunpack.c.h.b16 %v22
  %v132 = vunpack.c.l.b16 %v23
  %v133 = vunpack.c.l.b16 %v24
  %v134 = vunpack.c.h.b16 %v24
  %v135 = vunpack.c.l.b16 %v25
  %v136 = vunpack.c.h.b16 %v25
  %v137 = vunpack.c.l.b16 %v26
  %v138 = vpack.c.b16 %v123, %v118
  %v139 = vpack.c.b16 %v124, %v119
  %v140 = vpack.c.b16 %v125, %v120
  %v141 = vpack.c.b16 %v126, %v121
  %v142 = vpack.c.b16 %v127, %v122
  %v143 = vpack.c.b16 %v133, %v128
  %v144 = vpack.c.b16 %v134, %v129
  %v145 = vpack.c.b16 %v135, %v130
  %v146 = vpack.c.b16 %v136, %v131
  %v147 = vpack.c.b16 %v137, %v132
  %v228 = vunpack.c.l.b16 %v27
  %v229 = vunpack.c.l.b16 %v28
  %v230 = vunpack.c.l.b16 %v29
  %v231 = vunpack.c.l.b16 %v30
  %v232 = vunpack.c.l.b16 %v31
  %v233 = vunpack.c.l.b16 %v32
  %v234 = vunpack.c.l.b16 %v33
  %v235 = vunpack.c.l.b16 %v34
  %v236 = vunpack.c.l.b16 %v35
  %v237 = vunpack.c.l.b16 %v36
  %v238 = vunpack.c.l.b16 %v37
  %v239 = vunpack.c.l.b16 %v38
  %v240 = vunpack.c.l.b16 %v39
  %v241 = vunpack.c.l.b16 %v40
  %v242 = vunpack.c.l.b16 %v41
  %v243 = vunpack.c.l.b16 %v42
  %v244 = vunpack.c.l.b16 %v43
  %v245 = vunpack.c.l.b16 %v44
  %v246 = vunpack.c.l.b16 %v45
  %v247 = vunpack.c.l.b16 %v46
  %v248 = vunpack.c.l.b16 %v47
  %v249 = vunpack.c.l.b16 %v48
  %v250 = vunpack.c.l.b16 %v49
  %v251 = vunpack.c.l.b16 %v50
  %v252 = vunpack.c.l.b16 %v51
  %v253 = vunpack.c.l.b16 %v52
  %v254 = vunpack.c.l.b16 %v53
  %v255 = vunpack.c.l.b16 %v54
  %v256 = vunpack.c.l.b16 %v55
  %v257 = vunpack.c.l.b16 %v56
  %v258 = vunpack.c.l.b16 %v57
  %v259 = vunpack.c.l.b16 %v58
  %v260 = vunpack.c.l.b16 %v59
  %v261 = vunpack.c.l.b16 %v60
  %v262 = vunpack.c.l.b16 %v61
  %v263 = vunpack.c.l.b16 %v62
  %v264 = vunpack.c.l.b16 %v63
  %v265 = vunpack.c.l.b16 %v64
  %v266 = vunpack.c.l.b16 %v65
  %v267 = vunpack.c.l.b16 %v66
  %v268 = vunpack.c.l.b16 %v67
  %v269 = vunpack.c.l.b16 %v68
  %v270 = vunpack.c.l.b16 %v69
  %v271 = vunpack.c.l.b16 %v70
  %v272 = vunpack.c.l.b16 %v71
  %v273 = vunpack.c.l.b16 %v72
  %v274 = vunpack.c.l.b16 %v73
  %v275 = vunpack.c.l.b16 %v74
  %v276 = vunpack.c.l.b16 %v75
  %v277 = vunpack.c.l.b16 %v76
  %v278 = vunpack.c.l.b16 %v77
  %v279 = vunpack.c.l.b16 %v78
  %v280 = vunpack.c.l.b16 %v79
  %v281 = vunpack.c.l.b16 %v80
  %v282 = vunpack.c.l.b16 %v81
  %v283 = vunpack.c.l.b16 %v82
  %v284 = vunpack.c.l.b16 %v83
  %v285 = vunpack.c.l.b16 %v84
  %v286 = vunpack.c.l.b16 %v85
  %v287 = vunpack.c.l.b16 %v86
  %v288 = vunpack.c.l.b16 %v87
  %v289 = vunpack.c.l.b16 %v88
  %v290 = vunpack.c.l.b16 %v89
  %v291 = vunpack.c.l.b16 %v90
  %v292 = vunpack.c.l.b16 %v91
  %v293 = vunpack.c.l.b16 %v92
  %v294 = vunpack.c.l.b16 %v93
  %v295 = vunpack.c.l.b16 %v94
  %v296 = vunpack.c.l.b16 %v95
  %v297 = vunpack.c.l.b16 %v96
  %v298 = vunpack.c.l.b16 %v97
  %v299 = vunpack.c.l.b16 %v98
  %v300 = vpack.c.b16 %v229, %v228
  %v301 = vpack.c.b16 %v231, %v230
  %v302 = vpack.c.b16 %v233, %v232
  %v303 = vpack.c.b16 %v235, %v234
  %v304 = vpack.c.b16 %v237, %v236
  %v305 = vpack.c.b16 %v239, %v238
  %v306 = vpack.c.b16 %v241, %v240
  %v307 = vpack.c.b16 %v243, %v242
  %v308 = vpack.c.b16 %v245, %v244
  %v309 = vpack.c.b16 %v247, %v246
  %v310 = vpack.c.b16 %v249, %v248
  %v311 = vpack.c.b16 %v251, %v250
  %v312 = vpack.c.b16 %v253, %v252
  %v313 = vpack.c.b16 %v255, %v254
  %v314 = vpack.c.b16 %v257, %v256
  %v315 = vpack.c.b16 %v259, %v258
  %v316 = vpack.c.b16 %v261, %v260
  %v317 = vpack.c.b16 %v263, %v262
  %v318 = vpack.c.b16 %v265, %v264
  %v319 = vpack.c.b16 %v267, %v266
  %v320 = vpack.c.b16 %v269, %v268
  %v321 = vpack.c.b16 %v271, %v270
  %v322 = vpack.c.b16 %v273, %v272
  %v323 = vpack.c.b16 %v275, %v274
  %v324 = vpack.c.b16 %v277, %v276
  %v325 = vpack.c.b16 %v279, %v278
  %v326 = vpack.c.b16 %v281, %v280
  %v327 = vpack.c.b16 %v283, %v282
  %v328 = vpack.c.b16 %v285, %v284
  %v329 = vpack.c.b16 %v287, %v286
  %v330 = vpack.c.b16 %v289, %v288
  %v331 = vpack.c.b16 %v291, %v290
  %v332 = vpack.c.b16 %v293, %v292
  %v333 = vpack.c.b16 %v295, %v294
  %v334 = vpack.c.b16 %v297, %v296
  %v335 = vpack.c.b16 %v299, %v298
  %vm372 = vcmask 523264
  %v374 = vsel %vm372, %v142, 0
  %v377 = vsel %vm372, %v147, 0
  %379 = vmatprep.subr.bf16.mxu0 0
  %380 = vmatpush1.bf16.msra.mxu0 %v300
  %381 = vmatprep.subr.bf16.mxu0 0
  %382 = vmatpush1.bf16.msra.mxu0 %v301
  %383 = vmatprep.subr.bf16.mxu0 0
  %384 = vmatpush1.bf16.msra.mxu0 %v302
  %385 = vmatprep.subr.bf16.mxu0 0
  %386 = vmatpush1.bf16.msra.mxu0 %v303
  %387 = vmatprep.subr.bf16.mxu0 0
  %388 = vmatpush1.bf16.msra.mxu0 %v304
  %389 = vmatprep.subr.bf16.mxu0 0
  %390 = vmatpush1.bf16.msra.mxu0 %v305
  %391 = vmatprep.subr.bf16.mxu0 0
  %392 = vmatpush1.bf16.msra.mxu0 %v306
  %393 = vmatprep.subr.bf16.mxu0 0
  %394 = vmatpush1.bf16.msra.mxu0 %v307
  %395 = vmatprep.subr.bf16.mxu0 0
  %396 = vmatpush1.bf16.msra.mxu0 %v308
  %397 = vmatprep.subr.bf16.mxu0 0
  %398 = vmatpush1.bf16.msra.mxu0 %v309
  %399 = vmatprep.subr.bf16.mxu0 0
  %400 = vmatpush1.bf16.msra.mxu0 %v310
  %401 = vmatprep.subr.bf16.mxu0 0
  %402 = vmatpush1.bf16.msra.mxu0 %v311
  %403 = vmatprep.subr.bf16.mxu0 0
  %404 = vmatpush1.bf16.msra.mxu0 %v312
  %405 = vmatprep.subr.bf16.mxu0 0
  %406 = vmatpush1.bf16.msra.mxu0 %v313
  %407 = vmatprep.subr.bf16.mxu0 0
  %408 = vmatpush1.bf16.msra.mxu0 %v314
  %409 = vmatprep.subr.bf16.mxu0 0
  %410 = vmatpush1.bf16.msra.mxu0 %v315
  %411 = vmatprep.mubr.bf16.mxu0 %v139
  %412 = vmatmul.mubr.bf16.gmra.mrb[0].mxu0 %v138
  %v413 = vpop.f32.mrb[0].mxu0
  %v414 = vadd.f32 %v104, %v413
  %v415 = vpop.f32.mrb[0].mxu0
  %v416 = vpop.f32.mrb[0].mxu0
  %v417 = vadd.f32 %v104, %v416
  %v418 = vpop.f32.mrb[0].mxu0
  %419 = vmatprep.mubr.bf16.mxu0 %v144
  %420 = vmatmul.mubr.bf16.gmra.mrb[0].mxu0 %v143
  %v421 = vpop.f32.mrb[0].mxu0
  %v422 = vadd.f32 %v104, %v421
  %v423 = vpop.f32.mrb[0].mxu0
  %v424 = vpop.f32.mrb[0].mxu0
  %v425 = vadd.f32 %v104, %v424
  %v426 = vpop.f32.mrb[0].mxu0
  %427 = vdwg.mxu0
  %428 = vmatprep.subr.bf16.mxu0 0
  %429 = vmatpush1.bf16.msra.mxu0 %v316
  %430 = vmatprep.subr.bf16.mxu0 0
  %431 = vmatpush1.bf16.msra.mxu0 %v317
  %432 = vmatprep.subr.bf16.mxu0 0
  %433 = vmatpush1.bf16.msra.mxu0 %v318
  %434 = vmatprep.subr.bf16.mxu0 0
  %435 = vmatpush1.bf16.msra.mxu0 %v319
  %436 = vmatprep.subr.bf16.mxu0 0
  %437 = vmatpush1.bf16.msra.mxu0 %v320
  %438 = vmatprep.subr.bf16.mxu0 0
  %439 = vmatpush1.bf16.msra.mxu0 %v321
  %440 = vmatprep.subr.bf16.mxu0 0
  %441 = vmatpush1.bf16.msra.mxu0 %v322
  %442 = vmatprep.subr.bf16.mxu0 0
  %443 = vmatpush1.bf16.msra.mxu0 %v323
  %444 = vmatprep.subr.bf16.mxu0 0
  %445 = vmatpush1.bf16.msra.mxu0 %v324
  %446 = vmatprep.subr.bf16.mxu0 0
  %447 = vmatpush1.bf16.msra.mxu0 %v325
  %448 = vmatprep.subr.bf16.mxu0 0
  %449 = vmatpush1.bf16.msra.mxu0 %v326
  %450 = vmatprep.subr.bf16.mxu0 0
  %451 = vmatpush1.bf16.msra.mxu0 %v327
  %452 = vmatprep.subr.bf16.mxu0 0
  %453 = vmatpush1.bf16.msra.mxu0 %v328
  %454 = vmatprep.subr.bf16.mxu0 0
  %455 = vmatpush1.bf16.msra.mxu0 %v329
  %456 = vmatprep.subr.bf16.mxu0 0
  %457 = vmatpush1.bf16.msra.mxu0 %v330
  %458 = vmatprep.subr.bf16.mxu0 0
  %459 = vmatpush1.bf16.msra.mxu0 %v331
  %460 = vmatprep.mubr.bf16.mxu0 %v141
  %461 = vmatmul.mubr.bf16.gmra.mrb[0].mxu0 %v140
  %v462 = vpop.f32.mrb[0].mxu0
  %v463 = vadd.f32 %v414, %v462
  %v464 = vpop.f32.mrb[0].mxu0
  %v465 = vpop.f32.mrb[0].mxu0
  %v466 = vadd.f32 %v417, %v465
  %v467 = vpop.f32.mrb[0].mxu0
  %468 = vmatprep.mubr.bf16.mxu0 %v146
  %469 = vmatmul.mubr.bf16.gmra.mrb[0].mxu0 %v145
  %v470 = vpop.f32.mrb[0].mxu0
  %v471 = vadd.f32 %v422, %v470
  %v472 = vpop.f32.mrb[0].mxu0
  %v473 = vpop.f32.mrb[0].mxu0
  %v474 = vadd.f32 %v425, %v473
  %v475 = vpop.f32.mrb[0].mxu0
  %476 = vdwg.mxu0
  %477 = vmatprep.subr.bf16.mxu0 0
  %478 = vmatpush1.bf16.msra.mxu0 %v332
  %479 = vmatprep.subr.bf16.mxu0 0
  %480 = vmatpush1.bf16.msra.mxu0 %v333
  %481 = vmatprep.subr.bf16.mxu0 0
  %482 = vmatpush1.bf16.msra.mxu0 %v334
  %483 = vmatprep.subr.bf16.mxu0 0
  %484 = vmatpush1.bf16.msra.mxu0 %v335
  %485 = vmatprep.subr.bf16.mxu0 0
  %486 = vmatpush1.bf16.msra.mxu0 0
  %487 = vmatprep.subr.bf16.mxu0 0
  %488 = vmatpush1.bf16.msra.mxu0 0
  %489 = vmatprep.subr.bf16.mxu0 0
  %490 = vmatpush1.bf16.msra.mxu0 0
  %491 = vmatprep.subr.bf16.mxu0 0
  %492 = vmatpush1.bf16.msra.mxu0 0
  %493 = vmatprep.subr.bf16.mxu0 0
  %494 = vmatpush1.bf16.msra.mxu0 0
  %495 = vmatprep.subr.bf16.mxu0 0
  %496 = vmatpush1.bf16.msra.mxu0 0
  %497 = vmatprep.subr.bf16.mxu0 0
  %498 = vmatpush1.bf16.msra.mxu0 0
  %499 = vmatprep.subr.bf16.mxu0 0
  %500 = vmatpush1.bf16.msra.mxu0 0
  %501 = vmatprep.subr.bf16.mxu0 0
  %502 = vmatpush1.bf16.msra.mxu0 0
  %503 = vmatprep.subr.bf16.mxu0 0
  %504 = vmatpush1.bf16.msra.mxu0 0
  %505 = vmatprep.subr.bf16.mxu0 0
  %506 = vmatpush1.bf16.msra.mxu0 0
  %507 = vmatprep.subr.bf16.mxu0 0
  %508 = vmatpush1.bf16.msra.mxu0 0
  %509 = vmatprep.mubr.bf16.mxu0 0
  %510 = vmatmul.mubr.bf16.gmra.mrb[0].mxu0 %v374
  %v511 = vpop.f32.mrb[0].mxu0
  %v512 = vadd.f32 %v463, %v511
  %v513 = vpop.f32.mrb[0].mxu0
  %v514 = vpop.f32.mrb[0].mxu0
  %v515 = vadd.f32 %v466, %v514
  %v516 = vpop.f32.mrb[0].mxu0
  %517 = vmatprep.mubr.bf16.mxu0 0
  %518 = vmatmul.mubr.bf16.gmra.mrb[0].mxu0 %v377
  %v519 = vpop.f32.mrb[0].mxu0
  %v520 = vadd.f32 %v471, %v519
  %v521 = vpop.f32.mrb[0].mxu0
  %v522 = vpop.f32.mrb[0].mxu0
  %v523 = vadd.f32 %v474, %v522
  %v524 = vpop.f32.mrb[0].mxu0
  %525 = vdwg.mxu0
  %v526 = vmax.f32 %v512, 0.0
  %v527 = vmax.f32 %v515, 0.0
  %v528 = vmax.f32 %v520, 0.0
  %v529 = vmax.f32 %v523, 0.0
  %530 = vst [vmem:[%s3] sm:$0xff] %v526
  %531 = vst [vmem:[%s3 + $0x8] sm:$0xff] %v527
  %532 = vst [vmem:[%s3 + $0x10] sm:$0xff] %v528
  %533 = vst [vmem:[%s3 + $0x18] sm:$0xff] %v529
  // Predicated region
  $region14: #{colorization_forward.20} parent=0 // pred_check
    _
  $region15: #{colorization_forward.20} parent=0 // pred_check_branch
    %535 = sbr.rel (0) target = $region17
  $region16: #{colorization_forward.20} parent=0 // pred_region
    _
  $region17: #{colorization_forward.20} parent=0 // pred_fallthru
    _
  // Predicated region
  $region18: #{colorization_forward.20} parent=0 // pred_check
    _
  $region19: #{colorization_forward.20} parent=0 // pred_check_branch
    %537 = sbr.rel (0) target = $region21
  $region20: #{colorization_forward.20} parent=0 // pred_region
    _
  $region21: #{colorization_forward.20} parent=0 // pred_fallthru
    _

// kernel: colorization_forward.19
$region0: #{colorization_forward.19}
  #allocation0 [shape = 'u32[]', space=smem, size = 0x4, offset = 0x4, fixed_abs, tag = 'smem constant byte address 0x4 - core index']
  #allocation1 [shape = 'u32[144,128]{1,0:T(1,128)}', space=vmem, size = 0x12000, scoped, tag = 'internal scratch']
  %s0 = inlined_call_operand.vmem [shape: bf16[32,64], index: 0, kind: input, shape index: {}]
  %s1 = inlined_call_operand.vmem [shape: bf16[64,128], index: 1, kind: input, shape index: {}]
  %s2 = inlined_call_operand.vmem [shape: f32[1,128], index: 2, kind: input, shape index: {}]
  %s3 = inlined_call_operand.vmem [shape: f32[32,128], index: 3, kind: output, shape index: {}]
  %s4 = sld [smem:[#allocation0]]
  $region22: #{colorization_forward.19} parent=0
    _
  %s6 = ssub.s32 1, %s4
  %s7 = scalar_select 0, %s6, %s4
  // Predicated region
  $region2: #{colorization_forward.19} parent=0 // pred_check
    _
  $region3: #{colorization_forward.19} parent=0 // pred_check_branch
    %9 = sbr.rel (0) target = $region5
  $region4: #{colorization_forward.19} parent=0 // pred_region
    _
  $region5: #{colorization_forward.19} parent=0 // pred_fallthru
    _
  // Predicated region
  $region6: #{colorization_forward.19} parent=0 // pred_check
    _
  $region7: #{colorization_forward.19} parent=0 // pred_check_branch
    %11 = sbr.rel (0) target = $region9
  $region8: #{colorization_forward.19} parent=0 // pred_region
    _
  $region9: #{colorization_forward.19} parent=0 // pred_fallthru
    _
  // Predicated region
  $region10: #{colorization_forward.19} parent=0 // pred_check
    _
  $region11: #{colorization_forward.19} parent=0 // pred_check_branch
    %13 = sbr.rel (0) target = $region13
  $region12: #{colorization_forward.19} parent=0 // pred_region
    _
  $region13: #{colorization_forward.19} parent=0 // pred_fallthru
    _
  %v15 = vld [vmem:[%s0] sm:$0xf]
  %v16 = vld [vmem:[%s0 + $0x4] sm:$0xf]
  %v17 = vld [vmem:[%s0 + $0x8] sm:$0xf]
  %v18 = vld [vmem:[%s0 + $0xc] sm:$0xf]
  %v19 = vld [vmem:[%s1] sm:$0xf]
  %v20 = vld [vmem:[%s1 + $0x4] sm:$0xf]
  %v21 = vld [vmem:[%s1 + $0x8] sm:$0xf]
  %v22 = vld [vmem:[%s1 + $0xc] sm:$0xf]
  %v23 = vld [vmem:[%s1 + $0x10] sm:$0xf]
  %v24 = vld [vmem:[%s1 + $0x14] sm:$0xf]
  %v25 = vld [vmem:[%s1 + $0x18] sm:$0xf]
  %v26 = vld [vmem:[%s1 + $0x1c] sm:$0xf]
  %v27 = vld [vmem:[%s2] sm:$0x1]
  %v29 = vlaneseq
  %v30 = vshrl.u32 %v29, 7
  %v31 = vsub.s32 0, %v30
  %v32 = vrot.slane %v27, %v31
  %v38 = vunpack.c.l.b16 %v15
  %v39 = vunpack.c.l.b16 %v16
  %v40 = vunpack.c.l.b16 %v17
  %v41 = vunpack.c.l.b16 %v18
  %v42 = vpack.c.b16 %v39, %v38
  %v43 = vpack.c.b16 %v41, %v40
  %v52 = vunpack.c.l.b16 %v19
  %v53 = vunpack.c.l.b16 %v20
  %v54 = vunpack.c.l.b16 %v21
  %v55 = vunpack.c.l.b16 %v22
  %v56 = vunpack.c.l.b16 %v23
  %v57 = vunpack.c.l.b16 %v24
  %v58 = vunpack.c.l.b16 %v25
  %v59 = vunpack.c.l.b16 %v26
  %v60 = vpack.c.b16 %v53, %v52
  %v61 = vpack.c.b16 %v55, %v54
  %v62 = vpack.c.b16 %v57, %v56
  %v63 = vpack.c.b16 %v59, %v58
  %vm68 = vcmask 523264
  %v70 = vsel %vm68, %v42, 0
  %v73 = vsel %vm68, %v43, 0
  %75 = vmatprep.subr.bf16.mxu0 0
  %76 = vmatpush1.bf16.msra.mxu0 %v60
  %77 = vmatprep.subr.bf16.mxu0 0
  %78 = vmatpush1.bf16.msra.mxu0 %v61
  %79 = vmatprep.subr.bf16.mxu0 0
  %80 = vmatpush1.bf16.msra.mxu0 %v62
  %81 = vmatprep.subr.bf16.mxu0 0
  %82 = vmatpush1.bf16.msra.mxu0 %v63
  %83 = vmatprep.subr.bf16.mxu0 0
  %84 = vmatpush1.bf16.msra.mxu0 0
  %85 = vmatprep.subr.bf16.mxu0 0
  %86 = vmatpush1.bf16.msra.mxu0 0
  %87 = vmatprep.subr.bf16.mxu0 0
  %88 = vmatpush1.bf16.msra.mxu0 0
  %89 = vmatprep.subr.bf16.mxu0 0
  %90 = vmatpush1.bf16.msra.mxu0 0
  %91 = vmatprep.subr.bf16.mxu0 0
  %92 = vmatpush1.bf16.msra.mxu0 0
  %93 = vmatprep.subr.bf16.mxu0 0
  %94 = vmatpush1.bf16.msra.mxu0 0
  %95 = vmatprep.subr.bf16.mxu0 0
  %96 = vmatpush1.bf16.msra.mxu0 0
  %97 = vmatprep.subr.bf16.mxu0 0
  %98 = vmatpush1.bf16.msra.mxu0 0
  %99 = vmatprep.subr.bf16.mxu0 0
  %100 = vmatpush1.bf16.msra.mxu0 0
  %101 = vmatprep.subr.bf16.mxu0 0
  %102 = vmatpush1.bf16.msra.mxu0 0
  %103 = vmatprep.subr.bf16.mxu0 0
  %104 = vmatpush1.bf16.msra.mxu0 0
  %105 = vmatprep.subr.bf16.mxu0 0
  %106 = vmatpush1.bf16.msra.mxu0 0
  %107 = vmatprep.mubr.bf16.mxu0 0
  %108 = vmatmul.mubr.bf16.gmra.mrb[0].mxu0 %v70
  %v109 = vpop.f32.mrb[0].mxu0
  %v110 = vadd.f32 %v32, %v109
  %v111 = vpop.f32.mrb[0].mxu0
  %v112 = vpop.f32.mrb[0].mxu0
  %v113 = vadd.f32 %v32, %v112
  %v114 = vpop.f32.mrb[0].mxu0
  %115 = vmatprep.mubr.bf16.mxu0 0
  %116 = vmatmul.mubr.bf16.gmra.mrb[0].mxu0 %v73
  %v117 = vpop.f32.mrb[0].mxu0
  %v118 = vadd.f32 %v32, %v117
  %v119 = vpop.f32.mrb[0].mxu0
  %v120 = vpop.f32.mrb[0].mxu0
  %v121 = vadd.f32 %v32, %v120
  %v122 = vpop.f32.mrb[0].mxu0
  %123 = vdwg.mxu0
  %124 = vst [vmem:[%s3] sm:$0xff] %v110
  %125 = vst [vmem:[%s3 + $0x8] sm:$0xff] %v113
  %126 = vst [vmem:[%s3 + $0x10] sm:$0xff] %v118
  %127 = vst [vmem:[%s3 + $0x18] sm:$0xff] %v121
  // Predicated region
  $region14: #{colorization_forward.19} parent=0 // pred_check
    _
  $region15: #{colorization_forward.19} parent=0 // pred_check_branch
    %129 = sbr.rel (0) target = $region17
  $region16: #{colorization_forward.19} parent=0 // pred_region
    _
  $region17: #{colorization_forward.19} parent=0 // pred_fallthru
    _
  // Predicated region
  $region18: #{colorization_forward.19} parent=0 // pred_check
    _
  $region19: #{colorization_forward.19} parent=0 // pred_check_branch
    %131 = sbr.rel (0) target = $region21
  $region20: #{colorization_forward.19} parent=0 // pred_region
    _
  $region21: #{colorization_forward.19} parent=0 // pred_fallthru
    _

// kernel: colorization_forward.21
$region0: #{colorization_forward.21}
  #allocation0 [shape = 'u32[]', space=smem, size = 0x4, offset = 0x4, fixed_abs, tag = 'smem constant byte address 0x4 - core index']
  #allocation1 [shape = 'u32[144,128]{1,0:T(1,128)}', space=vmem, size = 0x12000, scoped, tag = 'internal scratch']
  %s0 = inlined_call_operand.vmem [shape: bf16[32,1152], index: 0, kind: input, shape index: {}]
  %s1 = inlined_call_operand.vmem [shape: bf16[1152,128], index: 1, kind: input, shape index: {}]
  %s2 = inlined_call_operand.vmem [shape: f32[1,128], index: 2, kind: input, shape index: {}]
  %s3 = inlined_call_operand.vmem [shape: f32[32,128], index: 3, kind: input, shape index: {}]
  %s4 = inlined_call_operand.vmem [shape: f32[32,128], index: 4, kind: output, shape index: {}]
  %s5 = sld [smem:[#allocation0]]
  $region26: #{colorization_forward.21} parent=0
    _
  %s7 = ssub.s32 1, %s5
  %s8 = scalar_select 0, %s7, %s5
  // Predicated region
  $region2: #{colorization_forward.21} parent=0 // pred_check
    _
  $region3: #{colorization_forward.21} parent=0 // pred_check_branch
    %10 = sbr.rel (0) target = $region5
  $region4: #{colorization_forward.21} parent=0 // pred_region
    _
  $region5: #{colorization_forward.21} parent=0 // pred_fallthru
    _
  // Predicated region
  $region6: #{colorization_forward.21} parent=0 // pred_check
    _
  $region7: #{colorization_forward.21} parent=0 // pred_check_branch
    %12 = sbr.rel (0) target = $region9
  $region8: #{colorization_forward.21} parent=0 // pred_region
    _
  $region9: #{colorization_forward.21} parent=0 // pred_fallthru
    _
  // Predicated region
  $region10: #{colorization_forward.21} parent=0 // pred_check
    _
  $region11: #{colorization_forward.21} parent=0 // pred_check_branch
    %14 = sbr.rel (0) target = $region13
  $region12: #{colorization_forward.21} parent=0 // pred_region
    _
  $region13: #{colorization_forward.21} parent=0 // pred_fallthru
    _
  // Predicated region
  $region14: #{colorization_forward.21} parent=0 // pred_check
    _
  $region15: #{colorization_forward.21} parent=0 // pred_check_branch
    %16 = sbr.rel (0) target = $region17
  $region16: #{colorization_forward.21} parent=0 // pred_region
    _
  $region17: #{colorization_forward.21} parent=0 // pred_fallthru
    _
  %v18 = vld [vmem:[%s0] sm:$0xff]
  %v19 = vld [vmem:[%s0 + $0x8] sm:$0xff]
  %v20 = vld [vmem:[%s0 + $0x10] sm:$0xff]
  %v21 = vld [vmem:[%s0 + $0x18] sm:$0xff]
  %v22 = vld [vmem:[%s0 + $0x20] sm:$0xf]
  %v23 = vld [vmem:[%s0 + $0x24] sm:$0xff]
  %v24 = vld [vmem:[%s0 + $0x2c] sm:$0xff]
  %v25 = vld [vmem:[%s0 + $0x34] sm:$0xff]
  %v26 = vld [vmem:[%s0 + $0x3c] sm:$0xff]
  %v27 = vld [vmem:[%s0 + $0x44] sm:$0xf]
  %v28 = vld [vmem:[%s0 + $0x48] sm:$0xff]
  %v29 = vld [vmem:[%s0 + $0x50] sm:$0xff]
  %v30 = vld [vmem:[%s0 + $0x58] sm:$0xff]
  %v31 = vld [vmem:[%s0 + $0x60] sm:$0xff]
  %v32 = vld [vmem:[%s0 + $0x68] sm:$0xf]
  %v33 = vld [vmem:[%s0 + $0x6c] sm:$0xff]
  %v34 = vld [vmem:[%s0 + $0x74] sm:$0xff]
  %v35 = vld [vmem:[%s0 + $0x7c] sm:$0xff]
  %v36 = vld [vmem:[%s0 + $0x84] sm:$0xff]
  %v37 = vld [vmem:[%s0 + $0x8c] sm:$0xf]
  %v38 = vld [vmem:[%s1] sm:$0xf]
  %v39 = vld [vmem:[%s1 + $0x4] sm:$0xf]
  %v40 = vld [vmem:[%s1 + $0x8] sm:$0xf]
  %v41 = vld [vmem:[%s1 + $0xc] sm:$0xf]
  %v42 = vld [vmem:[%s1 + $0x10] sm:$0xf]
  %v43 = vld [vmem:[%s1 + $0x14] sm:$0xf]
  %v44 = vld [vmem:[%s1 + $0x18] sm:$0xf]
  %v45 = vld [vmem:[%s1 + $0x1c] sm:$0xf]
  %v46 = vld [vmem:[%s1 + $0x20] sm:$0xf]
  %v47 = vld [vmem:[%s1 + $0x24] sm:$0xf]
  %v48 = vld [vmem:[%s1 + $0x28] sm:$0xf]
  %v49 = vld [vmem:[%s1 + $0x2c] sm:$0xf]
  %v50 = vld [vmem:[%s1 + $0x30] sm:$0xf]
  %v51 = vld [vmem:[%s1 + $0x34] sm:$0xf]
  %v52 = vld [vmem:[%s1 + $0x38] sm:$0xf]
  %v53 = vld [vmem:[%s1 + $0x3c] sm:$0xf]
  %v54 = vld [vmem:[%s1 + $0x40] sm:$0xf]
  %v55 = vld [vmem:[%s1 + $0x44] sm:$0xf]
  %v56 = vld [vmem:[%s1 + $0x48] sm:$0xf]
  %v57 = vld [vmem:[%s1 + $0x4c] sm:$0xf]
  %v58 = vld [vmem:[%s1 + $0x50] sm:$0xf]
  %v59 = vld [vmem:[%s1 + $0x54] sm:$0xf]
  %v60 = vld [vmem:[%s1 + $0x58] sm:$0xf]
  %v61 = vld [vmem:[%s1 + $0x5c] sm:$0xf]
  %v62 = vld [vmem:[%s1 + $0x60] sm:$0xf]
  %v63 = vld [vmem:[%s1 + $0x64] sm:$0xf]
  %v64 = vld [vmem:[%s1 + $0x68] sm:$0xf]
  %v65 = vld [vmem:[%s1 + $0x6c] sm:$0xf]
  %v66 = vld [vmem:[%s1 + $0x70] sm:$0xf]
  %v67 = vld [vmem:[%s1 + $0x74] sm:$0xf]
  %v68 = vld [vmem:[%s1 + $0x78] sm:$0xf]
  %v69 = vld [vmem:[%s1 + $0x7c] sm:$0xf]
  %v70 = vld [vmem:[%s1 + $0x80] sm:$0xf]
  %v71 = vld [vmem:[%s1 + $0x84] sm:$0xf]
  %v72 = vld [vmem:[%s1 + $0x88] sm:$0xf]
  %v73 = vld [vmem:[%s1 + $0x8c] sm:$0xf]
  %v74 = vld [vmem:[%s1 + $0x90] sm:$0xf]
  %v75 = vld [vmem:[%s1 + $0x94] sm:$0xf]
  %v76 = vld [vmem:[%s1 + $0x98] sm:$0xf]
  %v77 = vld [vmem:[%s1 + $0x9c] sm:$0xf]
  %v78 = vld [vmem:[%s1 + $0xa0] sm:$0xf]
  %v79 = vld [vmem:[%s1 + $0xa4] sm:$0xf]
  %v80 = vld [vmem:[%s1 + $0xa8] sm:$0xf]
  %v81 = vld [vmem:[%s1 + $0xac] sm:$0xf]
  %v82 = vld [vmem:[%s1 + $0xb0] sm:$0xf]
  %v83 = vld [vmem:[%s1 + $0xb4] sm:$0xf]
  %v84 = vld [vmem:[%s1 + $0xb8] sm:$0xf]
  %v85 = vld [vmem:[%s1 + $0xbc] sm:$0xf]
  %v86 = vld [vmem:[%s1 + $0xc0] sm:$0xf]
  %v87 = vld [vmem:[%s1 + $0xc4] sm:$0xf]
  %v88 = vld [vmem:[%s1 + $0xc8] sm:$0xf]
  %v89 = vld [vmem:[%s1 + $0xcc] sm:$0xf]
  %v90 = vld [vmem:[%s1 + $0xd0] sm:$0xf]
  %v91 = vld [vmem:[%s1 + $0xd4] sm:$0xf]
  %v92 = vld [vmem:[%s1 + $0xd8] sm:$0xf]
  %v93 = vld [vmem:[%s1 + $0xdc] sm:$0xf]
  %v94 = vld [vmem:[%s1 + $0xe0] sm:$0xf]
  %v95 = vld [vmem:[%s1 + $0xe4] sm:$0xf]
  %v96 = vld [vmem:[%s1 + $0xe8] sm:$0xf]
  %v97 = vld [vmem:[%s1 + $0xec] sm:$0xf]
  %v98 = vld [vmem:[%s1 + $0xf0] sm:$0xf]
  %v99 = vld [vmem:[%s1 + $0xf4] sm:$0xf]
  %v100 = vld [vmem:[%s1 + $0xf8] sm:$0xf]
  %v101 = vld [vmem:[%s1 + $0xfc] sm:$0xf]
  %v102 = vld [vmem:[%s1 + $0x100] sm:$0xf]
  %v103 = vld [vmem:[%s1 + $0x104] sm:$0xf]
  %v104 = vld [vmem:[%s1 + $0x108] sm:$0xf]
  %v105 = vld [vmem:[%s1 + $0x10c] sm:$0xf]
  %v106 = vld [vmem:[%s1 + $0x110] sm:$0xf]
  %v107 = vld [vmem:[%s1 + $0x114] sm:$0xf]
  %v108 = vld [vmem:[%s1 + $0x118] sm:$0xf]
  %v109 = vld [vmem:[%s1 + $0x11c] sm:$0xf]
  %v110 = vld [vmem:[%s1 + $0x120] sm:$0xf]
  %v111 = vld [vmem:[%s1 + $0x124] sm:$0xf]
  %v112 = vld [vmem:[%s1 + $0x128] sm:$0xf]
  %v113 = vld [vmem:[%s1 + $0x12c] sm:$0xf]
  %v114 = vld [vmem:[%s1 + $0x130] sm:$0xf]
  %v115 = vld [vmem:[%s1 + $0x134] sm:$0xf]
  %v116 = vld [vmem:[%s1 + $0x138] sm:$0xf]
  %v117 = vld [vmem:[%s1 + $0x13c] sm:$0xf]
  %v118 = vld [vmem:[%s1 + $0x140] sm:$0xf]
  %v119 = vld [vmem:[%s1 + $0x144] sm:$0xf]
  %v120 = vld [vmem:[%s1 + $0x148] sm:$0xf]
  %v121 = vld [vmem:[%s1 + $0x14c] sm:$0xf]
  %v122 = vld [vmem:[%s1 + $0x150] sm:$0xf]
  %v123 = vld [vmem:[%s1 + $0x154] sm:$0xf]
  %v124 = vld [vmem:[%s1 + $0x158] sm:$0xf]
  %v125 = vld [vmem:[%s1 + $0x15c] sm:$0xf]
  %v126 = vld [vmem:[%s1 + $0x160] sm:$0xf]
  %v127 = vld [vmem:[%s1 + $0x164] sm:$0xf]
  %v128 = vld [vmem:[%s1 + $0x168] sm:$0xf]
  %v129 = vld [vmem:[%s1 + $0x16c] sm:$0xf]
  %v130 = vld [vmem:[%s1 + $0x170] sm:$0xf]
  %v131 = vld [vmem:[%s1 + $0x174] sm:$0xf]
  %v132 = vld [vmem:[%s1 + $0x178] sm:$0xf]
  %v133 = vld [vmem:[%s1 + $0x17c] sm:$0xf]
  %v134 = vld [vmem:[%s1 + $0x180] sm:$0xf]
  %v135 = vld [vmem:[%s1 + $0x184] sm:$0xf]
  %v136 = vld [vmem:[%s1 + $0x188] sm:$0xf]
  %v137 = vld [vmem:[%s1 + $0x18c] sm:$0xf]
  %v138 = vld [vmem:[%s1 + $0x190] sm:$0xf]
  %v139 = vld [vmem:[%s1 + $0x194] sm:$0xf]
  %v140 = vld [vmem:[%s1 + $0x198] sm:$0xf]
  %v141 = vld [vmem:[%s1 + $0x19c] sm:$0xf]
  %v142 = vld [vmem:[%s1 + $0x1a0] sm:$0xf]
  %v143 = vld [vmem:[%s1 + $0x1a4] sm:$0xf]
  %v144 = vld [vmem:[%s1 + $0x1a8] sm:$0xf]
  %v145 = vld [vmem:[%s1 + $0x1ac] sm:$0xf]
  %v146 = vld [vmem:[%s1 + $0x1b0] sm:$0xf]
  %v147 = vld [vmem:[%s1 + $0x1b4] sm:$0xf]
  %v148 = vld [vmem:[%s1 + $0x1b8] sm:$0xf]
  %v149 = vld [vmem:[%s1 + $0x1bc] sm:$0xf]
  %v150 = vld [vmem:[%s1 + $0x1c0] sm:$0xf]
  %v151 = vld [vmem:[%s1 + $0x1c4] sm:$0xf]
  %v152 = vld [vmem:[%s1 + $0x1c8] sm:$0xf]
  %v153 = vld [vmem:[%s1 + $0x1cc] sm:$0xf]
  %v154 = vld [vmem:[%s1 + $0x1d0] sm:$0xf]
  %v155 = vld [vmem:[%s1 + $0x1d4] sm:$0xf]
  %v156 = vld [vmem:[%s1 + $0x1d8] sm:$0xf]
  %v157 = vld [vmem:[%s1 + $0x1dc] sm:$0xf]
  %v158 = vld [vmem:[%s1 + $0x1e0] sm:$0xf]
  %v159 = vld [vmem:[%s1 + $0x1e4] sm:$0xf]
  %v160 = vld [vmem:[%s1 + $0x1e8] sm:$0xf]
  %v161 = vld [vmem:[%s1 + $0x1ec] sm:$0xf]
  %v162 = vld [vmem:[%s1 + $0x1f0] sm:$0xf]
  %v163 = vld [vmem:[%s1 + $0x1f4] sm:$0xf]
  %v164 = vld [vmem:[%s1 + $0x1f8] sm:$0xf]
  %v165 = vld [vmem:[%s1 + $0x1fc] sm:$0xf]
  %v166 = vld [vmem:[%s1 + $0x200] sm:$0xf]
  %v167 = vld [vmem:[%s1 + $0x204] sm:$0xf]
  %v168 = vld [vmem:[%s1 + $0x208] sm:$0xf]
  %v169 = vld [vmem:[%s1 + $0x20c] sm:$0xf]
  %v170 = vld [vmem:[%s1 + $0x210] sm:$0xf]
  %v171 = vld [vmem:[%s1 + $0x214] sm:$0xf]
  %v172 = vld [vmem:[%s1 + $0x218] sm:$0xf]
  %v173 = vld [vmem:[%s1 + $0x21c] sm:$0xf]
  %v174 = vld [vmem:[%s1 + $0x220] sm:$0xf]
  %v175 = vld [vmem:[%s1 + $0x224] sm:$0xf]
  %v176 = vld [vmem:[%s1 + $0x228] sm:$0xf]
  %v177 = vld [vmem:[%s1 + $0x22c] sm:$0xf]
  %v178 = vld [vmem:[%s1 + $0x230] sm:$0xf]
  %v179 = vld [vmem:[%s1 + $0x234] sm:$0xf]
  %v180 = vld [vmem:[%s1 + $0x238] sm:$0xf]
  %v181 = vld [vmem:[%s1 + $0x23c] sm:$0xf]
  %v182 = vld [vmem:[%s2] sm:$0x1]
  %v184 = vlaneseq
  %v185 = vshrl.u32 %v184, 7
  %v186 = vsub.s32 0, %v185
  %v187 = vrot.slane %v182, %v186
  %v209 = vunpack.c.l.b16 %v18
  %v210 = vunpack.c.h.b16 %v18
  %v211 = vunpack.c.l.b16 %v19
  %v212 = vunpack.c.h.b16 %v19
  %v213 = vunpack.c.l.b16 %v20
  %v214 = vunpack.c.h.b16 %v20
  %v215 = vunpack.c.l.b16 %v21
  %v216 = vunpack.c.h.b16 %v21
  %v217 = vunpack.c.l.b16 %v22
  %v218 = vunpack.c.l.b16 %v23
  %v219 = vunpack.c.h.b16 %v23
  %v220 = vunpack.c.l.b16 %v24
  %v221 = vunpack.c.h.b16 %v24
  %v222 = vunpack.c.l.b16 %v25
  %v223 = vunpack.c.h.b16 %v25
  %v224 = vunpack.c.l.b16 %v26
  %v225 = vunpack.c.h.b16 %v26
  %v226 = vunpack.c.l.b16 %v27
  %v227 = vunpack.c.l.b16 %v28
  %v228 = vunpack.c.h.b16 %v28
  %v229 = vunpack.c.l.b16 %v29
  %v230 = vunpack.c.h.b16 %v29
  %v231 = vunpack.c.l.b16 %v30
  %v232 = vunpack.c.h.b16 %v30
  %v233 = vunpack.c.l.b16 %v31
  %v234 = vunpack.c.h.b16 %v31
  %v235 = vunpack.c.l.b16 %v32
  %v236 = vunpack.c.l.b16 %v33
  %v237 = vunpack.c.h.b16 %v33
  %v238 = vunpack.c.l.b16 %v34
  %v239 = vunpack.c.h.b16 %v34
  %v240 = vunpack.c.l.b16 %v35
  %v241 = vunpack.c.h.b16 %v35
  %v242 = vunpack.c.l.b16 %v36
  %v243 = vunpack.c.h.b16 %v36
  %v244 = vunpack.c.l.b16 %v37
  %v245 = vpack.c.b16 %v218, %v209
  %v246 = vpack.c.b16 %v219, %v210
  %v247 = vpack.c.b16 %v220, %v211
  %v248 = vpack.c.b16 %v221, %v212
  %v249 = vpack.c.b16 %v222, %v213
  %v250 = vpack.c.b16 %v223, %v214
  %v251 = vpack.c.b16 %v224, %v215
  %v252 = vpack.c.b16 %v225, %v216
  %v253 = vpack.c.b16 %v226, %v217
  %v254 = vpack.c.b16 %v236, %v227
  %v255 = vpack.c.b16 %v237, %v228
  %v256 = vpack.c.b16 %v238, %v229
  %v257 = vpack.c.b16 %v239, %v230
  %v258 = vpack.c.b16 %v240, %v231
  %v259 = vpack.c.b16 %v241, %v232
  %v260 = vpack.c.b16 %v242, %v233
  %v261 = vpack.c.b16 %v243, %v234
  %v262 = vpack.c.b16 %v244, %v235
  %v425 = vunpack.c.l.b16 %v38
  %v426 = vunpack.c.l.b16 %v39
  %v427 = vunpack.c.l.b16 %v40
  %v428 = vunpack.c.l.b16 %v41
  %v429 = vunpack.c.l.b16 %v42
  %v430 = vunpack.c.l.b16 %v43
  %v431 = vunpack.c.l.b16 %v44
  %v432 = vunpack.c.l.b16 %v45
  %v433 = vunpack.c.l.b16 %v46
  %v434 = vunpack.c.l.b16 %v47
  %v435 = vunpack.c.l.b16 %v48
  %v436 = vunpack.c.l.b16 %v49
  %v437 = vunpack.c.l.b16 %v50
  %v438 = vunpack.c.l.b16 %v51
  %v439 = vunpack.c.l.b16 %v52
  %v440 = vunpack.c.l.b16 %v53
  %v441 = vunpack.c.l.b16 %v54
  %v442 = vunpack.c.l.b16 %v55
  %v443 = vunpack.c.l.b16 %v56
  %v444 = vunpack.c.l.b16 %v57
  %v445 = vunpack.c.l.b16 %v58
  %v446 = vunpack.c.l.b16 %v59
  %v447 = vunpack.c.l.b16 %v60
  %v448 = vunpack.c.l.b16 %v61
  %v449 = vunpack.c.l.b16 %v62
  %v450 = vunpack.c.l.b16 %v63
  %v451 = vunpack.c.l.b16 %v64
  %v452 = vunpack.c.l.b16 %v65
  %v453 = vunpack.c.l.b16 %v66
  %v454 = vunpack.c.l.b16 %v67
  %v455 = vunpack.c.l.b16 %v68
  %v456 = vunpack.c.l.b16 %v69
  %v457 = vunpack.c.l.b16 %v70
  %v458 = vunpack.c.l.b16 %v71
  %v459 = vunpack.c.l.b16 %v72
  %v460 = vunpack.c.l.b16 %v73
  %v461 = vunpack.c.l.b16 %v74
  %v462 = vunpack.c.l.b16 %v75
  %v463 = vunpack.c.l.b16 %v76
  %v464 = vunpack.c.l.b16 %v77
  %v465 = vunpack.c.l.b16 %v78
  %v466 = vunpack.c.l.b16 %v79
  %v467 = vunpack.c.l.b16 %v80
  %v468 = vunpack.c.l.b16 %v81
  %v469 = vunpack.c.l.b16 %v82
  %v470 = vunpack.c.l.b16 %v83
  %v471 = vunpack.c.l.b16 %v84
  %v472 = vunpack.c.l.b16 %v85
  %v473 = vunpack.c.l.b16 %v86
  %v474 = vunpack.c.l.b16 %v87
  %v475 = vunpack.c.l.b16 %v88
  %v476 = vunpack.c.l.b16 %v89
  %v477 = vunpack.c.l.b16 %v90
  %v478 = vunpack.c.l.b16 %v91
  %v479 = vunpack.c.l.b16 %v92
  %v480 = vunpack.c.l.b16 %v93
  %v481 = vunpack.c.l.b16 %v94
  %v482 = vunpack.c.l.b16 %v95
  %v483 = vunpack.c.l.b16 %v96
  %v484 = vunpack.c.l.b16 %v97
  %v485 = vunpack.c.l.b16 %v98
  %v486 = vunpack.c.l.b16 %v99
  %v487 = vunpack.c.l.b16 %v100
  %v488 = vunpack.c.l.b16 %v101
  %v489 = vunpack.c.l.b16 %v102
  %v490 = vunpack.c.l.b16 %v103
  %v491 = vunpack.c.l.b16 %v104
  %v492 = vunpack.c.l.b16 %v105
  %v493 = vunpack.c.l.b16 %v106
  %v494 = vunpack.c.l.b16 %v107
  %v495 = vunpack.c.l.b16 %v108
  %v496 = vunpack.c.l.b16 %v109
  %v497 = vunpack.c.l.b16 %v110
  %v498 = vunpack.c.l.b16 %v111
  %v499 = vunpack.c.l.b16 %v112
  %v500 = vunpack.c.l.b16 %v113
  %v501 = vunpack.c.l.b16 %v114
  %v502 = vunpack.c.l.b16 %v115
  %v503 = vunpack.c.l.b16 %v116
  %v504 = vunpack.c.l.b16 %v117
  %v505 = vunpack.c.l.b16 %v118
  %v506 = vunpack.c.l.b16 %v119
  %v507 = vunpack.c.l.b16 %v120
  %v508 = vunpack.c.l.b16 %v121
  %v509 = vunpack.c.l.b16 %v122
  %v510 = vunpack.c.l.b16 %v123
  %v511 = vunpack.c.l.b16 %v124
  %v512 = vunpack.c.l.b16 %v125
  %v513 = vunpack.c.l.b16 %v126
  %v514 = vunpack.c.l.b16 %v127
  %v515 = vunpack.c.l.b16 %v128
  %v516 = vunpack.c.l.b16 %v129
  %v517 = vunpack.c.l.b16 %v130
  %v518 = vunpack.c.l.b16 %v131
  %v519 = vunpack.c.l.b16 %v132
  %v520 = vunpack.c.l.b16 %v133
  %v521 = vunpack.c.l.b16 %v134
  %v522 = vunpack.c.l.b16 %v135
  %v523 = vunpack.c.l.b16 %v136
  %v524 = vunpack.c.l.b16 %v137
  %v525 = vunpack.c.l.b16 %v138
  %v526 = vunpack.c.l.b16 %v139
  %v527 = vunpack.c.l.b16 %v140
  %v528 = vunpack.c.l.b16 %v141
  %v529 = vunpack.c.l.b16 %v142
  %v530 = vunpack.c.l.b16 %v143
  %v531 = vunpack.c.l.b16 %v144
  %v532 = vunpack.c.l.b16 %v145
  %v533 = vunpack.c.l.b16 %v146
  %v534 = vunpack.c.l.b16 %v147
  %v535 = vunpack.c.l.b16 %v148
  %v536 = vunpack.c.l.b16 %v149
  %v537 = vunpack.c.l.b16 %v150
  %v538 = vunpack.c.l.b16 %v151
  %v539 = vunpack.c.l.b16 %v152
  %v540 = vunpack.c.l.b16 %v153
  %v541 = vunpack.c.l.b16 %v154
  %v542 = vunpack.c.l.b16 %v155
  %v543 = vunpack.c.l.b16 %v156
  %v544 = vunpack.c.l.b16 %v157
  %v545 = vunpack.c.l.b16 %v158
  %v546 = vunpack.c.l.b16 %v159
  %v547 = vunpack.c.l.b16 %v160
  %v548 = vunpack.c.l.b16 %v161
  %v549 = vunpack.c.l.b16 %v162
  %v550 = vunpack.c.l.b16 %v163
  %v551 = vunpack.c.l.b16 %v164
  %v552 = vunpack.c.l.b16 %v165
  %v553 = vunpack.c.l.b16 %v166
  %v554 = vunpack.c.l.b16 %v167
  %v555 = vunpack.c.l.b16 %v168
  %v556 = vunpack.c.l.b16 %v169
  %v557 = vunpack.c.l.b16 %v170
  %v558 = vunpack.c.l.b16 %v171
  %v559 = vunpack.c.l.b16 %v172
  %v560 = vunpack.c.l.b16 %v173
  %v561 = vunpack.c.l.b16 %v174
  %v562 = vunpack.c.l.b16 %v175
  %v563 = vunpack.c.l.b16 %v176
  %v564 = vunpack.c.l.b16 %v177
  %v565 = vunpack.c.l.b16 %v178
  %v566 = vunpack.c.l.b16 %v179
  %v567 = vunpack.c.l.b16 %v180
  %v568 = vunpack.c.l.b16 %v181
  %v569 = vpack.c.b16 %v426, %v425
  %v570 = vpack.c.b16 %v428, %v427
  %v571 = vpack.c.b16 %v430, %v429
  %v572 = vpack.c.b16 %v432, %v431
  %v573 = vpack.c.b16 %v434, %v433
  %v574 = vpack.c.b16 %v436, %v435
  %v575 = vpack.c.b16 %v438, %v437
  %v576 = vpack.c.b16 %v440, %v439
  %v577 = vpack.c.b16 %v442, %v441
  %v578 = vpack.c.b16 %v444, %v443
  %v579 = vpack.c.b16 %v446, %v445
  %v580 = vpack.c.b16 %v448, %v447
  %v581 = vpack.c.b16 %v450, %v449
  %v582 = vpack.c.b16 %v452, %v451
  %v583 = vpack.c.b16 %v454, %v453
  %v584 = vpack.c.b16 %v456, %v455
  %v585 = vpack.c.b16 %v458, %v457
  %v586 = vpack.c.b16 %v460, %v459
  %v587 = vpack.c.b16 %v462, %v461
  %v588 = vpack.c.b16 %v464, %v463
  %v589 = vpack.c.b16 %v466, %v465
  %v590 = vpack.c.b16 %v468, %v467
  %v591 = vpack.c.b16 %v470, %v469
  %v592 = vpack.c.b16 %v472, %v471
  %v593 = vpack.c.b16 %v474, %v473
  %v594 = vpack.c.b16 %v476, %v475
  %v595 = vpack.c.b16 %v478, %v477
  %v596 = vpack.c.b16 %v480, %v479
  %v597 = vpack.c.b16 %v482, %v481
  %v598 = vpack.c.b16 %v484, %v483
  %v599 = vpack.c.b16 %v486, %v485
  %v600 = vpack.c.b16 %v488, %v487
  %v601 = vpack.c.b16 %v490, %v489
  %v602 = vpack.c.b16 %v492, %v491
  %v603 = vpack.c.b16 %v494, %v493
  %v604 = vpack.c.b16 %v496, %v495
  %v605 = vpack.c.b16 %v498, %v497
  %v606 = vpack.c.b16 %v500, %v499
  %v607 = vpack.c.b16 %v502, %v501
  %v608 = vpack.c.b16 %v504, %v503
  %v609 = vpack.c.b16 %v506, %v505
  %v610 = vpack.c.b16 %v508, %v507
  %v611 = vpack.c.b16 %v510, %v509
  %v612 = vpack.c.b16 %v512, %v511
  %v613 = vpack.c.b16 %v514, %v513
  %v614 = vpack.c.b16 %v516, %v515
  %v615 = vpack.c.b16 %v518, %v517
  %v616 = vpack.c.b16 %v520, %v519
  %v617 = vpack.c.b16 %v522, %v521
  %v618 = vpack.c.b16 %v524, %v523
  %v619 = vpack.c.b16 %v526, %v525
  %v620 = vpack.c.b16 %v528, %v527
  %v621 = vpack.c.b16 %v530, %v529
  %v622 = vpack.c.b16 %v532, %v531
  %v623 = vpack.c.b16 %v534, %v533
  %v624 = vpack.c.b16 %v536, %v535
  %v625 = vpack.c.b16 %v538, %v537
  %v626 = vpack.c.b16 %v540, %v539
  %v627 = vpack.c.b16 %v542, %v541
  %v628 = vpack.c.b16 %v544, %v543
  %v629 = vpack.c.b16 %v546, %v545
  %v630 = vpack.c.b16 %v548, %v547
  %v631 = vpack.c.b16 %v550, %v549
  %v632 = vpack.c.b16 %v552, %v551
  %v633 = vpack.c.b16 %v554, %v553
  %v634 = vpack.c.b16 %v556, %v555
  %v635 = vpack.c.b16 %v558, %v557
  %v636 = vpack.c.b16 %v560, %v559
  %v637 = vpack.c.b16 %v562, %v561
  %v638 = vpack.c.b16 %v564, %v563
  %v639 = vpack.c.b16 %v566, %v565
  %v640 = vpack.c.b16 %v568, %v567
  %713 = vmatprep.subr.bf16.mxu0 0
  %714 = vmatpush1.bf16.msra.mxu0 %v569
  %715 = vmatprep.subr.bf16.mxu0 0
  %716 = vmatpush1.bf16.msra.mxu0 %v570
  %717 = vmatprep.subr.bf16.mxu0 0
  %718 = vmatpush1.bf16.msra.mxu0 %v571
  %719 = vmatprep.subr.bf16.mxu0 0
  %720 = vmatpush1.bf16.msra.mxu0 %v572
  %721 = vmatprep.subr.bf16.mxu0 0
  %722 = vmatpush1.bf16.msra.mxu0 %v573
  %723 = vmatprep.subr.bf16.mxu0 0
  %724 = vmatpush1.bf16.msra.mxu0 %v574
  %725 = vmatprep.subr.bf16.mxu0 0
  %726 = vmatpush1.bf16.msra.mxu0 %v575
  %727 = vmatprep.subr.bf16.mxu0 0
  %728 = vmatpush1.bf16.msra.mxu0 %v576
  %729 = vmatprep.subr.bf16.mxu0 0
  %730 = vmatpush1.bf16.msra.mxu0 %v577
  %731 = vmatprep.subr.bf16.mxu0 0
  %732 = vmatpush1.bf16.msra.mxu0 %v578
  %733 = vmatprep.subr.bf16.mxu0 0
  %734 = vmatpush1.bf16.msra.mxu0 %v579
  %735 = vmatprep.subr.bf16.mxu0 0
  %736 = vmatpush1.bf16.msra.mxu0 %v580
  %737 = vmatprep.subr.bf16.mxu0 0
  %738 = vmatpush1.bf16.msra.mxu0 %v581
  %739 = vmatprep.subr.bf16.mxu0 0
  %740 = vmatpush1.bf16.msra.mxu0 %v582
  %741 = vmatprep.subr.bf16.mxu0 0
  %742 = vmatpush1.bf16.msra.mxu0 %v583
  %743 = vmatprep.subr.bf16.mxu0 0
  %744 = vmatpush1.bf16.msra.mxu0 %v584
  %745 = vmatprep.mubr.bf16.mxu0 %v246
  %746 = vmatmul.mubr.bf16.gmra.mrb[0].mxu0 %v245
  %v747 = vpop.f32.mrb[0].mxu0
  %v748 = vadd.f32 %v187, %v747
  %v749 = vpop.f32.mrb[0].mxu0
  %v750 = vpop.f32.mrb[0].mxu0
  %v751 = vadd.f32 %v187, %v750
  %v752 = vpop.f32.mrb[0].mxu0
  %753 = vmatprep.mubr.bf16.mxu0 %v255
  %754 = vmatmul.mubr.bf16.gmra.mrb[0].mxu0 %v254
  %v755 = vpop.f32.mrb[0].mxu0
  %v756 = vadd.f32 %v187, %v755
  %v757 = vpop.f32.mrb[0].mxu0
  %v758 = vpop.f32.mrb[0].mxu0
  %v759 = vadd.f32 %v187, %v758
  %v760 = vpop.f32.mrb[0].mxu0
  %761 = vdwg.mxu0
  %762 = vmatprep.subr.bf16.mxu0 0
  %763 = vmatpush1.bf16.msra.mxu0 %v585
  %764 = vmatprep.subr.bf16.mxu0 0
  %765 = vmatpush1.bf16.msra.mxu0 %v586
  %766 = vmatprep.subr.bf16.mxu0 0
  %767 = vmatpush1.bf16.msra.mxu0 %v587
  %768 = vmatprep.subr.bf16.mxu0 0
  %769 = vmatpush1.bf16.msra.mxu0 %v588
  %770 = vmatprep.subr.bf16.mxu0 0
  %771 = vmatpush1.bf16.msra.mxu0 %v589
  %772 = vmatprep.subr.bf16.mxu0 0
  %773 = vmatpush1.bf16.msra.mxu0 %v590
  %774 = vmatprep.subr.bf16.mxu0 0
  %775 = vmatpush1.bf16.msra.mxu0 %v591
  %776 = vmatprep.subr.bf16.mxu0 0
  %777 = vmatpush1.bf16.msra.mxu0 %v592
  %778 = vmatprep.subr.bf16.mxu0 0
  %779 = vmatpush1.bf16.msra.mxu0 %v593
  %780 = vmatprep.subr.bf16.mxu0 0
  %781 = vmatpush1.bf16.msra.mxu0 %v594
  %782 = vmatprep.subr.bf16.mxu0 0
  %783 = vmatpush1.bf16.msra.mxu0 %v595
  %784 = vmatprep.subr.bf16.mxu0 0
  %785 = vmatpush1.bf16.msra.mxu0 %v596
  %786 = vmatprep.subr.bf16.mxu0 0
  %787 = vmatpush1.bf16.msra.mxu0 %v597
  %788 = vmatprep.subr.bf16.mxu0 0
  %789 = vmatpush1.bf16.msra.mxu0 %v598
  %790 = vmatprep.subr.bf16.mxu0 0
  %791 = vmatpush1.bf16.msra.mxu0 %v599
  %792 = vmatprep.subr.bf16.mxu0 0
  %793 = vmatpush1.bf16.msra.mxu0 %v600
  %794 = vmatprep.mubr.bf16.mxu0 %v248
  %795 = vmatmul.mubr.bf16.gmra.mrb[0].mxu0 %v247
  %v796 = vpop.f32.mrb[0].mxu0
  %v797 = vadd.f32 %v748, %v796
  %v798 = vpop.f32.mrb[0].mxu0
  %v799 = vpop.f32.mrb[0].mxu0
  %v800 = vadd.f32 %v751, %v799
  %v801 = vpop.f32.mrb[0].mxu0
  %802 = vmatprep.mubr.bf16.mxu0 %v257
  %803 = vmatmul.mubr.bf16.gmra.mrb[0].mxu0 %v256
  %v804 = vpop.f32.mrb[0].mxu0
  %v805 = vadd.f32 %v756, %v804
  %v806 = vpop.f32.mrb[0].mxu0
  %v807 = vpop.f32.mrb[0].mxu0
  %v808 = vadd.f32 %v759, %v807
  %v809 = vpop.f32.mrb[0].mxu0
  %810 = vdwg.mxu0
  %811 = vmatprep.subr.bf16.mxu0 0
  %812 = vmatpush1.bf16.msra.mxu0 %v601
  %813 = vmatprep.subr.bf16.mxu0 0
  %814 = vmatpush1.bf16.msra.mxu0 %v602
  %815 = vmatprep.subr.bf16.mxu0 0
  %816 = vmatpush1.bf16.msra.mxu0 %v603
  %817 = vmatprep.subr.bf16.mxu0 0
  %818 = vmatpush1.bf16.msra.mxu0 %v604
  %819 = vmatprep.subr.bf16.mxu0 0
  %820 = vmatpush1.bf16.msra.mxu0 %v605
  %821 = vmatprep.subr.bf16.mxu0 0
  %822 = vmatpush1.bf16.msra.mxu0 %v606
  %823 = vmatprep.subr.bf16.mxu0 0
  %824 = vmatpush1.bf16.msra.mxu0 %v607
  %825 = vmatprep.subr.bf16.mxu0 0
  %826 = vmatpush1.bf16.msra.mxu0 %v608
  %827 = vmatprep.subr.bf16.mxu0 0
  %828 = vmatpush1.bf16.msra.mxu0 %v609
  %829 = vmatprep.subr.bf16.mxu0 0
  %830 = vmatpush1.bf16.msra.mxu0 %v610
  %831 = vmatprep.subr.bf16.mxu0 0
  %832 = vmatpush1.bf16.msra.mxu0 %v611
  %833 = vmatprep.subr.bf16.mxu0 0
  %834 = vmatpush1.bf16.msra.mxu0 %v612
  %835 = vmatprep.subr.bf16.mxu0 0
  %836 = vmatpush1.bf16.msra.mxu0 %v613
  %837 = vmatprep.subr.bf16.mxu0 0
  %838 = vmatpush1.bf16.msra.mxu0 %v614
  %839 = vmatprep.subr.bf16.mxu0 0
  %840 = vmatpush1.bf16.msra.mxu0 %v615
  %841 = vmatprep.subr.bf16.mxu0 0
  %842 = vmatpush1.bf16.msra.mxu0 %v616
  %843 = vmatprep.mubr.bf16.mxu0 %v250
  %844 = vmatmul.mubr.bf16.gmra.mrb[0].mxu0 %v249
  %v845 = vpop.f32.mrb[0].mxu0
  %v846 = vadd.f32 %v797, %v845
  %v847 = vpop.f32.mrb[0].mxu0
  %v848 = vpop.f32.mrb[0].mxu0
  %v849 = vadd.f32 %v800, %v848
  %v850 = vpop.f32.mrb[0].mxu0
  %851 = vmatprep.mubr.bf16.mxu0 %v259
  %852 = vmatmul.mubr.bf16.gmra.mrb[0].mxu0 %v258
  %v853 = vpop.f32.mrb[0].mxu0
  %v854 = vadd.f32 %v805, %v853
  %v855 = vpop.f32.mrb[0].mxu0
  %v856 = vpop.f32.mrb[0].mxu0
  %v857 = vadd.f32 %v808, %v856
  %v858 = vpop.f32.mrb[0].mxu0
  %859 = vdwg.mxu0
  %860 = vmatprep.subr.bf16.mxu0 0
  %861 = vmatpush1.bf16.msra.mxu0 %v617
  %862 = vmatprep.subr.bf16.mxu0 0
  %863 = vmatpush1.bf16.msra.mxu0 %v618
  %864 = vmatprep.subr.bf16.mxu0 0
  %865 = vmatpush1.bf16.msra.mxu0 %v619
  %866 = vmatprep.subr.bf16.mxu0 0
  %867 = vmatpush1.bf16.msra.mxu0 %v620
  %868 = vmatprep.subr.bf16.mxu0 0
  %869 = vmatpush1.bf16.msra.mxu0 %v621
  %870 = vmatprep.subr.bf16.mxu0 0
  %871 = vmatpush1.bf16.msra.mxu0 %v622
  %872 = vmatprep.subr.bf16.mxu0 0
  %873 = vmatpush1.bf16.msra.mxu0 %v623
  %874 = vmatprep.subr.bf16.mxu0 0
  %875 = vmatpush1.bf16.msra.mxu0 %v624
  %876 = vmatprep.subr.bf16.mxu0 0
  %877 = vmatpush1.bf16.msra.mxu0 %v625
  %878 = vmatprep.subr.bf16.mxu0 0
  %879 = vmatpush1.bf16.msra.mxu0 %v626
  %880 = vmatprep.subr.bf16.mxu0 0
  %881 = vmatpush1.bf16.msra.mxu0 %v627
  %882 = vmatprep.subr.bf16.mxu0 0
  %883 = vmatpush1.bf16.msra.mxu0 %v628
  %884 = vmatprep.subr.bf16.mxu0 0
  %885 = vmatpush1.bf16.msra.mxu0 %v629
  %886 = vmatprep.subr.bf16.mxu0 0
  %887 = vmatpush1.bf16.msra.mxu0 %v630
  %888 = vmatprep.subr.bf16.mxu0 0
  %889 = vmatpush1.bf16.msra.mxu0 %v631
  %890 = vmatprep.subr.bf16.mxu0 0
  %891 = vmatpush1.bf16.msra.mxu0 %v632
  %892 = vmatprep.mubr.bf16.mxu0 %v252
  %893 = vmatmul.mubr.bf16.gmra.mrb[0].mxu0 %v251
  %v894 = vpop.f32.mrb[0].mxu0
  %v895 = vadd.f32 %v846, %v894
  %v896 = vpop.f32.mrb[0].mxu0
  %v897 = vpop.f32.mrb[0].mxu0
  %v898 = vadd.f32 %v849, %v897
  %v899 = vpop.f32.mrb[0].mxu0
  %900 = vmatprep.mubr.bf16.mxu0 %v261
  %901 = vmatmul.mubr.bf16.gmra.mrb[0].mxu0 %v260
  %v902 = vpop.f32.mrb[0].mxu0
  %v903 = vadd.f32 %v854, %v902
  %v904 = vpop.f32.mrb[0].mxu0
  %v905 = vpop.f32.mrb[0].mxu0
  %v906 = vadd.f32 %v857, %v905
  %v907 = vpop.f32.mrb[0].mxu0
  %908 = vdwg.mxu0
  %909 = vmatprep.subr.bf16.mxu0 0
  %910 = vmatpush1.bf16.msra.mxu0 %v633
  %911 = vmatprep.subr.bf16.mxu0 0
  %912 = vmatpush1.bf16.msra.mxu0 %v634
  %913 = vmatprep.subr.bf16.mxu0 0
  %914 = vmatpush1.bf16.msra.mxu0 %v635
  %915 = vmatprep.subr.bf16.mxu0 0
  %916 = vmatpush1.bf16.msra.mxu0 %v636
  %917 = vmatprep.subr.bf16.mxu0 0
  %918 = vmatpush1.bf16.msra.mxu0 %v637
  %919 = vmatprep.subr.bf16.mxu0 0
  %920 = vmatpush1.bf16.msra.mxu0 %v638
  %921 = vmatprep.subr.bf16.mxu0 0
  %922 = vmatpush1.bf16.msra.mxu0 %v639
  %923 = vmatprep.subr.bf16.mxu0 0
  %924 = vmatpush1.bf16.msra.mxu0 %v640
  %925 = vmatprep.subr.bf16.mxu0 0
  %926 = vmatpush1.bf16.msra.mxu0 0
  %927 = vmatprep.subr.bf16.mxu0 0
  %928 = vmatpush1.bf16.msra.mxu0 0
  %929 = vmatprep.subr.bf16.mxu0 0
  %930 = vmatpush1.bf16.msra.mxu0 0
  %931 = vmatprep.subr.bf16.mxu0 0
  %932 = vmatpush1.bf16.msra.mxu0 0
  %933 = vmatprep.subr.bf16.mxu0 0
  %934 = vmatpush1.bf16.msra.mxu0 0
  %935 = vmatprep.subr.bf16.mxu0 0
  %936 = vmatpush1.bf16.msra.mxu0 0
  %937 = vmatprep.subr.bf16.mxu0 0
  %938 = vmatpush1.bf16.msra.mxu0 0
  %939 = vmatprep.subr.bf16.mxu0 0
  %940 = vmatpush1.bf16.msra.mxu0 0
  %941 = vmatprep.mubr.bf16.mxu0 0
  %942 = vmatmul.mubr.bf16.gmra.mrb[0].mxu0 %v253
  %v943 = vpop.f32.mrb[0].mxu0
  %v944 = vadd.f32 %v895, %v943
  %v945 = vpop.f32.mrb[0].mxu0
  %v946 = vpop.f32.mrb[0].mxu0
  %v947 = vadd.f32 %v898, %v946
  %v948 = vpop.f32.mrb[0].mxu0
  %949 = vmatprep.mubr.bf16.mxu0 0
  %950 = vmatmul.mubr.bf16.gmra.mrb[0].mxu0 %v262
  %v951 = vpop.f32.mrb[0].mxu0
  %v952 = vadd.f32 %v903, %v951
  %v953 = vpop.f32.mrb[0].mxu0
  %v954 = vpop.f32.mrb[0].mxu0
  %v955 = vadd.f32 %v906, %v954
  %v956 = vpop.f32.mrb[0].mxu0
  %957 = vdwg.mxu0
  %v958 = vld [vmem:[%s3] sm:$0xff]
  %v959 = vld [vmem:[%s3 + $0x8] sm:$0xff]
  %v960 = vld [vmem:[%s3 + $0x10] sm:$0xff]
  %v961 = vld [vmem:[%s3 + $0x18] sm:$0xff]
  %v962 = vadd.f32 %v944, %v958
  %v963 = vadd.f32 %v947, %v959
  %v964 = vadd.f32 %v952, %v960
  %v965 = vadd.f32 %v955, %v961
  %v966 = vmax.f32 %v962, 0.0
  %v967 = vmax.f32 %v963, 0.0
  %v968 = vmax.f32 %v964, 0.0
  %v969 = vmax.f32 %v965, 0.0
  %970 = vst [vmem:[%s4] sm:$0xff] %v966
  %971 = vst [vmem:[%s4 + $0x8] sm:$0xff] %v967
  %972 = vst [vmem:[%s4 + $0x10] sm:$0xff] %v968
  %973 = vst [vmem:[%s4 + $0x18] sm:$0xff] %v969
  // Predicated region
  $region18: #{colorization_forward.21} parent=0 // pred_check
    _
  $region19: #{colorization_forward.21} parent=0 // pred_check_branch
    %975 = sbr.rel (0) target = $region21
  $region20: #{colorization_forward.21} parent=0 // pred_region
    _
  $region21: #{colorization_forward.21} parent=0 // pred_fallthru
    _
  // Predicated region
  $region22: #{colorization_forward.21} parent=0 // pred_check
    _
  $region23: #{colorization_forward.21} parent=0 // pred_check_branch
    %977 = sbr.rel (0) target = $region25
  $region24: #{colorization_forward.21} parent=0 // pred_region
    _
  $region25: #{colorization_forward.21} parent=0 // pred_fallthru
    _

// kernel: colorization_forward.22
$region0: #{colorization_forward.22}
  #allocation0 [shape = 'u32[]', space=smem, size = 0x4, offset = 0x4, fixed_abs, tag = 'smem constant byte address 0x4 - core index']
  #allocation1 [shape = 'u32[144,128]{1,0:T(1,128)}', space=vmem, size = 0x12000, scoped, tag = 'internal scratch']
  %s0 = inlined_call_operand.vmem [shape: bf16[32,1152], index: 0, kind: input, shape index: {}]
  %s1 = inlined_call_operand.vmem [shape: bf16[1152,128], index: 1, kind: input, shape index: {}]
  %s2 = inlined_call_operand.vmem [shape: f32[1,128], index: 2, kind: input, shape index: {}]
  %s3 = inlined_call_operand.vmem [shape: f32[32,128], index: 3, kind: output, shape index: {}]
  %s4 = sld [smem:[#allocation0]]
  $region22: #{colorization_forward.22} parent=0
    _
  %s6 = ssub.s32 1, %s4
  %s7 = scalar_select 0, %s6, %s4
  // Predicated region
  $region2: #{colorization_forward.22} parent=0 // pred_check
    _
  $region3: #{colorization_forward.22} parent=0 // pred_check_branch
    %9 = sbr.rel (0) target = $region5
  $region4: #{colorization_forward.22} parent=0 // pred_region
    _
  $region5: #{colorization_forward.22} parent=0 // pred_fallthru
    _
  // Predicated region
  $region6: #{colorization_forward.22} parent=0 // pred_check
    _
  $region7: #{colorization_forward.22} parent=0 // pred_check_branch
    %11 = sbr.rel (0) target = $region9
  $region8: #{colorization_forward.22} parent=0 // pred_region
    _
  $region9: #{colorization_forward.22} parent=0 // pred_fallthru
    _
  // Predicated region
  $region10: #{colorization_forward.22} parent=0 // pred_check
    _
  $region11: #{colorization_forward.22} parent=0 // pred_check_branch
    %13 = sbr.rel (0) target = $region13
  $region12: #{colorization_forward.22} parent=0 // pred_region
    _
  $region13: #{colorization_forward.22} parent=0 // pred_fallthru
    _
  %v15 = vld [vmem:[%s0] sm:$0xff]
  %v16 = vld [vmem:[%s0 + $0x8] sm:$0xff]
  %v17 = vld [vmem:[%s0 + $0x10] sm:$0xff]
  %v18 = vld [vmem:[%s0 + $0x18] sm:$0xff]
  %v19 = vld [vmem:[%s0 + $0x20] sm:$0xf]
  %v20 = vld [vmem:[%s0 + $0x24] sm:$0xff]
  %v21 = vld [vmem:[%s0 + $0x2c] sm:$0xff]
  %v22 = vld [vmem:[%s0 + $0x34] sm:$0xff]
  %v23 = vld [vmem:[%s0 + $0x3c] sm:$0xff]
  %v24 = vld [vmem:[%s0 + $0x44] sm:$0xf]
  %v25 = vld [vmem:[%s0 + $0x48] sm:$0xff]
  %v26 = vld [vmem:[%s0 + $0x50] sm:$0xff]
  %v27 = vld [vmem:[%s0 + $0x58] sm:$0xff]
  %v28 = vld [vmem:[%s0 + $0x60] sm:$0xff]
  %v29 = vld [vmem:[%s0 + $0x68] sm:$0xf]
  %v30 = vld [vmem:[%s0 + $0x6c] sm:$0xff]
  %v31 = vld [vmem:[%s0 + $0x74] sm:$0xff]
  %v32 = vld [vmem:[%s0 + $0x7c] sm:$0xff]
  %v33 = vld [vmem:[%s0 + $0x84] sm:$0xff]
  %v34 = vld [vmem:[%s0 + $0x8c] sm:$0xf]
  %v35 = vld [vmem:[%s1] sm:$0xf]
  %v36 = vld [vmem:[%s1 + $0x4] sm:$0xf]
  %v37 = vld [vmem:[%s1 + $0x8] sm:$0xf]
  %v38 = vld [vmem:[%s1 + $0xc] sm:$0xf]
  %v39 = vld [vmem:[%s1 + $0x10] sm:$0xf]
  %v40 = vld [vmem:[%s1 + $0x14] sm:$0xf]
  %v41 = vld [vmem:[%s1 + $0x18] sm:$0xf]
  %v42 = vld [vmem:[%s1 + $0x1c] sm:$0xf]
  %v43 = vld [vmem:[%s1 + $0x20] sm:$0xf]
  %v44 = vld [vmem:[%s1 + $0x24] sm:$0xf]
  %v45 = vld [vmem:[%s1 + $0x28] sm:$0xf]
  %v46 = vld [vmem:[%s1 + $0x2c] sm:$0xf]
  %v47 = vld [vmem:[%s1 + $0x30] sm:$0xf]
  %v48 = vld [vmem:[%s1 + $0x34] sm:$0xf]
  %v49 = vld [vmem:[%s1 + $0x38] sm:$0xf]
  %v50 = vld [vmem:[%s1 + $0x3c] sm:$0xf]
  %v51 = vld [vmem:[%s1 + $0x40] sm:$0xf]
  %v52 = vld [vmem:[%s1 + $0x44] sm:$0xf]
  %v53 = vld [vmem:[%s1 + $0x48] sm:$0xf]
  %v54 = vld [vmem:[%s1 + $0x4c] sm:$0xf]
  %v55 = vld [vmem:[%s1 + $0x50] sm:$0xf]
  %v56 = vld [vmem:[%s1 + $0x54] sm:$0xf]
  %v57 = vld [vmem:[%s1 + $0x58] sm:$0xf]
  %v58 = vld [vmem:[%s1 + $0x5c] sm:$0xf]
  %v59 = vld [vmem:[%s1 + $0x60] sm:$0xf]
  %v60 = vld [vmem:[%s1 + $0x64] sm:$0xf]
  %v61 = vld [vmem:[%s1 + $0x68] sm:$0xf]
  %v62 = vld [vmem:[%s1 + $0x6c] sm:$0xf]
  %v63 = vld [vmem:[%s1 + $0x70] sm:$0xf]
  %v64 = vld [vmem:[%s1 + $0x74] sm:$0xf]
  %v65 = vld [vmem:[%s1 + $0x78] sm:$0xf]
  %v66 = vld [vmem:[%s1 + $0x7c] sm:$0xf]
  %v67 = vld [vmem:[%s1 + $0x80] sm:$0xf]
  %v68 = vld [vmem:[%s1 + $0x84] sm:$0xf]
  %v69 = vld [vmem:[%s1 + $0x88] sm:$0xf]
  %v70 = vld [vmem:[%s1 + $0x8c] sm:$0xf]
  %v71 = vld [vmem:[%s1 + $0x90] sm:$0xf]
  %v72 = vld [vmem:[%s1 + $0x94] sm:$0xf]
  %v73 = vld [vmem:[%s1 + $0x98] sm:$0xf]
  %v74 = vld [vmem:[%s1 + $0x9c] sm:$0xf]
  %v75 = vld [vmem:[%s1 + $0xa0] sm:$0xf]
  %v76 = vld [vmem:[%s1 + $0xa4] sm:$0xf]
  %v77 = vld [vmem:[%s1 + $0xa8] sm:$0xf]
  %v78 = vld [vmem:[%s1 + $0xac] sm:$0xf]
  %v79 = vld [vmem:[%s1 + $0xb0] sm:$0xf]
  %v80 = vld [vmem:[%s1 + $0xb4] sm:$0xf]
  %v81 = vld [vmem:[%s1 + $0xb8] sm:$0xf]
  %v82 = vld [vmem:[%s1 + $0xbc] sm:$0xf]
  %v83 = vld [vmem:[%s1 + $0xc0] sm:$0xf]
  %v84 = vld [vmem:[%s1 + $0xc4] sm:$0xf]
  %v85 = vld [vmem:[%s1 + $0xc8] sm:$0xf]
  %v86 = vld [vmem:[%s1 + $0xcc] sm:$0xf]
  %v87 = vld [vmem:[%s1 + $0xd0] sm:$0xf]
  %v88 = vld [vmem:[%s1 + $0xd4] sm:$0xf]
  %v89 = vld [vmem:[%s1 + $0xd8] sm:$0xf]
  %v90 = vld [vmem:[%s1 + $0xdc] sm:$0xf]
  %v91 = vld [vmem:[%s1 + $0xe0] sm:$0xf]
  %v92 = vld [vmem:[%s1 + $0xe4] sm:$0xf]
  %v93 = vld [vmem:[%s1 + $0xe8] sm:$0xf]
  %v94 = vld [vmem:[%s1 + $0xec] sm:$0xf]
  %v95 = vld [vmem:[%s1 + $0xf0] sm:$0xf]
  %v96 = vld [vmem:[%s1 + $0xf4] sm:$0xf]
  %v97 = vld [vmem:[%s1 + $0xf8] sm:$0xf]
  %v98 = vld [vmem:[%s1 + $0xfc] sm:$0xf]
  %v99 = vld [vmem:[%s1 + $0x100] sm:$0xf]
  %v100 = vld [vmem:[%s1 + $0x104] sm:$0xf]
  %v101 = vld [vmem:[%s1 + $0x108] sm:$0xf]
  %v102 = vld [vmem:[%s1 + $0x10c] sm:$0xf]
  %v103 = vld [vmem:[%s1 + $0x110] sm:$0xf]
  %v104 = vld [vmem:[%s1 + $0x114] sm:$0xf]
  %v105 = vld [vmem:[%s1 + $0x118] sm:$0xf]
  %v106 = vld [vmem:[%s1 + $0x11c] sm:$0xf]
  %v107 = vld [vmem:[%s1 + $0x120] sm:$0xf]
  %v108 = vld [vmem:[%s1 + $0x124] sm:$0xf]
  %v109 = vld [vmem:[%s1 + $0x128] sm:$0xf]
  %v110 = vld [vmem:[%s1 + $0x12c] sm:$0xf]
  %v111 = vld [vmem:[%s1 + $0x130] sm:$0xf]
  %v112 = vld [vmem:[%s1 + $0x134] sm:$0xf]
  %v113 = vld [vmem:[%s1 + $0x138] sm:$0xf]
  %v114 = vld [vmem:[%s1 + $0x13c] sm:$0xf]
  %v115 = vld [vmem:[%s1 + $0x140] sm:$0xf]
  %v116 = vld [vmem:[%s1 + $0x144] sm:$0xf]
  %v117 = vld [vmem:[%s1 + $0x148] sm:$0xf]
  %v118 = vld [vmem:[%s1 + $0x14c] sm:$0xf]
  %v119 = vld [vmem:[%s1 + $0x150] sm:$0xf]
  %v120 = vld [vmem:[%s1 + $0x154] sm:$0xf]
  %v121 = vld [vmem:[%s1 + $0x158] sm:$0xf]
  %v122 = vld [vmem:[%s1 + $0x15c] sm:$0xf]
  %v123 = vld [vmem:[%s1 + $0x160] sm:$0xf]
  %v124 = vld [vmem:[%s1 + $0x164] sm:$0xf]
  %v125 = vld [vmem:[%s1 + $0x168] sm:$0xf]
  %v126 = vld [vmem:[%s1 + $0x16c] sm:$0xf]
  %v127 = vld [vmem:[%s1 + $0x170] sm:$0xf]
  %v128 = vld [vmem:[%s1 + $0x174] sm:$0xf]
  %v129 = vld [vmem:[%s1 + $0x178] sm:$0xf]
  %v130 = vld [vmem:[%s1 + $0x17c] sm:$0xf]
  %v131 = vld [vmem:[%s1 + $0x180] sm:$0xf]
  %v132 = vld [vmem:[%s1 + $0x184] sm:$0xf]
  %v133 = vld [vmem:[%s1 + $0x188] sm:$0xf]
  %v134 = vld [vmem:[%s1 + $0x18c] sm:$0xf]
  %v135 = vld [vmem:[%s1 + $0x190] sm:$0xf]
  %v136 = vld [vmem:[%s1 + $0x194] sm:$0xf]
  %v137 = vld [vmem:[%s1 + $0x198] sm:$0xf]
  %v138 = vld [vmem:[%s1 + $0x19c] sm:$0xf]
  %v139 = vld [vmem:[%s1 + $0x1a0] sm:$0xf]
  %v140 = vld [vmem:[%s1 + $0x1a4] sm:$0xf]
  %v141 = vld [vmem:[%s1 + $0x1a8] sm:$0xf]
  %v142 = vld [vmem:[%s1 + $0x1ac] sm:$0xf]
  %v143 = vld [vmem:[%s1 + $0x1b0] sm:$0xf]
  %v144 = vld [vmem:[%s1 + $0x1b4] sm:$0xf]
  %v145 = vld [vmem:[%s1 + $0x1b8] sm:$0xf]
  %v146 = vld [vmem:[%s1 + $0x1bc] sm:$0xf]
  %v147 = vld [vmem:[%s1 + $0x1c0] sm:$0xf]
  %v148 = vld [vmem:[%s1 + $0x1c4] sm:$0xf]
  %v149 = vld [vmem:[%s1 + $0x1c8] sm:$0xf]
  %v150 = vld [vmem:[%s1 + $0x1cc] sm:$0xf]
  %v151 = vld [vmem:[%s1 + $0x1d0] sm:$0xf]
  %v152 = vld [vmem:[%s1 + $0x1d4] sm:$0xf]
  %v153 = vld [vmem:[%s1 + $0x1d8] sm:$0xf]
  %v154 = vld [vmem:[%s1 + $0x1dc] sm:$0xf]
  %v155 = vld [vmem:[%s1 + $0x1e0] sm:$0xf]
  %v156 = vld [vmem:[%s1 + $0x1e4] sm:$0xf]
  %v157 = vld [vmem:[%s1 + $0x1e8] sm:$0xf]
  %v158 = vld [vmem:[%s1 + $0x1ec] sm:$0xf]
  %v159 = vld [vmem:[%s1 + $0x1f0] sm:$0xf]
  %v160 = vld [vmem:[%s1 + $0x1f4] sm:$0xf]
  %v161 = vld [vmem:[%s1 + $0x1f8] sm:$0xf]
  %v162 = vld [vmem:[%s1 + $0x1fc] sm:$0xf]
  %v163 = vld [vmem:[%s1 + $0x200] sm:$0xf]
  %v164 = vld [vmem:[%s1 + $0x204] sm:$0xf]
  %v165 = vld [vmem:[%s1 + $0x208] sm:$0xf]
  %v166 = vld [vmem:[%s1 + $0x20c] sm:$0xf]
  %v167 = vld [vmem:[%s1 + $0x210] sm:$0xf]
  %v168 = vld [vmem:[%s1 + $0x214] sm:$0xf]
  %v169 = vld [vmem:[%s1 + $0x218] sm:$0xf]
  %v170 = vld [vmem:[%s1 + $0x21c] sm:$0xf]
  %v171 = vld [vmem:[%s1 + $0x220] sm:$0xf]
  %v172 = vld [vmem:[%s1 + $0x224] sm:$0xf]
  %v173 = vld [vmem:[%s1 + $0x228] sm:$0xf]
  %v174 = vld [vmem:[%s1 + $0x22c] sm:$0xf]
  %v175 = vld [vmem:[%s1 + $0x230] sm:$0xf]
  %v176 = vld [vmem:[%s1 + $0x234] sm:$0xf]
  %v177 = vld [vmem:[%s1 + $0x238] sm:$0xf]
  %v178 = vld [vmem:[%s1 + $0x23c] sm:$0xf]
  %v179 = vld [vmem:[%s2] sm:$0x1]
  %v181 = vlaneseq
  %v182 = vshrl.u32 %v181, 7
  %v183 = vsub.s32 0, %v182
  %v184 = vrot.slane %v179, %v183
  %v206 = vunpack.c.l.b16 %v15
  %v207 = vunpack.c.h.b16 %v15
  %v208 = vunpack.c.l.b16 %v16
  %v209 = vunpack.c.h.b16 %v16
  %v210 = vunpack.c.l.b16 %v17
  %v211 = vunpack.c.h.b16 %v17
  %v212 = vunpack.c.l.b16 %v18
  %v213 = vunpack.c.h.b16 %v18
  %v214 = vunpack.c.l.b16 %v19
  %v215 = vunpack.c.l.b16 %v20
  %v216 = vunpack.c.h.b16 %v20
  %v217 = vunpack.c.l.b16 %v21
  %v218 = vunpack.c.h.b16 %v21
  %v219 = vunpack.c.l.b16 %v22
  %v220 = vunpack.c.h.b16 %v22
  %v221 = vunpack.c.l.b16 %v23
  %v222 = vunpack.c.h.b16 %v23
  %v223 = vunpack.c.l.b16 %v24
  %v224 = vunpack.c.l.b16 %v25
  %v225 = vunpack.c.h.b16 %v25
  %v226 = vunpack.c.l.b16 %v26
  %v227 = vunpack.c.h.b16 %v26
  %v228 = vunpack.c.l.b16 %v27
  %v229 = vunpack.c.h.b16 %v27
  %v230 = vunpack.c.l.b16 %v28
  %v231 = vunpack.c.h.b16 %v28
  %v232 = vunpack.c.l.b16 %v29
  %v233 = vunpack.c.l.b16 %v30
  %v234 = vunpack.c.h.b16 %v30
  %v235 = vunpack.c.l.b16 %v31
  %v236 = vunpack.c.h.b16 %v31
  %v237 = vunpack.c.l.b16 %v32
  %v238 = vunpack.c.h.b16 %v32
  %v239 = vunpack.c.l.b16 %v33
  %v240 = vunpack.c.h.b16 %v33
  %v241 = vunpack.c.l.b16 %v34
  %v242 = vpack.c.b16 %v215, %v206
  %v243 = vpack.c.b16 %v216, %v207
  %v244 = vpack.c.b16 %v217, %v208
  %v245 = vpack.c.b16 %v218, %v209
  %v246 = vpack.c.b16 %v219, %v210
  %v247 = vpack.c.b16 %v220, %v211
  %v248 = vpack.c.b16 %v221, %v212
  %v249 = vpack.c.b16 %v222, %v213
  %v250 = vpack.c.b16 %v223, %v214
  %v251 = vpack.c.b16 %v233, %v224
  %v252 = vpack.c.b16 %v234, %v225
  %v253 = vpack.c.b16 %v235, %v226
  %v254 = vpack.c.b16 %v236, %v227
  %v255 = vpack.c.b16 %v237, %v228
  %v256 = vpack.c.b16 %v238, %v229
  %v257 = vpack.c.b16 %v239, %v230
  %v258 = vpack.c.b16 %v240, %v231
  %v259 = vpack.c.b16 %v241, %v232
  %v422 = vunpack.c.l.b16 %v35
  %v423 = vunpack.c.l.b16 %v36
  %v424 = vunpack.c.l.b16 %v37
  %v425 = vunpack.c.l.b16 %v38
  %v426 = vunpack.c.l.b16 %v39
  %v427 = vunpack.c.l.b16 %v40
  %v428 = vunpack.c.l.b16 %v41
  %v429 = vunpack.c.l.b16 %v42
  %v430 = vunpack.c.l.b16 %v43
  %v431 = vunpack.c.l.b16 %v44
  %v432 = vunpack.c.l.b16 %v45
  %v433 = vunpack.c.l.b16 %v46
  %v434 = vunpack.c.l.b16 %v47
  %v435 = vunpack.c.l.b16 %v48
  %v436 = vunpack.c.l.b16 %v49
  %v437 = vunpack.c.l.b16 %v50
  %v438 = vunpack.c.l.b16 %v51
  %v439 = vunpack.c.l.b16 %v52
  %v440 = vunpack.c.l.b16 %v53
  %v441 = vunpack.c.l.b16 %v54
  %v442 = vunpack.c.l.b16 %v55
  %v443 = vunpack.c.l.b16 %v56
  %v444 = vunpack.c.l.b16 %v57
  %v445 = vunpack.c.l.b16 %v58
  %v446 = vunpack.c.l.b16 %v59
  %v447 = vunpack.c.l.b16 %v60
  %v448 = vunpack.c.l.b16 %v61
  %v449 = vunpack.c.l.b16 %v62
  %v450 = vunpack.c.l.b16 %v63
  %v451 = vunpack.c.l.b16 %v64
  %v452 = vunpack.c.l.b16 %v65
  %v453 = vunpack.c.l.b16 %v66
  %v454 = vunpack.c.l.b16 %v67
  %v455 = vunpack.c.l.b16 %v68
  %v456 = vunpack.c.l.b16 %v69
  %v457 = vunpack.c.l.b16 %v70
  %v458 = vunpack.c.l.b16 %v71
  %v459 = vunpack.c.l.b16 %v72
  %v460 = vunpack.c.l.b16 %v73
  %v461 = vunpack.c.l.b16 %v74
  %v462 = vunpack.c.l.b16 %v75
  %v463 = vunpack.c.l.b16 %v76
  %v464 = vunpack.c.l.b16 %v77
  %v465 = vunpack.c.l.b16 %v78
  %v466 = vunpack.c.l.b16 %v79
  %v467 = vunpack.c.l.b16 %v80
  %v468 = vunpack.c.l.b16 %v81
  %v469 = vunpack.c.l.b16 %v82
  %v470 = vunpack.c.l.b16 %v83
  %v471 = vunpack.c.l.b16 %v84
  %v472 = vunpack.c.l.b16 %v85
  %v473 = vunpack.c.l.b16 %v86
  %v474 = vunpack.c.l.b16 %v87
  %v475 = vunpack.c.l.b16 %v88
  %v476 = vunpack.c.l.b16 %v89
  %v477 = vunpack.c.l.b16 %v90
  %v478 = vunpack.c.l.b16 %v91
  %v479 = vunpack.c.l.b16 %v92
  %v480 = vunpack.c.l.b16 %v93
  %v481 = vunpack.c.l.b16 %v94
  %v482 = vunpack.c.l.b16 %v95
  %v483 = vunpack.c.l.b16 %v96
  %v484 = vunpack.c.l.b16 %v97
  %v485 = vunpack.c.l.b16 %v98
  %v486 = vunpack.c.l.b16 %v99
  %v487 = vunpack.c.l.b16 %v100
  %v488 = vunpack.c.l.b16 %v101
  %v489 = vunpack.c.l.b16 %v102
  %v490 = vunpack.c.l.b16 %v103
  %v491 = vunpack.c.l.b16 %v104
  %v492 = vunpack.c.l.b16 %v105
  %v493 = vunpack.c.l.b16 %v106
  %v494 = vunpack.c.l.b16 %v107
  %v495 = vunpack.c.l.b16 %v108
  %v496 = vunpack.c.l.b16 %v109
  %v497 = vunpack.c.l.b16 %v110
  %v498 = vunpack.c.l.b16 %v111
  %v499 = vunpack.c.l.b16 %v112
  %v500 = vunpack.c.l.b16 %v113
  %v501 = vunpack.c.l.b16 %v114
  %v502 = vunpack.c.l.b16 %v115
  %v503 = vunpack.c.l.b16 %v116
  %v504 = vunpack.c.l.b16 %v117
  %v505 = vunpack.c.l.b16 %v118
  %v506 = vunpack.c.l.b16 %v119
  %v507 = vunpack.c.l.b16 %v120
  %v508 = vunpack.c.l.b16 %v121
  %v509 = vunpack.c.l.b16 %v122
  %v510 = vunpack.c.l.b16 %v123
  %v511 = vunpack.c.l.b16 %v124
  %v512 = vunpack.c.l.b16 %v125
  %v513 = vunpack.c.l.b16 %v126
  %v514 = vunpack.c.l.b16 %v127
  %v515 = vunpack.c.l.b16 %v128
  %v516 = vunpack.c.l.b16 %v129
  %v517 = vunpack.c.l.b16 %v130
  %v518 = vunpack.c.l.b16 %v131
  %v519 = vunpack.c.l.b16 %v132
  %v520 = vunpack.c.l.b16 %v133
  %v521 = vunpack.c.l.b16 %v134
  %v522 = vunpack.c.l.b16 %v135
  %v523 = vunpack.c.l.b16 %v136
  %v524 = vunpack.c.l.b16 %v137
  %v525 = vunpack.c.l.b16 %v138
  %v526 = vunpack.c.l.b16 %v139
  %v527 = vunpack.c.l.b16 %v140
  %v528 = vunpack.c.l.b16 %v141
  %v529 = vunpack.c.l.b16 %v142
  %v530 = vunpack.c.l.b16 %v143
  %v531 = vunpack.c.l.b16 %v144
  %v532 = vunpack.c.l.b16 %v145
  %v533 = vunpack.c.l.b16 %v146
  %v534 = vunpack.c.l.b16 %v147
  %v535 = vunpack.c.l.b16 %v148
  %v536 = vunpack.c.l.b16 %v149
  %v537 = vunpack.c.l.b16 %v150
  %v538 = vunpack.c.l.b16 %v151
  %v539 = vunpack.c.l.b16 %v152
  %v540 = vunpack.c.l.b16 %v153
  %v541 = vunpack.c.l.b16 %v154
  %v542 = vunpack.c.l.b16 %v155
  %v543 = vunpack.c.l.b16 %v156
  %v544 = vunpack.c.l.b16 %v157
  %v545 = vunpack.c.l.b16 %v158
  %v546 = vunpack.c.l.b16 %v159
  %v547 = vunpack.c.l.b16 %v160
  %v548 = vunpack.c.l.b16 %v161
  %v549 = vunpack.c.l.b16 %v162
  %v550 = vunpack.c.l.b16 %v163
  %v551 = vunpack.c.l.b16 %v164
  %v552 = vunpack.c.l.b16 %v165
  %v553 = vunpack.c.l.b16 %v166
  %v554 = vunpack.c.l.b16 %v167
  %v555 = vunpack.c.l.b16 %v168
  %v556 = vunpack.c.l.b16 %v169
  %v557 = vunpack.c.l.b16 %v170
  %v558 = vunpack.c.l.b16 %v171
  %v559 = vunpack.c.l.b16 %v172
  %v560 = vunpack.c.l.b16 %v173
  %v561 = vunpack.c.l.b16 %v174
  %v562 = vunpack.c.l.b16 %v175
  %v563 = vunpack.c.l.b16 %v176
  %v564 = vunpack.c.l.b16 %v177
  %v565 = vunpack.c.l.b16 %v178
  %v566 = vpack.c.b16 %v423, %v422
  %v567 = vpack.c.b16 %v425, %v424
  %v568 = vpack.c.b16 %v427, %v426
  %v569 = vpack.c.b16 %v429, %v428
  %v570 = vpack.c.b16 %v431, %v430
  %v571 = vpack.c.b16 %v433, %v432
  %v572 = vpack.c.b16 %v435, %v434
  %v573 = vpack.c.b16 %v437, %v436
  %v574 = vpack.c.b16 %v439, %v438
  %v575 = vpack.c.b16 %v441, %v440
  %v576 = vpack.c.b16 %v443, %v442
  %v577 = vpack.c.b16 %v445, %v444
  %v578 = vpack.c.b16 %v447, %v446
  %v579 = vpack.c.b16 %v449, %v448
  %v580 = vpack.c.b16 %v451, %v450
  %v581 = vpack.c.b16 %v453, %v452
  %v582 = vpack.c.b16 %v455, %v454
  %v583 = vpack.c.b16 %v457, %v456
  %v584 = vpack.c.b16 %v459, %v458
  %v585 = vpack.c.b16 %v461, %v460
  %v586 = vpack.c.b16 %v463, %v462
  %v587 = vpack.c.b16 %v465, %v464
  %v588 = vpack.c.b16 %v467, %v466
  %v589 = vpack.c.b16 %v469, %v468
  %v590 = vpack.c.b16 %v471, %v470
  %v591 = vpack.c.b16 %v473, %v472
  %v592 = vpack.c.b16 %v475, %v474
  %v593 = vpack.c.b16 %v477, %v476
  %v594 = vpack.c.b16 %v479, %v478
  %v595 = vpack.c.b16 %v481, %v480
  %v596 = vpack.c.b16 %v483, %v482
  %v597 = vpack.c.b16 %v485, %v484
  %v598 = vpack.c.b16 %v487, %v486
  %v599 = vpack.c.b16 %v489, %v488
  %v600 = vpack.c.b16 %v491, %v490
  %v601 = vpack.c.b16 %v493, %v492
  %v602 = vpack.c.b16 %v495, %v494
  %v603 = vpack.c.b16 %v497, %v496
  %v604 = vpack.c.b16 %v499, %v498
  %v605 = vpack.c.b16 %v501, %v500
  %v606 = vpack.c.b16 %v503, %v502
  %v607 = vpack.c.b16 %v505, %v504
  %v608 = vpack.c.b16 %v507, %v506
  %v609 = vpack.c.b16 %v509, %v508
  %v610 = vpack.c.b16 %v511, %v510
  %v611 = vpack.c.b16 %v513, %v512
  %v612 = vpack.c.b16 %v515, %v514
  %v613 = vpack.c.b16 %v517, %v516
  %v614 = vpack.c.b16 %v519, %v518
  %v615 = vpack.c.b16 %v521, %v520
  %v616 = vpack.c.b16 %v523, %v522
  %v617 = vpack.c.b16 %v525, %v524
  %v618 = vpack.c.b16 %v527, %v526
  %v619 = vpack.c.b16 %v529, %v528
  %v620 = vpack.c.b16 %v531, %v530
  %v621 = vpack.c.b16 %v533, %v532
  %v622 = vpack.c.b16 %v535, %v534
  %v623 = vpack.c.b16 %v537, %v536
  %v624 = vpack.c.b16 %v539, %v538
  %v625 = vpack.c.b16 %v541, %v540
  %v626 = vpack.c.b16 %v543, %v542
  %v627 = vpack.c.b16 %v545, %v544
  %v628 = vpack.c.b16 %v547, %v546
  %v629 = vpack.c.b16 %v549, %v548
  %v630 = vpack.c.b16 %v551, %v550
  %v631 = vpack.c.b16 %v553, %v552
  %v632 = vpack.c.b16 %v555, %v554
  %v633 = vpack.c.b16 %v557, %v556
  %v634 = vpack.c.b16 %v559, %v558
  %v635 = vpack.c.b16 %v561, %v560
  %v636 = vpack.c.b16 %v563, %v562
  %v637 = vpack.c.b16 %v565, %v564
  %710 = vmatprep.subr.bf16.mxu0 0
  %711 = vmatpush1.bf16.msra.mxu0 %v566
  %712 = vmatprep.subr.bf16.mxu0 0
  %713 = vmatpush1.bf16.msra.mxu0 %v567
  %714 = vmatprep.subr.bf16.mxu0 0
  %715 = vmatpush1.bf16.msra.mxu0 %v568
  %716 = vmatprep.subr.bf16.mxu0 0
  %717 = vmatpush1.bf16.msra.mxu0 %v569
  %718 = vmatprep.subr.bf16.mxu0 0
  %719 = vmatpush1.bf16.msra.mxu0 %v570
  %720 = vmatprep.subr.bf16.mxu0 0
  %721 = vmatpush1.bf16.msra.mxu0 %v571
  %722 = vmatprep.subr.bf16.mxu0 0
  %723 = vmatpush1.bf16.msra.mxu0 %v572
  %724 = vmatprep.subr.bf16.mxu0 0
  %725 = vmatpush1.bf16.msra.mxu0 %v573
  %726 = vmatprep.subr.bf16.mxu0 0
  %727 = vmatpush1.bf16.msra.mxu0 %v574
  %728 = vmatprep.subr.bf16.mxu0 0
  %729 = vmatpush1.bf16.msra.mxu0 %v575
  %730 = vmatprep.subr.bf16.mxu0 0
  %731 = vmatpush1.bf16.msra.mxu0 %v576
  %732 = vmatprep.subr.bf16.mxu0 0
  %733 = vmatpush1.bf16.msra.mxu0 %v577
  %734 = vmatprep.subr.bf16.mxu0 0
  %735 = vmatpush1.bf16.msra.mxu0 %v578
  %736 = vmatprep.subr.bf16.mxu0 0
  %737 = vmatpush1.bf16.msra.mxu0 %v579
  %738 = vmatprep.subr.bf16.mxu0 0
  %739 = vmatpush1.bf16.msra.mxu0 %v580
  %740 = vmatprep.subr.bf16.mxu0 0
  %741 = vmatpush1.bf16.msra.mxu0 %v581
  %742 = vmatprep.mubr.bf16.mxu0 %v243
  %743 = vmatmul.mubr.bf16.gmra.mrb[0].mxu0 %v242
  %v744 = vpop.f32.mrb[0].mxu0
  %v745 = vadd.f32 %v184, %v744
  %v746 = vpop.f32.mrb[0].mxu0
  %v747 = vpop.f32.mrb[0].mxu0
  %v748 = vadd.f32 %v184, %v747
  %v749 = vpop.f32.mrb[0].mxu0
  %750 = vmatprep.mubr.bf16.mxu0 %v252
  %751 = vmatmul.mubr.bf16.gmra.mrb[0].mxu0 %v251
  %v752 = vpop.f32.mrb[0].mxu0
  %v753 = vadd.f32 %v184, %v752
  %v754 = vpop.f32.mrb[0].mxu0
  %v755 = vpop.f32.mrb[0].mxu0
  %v756 = vadd.f32 %v184, %v755
  %v757 = vpop.f32.mrb[0].mxu0
  %758 = vdwg.mxu0
  %759 = vmatprep.subr.bf16.mxu0 0
  %760 = vmatpush1.bf16.msra.mxu0 %v582
  %761 = vmatprep.subr.bf16.mxu0 0
  %762 = vmatpush1.bf16.msra.mxu0 %v583
  %763 = vmatprep.subr.bf16.mxu0 0
  %764 = vmatpush1.bf16.msra.mxu0 %v584
  %765 = vmatprep.subr.bf16.mxu0 0
  %766 = vmatpush1.bf16.msra.mxu0 %v585
  %767 = vmatprep.subr.bf16.mxu0 0
  %768 = vmatpush1.bf16.msra.mxu0 %v586
  %769 = vmatprep.subr.bf16.mxu0 0
  %770 = vmatpush1.bf16.msra.mxu0 %v587
  %771 = vmatprep.subr.bf16.mxu0 0
  %772 = vmatpush1.bf16.msra.mxu0 %v588
  %773 = vmatprep.subr.bf16.mxu0 0
  %774 = vmatpush1.bf16.msra.mxu0 %v589
  %775 = vmatprep.subr.bf16.mxu0 0
  %776 = vmatpush1.bf16.msra.mxu0 %v590
  %777 = vmatprep.subr.bf16.mxu0 0
  %778 = vmatpush1.bf16.msra.mxu0 %v591
  %779 = vmatprep.subr.bf16.mxu0 0
  %780 = vmatpush1.bf16.msra.mxu0 %v592
  %781 = vmatprep.subr.bf16.mxu0 0
  %782 = vmatpush1.bf16.msra.mxu0 %v593
  %783 = vmatprep.subr.bf16.mxu0 0
  %784 = vmatpush1.bf16.msra.mxu0 %v594
  %785 = vmatprep.subr.bf16.mxu0 0
  %786 = vmatpush1.bf16.msra.mxu0 %v595
  %787 = vmatprep.subr.bf16.mxu0 0
  %788 = vmatpush1.bf16.msra.mxu0 %v596
  %789 = vmatprep.subr.bf16.mxu0 0
  %790 = vmatpush1.bf16.msra.mxu0 %v597
  %791 = vmatprep.mubr.bf16.mxu0 %v245
  %792 = vmatmul.mubr.bf16.gmra.mrb[0].mxu0 %v244
  %v793 = vpop.f32.mrb[0].mxu0
  %v794 = vadd.f32 %v745, %v793
  %v795 = vpop.f32.mrb[0].mxu0
  %v796 = vpop.f32.mrb[0].mxu0
  %v797 = vadd.f32 %v748, %v796
  %v798 = vpop.f32.mrb[0].mxu0
  %799 = vmatprep.mubr.bf16.mxu0 %v254
  %800 = vmatmul.mubr.bf16.gmra.mrb[0].mxu0 %v253
  %v801 = vpop.f32.mrb[0].mxu0
  %v802 = vadd.f32 %v753, %v801
  %v803 = vpop.f32.mrb[0].mxu0
  %v804 = vpop.f32.mrb[0].mxu0
  %v805 = vadd.f32 %v756, %v804
  %v806 = vpop.f32.mrb[0].mxu0
  %807 = vdwg.mxu0
  %808 = vmatprep.subr.bf16.mxu0 0
  %809 = vmatpush1.bf16.msra.mxu0 %v598
  %810 = vmatprep.subr.bf16.mxu0 0
  %811 = vmatpush1.bf16.msra.mxu0 %v599
  %812 = vmatprep.subr.bf16.mxu0 0
  %813 = vmatpush1.bf16.msra.mxu0 %v600
  %814 = vmatprep.subr.bf16.mxu0 0
  %815 = vmatpush1.bf16.msra.mxu0 %v601
  %816 = vmatprep.subr.bf16.mxu0 0
  %817 = vmatpush1.bf16.msra.mxu0 %v602
  %818 = vmatprep.subr.bf16.mxu0 0
  %819 = vmatpush1.bf16.msra.mxu0 %v603
  %820 = vmatprep.subr.bf16.mxu0 0
  %821 = vmatpush1.bf16.msra.mxu0 %v604
  %822 = vmatprep.subr.bf16.mxu0 0
  %823 = vmatpush1.bf16.msra.mxu0 %v605
  %824 = vmatprep.subr.bf16.mxu0 0
  %825 = vmatpush1.bf16.msra.mxu0 %v606
  %826 = vmatprep.subr.bf16.mxu0 0
  %827 = vmatpush1.bf16.msra.mxu0 %v607
  %828 = vmatprep.subr.bf16.mxu0 0
  %829 = vmatpush1.bf16.msra.mxu0 %v608
  %830 = vmatprep.subr.bf16.mxu0 0
  %831 = vmatpush1.bf16.msra.mxu0 %v609
  %832 = vmatprep.subr.bf16.mxu0 0
  %833 = vmatpush1.bf16.msra.mxu0 %v610
  %834 = vmatprep.subr.bf16.mxu0 0
  %835 = vmatpush1.bf16.msra.mxu0 %v611
  %836 = vmatprep.subr.bf16.mxu0 0
  %837 = vmatpush1.bf16.msra.mxu0 %v612
  %838 = vmatprep.subr.bf16.mxu0 0
  %839 = vmatpush1.bf16.msra.mxu0 %v613
  %840 = vmatprep.mubr.bf16.mxu0 %v247
  %841 = vmatmul.mubr.bf16.gmra.mrb[0].mxu0 %v246
  %v842 = vpop.f32.mrb[0].mxu0
  %v843 = vadd.f32 %v794, %v842
  %v844 = vpop.f32.mrb[0].mxu0
  %v845 = vpop.f32.mrb[0].mxu0
  %v846 = vadd.f32 %v797, %v845
  %v847 = vpop.f32.mrb[0].mxu0
  %848 = vmatprep.mubr.bf16.mxu0 %v256
  %849 = vmatmul.mubr.bf16.gmra.mrb[0].mxu0 %v255
  %v850 = vpop.f32.mrb[0].mxu0
  %v851 = vadd.f32 %v802, %v850
  %v852 = vpop.f32.mrb[0].mxu0
  %v853 = vpop.f32.mrb[0].mxu0
  %v854 = vadd.f32 %v805, %v853
  %v855 = vpop.f32.mrb[0].mxu0
  %856 = vdwg.mxu0
  %857 = vmatprep.subr.bf16.mxu0 0
  %858 = vmatpush1.bf16.msra.mxu0 %v614
  %859 = vmatprep.subr.bf16.mxu0 0
  %860 = vmatpush1.bf16.msra.mxu0 %v615
  %861 = vmatprep.subr.bf16.mxu0 0
  %862 = vmatpush1.bf16.msra.mxu0 %v616
  %863 = vmatprep.subr.bf16.mxu0 0
  %864 = vmatpush1.bf16.msra.mxu0 %v617
  %865 = vmatprep.subr.bf16.mxu0 0
  %866 = vmatpush1.bf16.msra.mxu0 %v618
  %867 = vmatprep.subr.bf16.mxu0 0
  %868 = vmatpush1.bf16.msra.mxu0 %v619
  %869 = vmatprep.subr.bf16.mxu0 0
  %870 = vmatpush1.bf16.msra.mxu0 %v620
  %871 = vmatprep.subr.bf16.mxu0 0
  %872 = vmatpush1.bf16.msra.mxu0 %v621
  %873 = vmatprep.subr.bf16.mxu0 0
  %874 = vmatpush1.bf16.msra.mxu0 %v622
  %875 = vmatprep.subr.bf16.mxu0 0
  %876 = vmatpush1.bf16.msra.mxu0 %v623
  %877 = vmatprep.subr.bf16.mxu0 0
  %878 = vmatpush1.bf16.msra.mxu0 %v624
  %879 = vmatprep.subr.bf16.mxu0 0
  %880 = vmatpush1.bf16.msra.mxu0 %v625
  %881 = vmatprep.subr.bf16.mxu0 0
  %882 = vmatpush1.bf16.msra.mxu0 %v626
  %883 = vmatprep.subr.bf16.mxu0 0
  %884 = vmatpush1.bf16.msra.mxu0 %v627
  %885 = vmatprep.subr.bf16.mxu0 0
  %886 = vmatpush1.bf16.msra.mxu0 %v628
  %887 = vmatprep.subr.bf16.mxu0 0
  %888 = vmatpush1.bf16.msra.mxu0 %v629
  %889 = vmatprep.mubr.bf16.mxu0 %v249
  %890 = vmatmul.mubr.bf16.gmra.mrb[0].mxu0 %v248
  %v891 = vpop.f32.mrb[0].mxu0
  %v892 = vadd.f32 %v843, %v891
  %v893 = vpop.f32.mrb[0].mxu0
  %v894 = vpop.f32.mrb[0].mxu0
  %v895 = vadd.f32 %v846, %v894
  %v896 = vpop.f32.mrb[0].mxu0
  %897 = vmatprep.mubr.bf16.mxu0 %v258
  %898 = vmatmul.mubr.bf16.gmra.mrb[0].mxu0 %v257
  %v899 = vpop.f32.mrb[0].mxu0
  %v900 = vadd.f32 %v851, %v899
  %v901 = vpop.f32.mrb[0].mxu0
  %v902 = vpop.f32.mrb[0].mxu0
  %v903 = vadd.f32 %v854, %v902
  %v904 = vpop.f32.mrb[0].mxu0
  %905 = vdwg.mxu0
  %906 = vmatprep.subr.bf16.mxu0 0
  %907 = vmatpush1.bf16.msra.mxu0 %v630
  %908 = vmatprep.subr.bf16.mxu0 0
  %909 = vmatpush1.bf16.msra.mxu0 %v631
  %910 = vmatprep.subr.bf16.mxu0 0
  %911 = vmatpush1.bf16.msra.mxu0 %v632
  %912 = vmatprep.subr.bf16.mxu0 0
  %913 = vmatpush1.bf16.msra.mxu0 %v633
  %914 = vmatprep.subr.bf16.mxu0 0
  %915 = vmatpush1.bf16.msra.mxu0 %v634
  %916 = vmatprep.subr.bf16.mxu0 0
  %917 = vmatpush1.bf16.msra.mxu0 %v635
  %918 = vmatprep.subr.bf16.mxu0 0
  %919 = vmatpush1.bf16.msra.mxu0 %v636
  %920 = vmatprep.subr.bf16.mxu0 0
  %921 = vmatpush1.bf16.msra.mxu0 %v637
  %922 = vmatprep.subr.bf16.mxu0 0
  %923 = vmatpush1.bf16.msra.mxu0 0
  %924 = vmatprep.subr.bf16.mxu0 0
  %925 = vmatpush1.bf16.msra.mxu0 0
  %926 = vmatprep.subr.bf16.mxu0 0
  %927 = vmatpush1.bf16.msra.mxu0 0
  %928 = vmatprep.subr.bf16.mxu0 0
  %929 = vmatpush1.bf16.msra.mxu0 0
  %930 = vmatprep.subr.bf16.mxu0 0
  %931 = vmatpush1.bf16.msra.mxu0 0
  %932 = vmatprep.subr.bf16.mxu0 0
  %933 = vmatpush1.bf16.msra.mxu0 0
  %934 = vmatprep.subr.bf16.mxu0 0
  %935 = vmatpush1.bf16.msra.mxu0 0
  %936 = vmatprep.subr.bf16.mxu0 0
  %937 = vmatpush1.bf16.msra.mxu0 0
  %938 = vmatprep.mubr.bf16.mxu0 0
  %939 = vmatmul.mubr.bf16.gmra.mrb[0].mxu0 %v250
  %v940 = vpop.f32.mrb[0].mxu0
  %v941 = vadd.f32 %v892, %v940
  %v942 = vpop.f32.mrb[0].mxu0
  %v943 = vpop.f32.mrb[0].mxu0
  %v944 = vadd.f32 %v895, %v943
  %v945 = vpop.f32.mrb[0].mxu0
  %946 = vmatprep.mubr.bf16.mxu0 0
  %947 = vmatmul.mubr.bf16.gmra.mrb[0].mxu0 %v259
  %v948 = vpop.f32.mrb[0].mxu0
  %v949 = vadd.f32 %v900, %v948
  %v950 = vpop.f32.mrb[0].mxu0
  %v951 = vpop.f32.mrb[0].mxu0
  %v952 = vadd.f32 %v903, %v951
  %v953 = vpop.f32.mrb[0].mxu0
  %954 = vdwg.mxu0
  %v955 = vmax.f32 %v941, 0.0
  %v956 = vmax.f32 %v944, 0.0
  %v957 = vmax.f32 %v949, 0.0
  %v958 = vmax.f32 %v952, 0.0
  %959 = vst [vmem:[%s3] sm:$0xff] %v955
  %960 = vst [vmem:[%s3 + $0x8] sm:$0xff] %v956
  %961 = vst [vmem:[%s3 + $0x10] sm:$0xff] %v957
  %962 = vst [vmem:[%s3 + $0x18] sm:$0xff] %v958
  // Predicated region
  $region14: #{colorization_forward.22} parent=0 // pred_check
    _
  $region15: #{colorization_forward.22} parent=0 // pred_check_branch
    %964 = sbr.rel (0) target = $region17
  $region16: #{colorization_forward.22} parent=0 // pred_region
    _
  $region17: #{colorization_forward.22} parent=0 // pred_fallthru
    _
  // Predicated region
  $region18: #{colorization_forward.22} parent=0 // pred_check
    _
  $region19: #{colorization_forward.22} parent=0 // pred_check_branch
    %966 = sbr.rel (0) target = $region21
  $region20: #{colorization_forward.22} parent=0 // pred_region
    _
  $region21: #{colorization_forward.22} parent=0 // pred_fallthru
    _

// kernel: colorization_forward.25
$region0: #{colorization_forward.25}
  #allocation0 [shape = 'u32[]', space=smem, size = 0x4, offset = 0x4, fixed_abs, tag = 'smem constant byte address 0x4 - core index']
  #allocation1 [shape = 'u32[144,128]{1,0:T(1,128)}', space=vmem, size = 0x12000, scoped, tag = 'internal scratch']
  %s0 = inlined_call_operand.vmem [shape: bf16[128,1152], index: 0, kind: input, shape index: {}]
  %s1 = inlined_call_operand.vmem [shape: bf16[1152,64], index: 1, kind: input, shape index: {}]
  %s2 = inlined_call_operand.vmem [shape: f32[1,64], index: 2, kind: input, shape index: {}]
  %s3 = inlined_call_operand.vmem [shape: f32[128,64], index: 3, kind: output, shape index: {}]
  %s4 = sld [smem:[#allocation0]]
  $region22: #{colorization_forward.25} parent=0
    _
  %s6 = ssub.s32 1, %s4
  %s7 = scalar_select 0, %s6, %s4
  // Predicated region
  $region2: #{colorization_forward.25} parent=0 // pred_check
    _
  $region3: #{colorization_forward.25} parent=0 // pred_check_branch
    %9 = sbr.rel (0) target = $region5
  $region4: #{colorization_forward.25} parent=0 // pred_region
    _
  $region5: #{colorization_forward.25} parent=0 // pred_fallthru
    _
  // Predicated region
  $region6: #{colorization_forward.25} parent=0 // pred_check
    _
  $region7: #{colorization_forward.25} parent=0 // pred_check_branch
    %11 = sbr.rel (0) target = $region9
  $region8: #{colorization_forward.25} parent=0 // pred_region
    _
  $region9: #{colorization_forward.25} parent=0 // pred_fallthru
    _
  // Predicated region
  $region10: #{colorization_forward.25} parent=0 // pred_check
    _
  $region11: #{colorization_forward.25} parent=0 // pred_check_branch
    %13 = sbr.rel (0) target = $region13
  $region12: #{colorization_forward.25} parent=0 // pred_region
    _
  $region13: #{colorization_forward.25} parent=0 // pred_fallthru
    _
  %v15 = vld [vmem:[%s0] sm:$0xff]
  %v16 = vld [vmem:[%s0 + $0x8] sm:$0xff]
  %v17 = vld [vmem:[%s0 + $0x10] sm:$0xff]
  %v18 = vld [vmem:[%s0 + $0x18] sm:$0xff]
  %v19 = vld [vmem:[%s0 + $0x20] sm:$0xf]
  %v20 = vld [vmem:[%s0 + $0x24] sm:$0xff]
  %v21 = vld [vmem:[%s0 + $0x2c] sm:$0xff]
  %v22 = vld [vmem:[%s0 + $0x34] sm:$0xff]
  %v23 = vld [vmem:[%s0 + $0x3c] sm:$0xff]
  %v24 = vld [vmem:[%s0 + $0x44] sm:$0xf]
  %v25 = vld [vmem:[%s0 + $0x48] sm:$0xff]
  %v26 = vld [vmem:[%s0 + $0x50] sm:$0xff]
  %v27 = vld [vmem:[%s0 + $0x58] sm:$0xff]
  %v28 = vld [vmem:[%s0 + $0x60] sm:$0xff]
  %v29 = vld [vmem:[%s0 + $0x68] sm:$0xf]
  %v30 = vld [vmem:[%s0 + $0x6c] sm:$0xff]
  %v31 = vld [vmem:[%s0 + $0x74] sm:$0xff]
  %v32 = vld [vmem:[%s0 + $0x7c] sm:$0xff]
  %v33 = vld [vmem:[%s0 + $0x84] sm:$0xff]
  %v34 = vld [vmem:[%s0 + $0x8c] sm:$0xf]
  %v35 = vld [vmem:[%s0 + $0x90] sm:$0xff]
  %v36 = vld [vmem:[%s0 + $0x98] sm:$0xff]
  %v37 = vld [vmem:[%s0 + $0xa0] sm:$0xff]
  %v38 = vld [vmem:[%s0 + $0xa8] sm:$0xff]
  %v39 = vld [vmem:[%s0 + $0xb0] sm:$0xf]
  %v40 = vld [vmem:[%s0 + $0xb4] sm:$0xff]
  %v41 = vld [vmem:[%s0 + $0xbc] sm:$0xff]
  %v42 = vld [vmem:[%s0 + $0xc4] sm:$0xff]
  %v43 = vld [vmem:[%s0 + $0xcc] sm:$0xff]
  %v44 = vld [vmem:[%s0 + $0xd4] sm:$0xf]
  %v45 = vld [vmem:[%s0 + $0xd8] sm:$0xff]
  %v46 = vld [vmem:[%s0 + $0xe0] sm:$0xff]
  %v47 = vld [vmem:[%s0 + $0xe8] sm:$0xff]
  %v48 = vld [vmem:[%s0 + $0xf0] sm:$0xff]
  %v49 = vld [vmem:[%s0 + $0xf8] sm:$0xf]
  %v50 = vld [vmem:[%s0 + $0xfc] sm:$0xff]
  %v51 = vld [vmem:[%s0 + $0x104] sm:$0xff]
  %v52 = vld [vmem:[%s0 + $0x10c] sm:$0xff]
  %v53 = vld [vmem:[%s0 + $0x114] sm:$0xff]
  %v54 = vld [vmem:[%s0 + $0x11c] sm:$0xf]
  %v55 = vld [vmem:[%s0 + $0x120] sm:$0xff]
  %v56 = vld [vmem:[%s0 + $0x128] sm:$0xff]
  %v57 = vld [vmem:[%s0 + $0x130] sm:$0xff]
  %v58 = vld [vmem:[%s0 + $0x138] sm:$0xff]
  %v59 = vld [vmem:[%s0 + $0x140] sm:$0xf]
  %v60 = vld [vmem:[%s0 + $0x144] sm:$0xff]
  %v61 = vld [vmem:[%s0 + $0x14c] sm:$0xff]
  %v62 = vld [vmem:[%s0 + $0x154] sm:$0xff]
  %v63 = vld [vmem:[%s0 + $0x15c] sm:$0xff]
  %v64 = vld [vmem:[%s0 + $0x164] sm:$0xf]
  %v65 = vld [vmem:[%s0 + $0x168] sm:$0xff]
  %v66 = vld [vmem:[%s0 + $0x170] sm:$0xff]
  %v67 = vld [vmem:[%s0 + $0x178] sm:$0xff]
  %v68 = vld [vmem:[%s0 + $0x180] sm:$0xff]
  %v69 = vld [vmem:[%s0 + $0x188] sm:$0xf]
  %v70 = vld [vmem:[%s0 + $0x18c] sm:$0xff]
  %v71 = vld [vmem:[%s0 + $0x194] sm:$0xff]
  %v72 = vld [vmem:[%s0 + $0x19c] sm:$0xff]
  %v73 = vld [vmem:[%s0 + $0x1a4] sm:$0xff]
  %v74 = vld [vmem:[%s0 + $0x1ac] sm:$0xf]
  %v75 = vld [vmem:[%s0 + $0x1b0] sm:$0xff]
  %v76 = vld [vmem:[%s0 + $0x1b8] sm:$0xff]
  %v77 = vld [vmem:[%s0 + $0x1c0] sm:$0xff]
  %v78 = vld [vmem:[%s0 + $0x1c8] sm:$0xff]
  %v79 = vld [vmem:[%s0 + $0x1d0] sm:$0xf]
  %v80 = vld [vmem:[%s0 + $0x1d4] sm:$0xff]
  %v81 = vld [vmem:[%s0 + $0x1dc] sm:$0xff]
  %v82 = vld [vmem:[%s0 + $0x1e4] sm:$0xff]
  %v83 = vld [vmem:[%s0 + $0x1ec] sm:$0xff]
  %v84 = vld [vmem:[%s0 + $0x1f4] sm:$0xf]
  %v85 = vld [vmem:[%s0 + $0x1f8] sm:$0xff]
  %v86 = vld [vmem:[%s0 + $0x200] sm:$0xff]
  %v87 = vld [vmem:[%s0 + $0x208] sm:$0xff]
  %v88 = vld [vmem:[%s0 + $0x210] sm:$0xff]
  %v89 = vld [vmem:[%s0 + $0x218] sm:$0xf]
  %v90 = vld [vmem:[%s0 + $0x21c] sm:$0xff]
  %v91 = vld [vmem:[%s0 + $0x224] sm:$0xff]
  %v92 = vld [vmem:[%s0 + $0x22c] sm:$0xff]
  %v93 = vld [vmem:[%s0 + $0x234] sm:$0xff]
  %v94 = vld [vmem:[%s0 + $0x23c] sm:$0xf]
  %v95 = vld [vmem:[%s1] sm:$0xf]
  %v96 = vld [vmem:[%s1 + $0x4] sm:$0xf]
  %v97 = vld [vmem:[%s1 + $0x8] sm:$0xf]
  %v98 = vld [vmem:[%s1 + $0xc] sm:$0xf]
  %v99 = vld [vmem:[%s1 + $0x10] sm:$0xf]
  %v100 = vld [vmem:[%s1 + $0x14] sm:$0xf]
  %v101 = vld [vmem:[%s1 + $0x18] sm:$0xf]
  %v102 = vld [vmem:[%s1 + $0x1c] sm:$0xf]
  %v103 = vld [vmem:[%s1 + $0x20] sm:$0xf]
  %v104 = vld [vmem:[%s1 + $0x24] sm:$0xf]
  %v105 = vld [vmem:[%s1 + $0x28] sm:$0xf]
  %v106 = vld [vmem:[%s1 + $0x2c] sm:$0xf]
  %v107 = vld [vmem:[%s1 + $0x30] sm:$0xf]
  %v108 = vld [vmem:[%s1 + $0x34] sm:$0xf]
  %v109 = vld [vmem:[%s1 + $0x38] sm:$0xf]
  %v110 = vld [vmem:[%s1 + $0x3c] sm:$0xf]
  %v111 = vld [vmem:[%s1 + $0x40] sm:$0xf]
  %v112 = vld [vmem:[%s1 + $0x44] sm:$0xf]
  %v113 = vld [vmem:[%s1 + $0x48] sm:$0xf]
  %v114 = vld [vmem:[%s1 + $0x4c] sm:$0xf]
  %v115 = vld [vmem:[%s1 + $0x50] sm:$0xf]
  %v116 = vld [vmem:[%s1 + $0x54] sm:$0xf]
  %v117 = vld [vmem:[%s1 + $0x58] sm:$0xf]
  %v118 = vld [vmem:[%s1 + $0x5c] sm:$0xf]
  %v119 = vld [vmem:[%s1 + $0x60] sm:$0xf]
  %v120 = vld [vmem:[%s1 + $0x64] sm:$0xf]
  %v121 = vld [vmem:[%s1 + $0x68] sm:$0xf]
  %v122 = vld [vmem:[%s1 + $0x6c] sm:$0xf]
  %v123 = vld [vmem:[%s1 + $0x70] sm:$0xf]
  %v124 = vld [vmem:[%s1 + $0x74] sm:$0xf]
  %v125 = vld [vmem:[%s1 + $0x78] sm:$0xf]
  %v126 = vld [vmem:[%s1 + $0x7c] sm:$0xf]
  %v127 = vld [vmem:[%s1 + $0x80] sm:$0xf]
  %v128 = vld [vmem:[%s1 + $0x84] sm:$0xf]
  %v129 = vld [vmem:[%s1 + $0x88] sm:$0xf]
  %v130 = vld [vmem:[%s1 + $0x8c] sm:$0xf]
  %v131 = vld [vmem:[%s1 + $0x90] sm:$0xf]
  %v132 = vld [vmem:[%s1 + $0x94] sm:$0xf]
  %v133 = vld [vmem:[%s1 + $0x98] sm:$0xf]
  %v134 = vld [vmem:[%s1 + $0x9c] sm:$0xf]
  %v135 = vld [vmem:[%s1 + $0xa0] sm:$0xf]
  %v136 = vld [vmem:[%s1 + $0xa4] sm:$0xf]
  %v137 = vld [vmem:[%s1 + $0xa8] sm:$0xf]
  %v138 = vld [vmem:[%s1 + $0xac] sm:$0xf]
  %v139 = vld [vmem:[%s1 + $0xb0] sm:$0xf]
  %v140 = vld [vmem:[%s1 + $0xb4] sm:$0xf]
  %v141 = vld [vmem:[%s1 + $0xb8] sm:$0xf]
  %v142 = vld [vmem:[%s1 + $0xbc] sm:$0xf]
  %v143 = vld [vmem:[%s1 + $0xc0] sm:$0xf]
  %v144 = vld [vmem:[%s1 + $0xc4] sm:$0xf]
  %v145 = vld [vmem:[%s1 + $0xc8] sm:$0xf]
  %v146 = vld [vmem:[%s1 + $0xcc] sm:$0xf]
  %v147 = vld [vmem:[%s1 + $0xd0] sm:$0xf]
  %v148 = vld [vmem:[%s1 + $0xd4] sm:$0xf]
  %v149 = vld [vmem:[%s1 + $0xd8] sm:$0xf]
  %v150 = vld [vmem:[%s1 + $0xdc] sm:$0xf]
  %v151 = vld [vmem:[%s1 + $0xe0] sm:$0xf]
  %v152 = vld [vmem:[%s1 + $0xe4] sm:$0xf]
  %v153 = vld [vmem:[%s1 + $0xe8] sm:$0xf]
  %v154 = vld [vmem:[%s1 + $0xec] sm:$0xf]
  %v155 = vld [vmem:[%s1 + $0xf0] sm:$0xf]
  %v156 = vld [vmem:[%s1 + $0xf4] sm:$0xf]
  %v157 = vld [vmem:[%s1 + $0xf8] sm:$0xf]
  %v158 = vld [vmem:[%s1 + $0xfc] sm:$0xf]
  %v159 = vld [vmem:[%s1 + $0x100] sm:$0xf]
  %v160 = vld [vmem:[%s1 + $0x104] sm:$0xf]
  %v161 = vld [vmem:[%s1 + $0x108] sm:$0xf]
  %v162 = vld [vmem:[%s1 + $0x10c] sm:$0xf]
  %v163 = vld [vmem:[%s1 + $0x110] sm:$0xf]
  %v164 = vld [vmem:[%s1 + $0x114] sm:$0xf]
  %v165 = vld [vmem:[%s1 + $0x118] sm:$0xf]
  %v166 = vld [vmem:[%s1 + $0x11c] sm:$0xf]
  %v167 = vld [vmem:[%s1 + $0x120] sm:$0xf]
  %v168 = vld [vmem:[%s1 + $0x124] sm:$0xf]
  %v169 = vld [vmem:[%s1 + $0x128] sm:$0xf]
  %v170 = vld [vmem:[%s1 + $0x12c] sm:$0xf]
  %v171 = vld [vmem:[%s1 + $0x130] sm:$0xf]
  %v172 = vld [vmem:[%s1 + $0x134] sm:$0xf]
  %v173 = vld [vmem:[%s1 + $0x138] sm:$0xf]
  %v174 = vld [vmem:[%s1 + $0x13c] sm:$0xf]
  %v175 = vld [vmem:[%s1 + $0x140] sm:$0xf]
  %v176 = vld [vmem:[%s1 + $0x144] sm:$0xf]
  %v177 = vld [vmem:[%s1 + $0x148] sm:$0xf]
  %v178 = vld [vmem:[%s1 + $0x14c] sm:$0xf]
  %v179 = vld [vmem:[%s1 + $0x150] sm:$0xf]
  %v180 = vld [vmem:[%s1 + $0x154] sm:$0xf]
  %v181 = vld [vmem:[%s1 + $0x158] sm:$0xf]
  %v182 = vld [vmem:[%s1 + $0x15c] sm:$0xf]
  %v183 = vld [vmem:[%s1 + $0x160] sm:$0xf]
  %v184 = vld [vmem:[%s1 + $0x164] sm:$0xf]
  %v185 = vld [vmem:[%s1 + $0x168] sm:$0xf]
  %v186 = vld [vmem:[%s1 + $0x16c] sm:$0xf]
  %v187 = vld [vmem:[%s1 + $0x170] sm:$0xf]
  %v188 = vld [vmem:[%s1 + $0x174] sm:$0xf]
  %v189 = vld [vmem:[%s1 + $0x178] sm:$0xf]
  %v190 = vld [vmem:[%s1 + $0x17c] sm:$0xf]
  %v191 = vld [vmem:[%s1 + $0x180] sm:$0xf]
  %v192 = vld [vmem:[%s1 + $0x184] sm:$0xf]
  %v193 = vld [vmem:[%s1 + $0x188] sm:$0xf]
  %v194 = vld [vmem:[%s1 + $0x18c] sm:$0xf]
  %v195 = vld [vmem:[%s1 + $0x190] sm:$0xf]
  %v196 = vld [vmem:[%s1 + $0x194] sm:$0xf]
  %v197 = vld [vmem:[%s1 + $0x198] sm:$0xf]
  %v198 = vld [vmem:[%s1 + $0x19c] sm:$0xf]
  %v199 = vld [vmem:[%s1 + $0x1a0] sm:$0xf]
  %v200 = vld [vmem:[%s1 + $0x1a4] sm:$0xf]
  %v201 = vld [vmem:[%s1 + $0x1a8] sm:$0xf]
  %v202 = vld [vmem:[%s1 + $0x1ac] sm:$0xf]
  %v203 = vld [vmem:[%s1 + $0x1b0] sm:$0xf]
  %v204 = vld [vmem:[%s1 + $0x1b4] sm:$0xf]
  %v205 = vld [vmem:[%s1 + $0x1b8] sm:$0xf]
  %v206 = vld [vmem:[%s1 + $0x1bc] sm:$0xf]
  %v207 = vld [vmem:[%s1 + $0x1c0] sm:$0xf]
  %v208 = vld [vmem:[%s1 + $0x1c4] sm:$0xf]
  %v209 = vld [vmem:[%s1 + $0x1c8] sm:$0xf]
  %v210 = vld [vmem:[%s1 + $0x1cc] sm:$0xf]
  %v211 = vld [vmem:[%s1 + $0x1d0] sm:$0xf]
  %v212 = vld [vmem:[%s1 + $0x1d4] sm:$0xf]
  %v213 = vld [vmem:[%s1 + $0x1d8] sm:$0xf]
  %v214 = vld [vmem:[%s1 + $0x1dc] sm:$0xf]
  %v215 = vld [vmem:[%s1 + $0x1e0] sm:$0xf]
  %v216 = vld [vmem:[%s1 + $0x1e4] sm:$0xf]
  %v217 = vld [vmem:[%s1 + $0x1e8] sm:$0xf]
  %v218 = vld [vmem:[%s1 + $0x1ec] sm:$0xf]
  %v219 = vld [vmem:[%s1 + $0x1f0] sm:$0xf]
  %v220 = vld [vmem:[%s1 + $0x1f4] sm:$0xf]
  %v221 = vld [vmem:[%s1 + $0x1f8] sm:$0xf]
  %v222 = vld [vmem:[%s1 + $0x1fc] sm:$0xf]
  %v223 = vld [vmem:[%s1 + $0x200] sm:$0xf]
  %v224 = vld [vmem:[%s1 + $0x204] sm:$0xf]
  %v225 = vld [vmem:[%s1 + $0x208] sm:$0xf]
  %v226 = vld [vmem:[%s1 + $0x20c] sm:$0xf]
  %v227 = vld [vmem:[%s1 + $0x210] sm:$0xf]
  %v228 = vld [vmem:[%s1 + $0x214] sm:$0xf]
  %v229 = vld [vmem:[%s1 + $0x218] sm:$0xf]
  %v230 = vld [vmem:[%s1 + $0x21c] sm:$0xf]
  %v231 = vld [vmem:[%s1 + $0x220] sm:$0xf]
  %v232 = vld [vmem:[%s1 + $0x224] sm:$0xf]
  %v233 = vld [vmem:[%s1 + $0x228] sm:$0xf]
  %v234 = vld [vmem:[%s1 + $0x22c] sm:$0xf]
  %v235 = vld [vmem:[%s1 + $0x230] sm:$0xf]
  %v236 = vld [vmem:[%s1 + $0x234] sm:$0xf]
  %v237 = vld [vmem:[%s1 + $0x238] sm:$0xf]
  %v238 = vld [vmem:[%s1 + $0x23c] sm:$0xf]
  %v239 = vld [vmem:[%s2] sm:$0x1]
  %v241 = vlaneseq
  %v242 = vshrl.u32 %v241, 7
  %v243 = vsub.s32 0, %v242
  %v244 = vrot.slane %v239, %v243
  %v326 = vunpack.c.l.b16 %v15
  %v327 = vunpack.c.h.b16 %v15
  %v328 = vunpack.c.l.b16 %v16
  %v329 = vunpack.c.h.b16 %v16
  %v330 = vunpack.c.l.b16 %v17
  %v331 = vunpack.c.h.b16 %v17
  %v332 = vunpack.c.l.b16 %v18
  %v333 = vunpack.c.h.b16 %v18
  %v334 = vunpack.c.l.b16 %v19
  %v335 = vunpack.c.l.b16 %v20
  %v336 = vunpack.c.h.b16 %v20
  %v337 = vunpack.c.l.b16 %v21
  %v338 = vunpack.c.h.b16 %v21
  %v339 = vunpack.c.l.b16 %v22
  %v340 = vunpack.c.h.b16 %v22
  %v341 = vunpack.c.l.b16 %v23
  %v342 = vunpack.c.h.b16 %v23
  %v343 = vunpack.c.l.b16 %v24
  %v344 = vunpack.c.l.b16 %v25
  %v345 = vunpack.c.h.b16 %v25
  %v346 = vunpack.c.l.b16 %v26
  %v347 = vunpack.c.h.b16 %v26
  %v348 = vunpack.c.l.b16 %v27
  %v349 = vunpack.c.h.b16 %v27
  %v350 = vunpack.c.l.b16 %v28
  %v351 = vunpack.c.h.b16 %v28
  %v352 = vunpack.c.l.b16 %v29
  %v353 = vunpack.c.l.b16 %v30
  %v354 = vunpack.c.h.b16 %v30
  %v355 = vunpack.c.l.b16 %v31
  %v356 = vunpack.c.h.b16 %v31
  %v357 = vunpack.c.l.b16 %v32
  %v358 = vunpack.c.h.b16 %v32
  %v359 = vunpack.c.l.b16 %v33
  %v360 = vunpack.c.h.b16 %v33
  %v361 = vunpack.c.l.b16 %v34
  %v362 = vunpack.c.l.b16 %v35
  %v363 = vunpack.c.h.b16 %v35
  %v364 = vunpack.c.l.b16 %v36
  %v365 = vunpack.c.h.b16 %v36
  %v366 = vunpack.c.l.b16 %v37
  %v367 = vunpack.c.h.b16 %v37
  %v368 = vunpack.c.l.b16 %v38
  %v369 = vunpack.c.h.b16 %v38
  %v370 = vunpack.c.l.b16 %v39
  %v371 = vunpack.c.l.b16 %v40
  %v372 = vunpack.c.h.b16 %v40
  %v373 = vunpack.c.l.b16 %v41
  %v374 = vunpack.c.h.b16 %v41
  %v375 = vunpack.c.l.b16 %v42
  %v376 = vunpack.c.h.b16 %v42
  %v377 = vunpack.c.l.b16 %v43
  %v378 = vunpack.c.h.b16 %v43
  %v379 = vunpack.c.l.b16 %v44
  %v380 = vunpack.c.l.b16 %v45
  %v381 = vunpack.c.h.b16 %v45
  %v382 = vunpack.c.l.b16 %v46
  %v383 = vunpack.c.h.b16 %v46
  %v384 = vunpack.c.l.b16 %v47
  %v385 = vunpack.c.h.b16 %v47
  %v386 = vunpack.c.l.b16 %v48
  %v387 = vunpack.c.h.b16 %v48
  %v388 = vunpack.c.l.b16 %v49
  %v389 = vunpack.c.l.b16 %v50
  %v390 = vunpack.c.h.b16 %v50
  %v391 = vunpack.c.l.b16 %v51
  %v392 = vunpack.c.h.b16 %v51
  %v393 = vunpack.c.l.b16 %v52
  %v394 = vunpack.c.h.b16 %v52
  %v395 = vunpack.c.l.b16 %v53
  %v396 = vunpack.c.h.b16 %v53
  %v397 = vunpack.c.l.b16 %v54
  %v398 = vunpack.c.l.b16 %v55
  %v399 = vunpack.c.h.b16 %v55
  %v400 = vunpack.c.l.b16 %v56
  %v401 = vunpack.c.h.b16 %v56
  %v402 = vunpack.c.l.b16 %v57
  %v403 = vunpack.c.h.b16 %v57
  %v404 = vunpack.c.l.b16 %v58
  %v405 = vunpack.c.h.b16 %v58
  %v406 = vunpack.c.l.b16 %v59
  %v407 = vunpack.c.l.b16 %v60
  %v408 = vunpack.c.h.b16 %v60
  %v409 = vunpack.c.l.b16 %v61
  %v410 = vunpack.c.h.b16 %v61
  %v411 = vunpack.c.l.b16 %v62
  %v412 = vunpack.c.h.b16 %v62
  %v413 = vunpack.c.l.b16 %v63
  %v414 = vunpack.c.h.b16 %v63
  %v415 = vunpack.c.l.b16 %v64
  %v416 = vunpack.c.l.b16 %v65
  %v417 = vunpack.c.h.b16 %v65
  %v418 = vunpack.c.l.b16 %v66
  %v419 = vunpack.c.h.b16 %v66
  %v420 = vunpack.c.l.b16 %v67
  %v421 = vunpack.c.h.b16 %v67
  %v422 = vunpack.c.l.b16 %v68
  %v423 = vunpack.c.h.b16 %v68
  %v424 = vunpack.c.l.b16 %v69
  %v425 = vunpack.c.l.b16 %v70
  %v426 = vunpack.c.h.b16 %v70
  %v427 = vunpack.c.l.b16 %v71
  %v428 = vunpack.c.h.b16 %v71
  %v429 = vunpack.c.l.b16 %v72
  %v430 = vunpack.c.h.b16 %v72
  %v431 = vunpack.c.l.b16 %v73
  %v432 = vunpack.c.h.b16 %v73
  %v433 = vunpack.c.l.b16 %v74
  %v434 = vunpack.c.l.b16 %v75
  %v435 = vunpack.c.h.b16 %v75
  %v436 = vunpack.c.l.b16 %v76
  %v437 = vunpack.c.h.b16 %v76
  %v438 = vunpack.c.l.b16 %v77
  %v439 = vunpack.c.h.b16 %v77
  %v440 = vunpack.c.l.b16 %v78
  %v441 = vunpack.c.h.b16 %v78
  %v442 = vunpack.c.l.b16 %v79
  %v443 = vunpack.c.l.b16 %v80
  %v444 = vunpack.c.h.b16 %v80
  %v445 = vunpack.c.l.b16 %v81
  %v446 = vunpack.c.h.b16 %v81
  %v447 = vunpack.c.l.b16 %v82
  %v448 = vunpack.c.h.b16 %v82
  %v449 = vunpack.c.l.b16 %v83
  %v450 = vunpack.c.h.b16 %v83
  %v451 = vunpack.c.l.b16 %v84
  %v452 = vunpack.c.l.b16 %v85
  %v453 = vunpack.c.h.b16 %v85
  %v454 = vunpack.c.l.b16 %v86
  %v455 = vunpack.c.h.b16 %v86
  %v456 = vunpack.c.l.b16 %v87
  %v457 = vunpack.c.h.b16 %v87
  %v458 = vunpack.c.l.b16 %v88
  %v459 = vunpack.c.h.b16 %v88
  %v460 = vunpack.c.l.b16 %v89
  %v461 = vunpack.c.l.b16 %v90
  %v462 = vunpack.c.h.b16 %v90
  %v463 = vunpack.c.l.b16 %v91
  %v464 = vunpack.c.h.b16 %v91
  %v465 = vunpack.c.l.b16 %v92
  %v466 = vunpack.c.h.b16 %v92
  %v467 = vunpack.c.l.b16 %v93
  %v468 = vunpack.c.h.b16 %v93
  %v469 = vunpack.c.l.b16 %v94
  %v470 = vpack.c.b16 %v335, %v326
  %v471 = vpack.c.b16 %v336, %v327
  %v472 = vpack.c.b16 %v337, %v328
  %v473 = vpack.c.b16 %v338, %v329
  %v474 = vpack.c.b16 %v339, %v330
  %v475 = vpack.c.b16 %v340, %v331
  %v476 = vpack.c.b16 %v341, %v332
  %v477 = vpack.c.b16 %v342, %v333
  %v478 = vpack.c.b16 %v343, %v334
  %v479 = vpack.c.b16 %v353, %v344
  %v480 = vpack.c.b16 %v354, %v345
  %v481 = vpack.c.b16 %v355, %v346
  %v482 = vpack.c.b16 %v356, %v347
  %v483 = vpack.c.b16 %v357, %v348
  %v484 = vpack.c.b16 %v358, %v349
  %v485 = vpack.c.b16 %v359, %v350
  %v486 = vpack.c.b16 %v360, %v351
  %v487 = vpack.c.b16 %v361, %v352
  %v488 = vpack.c.b16 %v371, %v362
  %v489 = vpack.c.b16 %v372, %v363
  %v490 = vpack.c.b16 %v373, %v364
  %v491 = vpack.c.b16 %v374, %v365
  %v492 = vpack.c.b16 %v375, %v366
  %v493 = vpack.c.b16 %v376, %v367
  %v494 = vpack.c.b16 %v377, %v368
  %v495 = vpack.c.b16 %v378, %v369
  %v496 = vpack.c.b16 %v379, %v370
  %v497 = vpack.c.b16 %v389, %v380
  %v498 = vpack.c.b16 %v390, %v381
  %v499 = vpack.c.b16 %v391, %v382
  %v500 = vpack.c.b16 %v392, %v383
  %v501 = vpack.c.b16 %v393, %v384
  %v502 = vpack.c.b16 %v394, %v385
  %v503 = vpack.c.b16 %v395, %v386
  %v504 = vpack.c.b16 %v396, %v387
  %v505 = vpack.c.b16 %v397, %v388
  %v506 = vpack.c.b16 %v407, %v398
  %v507 = vpack.c.b16 %v408, %v399
  %v508 = vpack.c.b16 %v409, %v400
  %v509 = vpack.c.b16 %v410, %v401
  %v510 = vpack.c.b16 %v411, %v402
  %v511 = vpack.c.b16 %v412, %v403
  %v512 = vpack.c.b16 %v413, %v404
  %v513 = vpack.c.b16 %v414, %v405
  %v514 = vpack.c.b16 %v415, %v406
  %v515 = vpack.c.b16 %v425, %v416
  %v516 = vpack.c.b16 %v426, %v417
  %v517 = vpack.c.b16 %v427, %v418
  %v518 = vpack.c.b16 %v428, %v419
  %v519 = vpack.c.b16 %v429, %v420
  %v520 = vpack.c.b16 %v430, %v421
  %v521 = vpack.c.b16 %v431, %v422
  %v522 = vpack.c.b16 %v432, %v423
  %v523 = vpack.c.b16 %v433, %v424
  %v524 = vpack.c.b16 %v443, %v434
  %v525 = vpack.c.b16 %v444, %v435
  %v526 = vpack.c.b16 %v445, %v436
  %v527 = vpack.c.b16 %v446, %v437
  %v528 = vpack.c.b16 %v447, %v438
  %v529 = vpack.c.b16 %v448, %v439
  %v530 = vpack.c.b16 %v449, %v440
  %v531 = vpack.c.b16 %v450, %v441
  %v532 = vpack.c.b16 %v451, %v442
  %v533 = vpack.c.b16 %v461, %v452
  %v534 = vpack.c.b16 %v462, %v453
  %v535 = vpack.c.b16 %v463, %v454
  %v536 = vpack.c.b16 %v464, %v455
  %v537 = vpack.c.b16 %v465, %v456
  %v538 = vpack.c.b16 %v466, %v457
  %v539 = vpack.c.b16 %v467, %v458
  %v540 = vpack.c.b16 %v468, %v459
  %v541 = vpack.c.b16 %v469, %v460
  %v758 = vunpack.c.l.b16 %v95
  %v759 = vunpack.c.l.b16 %v96
  %v760 = vunpack.c.l.b16 %v97
  %v761 = vunpack.c.l.b16 %v98
  %v762 = vunpack.c.l.b16 %v99
  %v763 = vunpack.c.l.b16 %v100
  %v764 = vunpack.c.l.b16 %v101
  %v765 = vunpack.c.l.b16 %v102
  %v766 = vunpack.c.l.b16 %v103
  %v767 = vunpack.c.l.b16 %v104
  %v768 = vunpack.c.l.b16 %v105
  %v769 = vunpack.c.l.b16 %v106
  %v770 = vunpack.c.l.b16 %v107
  %v771 = vunpack.c.l.b16 %v108
  %v772 = vunpack.c.l.b16 %v109
  %v773 = vunpack.c.l.b16 %v110
  %v774 = vunpack.c.l.b16 %v111
  %v775 = vunpack.c.l.b16 %v112
  %v776 = vunpack.c.l.b16 %v113
  %v777 = vunpack.c.l.b16 %v114
  %v778 = vunpack.c.l.b16 %v115
  %v779 = vunpack.c.l.b16 %v116
  %v780 = vunpack.c.l.b16 %v117
  %v781 = vunpack.c.l.b16 %v118
  %v782 = vunpack.c.l.b16 %v119
  %v783 = vunpack.c.l.b16 %v120
  %v784 = vunpack.c.l.b16 %v121
  %v785 = vunpack.c.l.b16 %v122
  %v786 = vunpack.c.l.b16 %v123
  %v787 = vunpack.c.l.b16 %v124
  %v788 = vunpack.c.l.b16 %v125
  %v789 = vunpack.c.l.b16 %v126
  %v790 = vunpack.c.l.b16 %v127
  %v791 = vunpack.c.l.b16 %v128
  %v792 = vunpack.c.l.b16 %v129
  %v793 = vunpack.c.l.b16 %v130
  %v794 = vunpack.c.l.b16 %v131
  %v795 = vunpack.c.l.b16 %v132
  %v796 = vunpack.c.l.b16 %v133
  %v797 = vunpack.c.l.b16 %v134
  %v798 = vunpack.c.l.b16 %v135
  %v799 = vunpack.c.l.b16 %v136
  %v800 = vunpack.c.l.b16 %v137
  %v801 = vunpack.c.l.b16 %v138
  %v802 = vunpack.c.l.b16 %v139
  %v803 = vunpack.c.l.b16 %v140
  %v804 = vunpack.c.l.b16 %v141
  %v805 = vunpack.c.l.b16 %v142
  %v806 = vunpack.c.l.b16 %v143
  %v807 = vunpack.c.l.b16 %v144
  %v808 = vunpack.c.l.b16 %v145
  %v809 = vunpack.c.l.b16 %v146
  %v810 = vunpack.c.l.b16 %v147
  %v811 = vunpack.c.l.b16 %v148
  %v812 = vunpack.c.l.b16 %v149
  %v813 = vunpack.c.l.b16 %v150
  %v814 = vunpack.c.l.b16 %v151
  %v815 = vunpack.c.l.b16 %v152
  %v816 = vunpack.c.l.b16 %v153
  %v817 = vunpack.c.l.b16 %v154
  %v818 = vunpack.c.l.b16 %v155
  %v819 = vunpack.c.l.b16 %v156
  %v820 = vunpack.c.l.b16 %v157
  %v821 = vunpack.c.l.b16 %v158
  %v822 = vunpack.c.l.b16 %v159
  %v823 = vunpack.c.l.b16 %v160
  %v824 = vunpack.c.l.b16 %v161
  %v825 = vunpack.c.l.b16 %v162
  %v826 = vunpack.c.l.b16 %v163
  %v827 = vunpack.c.l.b16 %v164
  %v828 = vunpack.c.l.b16 %v165
  %v829 = vunpack.c.l.b16 %v166
  %v830 = vunpack.c.l.b16 %v167
  %v831 = vunpack.c.l.b16 %v168
  %v832 = vunpack.c.l.b16 %v169
  %v833 = vunpack.c.l.b16 %v170
  %v834 = vunpack.c.l.b16 %v171
  %v835 = vunpack.c.l.b16 %v172
  %v836 = vunpack.c.l.b16 %v173
  %v837 = vunpack.c.l.b16 %v174
  %v838 = vunpack.c.l.b16 %v175
  %v839 = vunpack.c.l.b16 %v176
  %v840 = vunpack.c.l.b16 %v177
  %v841 = vunpack.c.l.b16 %v178
  %v842 = vunpack.c.l.b16 %v179
  %v843 = vunpack.c.l.b16 %v180
  %v844 = vunpack.c.l.b16 %v181
  %v845 = vunpack.c.l.b16 %v182
  %v846 = vunpack.c.l.b16 %v183
  %v847 = vunpack.c.l.b16 %v184
  %v848 = vunpack.c.l.b16 %v185
  %v849 = vunpack.c.l.b16 %v186
  %v850 = vunpack.c.l.b16 %v187
  %v851 = vunpack.c.l.b16 %v188
  %v852 = vunpack.c.l.b16 %v189
  %v853 = vunpack.c.l.b16 %v190
  %v854 = vunpack.c.l.b16 %v191
  %v855 = vunpack.c.l.b16 %v192
  %v856 = vunpack.c.l.b16 %v193
  %v857 = vunpack.c.l.b16 %v194
  %v858 = vunpack.c.l.b16 %v195
  %v859 = vunpack.c.l.b16 %v196
  %v860 = vunpack.c.l.b16 %v197
  %v861 = vunpack.c.l.b16 %v198
  %v862 = vunpack.c.l.b16 %v199
  %v863 = vunpack.c.l.b16 %v200
  %v864 = vunpack.c.l.b16 %v201
  %v865 = vunpack.c.l.b16 %v202
  %v866 = vunpack.c.l.b16 %v203
  %v867 = vunpack.c.l.b16 %v204
  %v868 = vunpack.c.l.b16 %v205
  %v869 = vunpack.c.l.b16 %v206
  %v870 = vunpack.c.l.b16 %v207
  %v871 = vunpack.c.l.b16 %v208
  %v872 = vunpack.c.l.b16 %v209
  %v873 = vunpack.c.l.b16 %v210
  %v874 = vunpack.c.l.b16 %v211
  %v875 = vunpack.c.l.b16 %v212
  %v876 = vunpack.c.l.b16 %v213
  %v877 = vunpack.c.l.b16 %v214
  %v878 = vunpack.c.l.b16 %v215
  %v879 = vunpack.c.l.b16 %v216
  %v880 = vunpack.c.l.b16 %v217
  %v881 = vunpack.c.l.b16 %v218
  %v882 = vunpack.c.l.b16 %v219
  %v883 = vunpack.c.l.b16 %v220
  %v884 = vunpack.c.l.b16 %v221
  %v885 = vunpack.c.l.b16 %v222
  %v886 = vunpack.c.l.b16 %v223
  %v887 = vunpack.c.l.b16 %v224
  %v888 = vunpack.c.l.b16 %v225
  %v889 = vunpack.c.l.b16 %v226
  %v890 = vunpack.c.l.b16 %v227
  %v891 = vunpack.c.l.b16 %v228
  %v892 = vunpack.c.l.b16 %v229
  %v893 = vunpack.c.l.b16 %v230
  %v894 = vunpack.c.l.b16 %v231
  %v895 = vunpack.c.l.b16 %v232
  %v896 = vunpack.c.l.b16 %v233
  %v897 = vunpack.c.l.b16 %v234
  %v898 = vunpack.c.l.b16 %v235
  %v899 = vunpack.c.l.b16 %v236
  %v900 = vunpack.c.l.b16 %v237
  %v901 = vunpack.c.l.b16 %v238
  %v902 = vpack.c.b16 %v759, %v758
  %v903 = vpack.c.b16 %v761, %v760
  %v904 = vpack.c.b16 %v763, %v762
  %v905 = vpack.c.b16 %v765, %v764
  %v906 = vpack.c.b16 %v767, %v766
  %v907 = vpack.c.b16 %v769, %v768
  %v908 = vpack.c.b16 %v771, %v770
  %v909 = vpack.c.b16 %v773, %v772
  %v910 = vpack.c.b16 %v775, %v774
  %v911 = vpack.c.b16 %v777, %v776
  %v912 = vpack.c.b16 %v779, %v778
  %v913 = vpack.c.b16 %v781, %v780
  %v914 = vpack.c.b16 %v783, %v782
  %v915 = vpack.c.b16 %v785, %v784
  %v916 = vpack.c.b16 %v787, %v786
  %v917 = vpack.c.b16 %v789, %v788
  %v918 = vpack.c.b16 %v791, %v790
  %v919 = vpack.c.b16 %v793, %v792
  %v920 = vpack.c.b16 %v795, %v794
  %v921 = vpack.c.b16 %v797, %v796
  %v922 = vpack.c.b16 %v799, %v798
  %v923 = vpack.c.b16 %v801, %v800
  %v924 = vpack.c.b16 %v803, %v802
  %v925 = vpack.c.b16 %v805, %v804
  %v926 = vpack.c.b16 %v807, %v806
  %v927 = vpack.c.b16 %v809, %v808
  %v928 = vpack.c.b16 %v811, %v810
  %v929 = vpack.c.b16 %v813, %v812
  %v930 = vpack.c.b16 %v815, %v814
  %v931 = vpack.c.b16 %v817, %v816
  %v932 = vpack.c.b16 %v819, %v818
  %v933 = vpack.c.b16 %v821, %v820
  %v934 = vpack.c.b16 %v823, %v822
  %v935 = vpack.c.b16 %v825, %v824
  %v936 = vpack.c.b16 %v827, %v826
  %v937 = vpack.c.b16 %v829, %v828
  %v938 = vpack.c.b16 %v831, %v830
  %v939 = vpack.c.b16 %v833, %v832
  %v940 = vpack.c.b16 %v835, %v834
  %v941 = vpack.c.b16 %v837, %v836
  %v942 = vpack.c.b16 %v839, %v838
  %v943 = vpack.c.b16 %v841, %v840
  %v944 = vpack.c.b16 %v843, %v842
  %v945 = vpack.c.b16 %v845, %v844
  %v946 = vpack.c.b16 %v847, %v846
  %v947 = vpack.c.b16 %v849, %v848
  %v948 = vpack.c.b16 %v851, %v850
  %v949 = vpack.c.b16 %v853, %v852
  %v950 = vpack.c.b16 %v855, %v854
  %v951 = vpack.c.b16 %v857, %v856
  %v952 = vpack.c.b16 %v859, %v858
  %v953 = vpack.c.b16 %v861, %v860
  %v954 = vpack.c.b16 %v863, %v862
  %v955 = vpack.c.b16 %v865, %v864
  %v956 = vpack.c.b16 %v867, %v866
  %v957 = vpack.c.b16 %v869, %v868
  %v958 = vpack.c.b16 %v871, %v870
  %v959 = vpack.c.b16 %v873, %v872
  %v960 = vpack.c.b16 %v875, %v874
  %v961 = vpack.c.b16 %v877, %v876
  %v962 = vpack.c.b16 %v879, %v878
  %v963 = vpack.c.b16 %v881, %v880
  %v964 = vpack.c.b16 %v883, %v882
  %v965 = vpack.c.b16 %v885, %v884
  %v966 = vpack.c.b16 %v887, %v886
  %v967 = vpack.c.b16 %v889, %v888
  %v968 = vpack.c.b16 %v891, %v890
  %v969 = vpack.c.b16 %v893, %v892
  %v970 = vpack.c.b16 %v895, %v894
  %v971 = vpack.c.b16 %v897, %v896
  %v972 = vpack.c.b16 %v899, %v898
  %v973 = vpack.c.b16 %v901, %v900
  %1046 = vmatprep.subr.bf16.mxu0 0
  %1047 = vmatpush1.bf16.msra.mxu0 %v902
  %1048 = vmatprep.subr.bf16.mxu0 0
  %1049 = vmatpush1.bf16.msra.mxu0 %v903
  %1050 = vmatprep.subr.bf16.mxu0 0
  %1051 = vmatpush1.bf16.msra.mxu0 %v904
  %1052 = vmatprep.subr.bf16.mxu0 0
  %1053 = vmatpush1.bf16.msra.mxu0 %v905
  %1054 = vmatprep.subr.bf16.mxu0 0
  %1055 = vmatpush1.bf16.msra.mxu0 %v906
  %1056 = vmatprep.subr.bf16.mxu0 0
  %1057 = vmatpush1.bf16.msra.mxu0 %v907
  %1058 = vmatprep.subr.bf16.mxu0 0
  %1059 = vmatpush1.bf16.msra.mxu0 %v908
  %1060 = vmatprep.subr.bf16.mxu0 0
  %1061 = vmatpush1.bf16.msra.mxu0 %v909
  %1062 = vmatprep.subr.bf16.mxu0 0
  %1063 = vmatpush1.bf16.msra.mxu0 %v910
  %1064 = vmatprep.subr.bf16.mxu0 0
  %1065 = vmatpush1.bf16.msra.mxu0 %v911
  %1066 = vmatprep.subr.bf16.mxu0 0
  %1067 = vmatpush1.bf16.msra.mxu0 %v912
  %1068 = vmatprep.subr.bf16.mxu0 0
  %1069 = vmatpush1.bf16.msra.mxu0 %v913
  %1070 = vmatprep.subr.bf16.mxu0 0
  %1071 = vmatpush1.bf16.msra.mxu0 %v914
  %1072 = vmatprep.subr.bf16.mxu0 0
  %1073 = vmatpush1.bf16.msra.mxu0 %v915
  %1074 = vmatprep.subr.bf16.mxu0 0
  %1075 = vmatpush1.bf16.msra.mxu0 %v916
  %1076 = vmatprep.subr.bf16.mxu0 0
  %1077 = vmatpush1.bf16.msra.mxu0 %v917
  %1078 = vmatprep.mubr.bf16.mxu0 %v471
  %1079 = vmatmul.mubr.bf16.gmra.mrb[0].mxu0 %v470
  %v1080 = vpop.f32.mrb[0].mxu0
  %v1081 = vadd.f32 %v244, %v1080
  %v1082 = vpop.f32.mrb[0].mxu0
  %v1083 = vpop.f32.mrb[0].mxu0
  %v1084 = vadd.f32 %v244, %v1083
  %v1085 = vpop.f32.mrb[0].mxu0
  %1086 = vmatprep.mubr.bf16.mxu0 %v480
  %1087 = vmatmul.mubr.bf16.gmra.mrb[0].mxu0 %v479
  %v1088 = vpop.f32.mrb[0].mxu0
  %v1089 = vadd.f32 %v244, %v1088
  %v1090 = vpop.f32.mrb[0].mxu0
  %v1091 = vpop.f32.mrb[0].mxu0
  %v1092 = vadd.f32 %v244, %v1091
  %v1093 = vpop.f32.mrb[0].mxu0
  %1094 = vmatprep.mubr.bf16.mxu0 %v489
  %1095 = vmatmul.mubr.bf16.gmra.mrb[0].mxu0 %v488
  %v1096 = vpop.f32.mrb[0].mxu0
  %v1097 = vadd.f32 %v244, %v1096
  %v1098 = vpop.f32.mrb[0].mxu0
  %v1099 = vpop.f32.mrb[0].mxu0
  %v1100 = vadd.f32 %v244, %v1099
  %v1101 = vpop.f32.mrb[0].mxu0
  %1102 = vmatprep.mubr.bf16.mxu0 %v498
  %1103 = vmatmul.mubr.bf16.gmra.mrb[0].mxu0 %v497
  %v1104 = vpop.f32.mrb[0].mxu0
  %v1105 = vadd.f32 %v244, %v1104
  %v1106 = vpop.f32.mrb[0].mxu0
  %v1107 = vpop.f32.mrb[0].mxu0
  %v1108 = vadd.f32 %v244, %v1107
  %v1109 = vpop.f32.mrb[0].mxu0
  %1110 = vmatprep.mubr.bf16.mxu0 %v507
  %1111 = vmatmul.mubr.bf16.gmra.mrb[0].mxu0 %v506
  %v1112 = vpop.f32.mrb[0].mxu0
  %v1113 = vadd.f32 %v244, %v1112
  %v1114 = vpop.f32.mrb[0].mxu0
  %v1115 = vpop.f32.mrb[0].mxu0
  %v1116 = vadd.f32 %v244, %v1115
  %v1117 = vpop.f32.mrb[0].mxu0
  %1118 = vmatprep.mubr.bf16.mxu0 %v516
  %1119 = vmatmul.mubr.bf16.gmra.mrb[0].mxu0 %v515
  %v1120 = vpop.f32.mrb[0].mxu0
  %v1121 = vadd.f32 %v244, %v1120
  %v1122 = vpop.f32.mrb[0].mxu0
  %v1123 = vpop.f32.mrb[0].mxu0
  %v1124 = vadd.f32 %v244, %v1123
  %v1125 = vpop.f32.mrb[0].mxu0
  %1126 = vmatprep.mubr.bf16.mxu0 %v525
  %1127 = vmatmul.mubr.bf16.gmra.mrb[0].mxu0 %v524
  %v1128 = vpop.f32.mrb[0].mxu0
  %v1129 = vadd.f32 %v244, %v1128
  %v1130 = vpop.f32.mrb[0].mxu0
  %v1131 = vpop.f32.mrb[0].mxu0
  %v1132 = vadd.f32 %v244, %v1131
  %v1133 = vpop.f32.mrb[0].mxu0
  %1134 = vmatprep.mubr.bf16.mxu0 %v534
  %1135 = vmatmul.mubr.bf16.gmra.mrb[0].mxu0 %v533
  %v1136 = vpop.f32.mrb[0].mxu0
  %v1137 = vadd.f32 %v244, %v1136
  %v1138 = vpop.f32.mrb[0].mxu0
  %v1139 = vpop.f32.mrb[0].mxu0
  %v1140 = vadd.f32 %v244, %v1139
  %v1141 = vpop.f32.mrb[0].mxu0
  %1142 = vdwg.mxu0
  %1143 = vmatprep.subr.bf16.mxu0 0
  %1144 = vmatpush1.bf16.msra.mxu0 %v918
  %1145 = vmatprep.subr.bf16.mxu0 0
  %1146 = vmatpush1.bf16.msra.mxu0 %v919
  %1147 = vmatprep.subr.bf16.mxu0 0
  %1148 = vmatpush1.bf16.msra.mxu0 %v920
  %1149 = vmatprep.subr.bf16.mxu0 0
  %1150 = vmatpush1.bf16.msra.mxu0 %v921
  %1151 = vmatprep.subr.bf16.mxu0 0
  %1152 = vmatpush1.bf16.msra.mxu0 %v922
  %1153 = vmatprep.subr.bf16.mxu0 0
  %1154 = vmatpush1.bf16.msra.mxu0 %v923
  %1155 = vmatprep.subr.bf16.mxu0 0
  %1156 = vmatpush1.bf16.msra.mxu0 %v924
  %1157 = vmatprep.subr.bf16.mxu0 0
  %1158 = vmatpush1.bf16.msra.mxu0 %v925
  %1159 = vmatprep.subr.bf16.mxu0 0
  %1160 = vmatpush1.bf16.msra.mxu0 %v926
  %1161 = vmatprep.subr.bf16.mxu0 0
  %1162 = vmatpush1.bf16.msra.mxu0 %v927
  %1163 = vmatprep.subr.bf16.mxu0 0
  %1164 = vmatpush1.bf16.msra.mxu0 %v928
  %1165 = vmatprep.subr.bf16.mxu0 0
  %1166 = vmatpush1.bf16.msra.mxu0 %v929
  %1167 = vmatprep.subr.bf16.mxu0 0
  %1168 = vmatpush1.bf16.msra.mxu0 %v930
  %1169 = vmatprep.subr.bf16.mxu0 0
  %1170 = vmatpush1.bf16.msra.mxu0 %v931
  %1171 = vmatprep.subr.bf16.mxu0 0
  %1172 = vmatpush1.bf16.msra.mxu0 %v932
  %1173 = vmatprep.subr.bf16.mxu0 0
  %1174 = vmatpush1.bf16.msra.mxu0 %v933
  %1175 = vmatprep.mubr.bf16.mxu0 %v473
  %1176 = vmatmul.mubr.bf16.gmra.mrb[0].mxu0 %v472
  %v1177 = vpop.f32.mrb[0].mxu0
  %v1178 = vadd.f32 %v1081, %v1177
  %v1179 = vpop.f32.mrb[0].mxu0
  %v1180 = vpop.f32.mrb[0].mxu0
  %v1181 = vadd.f32 %v1084, %v1180
  %v1182 = vpop.f32.mrb[0].mxu0
  %1183 = vmatprep.mubr.bf16.mxu0 %v482
  %1184 = vmatmul.mubr.bf16.gmra.mrb[0].mxu0 %v481
  %v1185 = vpop.f32.mrb[0].mxu0
  %v1186 = vadd.f32 %v1089, %v1185
  %v1187 = vpop.f32.mrb[0].mxu0
  %v1188 = vpop.f32.mrb[0].mxu0
  %v1189 = vadd.f32 %v1092, %v1188
  %v1190 = vpop.f32.mrb[0].mxu0
  %1191 = vmatprep.mubr.bf16.mxu0 %v491
  %1192 = vmatmul.mubr.bf16.gmra.mrb[0].mxu0 %v490
  %v1193 = vpop.f32.mrb[0].mxu0
  %v1194 = vadd.f32 %v1097, %v1193
  %v1195 = vpop.f32.mrb[0].mxu0
  %v1196 = vpop.f32.mrb[0].mxu0
  %v1197 = vadd.f32 %v1100, %v1196
  %v1198 = vpop.f32.mrb[0].mxu0
  %1199 = vmatprep.mubr.bf16.mxu0 %v500
  %1200 = vmatmul.mubr.bf16.gmra.mrb[0].mxu0 %v499
  %v1201 = vpop.f32.mrb[0].mxu0
  %v1202 = vadd.f32 %v1105, %v1201
  %v1203 = vpop.f32.mrb[0].mxu0
  %v1204 = vpop.f32.mrb[0].mxu0
  %v1205 = vadd.f32 %v1108, %v1204
  %v1206 = vpop.f32.mrb[0].mxu0
  %1207 = vmatprep.mubr.bf16.mxu0 %v509
  %1208 = vmatmul.mubr.bf16.gmra.mrb[0].mxu0 %v508
  %v1209 = vpop.f32.mrb[0].mxu0
  %v1210 = vadd.f32 %v1113, %v1209
  %v1211 = vpop.f32.mrb[0].mxu0
  %v1212 = vpop.f32.mrb[0].mxu0
  %v1213 = vadd.f32 %v1116, %v1212
  %v1214 = vpop.f32.mrb[0].mxu0
  %1215 = vmatprep.mubr.bf16.mxu0 %v518
  %1216 = vmatmul.mubr.bf16.gmra.mrb[0].mxu0 %v517
  %v1217 = vpop.f32.mrb[0].mxu0
  %v1218 = vadd.f32 %v1121, %v1217
  %v1219 = vpop.f32.mrb[0].mxu0
  %v1220 = vpop.f32.mrb[0].mxu0
  %v1221 = vadd.f32 %v1124, %v1220
  %v1222 = vpop.f32.mrb[0].mxu0
  %1223 = vmatprep.mubr.bf16.mxu0 %v527
  %1224 = vmatmul.mubr.bf16.gmra.mrb[0].mxu0 %v526
  %v1225 = vpop.f32.mrb[0].mxu0
  %v1226 = vadd.f32 %v1129, %v1225
  %v1227 = vpop.f32.mrb[0].mxu0
  %v1228 = vpop.f32.mrb[0].mxu0
  %v1229 = vadd.f32 %v1132, %v1228
  %v1230 = vpop.f32.mrb[0].mxu0
  %1231 = vmatprep.mubr.bf16.mxu0 %v536
  %1232 = vmatmul.mubr.bf16.gmra.mrb[0].mxu0 %v535
  %v1233 = vpop.f32.mrb[0].mxu0
  %v1234 = vadd.f32 %v1137, %v1233
  %v1235 = vpop.f32.mrb[0].mxu0
  %v1236 = vpop.f32.mrb[0].mxu0
  %v1237 = vadd.f32 %v1140, %v1236
  %v1238 = vpop.f32.mrb[0].mxu0
  %1239 = vdwg.mxu0
  %1240 = vmatprep.subr.bf16.mxu0 0
  %1241 = vmatpush1.bf16.msra.mxu0 %v934
  %1242 = vmatprep.subr.bf16.mxu0 0
  %1243 = vmatpush1.bf16.msra.mxu0 %v935
  %1244 = vmatprep.subr.bf16.mxu0 0
  %1245 = vmatpush1.bf16.msra.mxu0 %v936
  %1246 = vmatprep.subr.bf16.mxu0 0
  %1247 = vmatpush1.bf16.msra.mxu0 %v937
  %1248 = vmatprep.subr.bf16.mxu0 0
  %1249 = vmatpush1.bf16.msra.mxu0 %v938
  %1250 = vmatprep.subr.bf16.mxu0 0
  %1251 = vmatpush1.bf16.msra.mxu0 %v939
  %1252 = vmatprep.subr.bf16.mxu0 0
  %1253 = vmatpush1.bf16.msra.mxu0 %v940
  %1254 = vmatprep.subr.bf16.mxu0 0
  %1255 = vmatpush1.bf16.msra.mxu0 %v941
  %1256 = vmatprep.subr.bf16.mxu0 0
  %1257 = vmatpush1.bf16.msra.mxu0 %v942
  %1258 = vmatprep.subr.bf16.mxu0 0
  %1259 = vmatpush1.bf16.msra.mxu0 %v943
  %1260 = vmatprep.subr.bf16.mxu0 0
  %1261 = vmatpush1.bf16.msra.mxu0 %v944
  %1262 = vmatprep.subr.bf16.mxu0 0
  %1263 = vmatpush1.bf16.msra.mxu0 %v945
  %1264 = vmatprep.subr.bf16.mxu0 0
  %1265 = vmatpush1.bf16.msra.mxu0 %v946
  %1266 = vmatprep.subr.bf16.mxu0 0
  %1267 = vmatpush1.bf16.msra.mxu0 %v947
  %1268 = vmatprep.subr.bf16.mxu0 0
  %1269 = vmatpush1.bf16.msra.mxu0 %v948
  %1270 = vmatprep.subr.bf16.mxu0 0
  %1271 = vmatpush1.bf16.msra.mxu0 %v949
  %1272 = vmatprep.mubr.bf16.mxu0 %v475
  %1273 = vmatmul.mubr.bf16.gmra.mrb[0].mxu0 %v474
  %v1274 = vpop.f32.mrb[0].mxu0
  %v1275 = vadd.f32 %v1178, %v1274
  %v1276 = vpop.f32.mrb[0].mxu0
  %v1277 = vpop.f32.mrb[0].mxu0
  %v1278 = vadd.f32 %v1181, %v1277
  %v1279 = vpop.f32.mrb[0].mxu0
  %1280 = vmatprep.mubr.bf16.mxu0 %v484
  %1281 = vmatmul.mubr.bf16.gmra.mrb[0].mxu0 %v483
  %v1282 = vpop.f32.mrb[0].mxu0
  %v1283 = vadd.f32 %v1186, %v1282
  %v1284 = vpop.f32.mrb[0].mxu0
  %v1285 = vpop.f32.mrb[0].mxu0
  %v1286 = vadd.f32 %v1189, %v1285
  %v1287 = vpop.f32.mrb[0].mxu0
  %1288 = vmatprep.mubr.bf16.mxu0 %v493
  %1289 = vmatmul.mubr.bf16.gmra.mrb[0].mxu0 %v492
  %v1290 = vpop.f32.mrb[0].mxu0
  %v1291 = vadd.f32 %v1194, %v1290
  %v1292 = vpop.f32.mrb[0].mxu0
  %v1293 = vpop.f32.mrb[0].mxu0
  %v1294 = vadd.f32 %v1197, %v1293
  %v1295 = vpop.f32.mrb[0].mxu0
  %1296 = vmatprep.mubr.bf16.mxu0 %v502
  %1297 = vmatmul.mubr.bf16.gmra.mrb[0].mxu0 %v501
  %v1298 = vpop.f32.mrb[0].mxu0
  %v1299 = vadd.f32 %v1202, %v1298
  %v1300 = vpop.f32.mrb[0].mxu0
  %v1301 = vpop.f32.mrb[0].mxu0
  %v1302 = vadd.f32 %v1205, %v1301
  %v1303 = vpop.f32.mrb[0].mxu0
  %1304 = vmatprep.mubr.bf16.mxu0 %v511
  %1305 = vmatmul.mubr.bf16.gmra.mrb[0].mxu0 %v510
  %v1306 = vpop.f32.mrb[0].mxu0
  %v1307 = vadd.f32 %v1210, %v1306
  %v1308 = vpop.f32.mrb[0].mxu0
  %v1309 = vpop.f32.mrb[0].mxu0
  %v1310 = vadd.f32 %v1213, %v1309
  %v1311 = vpop.f32.mrb[0].mxu0
  %1312 = vmatprep.mubr.bf16.mxu0 %v520
  %1313 = vmatmul.mubr.bf16.gmra.mrb[0].mxu0 %v519
  %v1314 = vpop.f32.mrb[0].mxu0
  %v1315 = vadd.f32 %v1218, %v1314
  %v1316 = vpop.f32.mrb[0].mxu0
  %v1317 = vpop.f32.mrb[0].mxu0
  %v1318 = vadd.f32 %v1221, %v1317
  %v1319 = vpop.f32.mrb[0].mxu0
  %1320 = vmatprep.mubr.bf16.mxu0 %v529
  %1321 = vmatmul.mubr.bf16.gmra.mrb[0].mxu0 %v528
  %v1322 = vpop.f32.mrb[0].mxu0
  %v1323 = vadd.f32 %v1226, %v1322
  %v1324 = vpop.f32.mrb[0].mxu0
  %v1325 = vpop.f32.mrb[0].mxu0
  %v1326 = vadd.f32 %v1229, %v1325
  %v1327 = vpop.f32.mrb[0].mxu0
  %1328 = vmatprep.mubr.bf16.mxu0 %v538
  %1329 = vmatmul.mubr.bf16.gmra.mrb[0].mxu0 %v537
  %v1330 = vpop.f32.mrb[0].mxu0
  %v1331 = vadd.f32 %v1234, %v1330
  %v1332 = vpop.f32.mrb[0].mxu0
  %v1333 = vpop.f32.mrb[0].mxu0
  %v1334 = vadd.f32 %v1237, %v1333
  %v1335 = vpop.f32.mrb[0].mxu0
  %1336 = vdwg.mxu0
  %1337 = vmatprep.subr.bf16.mxu0 0
  %1338 = vmatpush1.bf16.msra.mxu0 %v950
  %1339 = vmatprep.subr.bf16.mxu0 0
  %1340 = vmatpush1.bf16.msra.mxu0 %v951
  %1341 = vmatprep.subr.bf16.mxu0 0
  %1342 = vmatpush1.bf16.msra.mxu0 %v952
  %1343 = vmatprep.subr.bf16.mxu0 0
  %1344 = vmatpush1.bf16.msra.mxu0 %v953
  %1345 = vmatprep.subr.bf16.mxu0 0
  %1346 = vmatpush1.bf16.msra.mxu0 %v954
  %1347 = vmatprep.subr.bf16.mxu0 0
  %1348 = vmatpush1.bf16.msra.mxu0 %v955
  %1349 = vmatprep.subr.bf16.mxu0 0
  %1350 = vmatpush1.bf16.msra.mxu0 %v956
  %1351 = vmatprep.subr.bf16.mxu0 0
  %1352 = vmatpush1.bf16.msra.mxu0 %v957
  %1353 = vmatprep.subr.bf16.mxu0 0
  %1354 = vmatpush1.bf16.msra.mxu0 %v958
  %1355 = vmatprep.subr.bf16.mxu0 0
  %1356 = vmatpush1.bf16.msra.mxu0 %v959
  %1357 = vmatprep.subr.bf16.mxu0 0
  %1358 = vmatpush1.bf16.msra.mxu0 %v960
  %1359 = vmatprep.subr.bf16.mxu0 0
  %1360 = vmatpush1.bf16.msra.mxu0 %v961
  %1361 = vmatprep.subr.bf16.mxu0 0
  %1362 = vmatpush1.bf16.msra.mxu0 %v962
  %1363 = vmatprep.subr.bf16.mxu0 0
  %1364 = vmatpush1.bf16.msra.mxu0 %v963
  %1365 = vmatprep.subr.bf16.mxu0 0
  %1366 = vmatpush1.bf16.msra.mxu0 %v964
  %1367 = vmatprep.subr.bf16.mxu0 0
  %1368 = vmatpush1.bf16.msra.mxu0 %v965
  %1369 = vmatprep.mubr.bf16.mxu0 %v477
  %1370 = vmatmul.mubr.bf16.gmra.mrb[0].mxu0 %v476
  %v1371 = vpop.f32.mrb[0].mxu0
  %v1372 = vadd.f32 %v1275, %v1371
  %v1373 = vpop.f32.mrb[0].mxu0
  %v1374 = vpop.f32.mrb[0].mxu0
  %v1375 = vadd.f32 %v1278, %v1374
  %v1376 = vpop.f32.mrb[0].mxu0
  %1377 = vmatprep.mubr.bf16.mxu0 %v486
  %1378 = vmatmul.mubr.bf16.gmra.mrb[0].mxu0 %v485
  %v1379 = vpop.f32.mrb[0].mxu0
  %v1380 = vadd.f32 %v1283, %v1379
  %v1381 = vpop.f32.mrb[0].mxu0
  %v1382 = vpop.f32.mrb[0].mxu0
  %v1383 = vadd.f32 %v1286, %v1382
  %v1384 = vpop.f32.mrb[0].mxu0
  %1385 = vmatprep.mubr.bf16.mxu0 %v495
  %1386 = vmatmul.mubr.bf16.gmra.mrb[0].mxu0 %v494
  %v1387 = vpop.f32.mrb[0].mxu0
  %v1388 = vadd.f32 %v1291, %v1387
  %v1389 = vpop.f32.mrb[0].mxu0
  %v1390 = vpop.f32.mrb[0].mxu0
  %v1391 = vadd.f32 %v1294, %v1390
  %v1392 = vpop.f32.mrb[0].mxu0
  %1393 = vmatprep.mubr.bf16.mxu0 %v504
  %1394 = vmatmul.mubr.bf16.gmra.mrb[0].mxu0 %v503
  %v1395 = vpop.f32.mrb[0].mxu0
  %v1396 = vadd.f32 %v1299, %v1395
  %v1397 = vpop.f32.mrb[0].mxu0
  %v1398 = vpop.f32.mrb[0].mxu0
  %v1399 = vadd.f32 %v1302, %v1398
  %v1400 = vpop.f32.mrb[0].mxu0
  %1401 = vmatprep.mubr.bf16.mxu0 %v513
  %1402 = vmatmul.mubr.bf16.gmra.mrb[0].mxu0 %v512
  %v1403 = vpop.f32.mrb[0].mxu0
  %v1404 = vadd.f32 %v1307, %v1403
  %v1405 = vpop.f32.mrb[0].mxu0
  %v1406 = vpop.f32.mrb[0].mxu0
  %v1407 = vadd.f32 %v1310, %v1406
  %v1408 = vpop.f32.mrb[0].mxu0
  %1409 = vmatprep.mubr.bf16.mxu0 %v522
  %1410 = vmatmul.mubr.bf16.gmra.mrb[0].mxu0 %v521
  %v1411 = vpop.f32.mrb[0].mxu0
  %v1412 = vadd.f32 %v1315, %v1411
  %v1413 = vpop.f32.mrb[0].mxu0
  %v1414 = vpop.f32.mrb[0].mxu0
  %v1415 = vadd.f32 %v1318, %v1414
  %v1416 = vpop.f32.mrb[0].mxu0
  %1417 = vmatprep.mubr.bf16.mxu0 %v531
  %1418 = vmatmul.mubr.bf16.gmra.mrb[0].mxu0 %v530
  %v1419 = vpop.f32.mrb[0].mxu0
  %v1420 = vadd.f32 %v1323, %v1419
  %v1421 = vpop.f32.mrb[0].mxu0
  %v1422 = vpop.f32.mrb[0].mxu0
  %v1423 = vadd.f32 %v1326, %v1422
  %v1424 = vpop.f32.mrb[0].mxu0
  %1425 = vmatprep.mubr.bf16.mxu0 %v540
  %1426 = vmatmul.mubr.bf16.gmra.mrb[0].mxu0 %v539
  %v1427 = vpop.f32.mrb[0].mxu0
  %v1428 = vadd.f32 %v1331, %v1427
  %v1429 = vpop.f32.mrb[0].mxu0
  %v1430 = vpop.f32.mrb[0].mxu0
  %v1431 = vadd.f32 %v1334, %v1430
  %v1432 = vpop.f32.mrb[0].mxu0
  %1433 = vdwg.mxu0
  %1434 = vmatprep.subr.bf16.mxu0 0
  %1435 = vmatpush1.bf16.msra.mxu0 %v966
  %1436 = vmatprep.subr.bf16.mxu0 0
  %1437 = vmatpush1.bf16.msra.mxu0 %v967
  %1438 = vmatprep.subr.bf16.mxu0 0
  %1439 = vmatpush1.bf16.msra.mxu0 %v968
  %1440 = vmatprep.subr.bf16.mxu0 0
  %1441 = vmatpush1.bf16.msra.mxu0 %v969
  %1442 = vmatprep.subr.bf16.mxu0 0
  %1443 = vmatpush1.bf16.msra.mxu0 %v970
  %1444 = vmatprep.subr.bf16.mxu0 0
  %1445 = vmatpush1.bf16.msra.mxu0 %v971
  %1446 = vmatprep.subr.bf16.mxu0 0
  %1447 = vmatpush1.bf16.msra.mxu0 %v972
  %1448 = vmatprep.subr.bf16.mxu0 0
  %1449 = vmatpush1.bf16.msra.mxu0 %v973
  %1450 = vmatprep.subr.bf16.mxu0 0
  %1451 = vmatpush1.bf16.msra.mxu0 0
  %1452 = vmatprep.subr.bf16.mxu0 0
  %1453 = vmatpush1.bf16.msra.mxu0 0
  %1454 = vmatprep.subr.bf16.mxu0 0
  %1455 = vmatpush1.bf16.msra.mxu0 0
  %1456 = vmatprep.subr.bf16.mxu0 0
  %1457 = vmatpush1.bf16.msra.mxu0 0
  %1458 = vmatprep.subr.bf16.mxu0 0
  %1459 = vmatpush1.bf16.msra.mxu0 0
  %1460 = vmatprep.subr.bf16.mxu0 0
  %1461 = vmatpush1.bf16.msra.mxu0 0
  %1462 = vmatprep.subr.bf16.mxu0 0
  %1463 = vmatpush1.bf16.msra.mxu0 0
  %1464 = vmatprep.subr.bf16.mxu0 0
  %1465 = vmatpush1.bf16.msra.mxu0 0
  %1466 = vmatprep.mubr.bf16.mxu0 0
  %1467 = vmatmul.mubr.bf16.gmra.mrb[0].mxu0 %v478
  %v1468 = vpop.f32.mrb[0].mxu0
  %v1469 = vadd.f32 %v1372, %v1468
  %v1470 = vpop.f32.mrb[0].mxu0
  %v1471 = vpop.f32.mrb[0].mxu0
  %v1472 = vadd.f32 %v1375, %v1471
  %v1473 = vpop.f32.mrb[0].mxu0
  %1474 = vmatprep.mubr.bf16.mxu0 0
  %1475 = vmatmul.mubr.bf16.gmra.mrb[0].mxu0 %v487
  %v1476 = vpop.f32.mrb[0].mxu0
  %v1477 = vadd.f32 %v1380, %v1476
  %v1478 = vpop.f32.mrb[0].mxu0
  %v1479 = vpop.f32.mrb[0].mxu0
  %v1480 = vadd.f32 %v1383, %v1479
  %v1481 = vpop.f32.mrb[0].mxu0
  %1482 = vmatprep.mubr.bf16.mxu0 0
  %1483 = vmatmul.mubr.bf16.gmra.mrb[0].mxu0 %v496
  %v1484 = vpop.f32.mrb[0].mxu0
  %v1485 = vadd.f32 %v1388, %v1484
  %v1486 = vpop.f32.mrb[0].mxu0
  %v1487 = vpop.f32.mrb[0].mxu0
  %v1488 = vadd.f32 %v1391, %v1487
  %v1489 = vpop.f32.mrb[0].mxu0
  %1490 = vmatprep.mubr.bf16.mxu0 0
  %1491 = vmatmul.mubr.bf16.gmra.mrb[0].mxu0 %v505
  %v1492 = vpop.f32.mrb[0].mxu0
  %v1493 = vadd.f32 %v1396, %v1492
  %v1494 = vpop.f32.mrb[0].mxu0
  %v1495 = vpop.f32.mrb[0].mxu0
  %v1496 = vadd.f32 %v1399, %v1495
  %v1497 = vpop.f32.mrb[0].mxu0
  %1498 = vmatprep.mubr.bf16.mxu0 0
  %1499 = vmatmul.mubr.bf16.gmra.mrb[0].mxu0 %v514
  %v1500 = vpop.f32.mrb[0].mxu0
  %v1501 = vadd.f32 %v1404, %v1500
  %v1502 = vpop.f32.mrb[0].mxu0
  %v1503 = vpop.f32.mrb[0].mxu0
  %v1504 = vadd.f32 %v1407, %v1503
  %v1505 = vpop.f32.mrb[0].mxu0
  %1506 = vmatprep.mubr.bf16.mxu0 0
  %1507 = vmatmul.mubr.bf16.gmra.mrb[0].mxu0 %v523
  %v1508 = vpop.f32.mrb[0].mxu0
  %v1509 = vadd.f32 %v1412, %v1508
  %v1510 = vpop.f32.mrb[0].mxu0
  %v1511 = vpop.f32.mrb[0].mxu0
  %v1512 = vadd.f32 %v1415, %v1511
  %v1513 = vpop.f32.mrb[0].mxu0
  %1514 = vmatprep.mubr.bf16.mxu0 0
  %1515 = vmatmul.mubr.bf16.gmra.mrb[0].mxu0 %v532
  %v1516 = vpop.f32.mrb[0].mxu0
  %v1517 = vadd.f32 %v1420, %v1516
  %v1518 = vpop.f32.mrb[0].mxu0
  %v1519 = vpop.f32.mrb[0].mxu0
  %v1520 = vadd.f32 %v1423, %v1519
  %v1521 = vpop.f32.mrb[0].mxu0
  %1522 = vmatprep.mubr.bf16.mxu0 0
  %1523 = vmatmul.mubr.bf16.gmra.mrb[0].mxu0 %v541
  %v1524 = vpop.f32.mrb[0].mxu0
  %v1525 = vadd.f32 %v1428, %v1524
  %v1526 = vpop.f32.mrb[0].mxu0
  %v1527 = vpop.f32.mrb[0].mxu0
  %v1528 = vadd.f32 %v1431, %v1527
  %v1529 = vpop.f32.mrb[0].mxu0
  %1530 = vdwg.mxu0
  %v1531 = vmax.f32 %v1469, 0.0
  %v1532 = vmax.f32 %v1472, 0.0
  %v1533 = vmax.f32 %v1477, 0.0
  %v1534 = vmax.f32 %v1480, 0.0
  %v1535 = vmax.f32 %v1485, 0.0
  %v1536 = vmax.f32 %v1488, 0.0
  %v1537 = vmax.f32 %v1493, 0.0
  %v1538 = vmax.f32 %v1496, 0.0
  %v1539 = vmax.f32 %v1501, 0.0
  %v1540 = vmax.f32 %v1504, 0.0
  %v1541 = vmax.f32 %v1509, 0.0
  %v1542 = vmax.f32 %v1512, 0.0
  %v1543 = vmax.f32 %v1517, 0.0
  %v1544 = vmax.f32 %v1520, 0.0
  %v1545 = vmax.f32 %v1525, 0.0
  %v1546 = vmax.f32 %v1528, 0.0
  %vm1547 = vcmask 523264
  %1548 = vst.msk [vmem:[%s3] sm:$0xff] %vm1547, %v1531
  %1549 = vst.msk [vmem:[%s3 + $0x8] sm:$0xff] %vm1547, %v1532
  %1550 = vst.msk [vmem:[%s3 + $0x10] sm:$0xff] %vm1547, %v1533
  %1551 = vst.msk [vmem:[%s3 + $0x18] sm:$0xff] %vm1547, %v1534
  %1552 = vst.msk [vmem:[%s3 + $0x20] sm:$0xff] %vm1547, %v1535
  %1553 = vst.msk [vmem:[%s3 + $0x28] sm:$0xff] %vm1547, %v1536
  %1554 = vst.msk [vmem:[%s3 + $0x30] sm:$0xff] %vm1547, %v1537
  %1555 = vst.msk [vmem:[%s3 + $0x38] sm:$0xff] %vm1547, %v1538
  %1556 = vst.msk [vmem:[%s3 + $0x40] sm:$0xff] %vm1547, %v1539
  %1557 = vst.msk [vmem:[%s3 + $0x48] sm:$0xff] %vm1547, %v1540
  %1558 = vst.msk [vmem:[%s3 + $0x50] sm:$0xff] %vm1547, %v1541
  %1559 = vst.msk [vmem:[%s3 + $0x58] sm:$0xff] %vm1547, %v1542
  %1560 = vst.msk [vmem:[%s3 + $0x60] sm:$0xff] %vm1547, %v1543
  %1561 = vst.msk [vmem:[%s3 + $0x68] sm:$0xff] %vm1547, %v1544
  %1562 = vst.msk [vmem:[%s3 + $0x70] sm:$0xff] %vm1547, %v1545
  %1563 = vst.msk [vmem:[%s3 + $0x78] sm:$0xff] %vm1547, %v1546
  // Predicated region
  $region14: #{colorization_forward.25} parent=0 // pred_check
    _
  $region15: #{colorization_forward.25} parent=0 // pred_check_branch
    %1565 = sbr.rel (0) target = $region17
  $region16: #{colorization_forward.25} parent=0 // pred_region
    _
  $region17: #{colorization_forward.25} parent=0 // pred_fallthru
    _
  // Predicated region
  $region18: #{colorization_forward.25} parent=0 // pred_check
    _
  $region19: #{colorization_forward.25} parent=0 // pred_check_branch
    %1567 = sbr.rel (0) target = $region21
  $region20: #{colorization_forward.25} parent=0 // pred_region
    _
  $region21: #{colorization_forward.25} parent=0 // pred_fallthru
    _

// kernel: colorization_forward.26
$region0: #{colorization_forward.26}
  #allocation0 [shape = 'u32[]', space=smem, size = 0x4, offset = 0x4, fixed_abs, tag = 'smem constant byte address 0x4 - core index']
  #allocation1 [shape = 'u32[144,128]{1,0:T(1,128)}', space=vmem, size = 0x12000, scoped, tag = 'internal scratch']
  %s0 = inlined_call_operand.vmem [shape: bf16[512,576], index: 0, kind: input, shape index: {}]
  %s1 = inlined_call_operand.vmem [shape: bf16[576,32], index: 1, kind: input, shape index: {}]
  %s2 = inlined_call_operand.vmem [shape: f32[1,32], index: 2, kind: input, shape index: {}]
  %s3 = inlined_call_operand.vmem [shape: f32[512,32], index: 3, kind: output, shape index: {}]
  %s4 = sld [smem:[#allocation0]]
  $region45: #{colorization_forward.26} parent=0
    _
  %s6 = ssub.s32 1, %s4
  %s7 = scalar_select 0, %s6, %s4
  loop: start=0, step=1, limit=4
  $region2: #{colorization_forward.26} parent=0 // loop_pre_header
    _
  $region3: #{colorization_forward.26} parent=0 // loop_header
    %s9 = sphi 0, %s13
    %p10 = scmp.ge.s32.totalorder %s9, 4
    %s19 = sphi 0, %s21
    %s22 = sphi 0, %s19
    %s23 = sphi 0, %s22
    %s39 = sphi 0, %s23
    %s43 = sphi 0, %s43
    %s45 = sphi 0, %s43
    %s46 = sphi 0, %s45
    %s60 = sphi 0, %s46
    %s64 = sphi 0, %s64
    %s66 = sphi 0, %s64
    %s67 = sphi 0, %s66
    %s81 = sphi 0, %s67
    %s87 = sphi 0, %s89
    %s90 = sphi 0, %s87
    %s91 = sphi 0, %s90
    %s107 = sphi 0, %s91
  $region4: #{colorization_forward.26} parent=0 // loop_header_branch
    %12 = sbr.rel (%p10) target = $region8
  $region5: #{colorization_forward.26} parent=0 // loop_body
    %s14 = ssub.s32 %s9, 1
    %s15 = ssub.s32 %s9, 2
    %s16 = sadd.s32 %s9, 1
    %s17 = ssub.s32 %s9, %s16
    %p18 = scmp.eq.s32.totalorder %s17, 0
    %s20 = sadd.s32 %s19, 1
    %s21 = scalar_select %p18, %s19, %s20
    %p24 = pneg %p18
    %p25 = scmp.eq.s32.totalorder %s9, 1
    %p26 = por %p24, %p25
    %p27 = scmp.ne.s32.totalorder %s19, %s22
    %p28 = scmp.eq.s32.totalorder %s9, 0
    %p29 = por %p27, %p28
    %p30 = scmp.ne.s32.totalorder %s19, %s22
    %p31 = scmp.eq.s32.totalorder %s14, 1
    %p32 = por %p30, %p31
    %p33 = scmp.ne.s32.totalorder %s22, %s23
    %p34 = scmp.eq.s32.totalorder %s14, 0
    %p35 = por %p33, %p34
    %p36 = scmp.ne.s32.totalorder %s22, %s23
    %p37 = scmp.eq.s32.totalorder %s15, 1
    %p38 = por %p36, %p37
    %p40 = scmp.ne.s32.totalorder %s23, %s39
    %p41 = scmp.eq.s32.totalorder %s15, 0
    %p42 = por %p40, %p41
    %s44 = sadd.s32 %s43, 1
    %p47 = scmp.eq.s32.totalorder %s9, 1
    %p48 = scmp.ne.s32.totalorder %s43, %s45
    %p49 = scmp.eq.s32.totalorder %s9, 0
    %p50 = por %p48, %p49
    %p51 = scmp.ne.s32.totalorder %s43, %s45
    %p52 = scmp.eq.s32.totalorder %s14, 1
    %p53 = por %p51, %p52
    %p54 = scmp.ne.s32.totalorder %s45, %s46
    %p55 = scmp.eq.s32.totalorder %s14, 0
    %p56 = por %p54, %p55
    %p57 = scmp.ne.s32.totalorder %s45, %s46
    %p58 = scmp.eq.s32.totalorder %s15, 1
    %p59 = por %p57, %p58
    %p61 = scmp.ne.s32.totalorder %s46, %s60
    %p62 = scmp.eq.s32.totalorder %s15, 0
    %p63 = por %p61, %p62
    %s65 = sadd.s32 %s64, 1
    %p68 = scmp.eq.s32.totalorder %s9, 1
    %p69 = scmp.ne.s32.totalorder %s64, %s66
    %p70 = scmp.eq.s32.totalorder %s9, 0
    %p71 = por %p69, %p70
    %p72 = scmp.ne.s32.totalorder %s64, %s66
    %p73 = scmp.eq.s32.totalorder %s14, 1
    %p74 = por %p72, %p73
    %p75 = scmp.ne.s32.totalorder %s66, %s67
    %p76 = scmp.eq.s32.totalorder %s14, 0
    %p77 = por %p75, %p76
    %p78 = scmp.ne.s32.totalorder %s66, %s67
    %p79 = scmp.eq.s32.totalorder %s15, 1
    %p80 = por %p78, %p79
    %p82 = scmp.ne.s32.totalorder %s67, %s81
    %p83 = scmp.eq.s32.totalorder %s15, 0
    %p84 = por %p82, %p83
    %s85 = ssub.s32 %s9, %s16
    %p86 = scmp.eq.s32.totalorder %s85, 0
    %s88 = sadd.s32 %s87, 1
    %s89 = scalar_select %p86, %s87, %s88
    %p92 = pneg %p86
    %p93 = scmp.eq.s32.totalorder %s9, 1
    %p94 = por %p92, %p93
    %p95 = scmp.ne.s32.totalorder %s87, %s90
    %p96 = scmp.eq.s32.totalorder %s9, 0
    %p97 = por %p95, %p96
    %p98 = scmp.ne.s32.totalorder %s87, %s90
    %p99 = scmp.eq.s32.totalorder %s14, 1
    %p100 = por %p98, %p99
    %p101 = scmp.ne.s32.totalorder %s90, %s91
    %p102 = scmp.eq.s32.totalorder %s14, 0
    %p103 = por %p101, %p102
    %p104 = scmp.ne.s32.totalorder %s90, %s91
    %p105 = scmp.eq.s32.totalorder %s15, 1
    %p106 = por %p104, %p105
    %p108 = scmp.ne.s32.totalorder %s91, %s107
    %p109 = scmp.eq.s32.totalorder %s15, 0
    %p110 = por %p108, %p109
    %p111 = scmp.le.s32.totalorder 1, %s9
    %p112 = scmp.lt.s32.totalorder %s9, 3
    %p113 = pnand %p111, %p112
    %p114 = pneg %p113
    // Predicated region
    $region9: #{colorization_forward.26} parent=5 // pred_check
      _
    $region10: #{colorization_forward.26} parent=5 // pred_check_branch
      %116 = sbr.rel (%p113) target = $region12
    $region11: #{colorization_forward.26} parent=5 // pred_region
      %s117 = ssub.s32 %s9, 1
      // Predicated region
      $region13: #{colorization_forward.26} parent=11 // pred_check
        %p118 = pneg %p56
      $region14: #{colorization_forward.26} parent=11 // pred_check_branch
        %120 = sbr.rel (%p118) target = $region16
      $region15: #{colorization_forward.26} parent=11 // pred_region
        _
      $region16: #{colorization_forward.26} parent=11 // pred_fallthru
        _
      // Predicated region
      $region17: #{colorization_forward.26} parent=11 // pred_check
        %p121 = pneg %p77
      $region18: #{colorization_forward.26} parent=11 // pred_check_branch
        %123 = sbr.rel (%p121) target = $region20
      $region19: #{colorization_forward.26} parent=11 // pred_region
        _
      $region20: #{colorization_forward.26} parent=11 // pred_fallthru
        _
    $region12: #{colorization_forward.26} parent=5 // pred_fallthru
      _
    %p124 = scmp.lt.s32.totalorder %s9, 2
    // Predicated region
    $region21: #{colorization_forward.26} parent=5 // pred_check
      %p125 = pneg %p124
    $region22: #{colorization_forward.26} parent=5 // pred_check_branch
      %127 = sbr.rel (%p125) target = $region24
    $region23: #{colorization_forward.26} parent=5 // pred_region
      // Predicated region
      $region25: #{colorization_forward.26} parent=23 // pred_check
        %p128 = pneg %p29
      $region26: #{colorization_forward.26} parent=23 // pred_check_branch
        %130 = sbr.rel (%p128) target = $region28
      $region27: #{colorization_forward.26} parent=23 // pred_region
        %s131 = smul.u32 32, %s9
        %p132 = scmp.lt.s32.totalorder %s131, 63
        %s133 = scalar_select %p132, %s131, 63
        %s134 = smul.addr %s133, 5
        %s135 = smul.addr %s134, 4
        %s136 = scalar_lea.vmem %s0, %s135
        %s137 = smul.u32 32, %s9
      $region28: #{colorization_forward.26} parent=23 // pred_fallthru
        _
    $region24: #{colorization_forward.26} parent=5 // pred_fallthru
      _
    %p138 = scmp.le.s32.totalorder 1, %s9
    %p139 = scmp.lt.s32.totalorder %s9, 3
    %p140 = pnand %p138, %p139
    %p141 = pneg %p140
    // Predicated region
    $region29: #{colorization_forward.26} parent=5 // pred_check
      _
    $region30: #{colorization_forward.26} parent=5 // pred_check_branch
      %143 = sbr.rel (%p140) target = $region32
    $region31: #{colorization_forward.26} parent=5 // pred_region
      %s144 = ssub.s32 %s9, 1
      %s145 = smul.u32 32, %s14
      %p146 = scmp.lt.s32.totalorder %s145, 63
      %s147 = scalar_select %p146, %s145, 63
      %s148 = smul.addr %s147, 5
      %s149 = smul.addr %s148, 4
      %s150 = scalar_lea.vmem %s0, %s149
      %p151 = pneg %p35
      %p152 = pneg %p32
      %p153 = pneg %p56
      %p154 = pneg %p53
      %p155 = pneg %p77
      %p156 = pneg %p74
      %p157 = pneg %p103
      %p158 = pneg %p100
      %s159 = smul.u32 32, %s14
      %p160 = scmp.lt.s32.totalorder %s159, 63
      %s161 = scalar_select %p160, %s159, 63
      %s162 = smul.addr %s161, 8
      %s163 = scalar_lea.vmem %s3, %s162
      %s164 = smul.u32 32, %s14
      %p165 = scmp.lt.s32.totalorder %s164, 63
      %s166 = scalar_select %p165, %s164, 63
      %s167 = smul.addr %s166, 5
      %s168 = smul.addr %s167, 4
      %s169 = scalar_lea.vmem %s0, %s168
      %s170 = smul.u32 32, %s14
      %s171 = smul.u32 32, %s14
      %p172 = scmp.lt.s32.totalorder %s171, 63
      %s173 = scalar_select %p172, %s171, 63
      %s174 = smul.addr %s173, 8
      %s175 = scalar_lea.vmem %s3, %s174
      %s176 = smul.u32 32, %s14
      %v178 = vld [vmem:[%s169] sm:$0xff]
      %v179 = vld [vmem:[%s169 + $0x8] sm:$0xff]
      %v180 = vld [vmem:[%s169 + $0x10] sm:$0xf]
      %v181 = vld [vmem:[%s169 + $0x14] sm:$0xff]
      %v182 = vld [vmem:[%s169 + $0x1c] sm:$0xff]
      %v183 = vld [vmem:[%s169 + $0x24] sm:$0xf]
      %v184 = vld [vmem:[%s169 + $0x28] sm:$0xff]
      %v185 = vld [vmem:[%s169 + $0x30] sm:$0xff]
      %v186 = vld [vmem:[%s169 + $0x38] sm:$0xf]
      %v187 = vld [vmem:[%s169 + $0x3c] sm:$0xff]
      %v188 = vld [vmem:[%s169 + $0x44] sm:$0xff]
      %v189 = vld [vmem:[%s169 + $0x4c] sm:$0xf]
      %v190 = vld [vmem:[%s169 + $0x50] sm:$0xff]
      %v191 = vld [vmem:[%s169 + $0x58] sm:$0xff]
      %v192 = vld [vmem:[%s169 + $0x60] sm:$0xf]
      %v193 = vld [vmem:[%s169 + $0x64] sm:$0xff]
      %v194 = vld [vmem:[%s169 + $0x6c] sm:$0xff]
      %v195 = vld [vmem:[%s169 + $0x74] sm:$0xf]
      %v196 = vld [vmem:[%s169 + $0x78] sm:$0xff]
      %v197 = vld [vmem:[%s169 + $0x80] sm:$0xff]
      %v198 = vld [vmem:[%s169 + $0x88] sm:$0xf]
      %v199 = vld [vmem:[%s169 + $0x8c] sm:$0xff]
      %v200 = vld [vmem:[%s169 + $0x94] sm:$0xff]
      %v201 = vld [vmem:[%s169 + $0x9c] sm:$0xf]
      %v202 = vld [vmem:[%s169 + $0xa0] sm:$0xff]
      %v203 = vld [vmem:[%s169 + $0xa8] sm:$0xff]
      %v204 = vld [vmem:[%s169 + $0xb0] sm:$0xf]
      %v205 = vld [vmem:[%s169 + $0xb4] sm:$0xff]
      %v206 = vld [vmem:[%s169 + $0xbc] sm:$0xff]
      %v207 = vld [vmem:[%s169 + $0xc4] sm:$0xf]
      %v208 = vld [vmem:[%s169 + $0xc8] sm:$0xff]
      %v209 = vld [vmem:[%s169 + $0xd0] sm:$0xff]
      %v210 = vld [vmem:[%s169 + $0xd8] sm:$0xf]
      %v211 = vld [vmem:[%s169 + $0xdc] sm:$0xff]
      %v212 = vld [vmem:[%s169 + $0xe4] sm:$0xff]
      %v213 = vld [vmem:[%s169 + $0xec] sm:$0xf]
      %v214 = vld [vmem:[%s169 + $0xf0] sm:$0xff]
      %v215 = vld [vmem:[%s169 + $0xf8] sm:$0xff]
      %v216 = vld [vmem:[%s169 + $0x100] sm:$0xf]
      %v217 = vld [vmem:[%s169 + $0x104] sm:$0xff]
      %v218 = vld [vmem:[%s169 + $0x10c] sm:$0xff]
      %v219 = vld [vmem:[%s169 + $0x114] sm:$0xf]
      %v220 = vld [vmem:[%s169 + $0x118] sm:$0xff]
      %v221 = vld [vmem:[%s169 + $0x120] sm:$0xff]
      %v222 = vld [vmem:[%s169 + $0x128] sm:$0xf]
      %v223 = vld [vmem:[%s169 + $0x12c] sm:$0xff]
      %v224 = vld [vmem:[%s169 + $0x134] sm:$0xff]
      %v225 = vld [vmem:[%s169 + $0x13c] sm:$0xf]
      %v226 = vld [vmem:[%s169 + $0x140] sm:$0xff]
      %v227 = vld [vmem:[%s169 + $0x148] sm:$0xff]
      %v228 = vld [vmem:[%s169 + $0x150] sm:$0xf]
      %v229 = vld [vmem:[%s169 + $0x154] sm:$0xff]
      %v230 = vld [vmem:[%s169 + $0x15c] sm:$0xff]
      %v231 = vld [vmem:[%s169 + $0x164] sm:$0xf]
      %v232 = vld [vmem:[%s169 + $0x168] sm:$0xff]
      %v233 = vld [vmem:[%s169 + $0x170] sm:$0xff]
      %v234 = vld [vmem:[%s169 + $0x178] sm:$0xf]
      %v235 = vld [vmem:[%s169 + $0x17c] sm:$0xff]
      %v236 = vld [vmem:[%s169 + $0x184] sm:$0xff]
      %v237 = vld [vmem:[%s169 + $0x18c] sm:$0xf]
      %v238 = vld [vmem:[%s169 + $0x190] sm:$0xff]
      %v239 = vld [vmem:[%s169 + $0x198] sm:$0xff]
      %v240 = vld [vmem:[%s169 + $0x1a0] sm:$0xf]
      %v241 = vld [vmem:[%s169 + $0x1a4] sm:$0xff]
      %v242 = vld [vmem:[%s169 + $0x1ac] sm:$0xff]
      %v243 = vld [vmem:[%s169 + $0x1b4] sm:$0xf]
      %v244 = vld [vmem:[%s169 + $0x1b8] sm:$0xff]
      %v245 = vld [vmem:[%s169 + $0x1c0] sm:$0xff]
      %v246 = vld [vmem:[%s169 + $0x1c8] sm:$0xf]
      %v247 = vld [vmem:[%s169 + $0x1cc] sm:$0xff]
      %v248 = vld [vmem:[%s169 + $0x1d4] sm:$0xff]
      %v249 = vld [vmem:[%s169 + $0x1dc] sm:$0xf]
      %v250 = vld [vmem:[%s169 + $0x1e0] sm:$0xff]
      %v251 = vld [vmem:[%s169 + $0x1e8] sm:$0xff]
      %v252 = vld [vmem:[%s169 + $0x1f0] sm:$0xf]
      %v253 = vld [vmem:[%s169 + $0x1f4] sm:$0xff]
      %v254 = vld [vmem:[%s169 + $0x1fc] sm:$0xff]
      %v255 = vld [vmem:[%s169 + $0x204] sm:$0xf]
      %v256 = vld [vmem:[%s169 + $0x208] sm:$0xff]
      %v257 = vld [vmem:[%s169 + $0x210] sm:$0xff]
      %v258 = vld [vmem:[%s169 + $0x218] sm:$0xf]
      %v259 = vld [vmem:[%s169 + $0x21c] sm:$0xff]
      %v260 = vld [vmem:[%s169 + $0x224] sm:$0xff]
      %v261 = vld [vmem:[%s169 + $0x22c] sm:$0xf]
      %v262 = vld [vmem:[%s169 + $0x230] sm:$0xff]
      %v263 = vld [vmem:[%s169 + $0x238] sm:$0xff]
      %v264 = vld [vmem:[%s169 + $0x240] sm:$0xf]
      %v265 = vld [vmem:[%s169 + $0x244] sm:$0xff]
      %v266 = vld [vmem:[%s169 + $0x24c] sm:$0xff]
      %v267 = vld [vmem:[%s169 + $0x254] sm:$0xf]
      %v268 = vld [vmem:[%s169 + $0x258] sm:$0xff]
      %v269 = vld [vmem:[%s169 + $0x260] sm:$0xff]
      %v270 = vld [vmem:[%s169 + $0x268] sm:$0xf]
      %v271 = vld [vmem:[%s169 + $0x26c] sm:$0xff]
      %v272 = vld [vmem:[%s169 + $0x274] sm:$0xff]
      %v273 = vld [vmem:[%s169 + $0x27c] sm:$0xf]
      %v274 = vld [vmem:[%s1] sm:$0xf]
      %v275 = vld [vmem:[%s1 + $0x4] sm:$0xf]
      %v276 = vld [vmem:[%s1 + $0x8] sm:$0xf]
      %v277 = vld [vmem:[%s1 + $0xc] sm:$0xf]
      %v278 = vld [vmem:[%s1 + $0x10] sm:$0xf]
      %v279 = vld [vmem:[%s1 + $0x14] sm:$0xf]
      %v280 = vld [vmem:[%s1 + $0x18] sm:$0xf]
      %v281 = vld [vmem:[%s1 + $0x1c] sm:$0xf]
      %v282 = vld [vmem:[%s1 + $0x20] sm:$0xf]
      %v283 = vld [vmem:[%s1 + $0x24] sm:$0xf]
      %v284 = vld [vmem:[%s1 + $0x28] sm:$0xf]
      %v285 = vld [vmem:[%s1 + $0x2c] sm:$0xf]
      %v286 = vld [vmem:[%s1 + $0x30] sm:$0xf]
      %v287 = vld [vmem:[%s1 + $0x34] sm:$0xf]
      %v288 = vld [vmem:[%s1 + $0x38] sm:$0xf]
      %v289 = vld [vmem:[%s1 + $0x3c] sm:$0xf]
      %v290 = vld [vmem:[%s1 + $0x40] sm:$0xf]
      %v291 = vld [vmem:[%s1 + $0x44] sm:$0xf]
      %v292 = vld [vmem:[%s1 + $0x48] sm:$0xf]
      %v293 = vld [vmem:[%s1 + $0x4c] sm:$0xf]
      %v294 = vld [vmem:[%s1 + $0x50] sm:$0xf]
      %v295 = vld [vmem:[%s1 + $0x54] sm:$0xf]
      %v296 = vld [vmem:[%s1 + $0x58] sm:$0xf]
      %v297 = vld [vmem:[%s1 + $0x5c] sm:$0xf]
      %v298 = vld [vmem:[%s1 + $0x60] sm:$0xf]
      %v299 = vld [vmem:[%s1 + $0x64] sm:$0xf]
      %v300 = vld [vmem:[%s1 + $0x68] sm:$0xf]
      %v301 = vld [vmem:[%s1 + $0x6c] sm:$0xf]
      %v302 = vld [vmem:[%s1 + $0x70] sm:$0xf]
      %v303 = vld [vmem:[%s1 + $0x74] sm:$0xf]
      %v304 = vld [vmem:[%s1 + $0x78] sm:$0xf]
      %v305 = vld [vmem:[%s1 + $0x7c] sm:$0xf]
      %v306 = vld [vmem:[%s1 + $0x80] sm:$0xf]
      %v307 = vld [vmem:[%s1 + $0x84] sm:$0xf]
      %v308 = vld [vmem:[%s1 + $0x88] sm:$0xf]
      %v309 = vld [vmem:[%s1 + $0x8c] sm:$0xf]
      %v310 = vld [vmem:[%s1 + $0x90] sm:$0xf]
      %v311 = vld [vmem:[%s1 + $0x94] sm:$0xf]
      %v312 = vld [vmem:[%s1 + $0x98] sm:$0xf]
      %v313 = vld [vmem:[%s1 + $0x9c] sm:$0xf]
      %v314 = vld [vmem:[%s1 + $0xa0] sm:$0xf]
      %v315 = vld [vmem:[%s1 + $0xa4] sm:$0xf]
      %v316 = vld [vmem:[%s1 + $0xa8] sm:$0xf]
      %v317 = vld [vmem:[%s1 + $0xac] sm:$0xf]
      %v318 = vld [vmem:[%s1 + $0xb0] sm:$0xf]
      %v319 = vld [vmem:[%s1 + $0xb4] sm:$0xf]
      %v320 = vld [vmem:[%s1 + $0xb8] sm:$0xf]
      %v321 = vld [vmem:[%s1 + $0xbc] sm:$0xf]
      %v322 = vld [vmem:[%s1 + $0xc0] sm:$0xf]
      %v323 = vld [vmem:[%s1 + $0xc4] sm:$0xf]
      %v324 = vld [vmem:[%s1 + $0xc8] sm:$0xf]
      %v325 = vld [vmem:[%s1 + $0xcc] sm:$0xf]
      %v326 = vld [vmem:[%s1 + $0xd0] sm:$0xf]
      %v327 = vld [vmem:[%s1 + $0xd4] sm:$0xf]
      %v328 = vld [vmem:[%s1 + $0xd8] sm:$0xf]
      %v329 = vld [vmem:[%s1 + $0xdc] sm:$0xf]
      %v330 = vld [vmem:[%s1 + $0xe0] sm:$0xf]
      %v331 = vld [vmem:[%s1 + $0xe4] sm:$0xf]
      %v332 = vld [vmem:[%s1 + $0xe8] sm:$0xf]
      %v333 = vld [vmem:[%s1 + $0xec] sm:$0xf]
      %v334 = vld [vmem:[%s1 + $0xf0] sm:$0xf]
      %v335 = vld [vmem:[%s1 + $0xf4] sm:$0xf]
      %v336 = vld [vmem:[%s1 + $0xf8] sm:$0xf]
      %v337 = vld [vmem:[%s1 + $0xfc] sm:$0xf]
      %v338 = vld [vmem:[%s1 + $0x100] sm:$0xf]
      %v339 = vld [vmem:[%s1 + $0x104] sm:$0xf]
      %v340 = vld [vmem:[%s1 + $0x108] sm:$0xf]
      %v341 = vld [vmem:[%s1 + $0x10c] sm:$0xf]
      %v342 = vld [vmem:[%s1 + $0x110] sm:$0xf]
      %v343 = vld [vmem:[%s1 + $0x114] sm:$0xf]
      %v344 = vld [vmem:[%s1 + $0x118] sm:$0xf]
      %v345 = vld [vmem:[%s1 + $0x11c] sm:$0xf]
      %v346 = vld [vmem:[%s2] sm:$0x1]
      %v348 = vlaneseq
      %v349 = vshrl.u32 %v348, 7
      %v350 = vsub.s32 0, %v349
      %v351 = vrot.slane %v346, %v350
      %v449 = vunpack.c.l.b16 %v178
      %v450 = vunpack.c.h.b16 %v178
      %v451 = vunpack.c.l.b16 %v179
      %v452 = vunpack.c.h.b16 %v179
      %v453 = vunpack.c.l.b16 %v180
      %v454 = vunpack.c.l.b16 %v181
      %v455 = vunpack.c.h.b16 %v181
      %v456 = vunpack.c.l.b16 %v182
      %v457 = vunpack.c.h.b16 %v182
      %v458 = vunpack.c.l.b16 %v183
      %v459 = vunpack.c.l.b16 %v184
      %v460 = vunpack.c.h.b16 %v184
      %v461 = vunpack.c.l.b16 %v185
      %v462 = vunpack.c.h.b16 %v185
      %v463 = vunpack.c.l.b16 %v186
      %v464 = vunpack.c.l.b16 %v187
      %v465 = vunpack.c.h.b16 %v187
      %v466 = vunpack.c.l.b16 %v188
      %v467 = vunpack.c.h.b16 %v188
      %v468 = vunpack.c.l.b16 %v189
      %v469 = vunpack.c.l.b16 %v190
      %v470 = vunpack.c.h.b16 %v190
      %v471 = vunpack.c.l.b16 %v191
      %v472 = vunpack.c.h.b16 %v191
      %v473 = vunpack.c.l.b16 %v192
      %v474 = vunpack.c.l.b16 %v193
      %v475 = vunpack.c.h.b16 %v193
      %v476 = vunpack.c.l.b16 %v194
      %v477 = vunpack.c.h.b16 %v194
      %v478 = vunpack.c.l.b16 %v195
      %v479 = vunpack.c.l.b16 %v196
      %v480 = vunpack.c.h.b16 %v196
      %v481 = vunpack.c.l.b16 %v197
      %v482 = vunpack.c.h.b16 %v197
      %v483 = vunpack.c.l.b16 %v198
      %v484 = vunpack.c.l.b16 %v199
      %v485 = vunpack.c.h.b16 %v199
      %v486 = vunpack.c.l.b16 %v200
      %v487 = vunpack.c.h.b16 %v200
      %v488 = vunpack.c.l.b16 %v201
      %v489 = vunpack.c.l.b16 %v202
      %v490 = vunpack.c.h.b16 %v202
      %v491 = vunpack.c.l.b16 %v203
      %v492 = vunpack.c.h.b16 %v203
      %v493 = vunpack.c.l.b16 %v204
      %v494 = vunpack.c.l.b16 %v205
      %v495 = vunpack.c.h.b16 %v205
      %v496 = vunpack.c.l.b16 %v206
      %v497 = vunpack.c.h.b16 %v206
      %v498 = vunpack.c.l.b16 %v207
      %v499 = vunpack.c.l.b16 %v208
      %v500 = vunpack.c.h.b16 %v208
      %v501 = vunpack.c.l.b16 %v209
      %v502 = vunpack.c.h.b16 %v209
      %v503 = vunpack.c.l.b16 %v210
      %v504 = vunpack.c.l.b16 %v211
      %v505 = vunpack.c.h.b16 %v211
      %v506 = vunpack.c.l.b16 %v212
      %v507 = vunpack.c.h.b16 %v212
      %v508 = vunpack.c.l.b16 %v213
      %v509 = vunpack.c.l.b16 %v214
      %v510 = vunpack.c.h.b16 %v214
      %v511 = vunpack.c.l.b16 %v215
      %v512 = vunpack.c.h.b16 %v215
      %v513 = vunpack.c.l.b16 %v216
      %v514 = vunpack.c.l.b16 %v217
      %v515 = vunpack.c.h.b16 %v217
      %v516 = vunpack.c.l.b16 %v218
      %v517 = vunpack.c.h.b16 %v218
      %v518 = vunpack.c.l.b16 %v219
      %v519 = vunpack.c.l.b16 %v220
      %v520 = vunpack.c.h.b16 %v220
      %v521 = vunpack.c.l.b16 %v221
      %v522 = vunpack.c.h.b16 %v221
      %v523 = vunpack.c.l.b16 %v222
      %v524 = vunpack.c.l.b16 %v223
      %v525 = vunpack.c.h.b16 %v223
      %v526 = vunpack.c.l.b16 %v224
      %v527 = vunpack.c.h.b16 %v224
      %v528 = vunpack.c.l.b16 %v225
      %v529 = vunpack.c.l.b16 %v226
      %v530 = vunpack.c.h.b16 %v226
      %v531 = vunpack.c.l.b16 %v227
      %v532 = vunpack.c.h.b16 %v227
      %v533 = vunpack.c.l.b16 %v228
      %v534 = vunpack.c.l.b16 %v229
      %v535 = vunpack.c.h.b16 %v229
      %v536 = vunpack.c.l.b16 %v230
      %v537 = vunpack.c.h.b16 %v230
      %v538 = vunpack.c.l.b16 %v231
      %v539 = vunpack.c.l.b16 %v232
      %v540 = vunpack.c.h.b16 %v232
      %v541 = vunpack.c.l.b16 %v233
      %v542 = vunpack.c.h.b16 %v233
      %v543 = vunpack.c.l.b16 %v234
      %v544 = vunpack.c.l.b16 %v235
      %v545 = vunpack.c.h.b16 %v235
      %v546 = vunpack.c.l.b16 %v236
      %v547 = vunpack.c.h.b16 %v236
      %v548 = vunpack.c.l.b16 %v237
      %v549 = vunpack.c.l.b16 %v238
      %v550 = vunpack.c.h.b16 %v238
      %v551 = vunpack.c.l.b16 %v239
      %v552 = vunpack.c.h.b16 %v239
      %v553 = vunpack.c.l.b16 %v240
      %v554 = vunpack.c.l.b16 %v241
      %v555 = vunpack.c.h.b16 %v241
      %v556 = vunpack.c.l.b16 %v242
      %v557 = vunpack.c.h.b16 %v242
      %v558 = vunpack.c.l.b16 %v243
      %v559 = vunpack.c.l.b16 %v244
      %v560 = vunpack.c.h.b16 %v244
      %v561 = vunpack.c.l.b16 %v245
      %v562 = vunpack.c.h.b16 %v245
      %v563 = vunpack.c.l.b16 %v246
      %v564 = vunpack.c.l.b16 %v247
      %v565 = vunpack.c.h.b16 %v247
      %v566 = vunpack.c.l.b16 %v248
      %v567 = vunpack.c.h.b16 %v248
      %v568 = vunpack.c.l.b16 %v249
      %v569 = vunpack.c.l.b16 %v250
      %v570 = vunpack.c.h.b16 %v250
      %v571 = vunpack.c.l.b16 %v251
      %v572 = vunpack.c.h.b16 %v251
      %v573 = vunpack.c.l.b16 %v252
      %v574 = vunpack.c.l.b16 %v253
      %v575 = vunpack.c.h.b16 %v253
      %v576 = vunpack.c.l.b16 %v254
      %v577 = vunpack.c.h.b16 %v254
      %v578 = vunpack.c.l.b16 %v255
      %v579 = vunpack.c.l.b16 %v256
      %v580 = vunpack.c.h.b16 %v256
      %v581 = vunpack.c.l.b16 %v257
      %v582 = vunpack.c.h.b16 %v257
      %v583 = vunpack.c.l.b16 %v258
      %v584 = vunpack.c.l.b16 %v259
      %v585 = vunpack.c.h.b16 %v259
      %v586 = vunpack.c.l.b16 %v260
      %v587 = vunpack.c.h.b16 %v260
      %v588 = vunpack.c.l.b16 %v261
      %v589 = vunpack.c.l.b16 %v262
      %v590 = vunpack.c.h.b16 %v262
      %v591 = vunpack.c.l.b16 %v263
      %v592 = vunpack.c.h.b16 %v263
      %v593 = vunpack.c.l.b16 %v264
      %v594 = vunpack.c.l.b16 %v265
      %v595 = vunpack.c.h.b16 %v265
      %v596 = vunpack.c.l.b16 %v266
      %v597 = vunpack.c.h.b16 %v266
      %v598 = vunpack.c.l.b16 %v267
      %v599 = vunpack.c.l.b16 %v268
      %v600 = vunpack.c.h.b16 %v268
      %v601 = vunpack.c.l.b16 %v269
      %v602 = vunpack.c.h.b16 %v269
      %v603 = vunpack.c.l.b16 %v270
      %v604 = vunpack.c.l.b16 %v271
      %v605 = vunpack.c.h.b16 %v271
      %v606 = vunpack.c.l.b16 %v272
      %v607 = vunpack.c.h.b16 %v272
      %v608 = vunpack.c.l.b16 %v273
      %v609 = vpack.c.b16 %v454, %v449
      %v610 = vpack.c.b16 %v455, %v450
      %v611 = vpack.c.b16 %v456, %v451
      %v612 = vpack.c.b16 %v457, %v452
      %v613 = vpack.c.b16 %v458, %v453
      %v614 = vpack.c.b16 %v464, %v459
      %v615 = vpack.c.b16 %v465, %v460
      %v616 = vpack.c.b16 %v466, %v461
      %v617 = vpack.c.b16 %v467, %v462
      %v618 = vpack.c.b16 %v468, %v463
      %v619 = vpack.c.b16 %v474, %v469
      %v620 = vpack.c.b16 %v475, %v470
      %v621 = vpack.c.b16 %v476, %v471
      %v622 = vpack.c.b16 %v477, %v472
      %v623 = vpack.c.b16 %v478, %v473
      %v624 = vpack.c.b16 %v484, %v479
      %v625 = vpack.c.b16 %v485, %v480
      %v626 = vpack.c.b16 %v486, %v481
      %v627 = vpack.c.b16 %v487, %v482
      %v628 = vpack.c.b16 %v488, %v483
      %v629 = vpack.c.b16 %v494, %v489
      %v630 = vpack.c.b16 %v495, %v490
      %v631 = vpack.c.b16 %v496, %v491
      %v632 = vpack.c.b16 %v497, %v492
      %v633 = vpack.c.b16 %v498, %v493
      %v634 = vpack.c.b16 %v504, %v499
      %v635 = vpack.c.b16 %v505, %v500
      %v636 = vpack.c.b16 %v506, %v501
      %v637 = vpack.c.b16 %v507, %v502
      %v638 = vpack.c.b16 %v508, %v503
      %v639 = vpack.c.b16 %v514, %v509
      %v640 = vpack.c.b16 %v515, %v510
      %v641 = vpack.c.b16 %v516, %v511
      %v642 = vpack.c.b16 %v517, %v512
      %v643 = vpack.c.b16 %v518, %v513
      %v644 = vpack.c.b16 %v524, %v519
      %v645 = vpack.c.b16 %v525, %v520
      %v646 = vpack.c.b16 %v526, %v521
      %v647 = vpack.c.b16 %v527, %v522
      %v648 = vpack.c.b16 %v528, %v523
      %v649 = vpack.c.b16 %v534, %v529
      %v650 = vpack.c.b16 %v535, %v530
      %v651 = vpack.c.b16 %v536, %v531
      %v652 = vpack.c.b16 %v537, %v532
      %v653 = vpack.c.b16 %v538, %v533
      %v654 = vpack.c.b16 %v544, %v539
      %v655 = vpack.c.b16 %v545, %v540
      %v656 = vpack.c.b16 %v546, %v541
      %v657 = vpack.c.b16 %v547, %v542
      %v658 = vpack.c.b16 %v548, %v543
      %v659 = vpack.c.b16 %v554, %v549
      %v660 = vpack.c.b16 %v555, %v550
      %v661 = vpack.c.b16 %v556, %v551
      %v662 = vpack.c.b16 %v557, %v552
      %v663 = vpack.c.b16 %v558, %v553
      %v664 = vpack.c.b16 %v564, %v559
      %v665 = vpack.c.b16 %v565, %v560
      %v666 = vpack.c.b16 %v566, %v561
      %v667 = vpack.c.b16 %v567, %v562
      %v668 = vpack.c.b16 %v568, %v563
      %v669 = vpack.c.b16 %v574, %v569
      %v670 = vpack.c.b16 %v575, %v570
      %v671 = vpack.c.b16 %v576, %v571
      %v672 = vpack.c.b16 %v577, %v572
      %v673 = vpack.c.b16 %v578, %v573
      %v674 = vpack.c.b16 %v584, %v579
      %v675 = vpack.c.b16 %v585, %v580
      %v676 = vpack.c.b16 %v586, %v581
      %v677 = vpack.c.b16 %v587, %v582
      %v678 = vpack.c.b16 %v588, %v583
      %v679 = vpack.c.b16 %v594, %v589
      %v680 = vpack.c.b16 %v595, %v590
      %v681 = vpack.c.b16 %v596, %v591
      %v682 = vpack.c.b16 %v597, %v592
      %v683 = vpack.c.b16 %v598, %v593
      %v684 = vpack.c.b16 %v604, %v599
      %v685 = vpack.c.b16 %v605, %v600
      %v686 = vpack.c.b16 %v606, %v601
      %v687 = vpack.c.b16 %v607, %v602
      %v688 = vpack.c.b16 %v608, %v603
      %v825 = vunpack.c.l.b16 %v274
      %v826 = vunpack.c.l.b16 %v275
      %v827 = vunpack.c.l.b16 %v276
      %v828 = vunpack.c.l.b16 %v277
      %v829 = vunpack.c.l.b16 %v278
      %v830 = vunpack.c.l.b16 %v279
      %v831 = vunpack.c.l.b16 %v280
      %v832 = vunpack.c.l.b16 %v281
      %v833 = vunpack.c.l.b16 %v282
      %v834 = vunpack.c.l.b16 %v283
      %v835 = vunpack.c.l.b16 %v284
      %v836 = vunpack.c.l.b16 %v285
      %v837 = vunpack.c.l.b16 %v286
      %v838 = vunpack.c.l.b16 %v287
      %v839 = vunpack.c.l.b16 %v288
      %v840 = vunpack.c.l.b16 %v289
      %v841 = vunpack.c.l.b16 %v290
      %v842 = vunpack.c.l.b16 %v291
      %v843 = vunpack.c.l.b16 %v292
      %v844 = vunpack.c.l.b16 %v293
      %v845 = vunpack.c.l.b16 %v294
      %v846 = vunpack.c.l.b16 %v295
      %v847 = vunpack.c.l.b16 %v296
      %v848 = vunpack.c.l.b16 %v297
      %v849 = vunpack.c.l.b16 %v298
      %v850 = vunpack.c.l.b16 %v299
      %v851 = vunpack.c.l.b16 %v300
      %v852 = vunpack.c.l.b16 %v301
      %v853 = vunpack.c.l.b16 %v302
      %v854 = vunpack.c.l.b16 %v303
      %v855 = vunpack.c.l.b16 %v304
      %v856 = vunpack.c.l.b16 %v305
      %v857 = vunpack.c.l.b16 %v306
      %v858 = vunpack.c.l.b16 %v307
      %v859 = vunpack.c.l.b16 %v308
      %v860 = vunpack.c.l.b16 %v309
      %v861 = vunpack.c.l.b16 %v310
      %v862 = vunpack.c.l.b16 %v311
      %v863 = vunpack.c.l.b16 %v312
      %v864 = vunpack.c.l.b16 %v313
      %v865 = vunpack.c.l.b16 %v314
      %v866 = vunpack.c.l.b16 %v315
      %v867 = vunpack.c.l.b16 %v316
      %v868 = vunpack.c.l.b16 %v317
      %v869 = vunpack.c.l.b16 %v318
      %v870 = vunpack.c.l.b16 %v319
      %v871 = vunpack.c.l.b16 %v320
      %v872 = vunpack.c.l.b16 %v321
      %v873 = vunpack.c.l.b16 %v322
      %v874 = vunpack.c.l.b16 %v323
      %v875 = vunpack.c.l.b16 %v324
      %v876 = vunpack.c.l.b16 %v325
      %v877 = vunpack.c.l.b16 %v326
      %v878 = vunpack.c.l.b16 %v327
      %v879 = vunpack.c.l.b16 %v328
      %v880 = vunpack.c.l.b16 %v329
      %v881 = vunpack.c.l.b16 %v330
      %v882 = vunpack.c.l.b16 %v331
      %v883 = vunpack.c.l.b16 %v332
      %v884 = vunpack.c.l.b16 %v333
      %v885 = vunpack.c.l.b16 %v334
      %v886 = vunpack.c.l.b16 %v335
      %v887 = vunpack.c.l.b16 %v336
      %v888 = vunpack.c.l.b16 %v337
      %v889 = vunpack.c.l.b16 %v338
      %v890 = vunpack.c.l.b16 %v339
      %v891 = vunpack.c.l.b16 %v340
      %v892 = vunpack.c.l.b16 %v341
      %v893 = vunpack.c.l.b16 %v342
      %v894 = vunpack.c.l.b16 %v343
      %v895 = vunpack.c.l.b16 %v344
      %v896 = vunpack.c.l.b16 %v345
      %v897 = vpack.c.b16 %v826, %v825
      %v898 = vpack.c.b16 %v828, %v827
      %v899 = vpack.c.b16 %v830, %v829
      %v900 = vpack.c.b16 %v832, %v831
      %v901 = vpack.c.b16 %v834, %v833
      %v902 = vpack.c.b16 %v836, %v835
      %v903 = vpack.c.b16 %v838, %v837
      %v904 = vpack.c.b16 %v840, %v839
      %v905 = vpack.c.b16 %v842, %v841
      %v906 = vpack.c.b16 %v844, %v843
      %v907 = vpack.c.b16 %v846, %v845
      %v908 = vpack.c.b16 %v848, %v847
      %v909 = vpack.c.b16 %v850, %v849
      %v910 = vpack.c.b16 %v852, %v851
      %v911 = vpack.c.b16 %v854, %v853
      %v912 = vpack.c.b16 %v856, %v855
      %v913 = vpack.c.b16 %v858, %v857
      %v914 = vpack.c.b16 %v860, %v859
      %v915 = vpack.c.b16 %v862, %v861
      %v916 = vpack.c.b16 %v864, %v863
      %v917 = vpack.c.b16 %v866, %v865
      %v918 = vpack.c.b16 %v868, %v867
      %v919 = vpack.c.b16 %v870, %v869
      %v920 = vpack.c.b16 %v872, %v871
      %v921 = vpack.c.b16 %v874, %v873
      %v922 = vpack.c.b16 %v876, %v875
      %v923 = vpack.c.b16 %v878, %v877
      %v924 = vpack.c.b16 %v880, %v879
      %v925 = vpack.c.b16 %v882, %v881
      %v926 = vpack.c.b16 %v884, %v883
      %v927 = vpack.c.b16 %v886, %v885
      %v928 = vpack.c.b16 %v888, %v887
      %v929 = vpack.c.b16 %v890, %v889
      %v930 = vpack.c.b16 %v892, %v891
      %v931 = vpack.c.b16 %v894, %v893
      %v932 = vpack.c.b16 %v896, %v895
      %vm969 = vcmask 523264
      %v971 = vsel %vm969, %v613, 0
      %v974 = vsel %vm969, %v618, 0
      %v977 = vsel %vm969, %v623, 0
      %v980 = vsel %vm969, %v628, 0
      %v983 = vsel %vm969, %v633, 0
      %v986 = vsel %vm969, %v638, 0
      %v989 = vsel %vm969, %v643, 0
      %v992 = vsel %vm969, %v648, 0
      %v995 = vsel %vm969, %v653, 0
      %v998 = vsel %vm969, %v658, 0
      %v1001 = vsel %vm969, %v663, 0
      %v1004 = vsel %vm969, %v668, 0
      %v1007 = vsel %vm969, %v673, 0
      %v1010 = vsel %vm969, %v678, 0
      %v1013 = vsel %vm969, %v683, 0
      %v1016 = vsel %vm969, %v688, 0
      %1018 = vmatprep.subr.bf16.mxu0 0
      %1019 = vmatpush1.bf16.msra.mxu0 %v897
      %1020 = vmatprep.subr.bf16.mxu0 0
      %1021 = vmatpush1.bf16.msra.mxu0 %v898
      %1022 = vmatprep.subr.bf16.mxu0 0
      %1023 = vmatpush1.bf16.msra.mxu0 %v899
      %1024 = vmatprep.subr.bf16.mxu0 0
      %1025 = vmatpush1.bf16.msra.mxu0 %v900
      %1026 = vmatprep.subr.bf16.mxu0 0
      %1027 = vmatpush1.bf16.msra.mxu0 %v901
      %1028 = vmatprep.subr.bf16.mxu0 0
      %1029 = vmatpush1.bf16.msra.mxu0 %v902
      %1030 = vmatprep.subr.bf16.mxu0 0
      %1031 = vmatpush1.bf16.msra.mxu0 %v903
      %1032 = vmatprep.subr.bf16.mxu0 0
      %1033 = vmatpush1.bf16.msra.mxu0 %v904
      %1034 = vmatprep.subr.bf16.mxu0 0
      %1035 = vmatpush1.bf16.msra.mxu0 %v905
      %1036 = vmatprep.subr.bf16.mxu0 0
      %1037 = vmatpush1.bf16.msra.mxu0 %v906
      %1038 = vmatprep.subr.bf16.mxu0 0
      %1039 = vmatpush1.bf16.msra.mxu0 %v907
      %1040 = vmatprep.subr.bf16.mxu0 0
      %1041 = vmatpush1.bf16.msra.mxu0 %v908
      %1042 = vmatprep.subr.bf16.mxu0 0
      %1043 = vmatpush1.bf16.msra.mxu0 %v909
      %1044 = vmatprep.subr.bf16.mxu0 0
      %1045 = vmatpush1.bf16.msra.mxu0 %v910
      %1046 = vmatprep.subr.bf16.mxu0 0
      %1047 = vmatpush1.bf16.msra.mxu0 %v911
      %1048 = vmatprep.subr.bf16.mxu0 0
      %1049 = vmatpush1.bf16.msra.mxu0 %v912
      %1050 = vmatprep.mubr.bf16.mxu0 %v610
      %1051 = vmatmul.mubr.bf16.gmra.mrb[0].mxu0 %v609
      %v1052 = vpop.f32.mrb[0].mxu0
      %v1053 = vadd.f32 %v351, %v1052
      %v1054 = vpop.f32.mrb[0].mxu0
      %v1055 = vpop.f32.mrb[0].mxu0
      %v1056 = vadd.f32 %v351, %v1055
      %v1057 = vpop.f32.mrb[0].mxu0
      %1058 = vmatprep.mubr.bf16.mxu0 %v615
      %1059 = vmatmul.mubr.bf16.gmra.mrb[0].mxu0 %v614
      %v1060 = vpop.f32.mrb[0].mxu0
      %v1061 = vadd.f32 %v351, %v1060
      %v1062 = vpop.f32.mrb[0].mxu0
      %v1063 = vpop.f32.mrb[0].mxu0
      %v1064 = vadd.f32 %v351, %v1063
      %v1065 = vpop.f32.mrb[0].mxu0
      %1066 = vmatprep.mubr.bf16.mxu0 %v620
      %1067 = vmatmul.mubr.bf16.gmra.mrb[0].mxu0 %v619
      %v1068 = vpop.f32.mrb[0].mxu0
      %v1069 = vadd.f32 %v351, %v1068
      %v1070 = vpop.f32.mrb[0].mxu0
      %v1071 = vpop.f32.mrb[0].mxu0
      %v1072 = vadd.f32 %v351, %v1071
      %v1073 = vpop.f32.mrb[0].mxu0
      %1074 = vmatprep.mubr.bf16.mxu0 %v625
      %1075 = vmatmul.mubr.bf16.gmra.mrb[0].mxu0 %v624
      %v1076 = vpop.f32.mrb[0].mxu0
      %v1077 = vadd.f32 %v351, %v1076
      %v1078 = vpop.f32.mrb[0].mxu0
      %v1079 = vpop.f32.mrb[0].mxu0
      %v1080 = vadd.f32 %v351, %v1079
      %v1081 = vpop.f32.mrb[0].mxu0
      %1082 = vmatprep.mubr.bf16.mxu0 %v630
      %1083 = vmatmul.mubr.bf16.gmra.mrb[0].mxu0 %v629
      %v1084 = vpop.f32.mrb[0].mxu0
      %v1085 = vadd.f32 %v351, %v1084
      %v1086 = vpop.f32.mrb[0].mxu0
      %v1087 = vpop.f32.mrb[0].mxu0
      %v1088 = vadd.f32 %v351, %v1087
      %v1089 = vpop.f32.mrb[0].mxu0
      %1090 = vmatprep.mubr.bf16.mxu0 %v635
      %1091 = vmatmul.mubr.bf16.gmra.mrb[0].mxu0 %v634
      %v1092 = vpop.f32.mrb[0].mxu0
      %v1093 = vadd.f32 %v351, %v1092
      %v1094 = vpop.f32.mrb[0].mxu0
      %v1095 = vpop.f32.mrb[0].mxu0
      %v1096 = vadd.f32 %v351, %v1095
      %v1097 = vpop.f32.mrb[0].mxu0
      %1098 = vmatprep.mubr.bf16.mxu0 %v640
      %1099 = vmatmul.mubr.bf16.gmra.mrb[0].mxu0 %v639
      %v1100 = vpop.f32.mrb[0].mxu0
      %v1101 = vadd.f32 %v351, %v1100
      %v1102 = vpop.f32.mrb[0].mxu0
      %v1103 = vpop.f32.mrb[0].mxu0
      %v1104 = vadd.f32 %v351, %v1103
      %v1105 = vpop.f32.mrb[0].mxu0
      %1106 = vmatprep.mubr.bf16.mxu0 %v645
      %1107 = vmatmul.mubr.bf16.gmra.mrb[0].mxu0 %v644
      %v1108 = vpop.f32.mrb[0].mxu0
      %v1109 = vadd.f32 %v351, %v1108
      %v1110 = vpop.f32.mrb[0].mxu0
      %v1111 = vpop.f32.mrb[0].mxu0
      %v1112 = vadd.f32 %v351, %v1111
      %v1113 = vpop.f32.mrb[0].mxu0
      %1114 = vmatprep.mubr.bf16.mxu0 %v650
      %1115 = vmatmul.mubr.bf16.gmra.mrb[0].mxu0 %v649
      %v1116 = vpop.f32.mrb[0].mxu0
      %v1117 = vadd.f32 %v351, %v1116
      %v1118 = vpop.f32.mrb[0].mxu0
      %v1119 = vpop.f32.mrb[0].mxu0
      %v1120 = vadd.f32 %v351, %v1119
      %v1121 = vpop.f32.mrb[0].mxu0
      %1122 = vmatprep.mubr.bf16.mxu0 %v655
      %1123 = vmatmul.mubr.bf16.gmra.mrb[0].mxu0 %v654
      %v1124 = vpop.f32.mrb[0].mxu0
      %v1125 = vadd.f32 %v351, %v1124
      %v1126 = vpop.f32.mrb[0].mxu0
      %v1127 = vpop.f32.mrb[0].mxu0
      %v1128 = vadd.f32 %v351, %v1127
      %v1129 = vpop.f32.mrb[0].mxu0
      %1130 = vmatprep.mubr.bf16.mxu0 %v660
      %1131 = vmatmul.mubr.bf16.gmra.mrb[0].mxu0 %v659
      %v1132 = vpop.f32.mrb[0].mxu0
      %v1133 = vadd.f32 %v351, %v1132
      %v1134 = vpop.f32.mrb[0].mxu0
      %v1135 = vpop.f32.mrb[0].mxu0
      %v1136 = vadd.f32 %v351, %v1135
      %v1137 = vpop.f32.mrb[0].mxu0
      %1138 = vmatprep.mubr.bf16.mxu0 %v665
      %1139 = vmatmul.mubr.bf16.gmra.mrb[0].mxu0 %v664
      %v1140 = vpop.f32.mrb[0].mxu0
      %v1141 = vadd.f32 %v351, %v1140
      %v1142 = vpop.f32.mrb[0].mxu0
      %v1143 = vpop.f32.mrb[0].mxu0
      %v1144 = vadd.f32 %v351, %v1143
      %v1145 = vpop.f32.mrb[0].mxu0
      %1146 = vmatprep.mubr.bf16.mxu0 %v670
      %1147 = vmatmul.mubr.bf16.gmra.mrb[0].mxu0 %v669
      %v1148 = vpop.f32.mrb[0].mxu0
      %v1149 = vadd.f32 %v351, %v1148
      %v1150 = vpop.f32.mrb[0].mxu0
      %v1151 = vpop.f32.mrb[0].mxu0
      %v1152 = vadd.f32 %v351, %v1151
      %v1153 = vpop.f32.mrb[0].mxu0
      %1154 = vmatprep.mubr.bf16.mxu0 %v675
      %1155 = vmatmul.mubr.bf16.gmra.mrb[0].mxu0 %v674
      %v1156 = vpop.f32.mrb[0].mxu0
      %v1157 = vadd.f32 %v351, %v1156
      %v1158 = vpop.f32.mrb[0].mxu0
      %v1159 = vpop.f32.mrb[0].mxu0
      %v1160 = vadd.f32 %v351, %v1159
      %v1161 = vpop.f32.mrb[0].mxu0
      %1162 = vmatprep.mubr.bf16.mxu0 %v680
      %1163 = vmatmul.mubr.bf16.gmra.mrb[0].mxu0 %v679
      %v1164 = vpop.f32.mrb[0].mxu0
      %v1165 = vadd.f32 %v351, %v1164
      %v1166 = vpop.f32.mrb[0].mxu0
      %v1167 = vpop.f32.mrb[0].mxu0
      %v1168 = vadd.f32 %v351, %v1167
      %v1169 = vpop.f32.mrb[0].mxu0
      %1170 = vmatprep.mubr.bf16.mxu0 %v685
      %1171 = vmatmul.mubr.bf16.gmra.mrb[0].mxu0 %v684
      %v1172 = vpop.f32.mrb[0].mxu0
      %v1173 = vadd.f32 %v351, %v1172
      %v1174 = vpop.f32.mrb[0].mxu0
      %v1175 = vpop.f32.mrb[0].mxu0
      %v1176 = vadd.f32 %v351, %v1175
      %v1177 = vpop.f32.mrb[0].mxu0
      %1178 = vdwg.mxu0
      %1179 = vmatprep.subr.bf16.mxu0 0
      %1180 = vmatpush1.bf16.msra.mxu0 %v913
      %1181 = vmatprep.subr.bf16.mxu0 0
      %1182 = vmatpush1.bf16.msra.mxu0 %v914
      %1183 = vmatprep.subr.bf16.mxu0 0
      %1184 = vmatpush1.bf16.msra.mxu0 %v915
      %1185 = vmatprep.subr.bf16.mxu0 0
      %1186 = vmatpush1.bf16.msra.mxu0 %v916
      %1187 = vmatprep.subr.bf16.mxu0 0
      %1188 = vmatpush1.bf16.msra.mxu0 %v917
      %1189 = vmatprep.subr.bf16.mxu0 0
      %1190 = vmatpush1.bf16.msra.mxu0 %v918
      %1191 = vmatprep.subr.bf16.mxu0 0
      %1192 = vmatpush1.bf16.msra.mxu0 %v919
      %1193 = vmatprep.subr.bf16.mxu0 0
      %1194 = vmatpush1.bf16.msra.mxu0 %v920
      %1195 = vmatprep.subr.bf16.mxu0 0
      %1196 = vmatpush1.bf16.msra.mxu0 %v921
      %1197 = vmatprep.subr.bf16.mxu0 0
      %1198 = vmatpush1.bf16.msra.mxu0 %v922
      %1199 = vmatprep.subr.bf16.mxu0 0
      %1200 = vmatpush1.bf16.msra.mxu0 %v923
      %1201 = vmatprep.subr.bf16.mxu0 0
      %1202 = vmatpush1.bf16.msra.mxu0 %v924
      %1203 = vmatprep.subr.bf16.mxu0 0
      %1204 = vmatpush1.bf16.msra.mxu0 %v925
      %1205 = vmatprep.subr.bf16.mxu0 0
      %1206 = vmatpush1.bf16.msra.mxu0 %v926
      %1207 = vmatprep.subr.bf16.mxu0 0
      %1208 = vmatpush1.bf16.msra.mxu0 %v927
      %1209 = vmatprep.subr.bf16.mxu0 0
      %1210 = vmatpush1.bf16.msra.mxu0 %v928
      %1211 = vmatprep.mubr.bf16.mxu0 %v612
      %1212 = vmatmul.mubr.bf16.gmra.mrb[0].mxu0 %v611
      %v1213 = vpop.f32.mrb[0].mxu0
      %v1214 = vadd.f32 %v1053, %v1213
      %v1215 = vpop.f32.mrb[0].mxu0
      %v1216 = vpop.f32.mrb[0].mxu0
      %v1217 = vadd.f32 %v1056, %v1216
      %v1218 = vpop.f32.mrb[0].mxu0
      %1219 = vmatprep.mubr.bf16.mxu0 %v617
      %1220 = vmatmul.mubr.bf16.gmra.mrb[0].mxu0 %v616
      %v1221 = vpop.f32.mrb[0].mxu0
      %v1222 = vadd.f32 %v1061, %v1221
      %v1223 = vpop.f32.mrb[0].mxu0
      %v1224 = vpop.f32.mrb[0].mxu0
      %v1225 = vadd.f32 %v1064, %v1224
      %v1226 = vpop.f32.mrb[0].mxu0
      %1227 = vmatprep.mubr.bf16.mxu0 %v622
      %1228 = vmatmul.mubr.bf16.gmra.mrb[0].mxu0 %v621
      %v1229 = vpop.f32.mrb[0].mxu0
      %v1230 = vadd.f32 %v1069, %v1229
      %v1231 = vpop.f32.mrb[0].mxu0
      %v1232 = vpop.f32.mrb[0].mxu0
      %v1233 = vadd.f32 %v1072, %v1232
      %v1234 = vpop.f32.mrb[0].mxu0
      %1235 = vmatprep.mubr.bf16.mxu0 %v627
      %1236 = vmatmul.mubr.bf16.gmra.mrb[0].mxu0 %v626
      %v1237 = vpop.f32.mrb[0].mxu0
      %v1238 = vadd.f32 %v1077, %v1237
      %v1239 = vpop.f32.mrb[0].mxu0
      %v1240 = vpop.f32.mrb[0].mxu0
      %v1241 = vadd.f32 %v1080, %v1240
      %v1242 = vpop.f32.mrb[0].mxu0
      %1243 = vmatprep.mubr.bf16.mxu0 %v632
      %1244 = vmatmul.mubr.bf16.gmra.mrb[0].mxu0 %v631
      %v1245 = vpop.f32.mrb[0].mxu0
      %v1246 = vadd.f32 %v1085, %v1245
      %v1247 = vpop.f32.mrb[0].mxu0
      %v1248 = vpop.f32.mrb[0].mxu0
      %v1249 = vadd.f32 %v1088, %v1248
      %v1250 = vpop.f32.mrb[0].mxu0
      %1251 = vmatprep.mubr.bf16.mxu0 %v637
      %1252 = vmatmul.mubr.bf16.gmra.mrb[0].mxu0 %v636
      %v1253 = vpop.f32.mrb[0].mxu0
      %v1254 = vadd.f32 %v1093, %v1253
      %v1255 = vpop.f32.mrb[0].mxu0
      %v1256 = vpop.f32.mrb[0].mxu0
      %v1257 = vadd.f32 %v1096, %v1256
      %v1258 = vpop.f32.mrb[0].mxu0
      %1259 = vmatprep.mubr.bf16.mxu0 %v642
      %1260 = vmatmul.mubr.bf16.gmra.mrb[0].mxu0 %v641
      %v1261 = vpop.f32.mrb[0].mxu0
      %v1262 = vadd.f32 %v1101, %v1261
      %v1263 = vpop.f32.mrb[0].mxu0
      %v1264 = vpop.f32.mrb[0].mxu0
      %v1265 = vadd.f32 %v1104, %v1264
      %v1266 = vpop.f32.mrb[0].mxu0
      %1267 = vmatprep.mubr.bf16.mxu0 %v647
      %1268 = vmatmul.mubr.bf16.gmra.mrb[0].mxu0 %v646
      %v1269 = vpop.f32.mrb[0].mxu0
      %v1270 = vadd.f32 %v1109, %v1269
      %v1271 = vpop.f32.mrb[0].mxu0
      %v1272 = vpop.f32.mrb[0].mxu0
      %v1273 = vadd.f32 %v1112, %v1272
      %v1274 = vpop.f32.mrb[0].mxu0
      %1275 = vmatprep.mubr.bf16.mxu0 %v652
      %1276 = vmatmul.mubr.bf16.gmra.mrb[0].mxu0 %v651
      %v1277 = vpop.f32.mrb[0].mxu0
      %v1278 = vadd.f32 %v1117, %v1277
      %v1279 = vpop.f32.mrb[0].mxu0
      %v1280 = vpop.f32.mrb[0].mxu0
      %v1281 = vadd.f32 %v1120, %v1280
      %v1282 = vpop.f32.mrb[0].mxu0
      %1283 = vmatprep.mubr.bf16.mxu0 %v657
      %1284 = vmatmul.mubr.bf16.gmra.mrb[0].mxu0 %v656
      %v1285 = vpop.f32.mrb[0].mxu0
      %v1286 = vadd.f32 %v1125, %v1285
      %v1287 = vpop.f32.mrb[0].mxu0
      %v1288 = vpop.f32.mrb[0].mxu0
      %v1289 = vadd.f32 %v1128, %v1288
      %v1290 = vpop.f32.mrb[0].mxu0
      %1291 = vmatprep.mubr.bf16.mxu0 %v662
      %1292 = vmatmul.mubr.bf16.gmra.mrb[0].mxu0 %v661
      %v1293 = vpop.f32.mrb[0].mxu0
      %v1294 = vadd.f32 %v1133, %v1293
      %v1295 = vpop.f32.mrb[0].mxu0
      %v1296 = vpop.f32.mrb[0].mxu0
      %v1297 = vadd.f32 %v1136, %v1296
      %v1298 = vpop.f32.mrb[0].mxu0
      %1299 = vmatprep.mubr.bf16.mxu0 %v667
      %1300 = vmatmul.mubr.bf16.gmra.mrb[0].mxu0 %v666
      %v1301 = vpop.f32.mrb[0].mxu0
      %v1302 = vadd.f32 %v1141, %v1301
      %v1303 = vpop.f32.mrb[0].mxu0
      %v1304 = vpop.f32.mrb[0].mxu0
      %v1305 = vadd.f32 %v1144, %v1304
      %v1306 = vpop.f32.mrb[0].mxu0
      %1307 = vmatprep.mubr.bf16.mxu0 %v672
      %1308 = vmatmul.mubr.bf16.gmra.mrb[0].mxu0 %v671
      %v1309 = vpop.f32.mrb[0].mxu0
      %v1310 = vadd.f32 %v1149, %v1309
      %v1311 = vpop.f32.mrb[0].mxu0
      %v1312 = vpop.f32.mrb[0].mxu0
      %v1313 = vadd.f32 %v1152, %v1312
      %v1314 = vpop.f32.mrb[0].mxu0
      %1315 = vmatprep.mubr.bf16.mxu0 %v677
      %1316 = vmatmul.mubr.bf16.gmra.mrb[0].mxu0 %v676
      %v1317 = vpop.f32.mrb[0].mxu0
      %v1318 = vadd.f32 %v1157, %v1317
      %v1319 = vpop.f32.mrb[0].mxu0
      %v1320 = vpop.f32.mrb[0].mxu0
      %v1321 = vadd.f32 %v1160, %v1320
      %v1322 = vpop.f32.mrb[0].mxu0
      %1323 = vmatprep.mubr.bf16.mxu0 %v682
      %1324 = vmatmul.mubr.bf16.gmra.mrb[0].mxu0 %v681
      %v1325 = vpop.f32.mrb[0].mxu0
      %v1326 = vadd.f32 %v1165, %v1325
      %v1327 = vpop.f32.mrb[0].mxu0
      %v1328 = vpop.f32.mrb[0].mxu0
      %v1329 = vadd.f32 %v1168, %v1328
      %v1330 = vpop.f32.mrb[0].mxu0
      %1331 = vmatprep.mubr.bf16.mxu0 %v687
      %1332 = vmatmul.mubr.bf16.gmra.mrb[0].mxu0 %v686
      %v1333 = vpop.f32.mrb[0].mxu0
      %v1334 = vadd.f32 %v1173, %v1333
      %v1335 = vpop.f32.mrb[0].mxu0
      %v1336 = vpop.f32.mrb[0].mxu0
      %v1337 = vadd.f32 %v1176, %v1336
      %v1338 = vpop.f32.mrb[0].mxu0
      %1339 = vdwg.mxu0
      %1340 = vmatprep.subr.bf16.mxu0 0
      %1341 = vmatpush1.bf16.msra.mxu0 %v929
      %1342 = vmatprep.subr.bf16.mxu0 0
      %1343 = vmatpush1.bf16.msra.mxu0 %v930
      %1344 = vmatprep.subr.bf16.mxu0 0
      %1345 = vmatpush1.bf16.msra.mxu0 %v931
      %1346 = vmatprep.subr.bf16.mxu0 0
      %1347 = vmatpush1.bf16.msra.mxu0 %v932
      %1348 = vmatprep.subr.bf16.mxu0 0
      %1349 = vmatpush1.bf16.msra.mxu0 0
      %1350 = vmatprep.subr.bf16.mxu0 0
      %1351 = vmatpush1.bf16.msra.mxu0 0
      %1352 = vmatprep.subr.bf16.mxu0 0
      %1353 = vmatpush1.bf16.msra.mxu0 0
      %1354 = vmatprep.subr.bf16.mxu0 0
      %1355 = vmatpush1.bf16.msra.mxu0 0
      %1356 = vmatprep.subr.bf16.mxu0 0
      %1357 = vmatpush1.bf16.msra.mxu0 0
      %1358 = vmatprep.subr.bf16.mxu0 0
      %1359 = vmatpush1.bf16.msra.mxu0 0
      %1360 = vmatprep.subr.bf16.mxu0 0
      %1361 = vmatpush1.bf16.msra.mxu0 0
      %1362 = vmatprep.subr.bf16.mxu0 0
      %1363 = vmatpush1.bf16.msra.mxu0 0
      %1364 = vmatprep.subr.bf16.mxu0 0
      %1365 = vmatpush1.bf16.msra.mxu0 0
      %1366 = vmatprep.subr.bf16.mxu0 0
      %1367 = vmatpush1.bf16.msra.mxu0 0
      %1368 = vmatprep.subr.bf16.mxu0 0
      %1369 = vmatpush1.bf16.msra.mxu0 0
      %1370 = vmatprep.subr.bf16.mxu0 0
      %1371 = vmatpush1.bf16.msra.mxu0 0
      %1372 = vmatprep.mubr.bf16.mxu0 0
      %1373 = vmatmul.mubr.bf16.gmra.mrb[0].mxu0 %v971
      %v1374 = vpop.f32.mrb[0].mxu0
      %v1375 = vadd.f32 %v1214, %v1374
      %v1376 = vpop.f32.mrb[0].mxu0
      %v1377 = vpop.f32.mrb[0].mxu0
      %v1378 = vadd.f32 %v1217, %v1377
      %v1379 = vpop.f32.mrb[0].mxu0
      %1380 = vmatprep.mubr.bf16.mxu0 0
      %1381 = vmatmul.mubr.bf16.gmra.mrb[0].mxu0 %v974
      %v1382 = vpop.f32.mrb[0].mxu0
      %v1383 = vadd.f32 %v1222, %v1382
      %v1384 = vpop.f32.mrb[0].mxu0
      %v1385 = vpop.f32.mrb[0].mxu0
      %v1386 = vadd.f32 %v1225, %v1385
      %v1387 = vpop.f32.mrb[0].mxu0
      %1388 = vmatprep.mubr.bf16.mxu0 0
      %1389 = vmatmul.mubr.bf16.gmra.mrb[0].mxu0 %v977
      %v1390 = vpop.f32.mrb[0].mxu0
      %v1391 = vadd.f32 %v1230, %v1390
      %v1392 = vpop.f32.mrb[0].mxu0
      %v1393 = vpop.f32.mrb[0].mxu0
      %v1394 = vadd.f32 %v1233, %v1393
      %v1395 = vpop.f32.mrb[0].mxu0
      %1396 = vmatprep.mubr.bf16.mxu0 0
      %1397 = vmatmul.mubr.bf16.gmra.mrb[0].mxu0 %v980
      %v1398 = vpop.f32.mrb[0].mxu0
      %v1399 = vadd.f32 %v1238, %v1398
      %v1400 = vpop.f32.mrb[0].mxu0
      %v1401 = vpop.f32.mrb[0].mxu0
      %v1402 = vadd.f32 %v1241, %v1401
      %v1403 = vpop.f32.mrb[0].mxu0
      %1404 = vmatprep.mubr.bf16.mxu0 0
      %1405 = vmatmul.mubr.bf16.gmra.mrb[0].mxu0 %v983
      %v1406 = vpop.f32.mrb[0].mxu0
      %v1407 = vadd.f32 %v1246, %v1406
      %v1408 = vpop.f32.mrb[0].mxu0
      %v1409 = vpop.f32.mrb[0].mxu0
      %v1410 = vadd.f32 %v1249, %v1409
      %v1411 = vpop.f32.mrb[0].mxu0
      %1412 = vmatprep.mubr.bf16.mxu0 0
      %1413 = vmatmul.mubr.bf16.gmra.mrb[0].mxu0 %v986
      %v1414 = vpop.f32.mrb[0].mxu0
      %v1415 = vadd.f32 %v1254, %v1414
      %v1416 = vpop.f32.mrb[0].mxu0
      %v1417 = vpop.f32.mrb[0].mxu0
      %v1418 = vadd.f32 %v1257, %v1417
      %v1419 = vpop.f32.mrb[0].mxu0
      %1420 = vmatprep.mubr.bf16.mxu0 0
      %1421 = vmatmul.mubr.bf16.gmra.mrb[0].mxu0 %v989
      %v1422 = vpop.f32.mrb[0].mxu0
      %v1423 = vadd.f32 %v1262, %v1422
      %v1424 = vpop.f32.mrb[0].mxu0
      %v1425 = vpop.f32.mrb[0].mxu0
      %v1426 = vadd.f32 %v1265, %v1425
      %v1427 = vpop.f32.mrb[0].mxu0
      %1428 = vmatprep.mubr.bf16.mxu0 0
      %1429 = vmatmul.mubr.bf16.gmra.mrb[0].mxu0 %v992
      %v1430 = vpop.f32.mrb[0].mxu0
      %v1431 = vadd.f32 %v1270, %v1430
      %v1432 = vpop.f32.mrb[0].mxu0
      %v1433 = vpop.f32.mrb[0].mxu0
      %v1434 = vadd.f32 %v1273, %v1433
      %v1435 = vpop.f32.mrb[0].mxu0
      %1436 = vmatprep.mubr.bf16.mxu0 0
      %1437 = vmatmul.mubr.bf16.gmra.mrb[0].mxu0 %v995
      %v1438 = vpop.f32.mrb[0].mxu0
      %v1439 = vadd.f32 %v1278, %v1438
      %v1440 = vpop.f32.mrb[0].mxu0
      %v1441 = vpop.f32.mrb[0].mxu0
      %v1442 = vadd.f32 %v1281, %v1441
      %v1443 = vpop.f32.mrb[0].mxu0
      %1444 = vmatprep.mubr.bf16.mxu0 0
      %1445 = vmatmul.mubr.bf16.gmra.mrb[0].mxu0 %v998
      %v1446 = vpop.f32.mrb[0].mxu0
      %v1447 = vadd.f32 %v1286, %v1446
      %v1448 = vpop.f32.mrb[0].mxu0
      %v1449 = vpop.f32.mrb[0].mxu0
      %v1450 = vadd.f32 %v1289, %v1449
      %v1451 = vpop.f32.mrb[0].mxu0
      %1452 = vmatprep.mubr.bf16.mxu0 0
      %1453 = vmatmul.mubr.bf16.gmra.mrb[0].mxu0 %v1001
      %v1454 = vpop.f32.mrb[0].mxu0
      %v1455 = vadd.f32 %v1294, %v1454
      %v1456 = vpop.f32.mrb[0].mxu0
      %v1457 = vpop.f32.mrb[0].mxu0
      %v1458 = vadd.f32 %v1297, %v1457
      %v1459 = vpop.f32.mrb[0].mxu0
      %1460 = vmatprep.mubr.bf16.mxu0 0
      %1461 = vmatmul.mubr.bf16.gmra.mrb[0].mxu0 %v1004
      %v1462 = vpop.f32.mrb[0].mxu0
      %v1463 = vadd.f32 %v1302, %v1462
      %v1464 = vpop.f32.mrb[0].mxu0
      %v1465 = vpop.f32.mrb[0].mxu0
      %v1466 = vadd.f32 %v1305, %v1465
      %v1467 = vpop.f32.mrb[0].mxu0
      %1468 = vmatprep.mubr.bf16.mxu0 0
      %1469 = vmatmul.mubr.bf16.gmra.mrb[0].mxu0 %v1007
      %v1470 = vpop.f32.mrb[0].mxu0
      %v1471 = vadd.f32 %v1310, %v1470
      %v1472 = vpop.f32.mrb[0].mxu0
      %v1473 = vpop.f32.mrb[0].mxu0
      %v1474 = vadd.f32 %v1313, %v1473
      %v1475 = vpop.f32.mrb[0].mxu0
      %1476 = vmatprep.mubr.bf16.mxu0 0
      %1477 = vmatmul.mubr.bf16.gmra.mrb[0].mxu0 %v1010
      %v1478 = vpop.f32.mrb[0].mxu0
      %v1479 = vadd.f32 %v1318, %v1478
      %v1480 = vpop.f32.mrb[0].mxu0
      %v1481 = vpop.f32.mrb[0].mxu0
      %v1482 = vadd.f32 %v1321, %v1481
      %v1483 = vpop.f32.mrb[0].mxu0
      %1484 = vmatprep.mubr.bf16.mxu0 0
      %1485 = vmatmul.mubr.bf16.gmra.mrb[0].mxu0 %v1013
      %v1486 = vpop.f32.mrb[0].mxu0
      %v1487 = vadd.f32 %v1326, %v1486
      %v1488 = vpop.f32.mrb[0].mxu0
      %v1489 = vpop.f32.mrb[0].mxu0
      %v1490 = vadd.f32 %v1329, %v1489
      %v1491 = vpop.f32.mrb[0].mxu0
      %1492 = vmatprep.mubr.bf16.mxu0 0
      %1493 = vmatmul.mubr.bf16.gmra.mrb[0].mxu0 %v1016
      %v1494 = vpop.f32.mrb[0].mxu0
      %v1495 = vadd.f32 %v1334, %v1494
      %v1496 = vpop.f32.mrb[0].mxu0
      %v1497 = vpop.f32.mrb[0].mxu0
      %v1498 = vadd.f32 %v1337, %v1497
      %v1499 = vpop.f32.mrb[0].mxu0
      %1500 = vdwg.mxu0
      %v1501 = vmax.f32 %v1375, 0.0
      %v1502 = vmax.f32 %v1378, 0.0
      %v1503 = vmax.f32 %v1383, 0.0
      %v1504 = vmax.f32 %v1386, 0.0
      %v1505 = vmax.f32 %v1391, 0.0
      %v1506 = vmax.f32 %v1394, 0.0
      %v1507 = vmax.f32 %v1399, 0.0
      %v1508 = vmax.f32 %v1402, 0.0
      %v1509 = vmax.f32 %v1407, 0.0
      %v1510 = vmax.f32 %v1410, 0.0
      %v1511 = vmax.f32 %v1415, 0.0
      %v1512 = vmax.f32 %v1418, 0.0
      %v1513 = vmax.f32 %v1423, 0.0
      %v1514 = vmax.f32 %v1426, 0.0
      %v1515 = vmax.f32 %v1431, 0.0
      %v1516 = vmax.f32 %v1434, 0.0
      %v1517 = vmax.f32 %v1439, 0.0
      %v1518 = vmax.f32 %v1442, 0.0
      %v1519 = vmax.f32 %v1447, 0.0
      %v1520 = vmax.f32 %v1450, 0.0
      %v1521 = vmax.f32 %v1455, 0.0
      %v1522 = vmax.f32 %v1458, 0.0
      %v1523 = vmax.f32 %v1463, 0.0
      %v1524 = vmax.f32 %v1466, 0.0
      %v1525 = vmax.f32 %v1471, 0.0
      %v1526 = vmax.f32 %v1474, 0.0
      %v1527 = vmax.f32 %v1479, 0.0
      %v1528 = vmax.f32 %v1482, 0.0
      %v1529 = vmax.f32 %v1487, 0.0
      %v1530 = vmax.f32 %v1490, 0.0
      %v1531 = vmax.f32 %v1495, 0.0
      %v1532 = vmax.f32 %v1498, 0.0
      %vm1533 = vcmask 261120
      %1534 = vst.msk [vmem:[%s175] sm:$0xff] %vm1533, %v1501
      %1535 = vst.msk [vmem:[%s175 + $0x8] sm:$0xff] %vm1533, %v1502
      %1536 = vst.msk [vmem:[%s175 + $0x10] sm:$0xff] %vm1533, %v1503
      %1537 = vst.msk [vmem:[%s175 + $0x18] sm:$0xff] %vm1533, %v1504
      %1538 = vst.msk [vmem:[%s175 + $0x20] sm:$0xff] %vm1533, %v1505
      %1539 = vst.msk [vmem:[%s175 + $0x28] sm:$0xff] %vm1533, %v1506
      %1540 = vst.msk [vmem:[%s175 + $0x30] sm:$0xff] %vm1533, %v1507
      %1541 = vst.msk [vmem:[%s175 + $0x38] sm:$0xff] %vm1533, %v1508
      %1542 = vst.msk [vmem:[%s175 + $0x40] sm:$0xff] %vm1533, %v1509
      %1543 = vst.msk [vmem:[%s175 + $0x48] sm:$0xff] %vm1533, %v1510
      %1544 = vst.msk [vmem:[%s175 + $0x50] sm:$0xff] %vm1533, %v1511
      %1545 = vst.msk [vmem:[%s175 + $0x58] sm:$0xff] %vm1533, %v1512
      %1546 = vst.msk [vmem:[%s175 + $0x60] sm:$0xff] %vm1533, %v1513
      %1547 = vst.msk [vmem:[%s175 + $0x68] sm:$0xff] %vm1533, %v1514
      %1548 = vst.msk [vmem:[%s175 + $0x70] sm:$0xff] %vm1533, %v1515
      %1549 = vst.msk [vmem:[%s175 + $0x78] sm:$0xff] %vm1533, %v1516
      %1550 = vst.msk [vmem:[%s175 + $0x80] sm:$0xff] %vm1533, %v1517
      %1551 = vst.msk [vmem:[%s175 + $0x88] sm:$0xff] %vm1533, %v1518
      %1552 = vst.msk [vmem:[%s175 + $0x90] sm:$0xff] %vm1533, %v1519
      %1553 = vst.msk [vmem:[%s175 + $0x98] sm:$0xff] %vm1533, %v1520
      %1554 = vst.msk [vmem:[%s175 + $0xa0] sm:$0xff] %vm1533, %v1521
      %1555 = vst.msk [vmem:[%s175 + $0xa8] sm:$0xff] %vm1533, %v1522
      %1556 = vst.msk [vmem:[%s175 + $0xb0] sm:$0xff] %vm1533, %v1523
      %1557 = vst.msk [vmem:[%s175 + $0xb8] sm:$0xff] %vm1533, %v1524
      %1558 = vst.msk [vmem:[%s175 + $0xc0] sm:$0xff] %vm1533, %v1525
      %1559 = vst.msk [vmem:[%s175 + $0xc8] sm:$0xff] %vm1533, %v1526
      %1560 = vst.msk [vmem:[%s175 + $0xd0] sm:$0xff] %vm1533, %v1527
      %1561 = vst.msk [vmem:[%s175 + $0xd8] sm:$0xff] %vm1533, %v1528
      %1562 = vst.msk [vmem:[%s175 + $0xe0] sm:$0xff] %vm1533, %v1529
      %1563 = vst.msk [vmem:[%s175 + $0xe8] sm:$0xff] %vm1533, %v1530
      %1564 = vst.msk [vmem:[%s175 + $0xf0] sm:$0xff] %vm1533, %v1531
      %1565 = vst.msk [vmem:[%s175 + $0xf8] sm:$0xff] %vm1533, %v1532
      %s1566 = smul.u32 32, %s14
      %p1567 = scmp.lt.s32.totalorder %s1566, 63
      %s1568 = scalar_select %p1567, %s1566, 63
      %s1569 = smul.addr %s1568, 8
      %s1570 = scalar_lea.vmem %s3, %s1569
      // Predicated region
      $region33: #{colorization_forward.26} parent=31 // pred_check
        %p1571 = pneg %p100
      $region34: #{colorization_forward.26} parent=31 // pred_check_branch
        %1573 = sbr.rel (%p1571) target = $region36
      $region35: #{colorization_forward.26} parent=31 // pred_region
        %s1574 = smul.u32 32, %s14
      $region36: #{colorization_forward.26} parent=31 // pred_fallthru
        _
    $region32: #{colorization_forward.26} parent=5 // pred_fallthru
      _
    %p1575 = scmp.le.s32.totalorder 2, %s9
    // Predicated region
    $region37: #{colorization_forward.26} parent=5 // pred_check
      %p1576 = pneg %p1575
    $region38: #{colorization_forward.26} parent=5 // pred_check_branch
      %1578 = sbr.rel (%p1576) target = $region40
    $region39: #{colorization_forward.26} parent=5 // pred_region
      %s1579 = ssub.s32 %s9, 2
      // Predicated region
      $region41: #{colorization_forward.26} parent=39 // pred_check
        %p1580 = pneg %p106
      $region42: #{colorization_forward.26} parent=39 // pred_check_branch
        %1582 = sbr.rel (%p1580) target = $region44
      $region43: #{colorization_forward.26} parent=39 // pred_region
        %s1583 = smul.u32 32, %s15
        %p1584 = scmp.lt.s32.totalorder %s1583, 63
        %s1585 = scalar_select %p1584, %s1583, 63
        %s1586 = smul.addr %s1585, 8
        %s1587 = scalar_lea.vmem %s3, %s1586
      $region44: #{colorization_forward.26} parent=39 // pred_fallthru
        _
    $region40: #{colorization_forward.26} parent=5 // pred_fallthru
      _
  $region6: #{colorization_forward.26} parent=0 // loop_footer
    %s13 = sadd.s32 1, %s9
  $region7: #{colorization_forward.26} parent=0 // loop_footer_branch
    %8 = sbr.rel target = $region3
  $region8: #{colorization_forward.26} parent=0 // loop_exit
    _

// kernel: colorization_forward.27
$region0: #{colorization_forward.27}
  #allocation0 [shape = 'u32[]', space=smem, size = 0x4, offset = 0x4, fixed_abs, tag = 'smem constant byte address 0x4 - core index']
  #allocation1 [shape = 'u32[144,128]{1,0:T(1,128)}', space=vmem, size = 0x12000, scoped, tag = 'internal scratch']
  %s0 = inlined_call_operand.vmem [shape: bf16[512,288], index: 0, kind: input, shape index: {}]
  %s1 = inlined_call_operand.vmem [shape: bf16[288,2], index: 1, kind: input, shape index: {}]
  %s2 = inlined_call_operand.vmem [shape: f32[1,2], index: 2, kind: input, shape index: {}]
  %s3 = inlined_call_operand.vmem [shape: f32[512,2], index: 3, kind: output, shape index: {}]
  %s4 = sld [smem:[#allocation0]]
  $region45: #{colorization_forward.27} parent=0
    _
  %s6 = ssub.s32 1, %s4
  %s7 = scalar_select 0, %s6, %s4
  loop: start=0, step=1, limit=4
  $region2: #{colorization_forward.27} parent=0 // loop_pre_header
    _
  $region3: #{colorization_forward.27} parent=0 // loop_header
    %s9 = sphi 0, %s13
    %p10 = scmp.ge.s32.totalorder %s9, 4
    %s19 = sphi 0, %s21
    %s22 = sphi 0, %s19
    %s23 = sphi 0, %s22
    %s39 = sphi 0, %s23
    %s43 = sphi 0, %s43
    %s45 = sphi 0, %s43
    %s46 = sphi 0, %s45
    %s60 = sphi 0, %s46
    %s64 = sphi 0, %s64
    %s66 = sphi 0, %s64
    %s67 = sphi 0, %s66
    %s81 = sphi 0, %s67
    %s87 = sphi 0, %s89
    %s90 = sphi 0, %s87
    %s91 = sphi 0, %s90
    %s107 = sphi 0, %s91
  $region4: #{colorization_forward.27} parent=0 // loop_header_branch
    %12 = sbr.rel (%p10) target = $region8
  $region5: #{colorization_forward.27} parent=0 // loop_body
    %s14 = ssub.s32 %s9, 1
    %s15 = ssub.s32 %s9, 2
    %s16 = sadd.s32 %s9, 1
    %s17 = ssub.s32 %s9, %s16
    %p18 = scmp.eq.s32.totalorder %s17, 0
    %s20 = sadd.s32 %s19, 1
    %s21 = scalar_select %p18, %s19, %s20
    %p24 = pneg %p18
    %p25 = scmp.eq.s32.totalorder %s9, 1
    %p26 = por %p24, %p25
    %p27 = scmp.ne.s32.totalorder %s19, %s22
    %p28 = scmp.eq.s32.totalorder %s9, 0
    %p29 = por %p27, %p28
    %p30 = scmp.ne.s32.totalorder %s19, %s22
    %p31 = scmp.eq.s32.totalorder %s14, 1
    %p32 = por %p30, %p31
    %p33 = scmp.ne.s32.totalorder %s22, %s23
    %p34 = scmp.eq.s32.totalorder %s14, 0
    %p35 = por %p33, %p34
    %p36 = scmp.ne.s32.totalorder %s22, %s23
    %p37 = scmp.eq.s32.totalorder %s15, 1
    %p38 = por %p36, %p37
    %p40 = scmp.ne.s32.totalorder %s23, %s39
    %p41 = scmp.eq.s32.totalorder %s15, 0
    %p42 = por %p40, %p41
    %s44 = sadd.s32 %s43, 1
    %p47 = scmp.eq.s32.totalorder %s9, 1
    %p48 = scmp.ne.s32.totalorder %s43, %s45
    %p49 = scmp.eq.s32.totalorder %s9, 0
    %p50 = por %p48, %p49
    %p51 = scmp.ne.s32.totalorder %s43, %s45
    %p52 = scmp.eq.s32.totalorder %s14, 1
    %p53 = por %p51, %p52
    %p54 = scmp.ne.s32.totalorder %s45, %s46
    %p55 = scmp.eq.s32.totalorder %s14, 0
    %p56 = por %p54, %p55
    %p57 = scmp.ne.s32.totalorder %s45, %s46
    %p58 = scmp.eq.s32.totalorder %s15, 1
    %p59 = por %p57, %p58
    %p61 = scmp.ne.s32.totalorder %s46, %s60
    %p62 = scmp.eq.s32.totalorder %s15, 0
    %p63 = por %p61, %p62
    %s65 = sadd.s32 %s64, 1
    %p68 = scmp.eq.s32.totalorder %s9, 1
    %p69 = scmp.ne.s32.totalorder %s64, %s66
    %p70 = scmp.eq.s32.totalorder %s9, 0
    %p71 = por %p69, %p70
    %p72 = scmp.ne.s32.totalorder %s64, %s66
    %p73 = scmp.eq.s32.totalorder %s14, 1
    %p74 = por %p72, %p73
    %p75 = scmp.ne.s32.totalorder %s66, %s67
    %p76 = scmp.eq.s32.totalorder %s14, 0
    %p77 = por %p75, %p76
    %p78 = scmp.ne.s32.totalorder %s66, %s67
    %p79 = scmp.eq.s32.totalorder %s15, 1
    %p80 = por %p78, %p79
    %p82 = scmp.ne.s32.totalorder %s67, %s81
    %p83 = scmp.eq.s32.totalorder %s15, 0
    %p84 = por %p82, %p83
    %s85 = ssub.s32 %s9, %s16
    %p86 = scmp.eq.s32.totalorder %s85, 0
    %s88 = sadd.s32 %s87, 1
    %s89 = scalar_select %p86, %s87, %s88
    %p92 = pneg %p86
    %p93 = scmp.eq.s32.totalorder %s9, 1
    %p94 = por %p92, %p93
    %p95 = scmp.ne.s32.totalorder %s87, %s90
    %p96 = scmp.eq.s32.totalorder %s9, 0
    %p97 = por %p95, %p96
    %p98 = scmp.ne.s32.totalorder %s87, %s90
    %p99 = scmp.eq.s32.totalorder %s14, 1
    %p100 = por %p98, %p99
    %p101 = scmp.ne.s32.totalorder %s90, %s91
    %p102 = scmp.eq.s32.totalorder %s14, 0
    %p103 = por %p101, %p102
    %p104 = scmp.ne.s32.totalorder %s90, %s91
    %p105 = scmp.eq.s32.totalorder %s15, 1
    %p106 = por %p104, %p105
    %p108 = scmp.ne.s32.totalorder %s91, %s107
    %p109 = scmp.eq.s32.totalorder %s15, 0
    %p110 = por %p108, %p109
    %p111 = scmp.le.s32.totalorder 1, %s9
    %p112 = scmp.lt.s32.totalorder %s9, 3
    %p113 = pnand %p111, %p112
    %p114 = pneg %p113
    // Predicated region
    $region9: #{colorization_forward.27} parent=5 // pred_check
      _
    $region10: #{colorization_forward.27} parent=5 // pred_check_branch
      %116 = sbr.rel (%p113) target = $region12
    $region11: #{colorization_forward.27} parent=5 // pred_region
      %s117 = ssub.s32 %s9, 1
      // Predicated region
      $region13: #{colorization_forward.27} parent=11 // pred_check
        %p118 = pneg %p56
      $region14: #{colorization_forward.27} parent=11 // pred_check_branch
        %120 = sbr.rel (%p118) target = $region16
      $region15: #{colorization_forward.27} parent=11 // pred_region
        _
      $region16: #{colorization_forward.27} parent=11 // pred_fallthru
        _
      // Predicated region
      $region17: #{colorization_forward.27} parent=11 // pred_check
        %p121 = pneg %p77
      $region18: #{colorization_forward.27} parent=11 // pred_check_branch
        %123 = sbr.rel (%p121) target = $region20
      $region19: #{colorization_forward.27} parent=11 // pred_region
        _
      $region20: #{colorization_forward.27} parent=11 // pred_fallthru
        _
    $region12: #{colorization_forward.27} parent=5 // pred_fallthru
      _
    %p124 = scmp.lt.s32.totalorder %s9, 2
    // Predicated region
    $region21: #{colorization_forward.27} parent=5 // pred_check
      %p125 = pneg %p124
    $region22: #{colorization_forward.27} parent=5 // pred_check_branch
      %127 = sbr.rel (%p125) target = $region24
    $region23: #{colorization_forward.27} parent=5 // pred_region
      // Predicated region
      $region25: #{colorization_forward.27} parent=23 // pred_check
        %p128 = pneg %p29
      $region26: #{colorization_forward.27} parent=23 // pred_check_branch
        %130 = sbr.rel (%p128) target = $region28
      $region27: #{colorization_forward.27} parent=23 // pred_region
        %s131 = smul.u32 32, %s9
        %p132 = scmp.lt.s32.totalorder %s131, 63
        %s133 = scalar_select %p132, %s131, 63
        %s134 = smul.addr %s133, 3
        %s135 = smul.addr %s134, 4
        %s136 = scalar_lea.vmem %s0, %s135
        %s137 = smul.u32 32, %s9
      $region28: #{colorization_forward.27} parent=23 // pred_fallthru
        _
    $region24: #{colorization_forward.27} parent=5 // pred_fallthru
      _
    %p138 = scmp.le.s32.totalorder 1, %s9
    %p139 = scmp.lt.s32.totalorder %s9, 3
    %p140 = pnand %p138, %p139
    %p141 = pneg %p140
    // Predicated region
    $region29: #{colorization_forward.27} parent=5 // pred_check
      _
    $region30: #{colorization_forward.27} parent=5 // pred_check_branch
      %143 = sbr.rel (%p140) target = $region32
    $region31: #{colorization_forward.27} parent=5 // pred_region
      %s144 = ssub.s32 %s9, 1
      %s145 = smul.u32 32, %s14
      %p146 = scmp.lt.s32.totalorder %s145, 63
      %s147 = scalar_select %p146, %s145, 63
      %s148 = smul.addr %s147, 3
      %s149 = smul.addr %s148, 4
      %s150 = scalar_lea.vmem %s0, %s149
      %p151 = pneg %p35
      %p152 = pneg %p32
      %p153 = pneg %p56
      %p154 = pneg %p53
      %p155 = pneg %p77
      %p156 = pneg %p74
      %p157 = pneg %p103
      %p158 = pneg %p100
      %s159 = smul.u32 32, %s14
      %p160 = scmp.lt.s32.totalorder %s159, 63
      %s161 = scalar_select %p160, %s159, 63
      %s162 = smul.addr %s161, 8
      %s163 = scalar_lea.vmem %s3, %s162
      %s164 = smul.u32 32, %s14
      %p165 = scmp.lt.s32.totalorder %s164, 63
      %s166 = scalar_select %p165, %s164, 63
      %s167 = smul.addr %s166, 3
      %s168 = smul.addr %s167, 4
      %s169 = scalar_lea.vmem %s0, %s168
      %s170 = smul.u32 32, %s14
      %s171 = smul.u32 32, %s14
      %p172 = scmp.lt.s32.totalorder %s171, 63
      %s173 = scalar_select %p172, %s171, 63
      %s174 = smul.addr %s173, 8
      %s175 = scalar_lea.vmem %s3, %s174
      %s176 = smul.u32 32, %s14
      %v178 = vld [vmem:[%s169] sm:$0xff]
      %v179 = vld [vmem:[%s169 + $0x8] sm:$0xf]
      %v180 = vld [vmem:[%s169 + $0xc] sm:$0xff]
      %v181 = vld [vmem:[%s169 + $0x14] sm:$0xf]
      %v182 = vld [vmem:[%s169 + $0x18] sm:$0xff]
      %v183 = vld [vmem:[%s169 + $0x20] sm:$0xf]
      %v184 = vld [vmem:[%s169 + $0x24] sm:$0xff]
      %v185 = vld [vmem:[%s169 + $0x2c] sm:$0xf]
      %v186 = vld [vmem:[%s169 + $0x30] sm:$0xff]
      %v187 = vld [vmem:[%s169 + $0x38] sm:$0xf]
      %v188 = vld [vmem:[%s169 + $0x3c] sm:$0xff]
      %v189 = vld [vmem:[%s169 + $0x44] sm:$0xf]
      %v190 = vld [vmem:[%s169 + $0x48] sm:$0xff]
      %v191 = vld [vmem:[%s169 + $0x50] sm:$0xf]
      %v192 = vld [vmem:[%s169 + $0x54] sm:$0xff]
      %v193 = vld [vmem:[%s169 + $0x5c] sm:$0xf]
      %v194 = vld [vmem:[%s169 + $0x60] sm:$0xff]
      %v195 = vld [vmem:[%s169 + $0x68] sm:$0xf]
      %v196 = vld [vmem:[%s169 + $0x6c] sm:$0xff]
      %v197 = vld [vmem:[%s169 + $0x74] sm:$0xf]
      %v198 = vld [vmem:[%s169 + $0x78] sm:$0xff]
      %v199 = vld [vmem:[%s169 + $0x80] sm:$0xf]
      %v200 = vld [vmem:[%s169 + $0x84] sm:$0xff]
      %v201 = vld [vmem:[%s169 + $0x8c] sm:$0xf]
      %v202 = vld [vmem:[%s169 + $0x90] sm:$0xff]
      %v203 = vld [vmem:[%s169 + $0x98] sm:$0xf]
      %v204 = vld [vmem:[%s169 + $0x9c] sm:$0xff]
      %v205 = vld [vmem:[%s169 + $0xa4] sm:$0xf]
      %v206 = vld [vmem:[%s169 + $0xa8] sm:$0xff]
      %v207 = vld [vmem:[%s169 + $0xb0] sm:$0xf]
      %v208 = vld [vmem:[%s169 + $0xb4] sm:$0xff]
      %v209 = vld [vmem:[%s169 + $0xbc] sm:$0xf]
      %v210 = vld [vmem:[%s169 + $0xc0] sm:$0xff]
      %v211 = vld [vmem:[%s169 + $0xc8] sm:$0xf]
      %v212 = vld [vmem:[%s169 + $0xcc] sm:$0xff]
      %v213 = vld [vmem:[%s169 + $0xd4] sm:$0xf]
      %v214 = vld [vmem:[%s169 + $0xd8] sm:$0xff]
      %v215 = vld [vmem:[%s169 + $0xe0] sm:$0xf]
      %v216 = vld [vmem:[%s169 + $0xe4] sm:$0xff]
      %v217 = vld [vmem:[%s169 + $0xec] sm:$0xf]
      %v218 = vld [vmem:[%s169 + $0xf0] sm:$0xff]
      %v219 = vld [vmem:[%s169 + $0xf8] sm:$0xf]
      %v220 = vld [vmem:[%s169 + $0xfc] sm:$0xff]
      %v221 = vld [vmem:[%s169 + $0x104] sm:$0xf]
      %v222 = vld [vmem:[%s169 + $0x108] sm:$0xff]
      %v223 = vld [vmem:[%s169 + $0x110] sm:$0xf]
      %v224 = vld [vmem:[%s169 + $0x114] sm:$0xff]
      %v225 = vld [vmem:[%s169 + $0x11c] sm:$0xf]
      %v226 = vld [vmem:[%s169 + $0x120] sm:$0xff]
      %v227 = vld [vmem:[%s169 + $0x128] sm:$0xf]
      %v228 = vld [vmem:[%s169 + $0x12c] sm:$0xff]
      %v229 = vld [vmem:[%s169 + $0x134] sm:$0xf]
      %v230 = vld [vmem:[%s169 + $0x138] sm:$0xff]
      %v231 = vld [vmem:[%s169 + $0x140] sm:$0xf]
      %v232 = vld [vmem:[%s169 + $0x144] sm:$0xff]
      %v233 = vld [vmem:[%s169 + $0x14c] sm:$0xf]
      %v234 = vld [vmem:[%s169 + $0x150] sm:$0xff]
      %v235 = vld [vmem:[%s169 + $0x158] sm:$0xf]
      %v236 = vld [vmem:[%s169 + $0x15c] sm:$0xff]
      %v237 = vld [vmem:[%s169 + $0x164] sm:$0xf]
      %v238 = vld [vmem:[%s169 + $0x168] sm:$0xff]
      %v239 = vld [vmem:[%s169 + $0x170] sm:$0xf]
      %v240 = vld [vmem:[%s169 + $0x174] sm:$0xff]
      %v241 = vld [vmem:[%s169 + $0x17c] sm:$0xf]
      %v242 = vld [vmem:[%s1] sm:$0xf]
      %v243 = vld [vmem:[%s1 + $0x4] sm:$0xf]
      %v244 = vld [vmem:[%s1 + $0x8] sm:$0xf]
      %v245 = vld [vmem:[%s1 + $0xc] sm:$0xf]
      %v246 = vld [vmem:[%s1 + $0x10] sm:$0xf]
      %v247 = vld [vmem:[%s1 + $0x14] sm:$0xf]
      %v248 = vld [vmem:[%s1 + $0x18] sm:$0xf]
      %v249 = vld [vmem:[%s1 + $0x1c] sm:$0xf]
      %v250 = vld [vmem:[%s1 + $0x20] sm:$0xf]
      %v251 = vld [vmem:[%s1 + $0x24] sm:$0xf]
      %v252 = vld [vmem:[%s1 + $0x28] sm:$0xf]
      %v253 = vld [vmem:[%s1 + $0x2c] sm:$0xf]
      %v254 = vld [vmem:[%s1 + $0x30] sm:$0xf]
      %v255 = vld [vmem:[%s1 + $0x34] sm:$0xf]
      %v256 = vld [vmem:[%s1 + $0x38] sm:$0xf]
      %v257 = vld [vmem:[%s1 + $0x3c] sm:$0xf]
      %v258 = vld [vmem:[%s1 + $0x40] sm:$0xf]
      %v259 = vld [vmem:[%s1 + $0x44] sm:$0xf]
      %v260 = vld [vmem:[%s1 + $0x48] sm:$0xf]
      %v261 = vld [vmem:[%s1 + $0x4c] sm:$0xf]
      %v262 = vld [vmem:[%s1 + $0x50] sm:$0xf]
      %v263 = vld [vmem:[%s1 + $0x54] sm:$0xf]
      %v264 = vld [vmem:[%s1 + $0x58] sm:$0xf]
      %v265 = vld [vmem:[%s1 + $0x5c] sm:$0xf]
      %v266 = vld [vmem:[%s1 + $0x60] sm:$0xf]
      %v267 = vld [vmem:[%s1 + $0x64] sm:$0xf]
      %v268 = vld [vmem:[%s1 + $0x68] sm:$0xf]
      %v269 = vld [vmem:[%s1 + $0x6c] sm:$0xf]
      %v270 = vld [vmem:[%s1 + $0x70] sm:$0xf]
      %v271 = vld [vmem:[%s1 + $0x74] sm:$0xf]
      %v272 = vld [vmem:[%s1 + $0x78] sm:$0xf]
      %v273 = vld [vmem:[%s1 + $0x7c] sm:$0xf]
      %v274 = vld [vmem:[%s1 + $0x80] sm:$0xf]
      %v275 = vld [vmem:[%s1 + $0x84] sm:$0xf]
      %v276 = vld [vmem:[%s1 + $0x88] sm:$0xf]
      %v277 = vld [vmem:[%s1 + $0x8c] sm:$0xf]
      %v278 = vld [vmem:[%s2] sm:$0x1]
      %v280 = vlaneseq
      %v281 = vshrl.u32 %v280, 7
      %v282 = vsub.s32 0, %v281
      %v283 = vrot.slane %v278, %v282
      %v349 = vunpack.c.l.b16 %v178
      %v350 = vunpack.c.h.b16 %v178
      %v351 = vunpack.c.l.b16 %v179
      %v352 = vunpack.c.l.b16 %v180
      %v353 = vunpack.c.h.b16 %v180
      %v354 = vunpack.c.l.b16 %v181
      %v355 = vunpack.c.l.b16 %v182
      %v356 = vunpack.c.h.b16 %v182
      %v357 = vunpack.c.l.b16 %v183
      %v358 = vunpack.c.l.b16 %v184
      %v359 = vunpack.c.h.b16 %v184
      %v360 = vunpack.c.l.b16 %v185
      %v361 = vunpack.c.l.b16 %v186
      %v362 = vunpack.c.h.b16 %v186
      %v363 = vunpack.c.l.b16 %v187
      %v364 = vunpack.c.l.b16 %v188
      %v365 = vunpack.c.h.b16 %v188
      %v366 = vunpack.c.l.b16 %v189
      %v367 = vunpack.c.l.b16 %v190
      %v368 = vunpack.c.h.b16 %v190
      %v369 = vunpack.c.l.b16 %v191
      %v370 = vunpack.c.l.b16 %v192
      %v371 = vunpack.c.h.b16 %v192
      %v372 = vunpack.c.l.b16 %v193
      %v373 = vunpack.c.l.b16 %v194
      %v374 = vunpack.c.h.b16 %v194
      %v375 = vunpack.c.l.b16 %v195
      %v376 = vunpack.c.l.b16 %v196
      %v377 = vunpack.c.h.b16 %v196
      %v378 = vunpack.c.l.b16 %v197
      %v379 = vunpack.c.l.b16 %v198
      %v380 = vunpack.c.h.b16 %v198
      %v381 = vunpack.c.l.b16 %v199
      %v382 = vunpack.c.l.b16 %v200
      %v383 = vunpack.c.h.b16 %v200
      %v384 = vunpack.c.l.b16 %v201
      %v385 = vunpack.c.l.b16 %v202
      %v386 = vunpack.c.h.b16 %v202
      %v387 = vunpack.c.l.b16 %v203
      %v388 = vunpack.c.l.b16 %v204
      %v389 = vunpack.c.h.b16 %v204
      %v390 = vunpack.c.l.b16 %v205
      %v391 = vunpack.c.l.b16 %v206
      %v392 = vunpack.c.h.b16 %v206
      %v393 = vunpack.c.l.b16 %v207
      %v394 = vunpack.c.l.b16 %v208
      %v395 = vunpack.c.h.b16 %v208
      %v396 = vunpack.c.l.b16 %v209
      %v397 = vunpack.c.l.b16 %v210
      %v398 = vunpack.c.h.b16 %v210
      %v399 = vunpack.c.l.b16 %v211
      %v400 = vunpack.c.l.b16 %v212
      %v401 = vunpack.c.h.b16 %v212
      %v402 = vunpack.c.l.b16 %v213
      %v403 = vunpack.c.l.b16 %v214
      %v404 = vunpack.c.h.b16 %v214
      %v405 = vunpack.c.l.b16 %v215
      %v406 = vunpack.c.l.b16 %v216
      %v407 = vunpack.c.h.b16 %v216
      %v408 = vunpack.c.l.b16 %v217
      %v409 = vunpack.c.l.b16 %v218
      %v410 = vunpack.c.h.b16 %v218
      %v411 = vunpack.c.l.b16 %v219
      %v412 = vunpack.c.l.b16 %v220
      %v413 = vunpack.c.h.b16 %v220
      %v414 = vunpack.c.l.b16 %v221
      %v415 = vunpack.c.l.b16 %v222
      %v416 = vunpack.c.h.b16 %v222
      %v417 = vunpack.c.l.b16 %v223
      %v418 = vunpack.c.l.b16 %v224
      %v419 = vunpack.c.h.b16 %v224
      %v420 = vunpack.c.l.b16 %v225
      %v421 = vunpack.c.l.b16 %v226
      %v422 = vunpack.c.h.b16 %v226
      %v423 = vunpack.c.l.b16 %v227
      %v424 = vunpack.c.l.b16 %v228
      %v425 = vunpack.c.h.b16 %v228
      %v426 = vunpack.c.l.b16 %v229
      %v427 = vunpack.c.l.b16 %v230
      %v428 = vunpack.c.h.b16 %v230
      %v429 = vunpack.c.l.b16 %v231
      %v430 = vunpack.c.l.b16 %v232
      %v431 = vunpack.c.h.b16 %v232
      %v432 = vunpack.c.l.b16 %v233
      %v433 = vunpack.c.l.b16 %v234
      %v434 = vunpack.c.h.b16 %v234
      %v435 = vunpack.c.l.b16 %v235
      %v436 = vunpack.c.l.b16 %v236
      %v437 = vunpack.c.h.b16 %v236
      %v438 = vunpack.c.l.b16 %v237
      %v439 = vunpack.c.l.b16 %v238
      %v440 = vunpack.c.h.b16 %v238
      %v441 = vunpack.c.l.b16 %v239
      %v442 = vunpack.c.l.b16 %v240
      %v443 = vunpack.c.h.b16 %v240
      %v444 = vunpack.c.l.b16 %v241
      %v445 = vpack.c.b16 %v352, %v349
      %v446 = vpack.c.b16 %v353, %v350
      %v447 = vpack.c.b16 %v354, %v351
      %v448 = vpack.c.b16 %v358, %v355
      %v449 = vpack.c.b16 %v359, %v356
      %v450 = vpack.c.b16 %v360, %v357
      %v451 = vpack.c.b16 %v364, %v361
      %v452 = vpack.c.b16 %v365, %v362
      %v453 = vpack.c.b16 %v366, %v363
      %v454 = vpack.c.b16 %v370, %v367
      %v455 = vpack.c.b16 %v371, %v368
      %v456 = vpack.c.b16 %v372, %v369
      %v457 = vpack.c.b16 %v376, %v373
      %v458 = vpack.c.b16 %v377, %v374
      %v459 = vpack.c.b16 %v378, %v375
      %v460 = vpack.c.b16 %v382, %v379
      %v461 = vpack.c.b16 %v383, %v380
      %v462 = vpack.c.b16 %v384, %v381
      %v463 = vpack.c.b16 %v388, %v385
      %v464 = vpack.c.b16 %v389, %v386
      %v465 = vpack.c.b16 %v390, %v387
      %v466 = vpack.c.b16 %v394, %v391
      %v467 = vpack.c.b16 %v395, %v392
      %v468 = vpack.c.b16 %v396, %v393
      %v469 = vpack.c.b16 %v400, %v397
      %v470 = vpack.c.b16 %v401, %v398
      %v471 = vpack.c.b16 %v402, %v399
      %v472 = vpack.c.b16 %v406, %v403
      %v473 = vpack.c.b16 %v407, %v404
      %v474 = vpack.c.b16 %v408, %v405
      %v475 = vpack.c.b16 %v412, %v409
      %v476 = vpack.c.b16 %v413, %v410
      %v477 = vpack.c.b16 %v414, %v411
      %v478 = vpack.c.b16 %v418, %v415
      %v479 = vpack.c.b16 %v419, %v416
      %v480 = vpack.c.b16 %v420, %v417
      %v481 = vpack.c.b16 %v424, %v421
      %v482 = vpack.c.b16 %v425, %v422
      %v483 = vpack.c.b16 %v426, %v423
      %v484 = vpack.c.b16 %v430, %v427
      %v485 = vpack.c.b16 %v431, %v428
      %v486 = vpack.c.b16 %v432, %v429
      %v487 = vpack.c.b16 %v436, %v433
      %v488 = vpack.c.b16 %v437, %v434
      %v489 = vpack.c.b16 %v438, %v435
      %v490 = vpack.c.b16 %v442, %v439
      %v491 = vpack.c.b16 %v443, %v440
      %v492 = vpack.c.b16 %v444, %v441
      %v561 = vunpack.c.l.b16 %v242
      %v562 = vunpack.c.l.b16 %v243
      %v563 = vunpack.c.l.b16 %v244
      %v564 = vunpack.c.l.b16 %v245
      %v565 = vunpack.c.l.b16 %v246
      %v566 = vunpack.c.l.b16 %v247
      %v567 = vunpack.c.l.b16 %v248
      %v568 = vunpack.c.l.b16 %v249
      %v569 = vunpack.c.l.b16 %v250
      %v570 = vunpack.c.l.b16 %v251
      %v571 = vunpack.c.l.b16 %v252
      %v572 = vunpack.c.l.b16 %v253
      %v573 = vunpack.c.l.b16 %v254
      %v574 = vunpack.c.l.b16 %v255
      %v575 = vunpack.c.l.b16 %v256
      %v576 = vunpack.c.l.b16 %v257
      %v577 = vunpack.c.l.b16 %v258
      %v578 = vunpack.c.l.b16 %v259
      %v579 = vunpack.c.l.b16 %v260
      %v580 = vunpack.c.l.b16 %v261
      %v581 = vunpack.c.l.b16 %v262
      %v582 = vunpack.c.l.b16 %v263
      %v583 = vunpack.c.l.b16 %v264
      %v584 = vunpack.c.l.b16 %v265
      %v585 = vunpack.c.l.b16 %v266
      %v586 = vunpack.c.l.b16 %v267
      %v587 = vunpack.c.l.b16 %v268
      %v588 = vunpack.c.l.b16 %v269
      %v589 = vunpack.c.l.b16 %v270
      %v590 = vunpack.c.l.b16 %v271
      %v591 = vunpack.c.l.b16 %v272
      %v592 = vunpack.c.l.b16 %v273
      %v593 = vunpack.c.l.b16 %v274
      %v594 = vunpack.c.l.b16 %v275
      %v595 = vunpack.c.l.b16 %v276
      %v596 = vunpack.c.l.b16 %v277
      %v597 = vpack.c.b16 %v562, %v561
      %v598 = vpack.c.b16 %v564, %v563
      %v599 = vpack.c.b16 %v566, %v565
      %v600 = vpack.c.b16 %v568, %v567
      %v601 = vpack.c.b16 %v570, %v569
      %v602 = vpack.c.b16 %v572, %v571
      %v603 = vpack.c.b16 %v574, %v573
      %v604 = vpack.c.b16 %v576, %v575
      %v605 = vpack.c.b16 %v578, %v577
      %v606 = vpack.c.b16 %v580, %v579
      %v607 = vpack.c.b16 %v582, %v581
      %v608 = vpack.c.b16 %v584, %v583
      %v609 = vpack.c.b16 %v586, %v585
      %v610 = vpack.c.b16 %v588, %v587
      %v611 = vpack.c.b16 %v590, %v589
      %v612 = vpack.c.b16 %v592, %v591
      %v613 = vpack.c.b16 %v594, %v593
      %v614 = vpack.c.b16 %v596, %v595
      %vm633 = vcmask 261120
      %v635 = vsel %vm633, %v447, 0
      %v638 = vsel %vm633, %v450, 0
      %v641 = vsel %vm633, %v453, 0
      %v644 = vsel %vm633, %v456, 0
      %v647 = vsel %vm633, %v459, 0
      %v650 = vsel %vm633, %v462, 0
      %v653 = vsel %vm633, %v465, 0
      %v656 = vsel %vm633, %v468, 0
      %v659 = vsel %vm633, %v471, 0
      %v662 = vsel %vm633, %v474, 0
      %v665 = vsel %vm633, %v477, 0
      %v668 = vsel %vm633, %v480, 0
      %v671 = vsel %vm633, %v483, 0
      %v674 = vsel %vm633, %v486, 0
      %v677 = vsel %vm633, %v489, 0
      %v680 = vsel %vm633, %v492, 0
      %682 = vmatprep.subr.bf16.mxu0 0
      %683 = vmatpush1.bf16.msra.mxu0 %v597
      %684 = vmatprep.subr.bf16.mxu0 0
      %685 = vmatpush1.bf16.msra.mxu0 %v598
      %686 = vmatprep.subr.bf16.mxu0 0
      %687 = vmatpush1.bf16.msra.mxu0 %v599
      %688 = vmatprep.subr.bf16.mxu0 0
      %689 = vmatpush1.bf16.msra.mxu0 %v600
      %690 = vmatprep.subr.bf16.mxu0 0
      %691 = vmatpush1.bf16.msra.mxu0 %v601
      %692 = vmatprep.subr.bf16.mxu0 0
      %693 = vmatpush1.bf16.msra.mxu0 %v602
      %694 = vmatprep.subr.bf16.mxu0 0
      %695 = vmatpush1.bf16.msra.mxu0 %v603
      %696 = vmatprep.subr.bf16.mxu0 0
      %697 = vmatpush1.bf16.msra.mxu0 %v604
      %698 = vmatprep.subr.bf16.mxu0 0
      %699 = vmatpush1.bf16.msra.mxu0 %v605
      %700 = vmatprep.subr.bf16.mxu0 0
      %701 = vmatpush1.bf16.msra.mxu0 %v606
      %702 = vmatprep.subr.bf16.mxu0 0
      %703 = vmatpush1.bf16.msra.mxu0 %v607
      %704 = vmatprep.subr.bf16.mxu0 0
      %705 = vmatpush1.bf16.msra.mxu0 %v608
      %706 = vmatprep.subr.bf16.mxu0 0
      %707 = vmatpush1.bf16.msra.mxu0 %v609
      %708 = vmatprep.subr.bf16.mxu0 0
      %709 = vmatpush1.bf16.msra.mxu0 %v610
      %710 = vmatprep.subr.bf16.mxu0 0
      %711 = vmatpush1.bf16.msra.mxu0 %v611
      %712 = vmatprep.subr.bf16.mxu0 0
      %713 = vmatpush1.bf16.msra.mxu0 %v612
      %714 = vmatprep.mubr.bf16.mxu0 %v446
      %715 = vmatmul.mubr.bf16.gmra.mrb[0].mxu0 %v445
      %v716 = vpop.f32.mrb[0].mxu0
      %v717 = vadd.f32 %v283, %v716
      %v718 = vpop.f32.mrb[0].mxu0
      %v719 = vpop.f32.mrb[0].mxu0
      %v720 = vadd.f32 %v283, %v719
      %v721 = vpop.f32.mrb[0].mxu0
      %722 = vmatprep.mubr.bf16.mxu0 %v449
      %723 = vmatmul.mubr.bf16.gmra.mrb[0].mxu0 %v448
      %v724 = vpop.f32.mrb[0].mxu0
      %v725 = vadd.f32 %v283, %v724
      %v726 = vpop.f32.mrb[0].mxu0
      %v727 = vpop.f32.mrb[0].mxu0
      %v728 = vadd.f32 %v283, %v727
      %v729 = vpop.f32.mrb[0].mxu0
      %730 = vmatprep.mubr.bf16.mxu0 %v452
      %731 = vmatmul.mubr.bf16.gmra.mrb[0].mxu0 %v451
      %v732 = vpop.f32.mrb[0].mxu0
      %v733 = vadd.f32 %v283, %v732
      %v734 = vpop.f32.mrb[0].mxu0
      %v735 = vpop.f32.mrb[0].mxu0
      %v736 = vadd.f32 %v283, %v735
      %v737 = vpop.f32.mrb[0].mxu0
      %738 = vmatprep.mubr.bf16.mxu0 %v455
      %739 = vmatmul.mubr.bf16.gmra.mrb[0].mxu0 %v454
      %v740 = vpop.f32.mrb[0].mxu0
      %v741 = vadd.f32 %v283, %v740
      %v742 = vpop.f32.mrb[0].mxu0
      %v743 = vpop.f32.mrb[0].mxu0
      %v744 = vadd.f32 %v283, %v743
      %v745 = vpop.f32.mrb[0].mxu0
      %746 = vmatprep.mubr.bf16.mxu0 %v458
      %747 = vmatmul.mubr.bf16.gmra.mrb[0].mxu0 %v457
      %v748 = vpop.f32.mrb[0].mxu0
      %v749 = vadd.f32 %v283, %v748
      %v750 = vpop.f32.mrb[0].mxu0
      %v751 = vpop.f32.mrb[0].mxu0
      %v752 = vadd.f32 %v283, %v751
      %v753 = vpop.f32.mrb[0].mxu0
      %754 = vmatprep.mubr.bf16.mxu0 %v461
      %755 = vmatmul.mubr.bf16.gmra.mrb[0].mxu0 %v460
      %v756 = vpop.f32.mrb[0].mxu0
      %v757 = vadd.f32 %v283, %v756
      %v758 = vpop.f32.mrb[0].mxu0
      %v759 = vpop.f32.mrb[0].mxu0
      %v760 = vadd.f32 %v283, %v759
      %v761 = vpop.f32.mrb[0].mxu0
      %762 = vmatprep.mubr.bf16.mxu0 %v464
      %763 = vmatmul.mubr.bf16.gmra.mrb[0].mxu0 %v463
      %v764 = vpop.f32.mrb[0].mxu0
      %v765 = vadd.f32 %v283, %v764
      %v766 = vpop.f32.mrb[0].mxu0
      %v767 = vpop.f32.mrb[0].mxu0
      %v768 = vadd.f32 %v283, %v767
      %v769 = vpop.f32.mrb[0].mxu0
      %770 = vmatprep.mubr.bf16.mxu0 %v467
      %771 = vmatmul.mubr.bf16.gmra.mrb[0].mxu0 %v466
      %v772 = vpop.f32.mrb[0].mxu0
      %v773 = vadd.f32 %v283, %v772
      %v774 = vpop.f32.mrb[0].mxu0
      %v775 = vpop.f32.mrb[0].mxu0
      %v776 = vadd.f32 %v283, %v775
      %v777 = vpop.f32.mrb[0].mxu0
      %778 = vmatprep.mubr.bf16.mxu0 %v470
      %779 = vmatmul.mubr.bf16.gmra.mrb[0].mxu0 %v469
      %v780 = vpop.f32.mrb[0].mxu0
      %v781 = vadd.f32 %v283, %v780
      %v782 = vpop.f32.mrb[0].mxu0
      %v783 = vpop.f32.mrb[0].mxu0
      %v784 = vadd.f32 %v283, %v783
      %v785 = vpop.f32.mrb[0].mxu0
      %786 = vmatprep.mubr.bf16.mxu0 %v473
      %787 = vmatmul.mubr.bf16.gmra.mrb[0].mxu0 %v472
      %v788 = vpop.f32.mrb[0].mxu0
      %v789 = vadd.f32 %v283, %v788
      %v790 = vpop.f32.mrb[0].mxu0
      %v791 = vpop.f32.mrb[0].mxu0
      %v792 = vadd.f32 %v283, %v791
      %v793 = vpop.f32.mrb[0].mxu0
      %794 = vmatprep.mubr.bf16.mxu0 %v476
      %795 = vmatmul.mubr.bf16.gmra.mrb[0].mxu0 %v475
      %v796 = vpop.f32.mrb[0].mxu0
      %v797 = vadd.f32 %v283, %v796
      %v798 = vpop.f32.mrb[0].mxu0
      %v799 = vpop.f32.mrb[0].mxu0
      %v800 = vadd.f32 %v283, %v799
      %v801 = vpop.f32.mrb[0].mxu0
      %802 = vmatprep.mubr.bf16.mxu0 %v479
      %803 = vmatmul.mubr.bf16.gmra.mrb[0].mxu0 %v478
      %v804 = vpop.f32.mrb[0].mxu0
      %v805 = vadd.f32 %v283, %v804
      %v806 = vpop.f32.mrb[0].mxu0
      %v807 = vpop.f32.mrb[0].mxu0
      %v808 = vadd.f32 %v283, %v807
      %v809 = vpop.f32.mrb[0].mxu0
      %810 = vmatprep.mubr.bf16.mxu0 %v482
      %811 = vmatmul.mubr.bf16.gmra.mrb[0].mxu0 %v481
      %v812 = vpop.f32.mrb[0].mxu0
      %v813 = vadd.f32 %v283, %v812
      %v814 = vpop.f32.mrb[0].mxu0
      %v815 = vpop.f32.mrb[0].mxu0
      %v816 = vadd.f32 %v283, %v815
      %v817 = vpop.f32.mrb[0].mxu0
      %818 = vmatprep.mubr.bf16.mxu0 %v485
      %819 = vmatmul.mubr.bf16.gmra.mrb[0].mxu0 %v484
      %v820 = vpop.f32.mrb[0].mxu0
      %v821 = vadd.f32 %v283, %v820
      %v822 = vpop.f32.mrb[0].mxu0
      %v823 = vpop.f32.mrb[0].mxu0
      %v824 = vadd.f32 %v283, %v823
      %v825 = vpop.f32.mrb[0].mxu0
      %826 = vmatprep.mubr.bf16.mxu0 %v488
      %827 = vmatmul.mubr.bf16.gmra.mrb[0].mxu0 %v487
      %v828 = vpop.f32.mrb[0].mxu0
      %v829 = vadd.f32 %v283, %v828
      %v830 = vpop.f32.mrb[0].mxu0
      %v831 = vpop.f32.mrb[0].mxu0
      %v832 = vadd.f32 %v283, %v831
      %v833 = vpop.f32.mrb[0].mxu0
      %834 = vmatprep.mubr.bf16.mxu0 %v491
      %835 = vmatmul.mubr.bf16.gmra.mrb[0].mxu0 %v490
      %v836 = vpop.f32.mrb[0].mxu0
      %v837 = vadd.f32 %v283, %v836
      %v838 = vpop.f32.mrb[0].mxu0
      %v839 = vpop.f32.mrb[0].mxu0
      %v840 = vadd.f32 %v283, %v839
      %v841 = vpop.f32.mrb[0].mxu0
      %842 = vdwg.mxu0
      %843 = vmatprep.subr.bf16.mxu0 0
      %844 = vmatpush1.bf16.msra.mxu0 %v613
      %845 = vmatprep.subr.bf16.mxu0 0
      %846 = vmatpush1.bf16.msra.mxu0 %v614
      %847 = vmatprep.subr.bf16.mxu0 0
      %848 = vmatpush1.bf16.msra.mxu0 0
      %849 = vmatprep.subr.bf16.mxu0 0
      %850 = vmatpush1.bf16.msra.mxu0 0
      %851 = vmatprep.subr.bf16.mxu0 0
      %852 = vmatpush1.bf16.msra.mxu0 0
      %853 = vmatprep.subr.bf16.mxu0 0
      %854 = vmatpush1.bf16.msra.mxu0 0
      %855 = vmatprep.subr.bf16.mxu0 0
      %856 = vmatpush1.bf16.msra.mxu0 0
      %857 = vmatprep.subr.bf16.mxu0 0
      %858 = vmatpush1.bf16.msra.mxu0 0
      %859 = vmatprep.subr.bf16.mxu0 0
      %860 = vmatpush1.bf16.msra.mxu0 0
      %861 = vmatprep.subr.bf16.mxu0 0
      %862 = vmatpush1.bf16.msra.mxu0 0
      %863 = vmatprep.subr.bf16.mxu0 0
      %864 = vmatpush1.bf16.msra.mxu0 0
      %865 = vmatprep.subr.bf16.mxu0 0
      %866 = vmatpush1.bf16.msra.mxu0 0
      %867 = vmatprep.subr.bf16.mxu0 0
      %868 = vmatpush1.bf16.msra.mxu0 0
      %869 = vmatprep.subr.bf16.mxu0 0
      %870 = vmatpush1.bf16.msra.mxu0 0
      %871 = vmatprep.subr.bf16.mxu0 0
      %872 = vmatpush1.bf16.msra.mxu0 0
      %873 = vmatprep.subr.bf16.mxu0 0
      %874 = vmatpush1.bf16.msra.mxu0 0
      %875 = vmatprep.mubr.bf16.mxu0 0
      %876 = vmatmul.mubr.bf16.gmra.mrb[0].mxu0 %v635
      %v877 = vpop.f32.mrb[0].mxu0
      %v878 = vadd.f32 %v717, %v877
      %v879 = vpop.f32.mrb[0].mxu0
      %v880 = vpop.f32.mrb[0].mxu0
      %v881 = vadd.f32 %v720, %v880
      %v882 = vpop.f32.mrb[0].mxu0
      %883 = vmatprep.mubr.bf16.mxu0 0
      %884 = vmatmul.mubr.bf16.gmra.mrb[0].mxu0 %v638
      %v885 = vpop.f32.mrb[0].mxu0
      %v886 = vadd.f32 %v725, %v885
      %v887 = vpop.f32.mrb[0].mxu0
      %v888 = vpop.f32.mrb[0].mxu0
      %v889 = vadd.f32 %v728, %v888
      %v890 = vpop.f32.mrb[0].mxu0
      %891 = vmatprep.mubr.bf16.mxu0 0
      %892 = vmatmul.mubr.bf16.gmra.mrb[0].mxu0 %v641
      %v893 = vpop.f32.mrb[0].mxu0
      %v894 = vadd.f32 %v733, %v893
      %v895 = vpop.f32.mrb[0].mxu0
      %v896 = vpop.f32.mrb[0].mxu0
      %v897 = vadd.f32 %v736, %v896
      %v898 = vpop.f32.mrb[0].mxu0
      %899 = vmatprep.mubr.bf16.mxu0 0
      %900 = vmatmul.mubr.bf16.gmra.mrb[0].mxu0 %v644
      %v901 = vpop.f32.mrb[0].mxu0
      %v902 = vadd.f32 %v741, %v901
      %v903 = vpop.f32.mrb[0].mxu0
      %v904 = vpop.f32.mrb[0].mxu0
      %v905 = vadd.f32 %v744, %v904
      %v906 = vpop.f32.mrb[0].mxu0
      %907 = vmatprep.mubr.bf16.mxu0 0
      %908 = vmatmul.mubr.bf16.gmra.mrb[0].mxu0 %v647
      %v909 = vpop.f32.mrb[0].mxu0
      %v910 = vadd.f32 %v749, %v909
      %v911 = vpop.f32.mrb[0].mxu0
      %v912 = vpop.f32.mrb[0].mxu0
      %v913 = vadd.f32 %v752, %v912
      %v914 = vpop.f32.mrb[0].mxu0
      %915 = vmatprep.mubr.bf16.mxu0 0
      %916 = vmatmul.mubr.bf16.gmra.mrb[0].mxu0 %v650
      %v917 = vpop.f32.mrb[0].mxu0
      %v918 = vadd.f32 %v757, %v917
      %v919 = vpop.f32.mrb[0].mxu0
      %v920 = vpop.f32.mrb[0].mxu0
      %v921 = vadd.f32 %v760, %v920
      %v922 = vpop.f32.mrb[0].mxu0
      %923 = vmatprep.mubr.bf16.mxu0 0
      %924 = vmatmul.mubr.bf16.gmra.mrb[0].mxu0 %v653
      %v925 = vpop.f32.mrb[0].mxu0
      %v926 = vadd.f32 %v765, %v925
      %v927 = vpop.f32.mrb[0].mxu0
      %v928 = vpop.f32.mrb[0].mxu0
      %v929 = vadd.f32 %v768, %v928
      %v930 = vpop.f32.mrb[0].mxu0
      %931 = vmatprep.mubr.bf16.mxu0 0
      %932 = vmatmul.mubr.bf16.gmra.mrb[0].mxu0 %v656
      %v933 = vpop.f32.mrb[0].mxu0
      %v934 = vadd.f32 %v773, %v933
      %v935 = vpop.f32.mrb[0].mxu0
      %v936 = vpop.f32.mrb[0].mxu0
      %v937 = vadd.f32 %v776, %v936
      %v938 = vpop.f32.mrb[0].mxu0
      %939 = vmatprep.mubr.bf16.mxu0 0
      %940 = vmatmul.mubr.bf16.gmra.mrb[0].mxu0 %v659
      %v941 = vpop.f32.mrb[0].mxu0
      %v942 = vadd.f32 %v781, %v941
      %v943 = vpop.f32.mrb[0].mxu0
      %v944 = vpop.f32.mrb[0].mxu0
      %v945 = vadd.f32 %v784, %v944
      %v946 = vpop.f32.mrb[0].mxu0
      %947 = vmatprep.mubr.bf16.mxu0 0
      %948 = vmatmul.mubr.bf16.gmra.mrb[0].mxu0 %v662
      %v949 = vpop.f32.mrb[0].mxu0
      %v950 = vadd.f32 %v789, %v949
      %v951 = vpop.f32.mrb[0].mxu0
      %v952 = vpop.f32.mrb[0].mxu0
      %v953 = vadd.f32 %v792, %v952
      %v954 = vpop.f32.mrb[0].mxu0
      %955 = vmatprep.mubr.bf16.mxu0 0
      %956 = vmatmul.mubr.bf16.gmra.mrb[0].mxu0 %v665
      %v957 = vpop.f32.mrb[0].mxu0
      %v958 = vadd.f32 %v797, %v957
      %v959 = vpop.f32.mrb[0].mxu0
      %v960 = vpop.f32.mrb[0].mxu0
      %v961 = vadd.f32 %v800, %v960
      %v962 = vpop.f32.mrb[0].mxu0
      %963 = vmatprep.mubr.bf16.mxu0 0
      %964 = vmatmul.mubr.bf16.gmra.mrb[0].mxu0 %v668
      %v965 = vpop.f32.mrb[0].mxu0
      %v966 = vadd.f32 %v805, %v965
      %v967 = vpop.f32.mrb[0].mxu0
      %v968 = vpop.f32.mrb[0].mxu0
      %v969 = vadd.f32 %v808, %v968
      %v970 = vpop.f32.mrb[0].mxu0
      %971 = vmatprep.mubr.bf16.mxu0 0
      %972 = vmatmul.mubr.bf16.gmra.mrb[0].mxu0 %v671
      %v973 = vpop.f32.mrb[0].mxu0
      %v974 = vadd.f32 %v813, %v973
      %v975 = vpop.f32.mrb[0].mxu0
      %v976 = vpop.f32.mrb[0].mxu0
      %v977 = vadd.f32 %v816, %v976
      %v978 = vpop.f32.mrb[0].mxu0
      %979 = vmatprep.mubr.bf16.mxu0 0
      %980 = vmatmul.mubr.bf16.gmra.mrb[0].mxu0 %v674
      %v981 = vpop.f32.mrb[0].mxu0
      %v982 = vadd.f32 %v821, %v981
      %v983 = vpop.f32.mrb[0].mxu0
      %v984 = vpop.f32.mrb[0].mxu0
      %v985 = vadd.f32 %v824, %v984
      %v986 = vpop.f32.mrb[0].mxu0
      %987 = vmatprep.mubr.bf16.mxu0 0
      %988 = vmatmul.mubr.bf16.gmra.mrb[0].mxu0 %v677
      %v989 = vpop.f32.mrb[0].mxu0
      %v990 = vadd.f32 %v829, %v989
      %v991 = vpop.f32.mrb[0].mxu0
      %v992 = vpop.f32.mrb[0].mxu0
      %v993 = vadd.f32 %v832, %v992
      %v994 = vpop.f32.mrb[0].mxu0
      %995 = vmatprep.mubr.bf16.mxu0 0
      %996 = vmatmul.mubr.bf16.gmra.mrb[0].mxu0 %v680
      %v997 = vpop.f32.mrb[0].mxu0
      %v998 = vadd.f32 %v837, %v997
      %v999 = vpop.f32.mrb[0].mxu0
      %v1000 = vpop.f32.mrb[0].mxu0
      %v1001 = vadd.f32 %v840, %v1000
      %v1002 = vpop.f32.mrb[0].mxu0
      %1003 = vdwg.mxu0
      %vm1004 = vcmask 15360
      %1005 = vst.msk [vmem:[%s175] sm:$0xff] %vm1004, %v878
      %1006 = vst.msk [vmem:[%s175 + $0x8] sm:$0xff] %vm1004, %v881
      %1007 = vst.msk [vmem:[%s175 + $0x10] sm:$0xff] %vm1004, %v886
      %1008 = vst.msk [vmem:[%s175 + $0x18] sm:$0xff] %vm1004, %v889
      %1009 = vst.msk [vmem:[%s175 + $0x20] sm:$0xff] %vm1004, %v894
      %1010 = vst.msk [vmem:[%s175 + $0x28] sm:$0xff] %vm1004, %v897
      %1011 = vst.msk [vmem:[%s175 + $0x30] sm:$0xff] %vm1004, %v902
      %1012 = vst.msk [vmem:[%s175 + $0x38] sm:$0xff] %vm1004, %v905
      %1013 = vst.msk [vmem:[%s175 + $0x40] sm:$0xff] %vm1004, %v910
      %1014 = vst.msk [vmem:[%s175 + $0x48] sm:$0xff] %vm1004, %v913
      %1015 = vst.msk [vmem:[%s175 + $0x50] sm:$0xff] %vm1004, %v918
      %1016 = vst.msk [vmem:[%s175 + $0x58] sm:$0xff] %vm1004, %v921
      %1017 = vst.msk [vmem:[%s175 + $0x60] sm:$0xff] %vm1004, %v926
      %1018 = vst.msk [vmem:[%s175 + $0x68] sm:$0xff] %vm1004, %v929
      %1019 = vst.msk [vmem:[%s175 + $0x70] sm:$0xff] %vm1004, %v934
      %1020 = vst.msk [vmem:[%s175 + $0x78] sm:$0xff] %vm1004, %v937
      %1021 = vst.msk [vmem:[%s175 + $0x80] sm:$0xff] %vm1004, %v942
      %1022 = vst.msk [vmem:[%s175 + $0x88] sm:$0xff] %vm1004, %v945
      %1023 = vst.msk [vmem:[%s175 + $0x90] sm:$0xff] %vm1004, %v950
      %1024 = vst.msk [vmem:[%s175 + $0x98] sm:$0xff] %vm1004, %v953
      %1025 = vst.msk [vmem:[%s175 + $0xa0] sm:$0xff] %vm1004, %v958
      %1026 = vst.msk [vmem:[%s175 + $0xa8] sm:$0xff] %vm1004, %v961
      %1027 = vst.msk [vmem:[%s175 + $0xb0] sm:$0xff] %vm1004, %v966
      %1028 = vst.msk [vmem:[%s175 + $0xb8] sm:$0xff] %vm1004, %v969
      %1029 = vst.msk [vmem:[%s175 + $0xc0] sm:$0xff] %vm1004, %v974
      %1030 = vst.msk [vmem:[%s175 + $0xc8] sm:$0xff] %vm1004, %v977
      %1031 = vst.msk [vmem:[%s175 + $0xd0] sm:$0xff] %vm1004, %v982
      %1032 = vst.msk [vmem:[%s175 + $0xd8] sm:$0xff] %vm1004, %v985
      %1033 = vst.msk [vmem:[%s175 + $0xe0] sm:$0xff] %vm1004, %v990
      %1034 = vst.msk [vmem:[%s175 + $0xe8] sm:$0xff] %vm1004, %v993
      %1035 = vst.msk [vmem:[%s175 + $0xf0] sm:$0xff] %vm1004, %v998
      %1036 = vst.msk [vmem:[%s175 + $0xf8] sm:$0xff] %vm1004, %v1001
      %s1037 = smul.u32 32, %s14
      %p1038 = scmp.lt.s32.totalorder %s1037, 63
      %s1039 = scalar_select %p1038, %s1037, 63
      %s1040 = smul.addr %s1039, 8
      %s1041 = scalar_lea.vmem %s3, %s1040
      // Predicated region
      $region33: #{colorization_forward.27} parent=31 // pred_check
        %p1042 = pneg %p100
      $region34: #{colorization_forward.27} parent=31 // pred_check_branch
        %1044 = sbr.rel (%p1042) target = $region36
      $region35: #{colorization_forward.27} parent=31 // pred_region
        %s1045 = smul.u32 32, %s14
      $region36: #{colorization_forward.27} parent=31 // pred_fallthru
        _
    $region32: #{colorization_forward.27} parent=5 // pred_fallthru
      _
    %p1046 = scmp.le.s32.totalorder 2, %s9
    // Predicated region
    $region37: #{colorization_forward.27} parent=5 // pred_check
      %p1047 = pneg %p1046
    $region38: #{colorization_forward.27} parent=5 // pred_check_branch
      %1049 = sbr.rel (%p1047) target = $region40
    $region39: #{colorization_forward.27} parent=5 // pred_region
      %s1050 = ssub.s32 %s9, 2
      // Predicated region
      $region41: #{colorization_forward.27} parent=39 // pred_check
        %p1051 = pneg %p106
      $region42: #{colorization_forward.27} parent=39 // pred_check_branch
        %1053 = sbr.rel (%p1051) target = $region44
      $region43: #{colorization_forward.27} parent=39 // pred_region
        %s1054 = smul.u32 32, %s15
        %p1055 = scmp.lt.s32.totalorder %s1054, 63
        %s1056 = scalar_select %p1055, %s1054, 63
        %s1057 = smul.addr %s1056, 8
        %s1058 = scalar_lea.vmem %s3, %s1057
      $region44: #{colorization_forward.27} parent=39 // pred_fallthru
        _
    $region40: #{colorization_forward.27} parent=5 // pred_fallthru
      _
  $region6: #{colorization_forward.27} parent=0 // loop_footer
    %s13 = sadd.s32 1, %s9
  $region7: #{colorization_forward.27} parent=0 // loop_footer_branch
    %8 = sbr.rel target = $region3
  $region8: #{colorization_forward.27} parent=0 // loop_exit
    _

</llo_original>
